<compile_context>
chip_gen: v6e
topology: v6e:2x2x1
jax: 0.10.0
libtpu: 0.0.40
codegen_flags: <defaults>
</compile_context>

<pallas_src>
import functools

import jax
import jax.numpy as jnp
from jax import lax
from jax.experimental import pallas as pl
from jax.experimental.pallas import tpu as pltpu


# ---------------------------------------------------------------------------
# small helpers
# ---------------------------------------------------------------------------
def _round_up(x, m):
    return (x + m - 1) // m * m


def _choose_tile_m(M, max_tile=512):
    """Row tile: whole (8-aligned) M for small problems, 512 rows otherwise."""
    tm = _round_up(M, 8) if M <= max_tile else max_tile
    return tm, _round_up(M, tm)


def _pad_rows(a, Mp):
    if a.shape[0] != Mp:
        a = jnp.pad(a, ((0, Mp - a.shape[0]), (0, 0)))
    return a


def _im2col(x, kh, kw):
    """x: NCHW -> (B*Ho*Wo, C*kh*kw) patches (PyTorch weight-flatten order)."""
    B, C, H, W = x.shape
    Ho, Wo = H - kh + 1, W - kw + 1
    cols = [x[:, :, i:i + Ho, j:j + Wo] for i in range(kh) for j in range(kw)]
    patches = jnp.stack(cols, axis=2)              # (B, C, kh*kw, Ho, Wo)
    patches = patches.transpose(0, 3, 4, 1, 2)     # (B, Ho, Wo, C, kh*kw)
    return patches.reshape(B * Ho * Wo, C * kh * kw), Ho, Wo


# ---------------------------------------------------------------------------
# Pallas kernels
# ---------------------------------------------------------------------------
def _conv_bias_stats_kernel(a_ref, w_ref, b_ref, z_ref, s_ref, ss_ref):
    """z = A @ W + b; per-column sum / sum-of-squares accumulated across the
    row (M) grid axis for training-mode BatchNorm statistics."""
    z = jnp.dot(a_ref[...], w_ref[...], preferred_element_type=jnp.float32)
    z = z + b_ref[...]
    z_ref[...] = z

    @pl.when(pl.program_id(1) == 0)                 # first M tile for this N tile
    def _():
        s_ref[...] = jnp.zeros_like(s_ref)
        ss_ref[...] = jnp.zeros_like(ss_ref)

    s_ref[...] += jnp.sum(z, axis=0, keepdims=True)
    ss_ref[...] += jnp.sum(z * z, axis=0, keepdims=True)


def _affine_relu_matmul_kernel(a_ref, sc_ref, sh_ref, w_ref, b_ref, o_ref):
    """out = relu(A * scale + shift) @ W + b  (BN affine + ReLU fused as the
    prologue).  W is bf16; accumulation is f32."""
    a = jnp.maximum(a_ref[...] * sc_ref[...] + sh_ref[...], 0.0)
    z = jnp.dot(a.astype(jnp.bfloat16), w_ref[...],
                preferred_element_type=jnp.float32)
    o_ref[...] = z + b_ref[...]


def _squash_last(x):
    nsq = jnp.sum(x * x, axis=-1, keepdims=True)
    return x * (nsq / (1.0 + nsq) / (jnp.sqrt(nsq) + 1e-8))


def _head_kernel(u_ref, wt_ref, w1_ref, b1_ref, w2_ref, b2_ref, w3_ref, b3_ref,
                 len_ref, recon_ref, *, routings):
    """Primary-capsule squash + dynamic routing + length/argmax mask + decoder
    MLP for all batch elements in one invocation.  in_num_caps (In) sits on
    the lane axis throughout the routing math."""
    Id, B, In = u_ref.shape
    _, O, Od, _ = wt_ref.shape

    # ---- PrimaryCapsule squash (norm over capsule dim Id = axis 0) ---------
    u = u_ref[...]                                   # (Id, B, In)
    nsq = jnp.sum(u * u, axis=0)                     # (B, In)
    scale = nsq / (1.0 + nsq) / (jnp.sqrt(nsq) + 1e-8)
    x = u * scale[None, :, :]                        # squashed caps (Id, B, In)

    # ---- x_hat[b, o, d, i] = sum_k W[o, i, d, k] * x[b, i, k] --------------
    wt = wt_ref[...]                                 # (Id, O, Od, In)
    xh = jnp.zeros((B, O, Od, In), jnp.float32)
    for k in range(Id):                              # static unroll, Id == 8
        xh = xh + wt[k][None, :, :, :] * x[k][:, None, None, :]

    # ---- dynamic routing (static unroll, routings == 3) --------------------
    b_log = jnp.zeros((B, O, In), jnp.float32)
    outputs = jnp.zeros((B, O, Od), jnp.float32)
    for r in range(routings):
        c = jax.nn.softmax(b_log, axis=1)            # softmax over out-capsules
        s = jnp.sum(c[:, :, None, :] * xh, axis=-1)  # (B, O, Od), lane reduce
        outputs = _squash_last(s)
        if r != routings - 1:
            b_log = b_log + jnp.sum(outputs[:, :, :, None] * xh, axis=2)

    caps = outputs                                   # (B, O, Od)
    length = jnp.sqrt(jnp.sum(caps * caps, axis=-1))  # (B, O)
    len_ref[...] = length

    # ---- mask by predicted class (y is None branch of the torch forward) ---
    iota_o = lax.broadcasted_iota(jnp.int32, (B, O), 1)
    mx = jnp.max(length, axis=1, keepdims=True)
    first = jnp.min(jnp.where(length >= mx, iota_o, O), axis=1, keepdims=True)
    y = (iota_o == first).astype(jnp.float32)        # one-hot of argmax (first)
    masked = caps * y[:, :, None]                    # (B, O, Od)

    # ---- decoder MLP (weights resident in VMEM; padded lanes carry zeros) --
    w1 = w1_ref[...]                                 # (O, Od, N1p)
    n1p = w1.shape[-1]
    acc = jnp.zeros((B, n1p), jnp.float32)
    for o in range(O):                               # static unroll, O = classes
        acc = acc + jnp.dot(masked[:, o, :], w1[o],
                            preferred_element_type=jnp.float32)
    d1 = jax.nn.sigmoid(acc + b1_ref[...])
    d2 = jax.nn.sigmoid(jnp.dot(d1, w2_ref[...],
                                preferred_element_type=jnp.float32) + b2_ref[...])
    recon_ref[...] = jnp.dot(d2, w3_ref[...],
                             preferred_element_type=jnp.float32) + b3_ref[...]


# ---------------------------------------------------------------------------
# Pallas wrappers
# ---------------------------------------------------------------------------
def conv_matmul_with_stats(a, w, b, tile_n=256):
    """Returns (A @ W + b, column-sum, column-sum-of-squares)."""
    M, K = a.shape
    N = w.shape[1]
    tn = tile_n if N % tile_n == 0 else N
    tm, Mp = _choose_tile_m(M)
    a_p = _pad_rows(a, Mp)
    z, colsum, colsumsq = pl.pallas_call(
        _conv_bias_stats_kernel,
        out_shape=(
            jax.ShapeDtypeStruct((Mp, N), jnp.float32),
            jax.ShapeDtypeStruct((1, N), jnp.float32),
            jax.ShapeDtypeStruct((1, N), jnp.float32),
        ),
        grid_spec=pltpu.PrefetchScalarGridSpec(
            num_scalar_prefetch=0,
            grid=(N // tn, Mp // tm),          # N outer (parallel), M inner
            in_specs=[
                pl.BlockSpec((tm, K), lambda j, i: (i, 0)),
                pl.BlockSpec((K, tn), lambda j, i: (0, j)),
                pl.BlockSpec((1, tn), lambda j, i: (0, j)),
            ],
            out_specs=[
                pl.BlockSpec((tm, tn), lambda j, i: (i, j)),
                pl.BlockSpec((1, tn), lambda j, i: (0, j)),   # accumulators
                pl.BlockSpec((1, tn), lambda j, i: (0, j)),   # (revisit over M)
            ],
        ),
        compiler_params=pltpu.CompilerParams(
            dimension_semantics=("parallel", "arbitrary")),
    )(a_p, w, b.reshape(1, N))
    return z[:M], colsum, colsumsq


def affine_relu_matmul(a, scale_cols, shift_cols, w_bf16, b, tile_n=256):
    """relu(a * scale + shift) @ W + b, tiled over (rows, output channels)."""
    M, K = a.shape
    N = w_bf16.shape[1]
    tn = tile_n if N % tile_n == 0 else N
    tm, Mp = _choose_tile_m(M)
    a_p = _pad_rows(a, Mp)
    out = pl.pallas_call(
        _affine_relu_matmul_kernel,
        out_shape=jax.ShapeDtypeStruct((Mp, N), jnp.float32),
        grid_spec=pltpu.PrefetchScalarGridSpec(
            num_scalar_prefetch=0,
            grid=(N // tn, Mp // tm),
            in_specs=[
                pl.BlockSpec((tm, K), lambda j, i: (i, 0)),
                pl.BlockSpec((1, K), lambda j, i: (0, 0)),
                pl.BlockSpec((1, K), lambda j, i: (0, 0)),
                pl.BlockSpec((K, tn), lambda j, i: (0, j)),
                pl.BlockSpec((1, tn), lambda j, i: (0, j)),
            ],
            out_specs=pl.BlockSpec((tm, tn), lambda j, i: (i, j)),
        ),
        compiler_params=pltpu.CompilerParams(
            dimension_semantics=("parallel", "parallel")),
    )(a_p, scale_cols, shift_cols, w_bf16, b.reshape(1, N))
    return out[:M]


def capsule_head(u_t, w_t, w1r, b1, w2, b2, w3, b3, routings):
    """Squash + routing + mask + decoder, single invocation, full blocks."""
    _, B, _ = u_t.shape
    _, O, _, _ = w_t.shape
    n_out = w3.shape[1]
    length, recon = pl.pallas_call(
        functools.partial(_head_kernel, routings=routings),
        out_shape=(jax.ShapeDtypeStruct((B, O), jnp.float32),
                   jax.ShapeDtypeStruct((B, n_out), jnp.float32)),
    )(u_t, w_t, w1r, b1, w2, b2, w3, b3)
    return length, recon


# ---------------------------------------------------------------------------
# parameters + full forward
# ---------------------------------------------------------------------------
def init_params(key, input_size, classes, outpatchdim):
    C, H, W = input_size
    ks = jax.random.split(key, 12)
    inplanes, indimcap = 256, 8
    in_num_caps = 32 * outpatchdim * outpatchdim
    d_in = (2 * indimcap) * classes
    p = {
        "conv1_w": 0.1 * jax.random.normal(ks[0], (inplanes, C, 3, 3), jnp.float32),
        "conv1_b": 0.1 * jax.random.normal(ks[1], (inplanes,), jnp.float32),
        "bn_gamma": jnp.ones((inplanes,), jnp.float32),
        "bn_beta": jnp.zeros((inplanes,), jnp.float32),
        "prim_w": 0.05 * jax.random.normal(ks[2], (inplanes, inplanes, 3, 3), jnp.float32),
        "prim_b": 0.05 * jax.random.normal(ks[3], (inplanes,), jnp.float32),
        "digit_w": 0.01 * jax.random.normal(
            ks[4], (classes, in_num_caps, 2 * indimcap, indimcap), jnp.float32),
        "dec1_w": jax.random.normal(ks[5], (d_in, 328), jnp.float32) / jnp.sqrt(d_in * 1.0),
        "dec1_b": 0.01 * jax.random.normal(ks[6], (328,), jnp.float32),
        "dec2_w": jax.random.normal(ks[7], (328, 192), jnp.float32) / jnp.sqrt(328.0),
        "dec2_b": 0.01 * jax.random.normal(ks[8], (192,), jnp.float32),
        "dec3_w": jax.random.normal(ks[9], (192, C * H * W), jnp.float32) / jnp.sqrt(192.0),
        "dec3_b": 0.01 * jax.random.normal(ks[10], (C * H * W,), jnp.float32),
    }
    return p


def capsule_net_forward(p, x, *, classes, routings, input_size):
    B = x.shape[0]
    C, H, W = input_size
    inplanes, indimcap = 256, 8
    eps = 1e-5

    # ---- conv1: Pallas matmul + BN batch statistics (single pass) ----------
    patches1, Ho, Wo = _im2col(x, 3, 3)                     # (B*Ho*Wo, C*9)
    w1 = p["conv1_w"].reshape(inplanes, -1).T               # (C*9, 256)
    z, colsum, colsumsq = conv_matmul_with_stats(patches1, w1, p["conv1_b"])
    m_rows = patches1.shape[0]
    mean = colsum / m_rows
    var = jnp.maximum(colsumsq / m_rows - mean * mean, 0.0)  # biased variance
    bn_scale = p["bn_gamma"].reshape(1, -1) * lax.rsqrt(var + eps)
    bn_shift = p["bn_beta"].reshape(1, -1) - mean * bn_scale

    # ---- PrimaryCapsule conv with BN affine + ReLU fused as prologue -------
    h_nchw = z.reshape(B, Ho, Wo, inplanes).transpose(0, 3, 1, 2)
    patches2, Ho2, Wo2 = _im2col(h_nchw, 3, 3)              # raw (pre-BN) patches
    # im2col column c*9 + t belongs to channel c -> per-column scale/shift
    sc_cols = jnp.repeat(bn_scale, 9, axis=1)               # (1, 2304)
    sh_cols = jnp.repeat(bn_shift, 9, axis=1)
    w2 = p["prim_w"].reshape(inplanes, -1).T.astype(jnp.bfloat16)   # (2304, 256)
    h2 = affine_relu_matmul(patches2, sc_cols, sh_cols, w2, p["prim_b"])

    # ---- re-layout primary caps so in_num_caps (In) is the lane axis -------
    spatial = Ho2 * Wo2                                     # divisible by 8 here
    groups = spatial // indimcap
    u_t = (h2.reshape(B, groups, indimcap, inplanes)        # (b, sh, d, c)
             .transpose(2, 0, 3, 1)                         # (d, b, c, sh)
             .reshape(indimcap, B, inplanes * groups))      # (Id, B, In)
    w_t = p["digit_w"].transpose(3, 0, 2, 1)                # (Id, O, Od, In)

    # ---- decoder params padded to lane-dense widths (zero rows keep exact) -
    O, Od = classes, 2 * indimcap
    n1, n2 = p["dec1_w"].shape[1], p["dec2_w"].shape[1]
    n1p, n2p = _round_up(n1, 128), _round_up(n2, 128)
    w1r = jnp.pad(p["dec1_w"], ((0, 0), (0, n1p - n1))).reshape(O, Od, n1p)
    b1p = jnp.pad(p["dec1_b"].reshape(1, -1), ((0, 0), (0, n1p - n1)))
    w2p = jnp.pad(p["dec2_w"], ((0, n1p - n1), (0, n2p - n2)))
    b2p = jnp.pad(p["dec2_b"].reshape(1, -1), ((0, 0), (0, n2p - n2)))
    w3p = jnp.pad(p["dec3_w"], ((0, n2p - n2), (0, 0)))
    b3 = p["dec3_b"].reshape(1, -1)

    # ---- fused squash + routing + mask + decoder kernel ---------------------
    length, recon = capsule_head(u_t, w_t, w1r, b1p, w2p, b2p, w3p, b3, routings)
    return length, recon.reshape(-1, C, H, W)


if __name__ == "__main__":
    # Shapes consistent with the module: input (1, 8, 8) -> conv1 -> 6x6 ->
    # primary conv -> 4x4, so outpatchdim = 4, in_num_caps = 32*4*4 = 512,
    # in_dim_caps = 8, out_dim_caps = 16.
    input_size = (1, 8, 8)
    classes, routings, outpatchdim = 4, 3, 4
    B = 2

    key = jax.random.PRNGKey(0)
    kp, kx = jax.random.split(key)
    params = init_params(kp, input_size, classes, outpatchdim)
    x = jax.random.normal(kx, (B,) + input_size, dtype=jnp.float32)

    fwd = jax.jit(functools.partial(
        capsule_net_forward, classes=classes, routings=routings,
        input_size=input_size))
    length, recon = fwd(params, x)
    jax.block_until_ready((length, recon))

    assert length.shape == (B, classes), length.shape
    assert recon.shape == (B,) + input_size, recon.shape
    assert bool(jnp.all(jnp.isfinite(length))) and bool(jnp.all(jnp.isfinite(recon)))
    print("KERNEL_OK")
</pallas_src>

<mosaic_0001>
module attributes {stable_mosaic.version = 11 : i64} {
  func.func @_conv_bias_stats_kernel(%arg0: i32, %arg1: i32, %arg2: memref<72x9xf32, #tpu.memory_space<vmem>>, %arg3: memref<9x256xf32, #tpu.memory_space<vmem>>, %arg4: memref<1x256xf32, #tpu.memory_space<vmem>>, %arg5: memref<72x256xf32, #tpu.memory_space<vmem>>, %arg6: memref<1x256xf32, #tpu.memory_space<vmem>>, %arg7: memref<1x256xf32, #tpu.memory_space<vmem>>) attributes {dimension_semantics = [#tpu.dimension_semantics<parallel>, #tpu.dimension_semantics<arbitrary>], iteration_bounds = array<i64: 1, 1>, scalar_prefetch = 0 : i64, scratch_operands = 0 : i64, tpu.core_type = #tpu.core_type<tc>, window_params = [{transform_indices = @transform_0, window_bounds = array<i64: 72, 9>}, {transform_indices = @transform_1, window_bounds = array<i64: 9, 256>}, {transform_indices = @transform_2, window_bounds = array<i64: 1, 256>}, {transform_indices = @transform_3, window_bounds = array<i64: 72, 256>}, {transform_indices = @transform_4, window_bounds = array<i64: 1, 256>}, {transform_indices = @transform_5, window_bounds = array<i64: 1, 256>}]} {
    %c0 = arith.constant 0 : index
    %c0_0 = arith.constant 0 : index
    %0 = vector.load %arg2[%c0, %c0_0] : memref<72x9xf32, #tpu.memory_space<vmem>>, vector<72x9xf32>
    %c0_1 = arith.constant 0 : index
    %c0_2 = arith.constant 0 : index
    %1 = vector.load %arg3[%c0_1, %c0_2] : memref<9x256xf32, #tpu.memory_space<vmem>>, vector<9x256xf32>
    %cst = arith.constant dense<0.000000e+00> : vector<72x256xf32>
    %2 = tpu.matmul %0, %1, %cst {dimension_numbers = #tpu.dot_dimension_numbers<[1], [0], [0], [1], [0, 0, 1, 1], [], []>} : vector<72x9xf32>, vector<9x256xf32>, vector<72x256xf32> -> vector<72x256xf32>
    %c0_3 = arith.constant 0 : index
    %c0_4 = arith.constant 0 : index
    %3 = vector.load %arg4[%c0_3, %c0_4] : memref<1x256xf32, #tpu.memory_space<vmem>>, vector<1x256xf32>
    %4 = vector.broadcast %3 : vector<1x256xf32> to vector<72x256xf32>
    %5 = arith.addf %2, %4 : vector<72x256xf32>
    %c0_5 = arith.constant 0 : index
    %c0_6 = arith.constant 0 : index
    %6 = vector.load %arg5[%c0_5, %c0_6] : memref<72x256xf32, #tpu.memory_space<vmem>>, vector<72x256xf32>
    tpu.vector_store %arg5[%c0_5, %c0_6], %5 {strides = array<i32>} : memref<72x256xf32, #tpu.memory_space<vmem>>, vector<72x256xf32>,
    %c0_i32 = arith.constant 0 : i32
    %7 = arith.cmpi eq, %arg1, %c0_i32 : i32
    %8 = arith.extui %7 : i1 to i32
    %c0_i32_7 = arith.constant 0 : i32
    %9 = arith.cmpi ne, %8, %c0_i32_7 : i32
    scf.if %9 {
      %cst_18 = arith.constant 0.000000e+00 : f32
      %21 = vector.broadcast %cst_18 : f32 to vector<1x256xf32>
      %c0_19 = arith.constant 0 : index
      %c0_20 = arith.constant 0 : index
      %22 = vector.load %arg6[%c0_19, %c0_20] : memref<1x256xf32, #tpu.memory_space<vmem>>, vector<1x256xf32>
      tpu.vector_store %arg6[%c0_19, %c0_20], %21 {strides = array<i32>} : memref<1x256xf32, #tpu.memory_space<vmem>>, vector<1x256xf32>,
      %cst_21 = arith.constant 0.000000e+00 : f32
      %23 = vector.broadcast %cst_21 : f32 to vector<1x256xf32>
      %c0_22 = arith.constant 0 : index
      %c0_23 = arith.constant 0 : index
      %24 = vector.load %arg7[%c0_22, %c0_23] : memref<1x256xf32, #tpu.memory_space<vmem>>, vector<1x256xf32>
      tpu.vector_store %arg7[%c0_22, %c0_23], %23 {strides = array<i32>} : memref<1x256xf32, #tpu.memory_space<vmem>>, vector<1x256xf32>,
    } else {
    }
    %c0_8 = arith.constant 0 : index
    %c0_9 = arith.constant 0 : index
    %10 = vector.load %arg6[%c0_8, %c0_9] : memref<1x256xf32, #tpu.memory_space<vmem>>, vector<1x256xf32>
    %cst_10 = arith.constant dense<0.000000e+00> : vector<256xf32>
    %11 = vector.multi_reduction <add>, %5, %cst_10 [0] : vector<72x256xf32> to vector<256xf32>
    %12 = vector.shape_cast %11 : vector<256xf32> to vector<1x256xf32>
    %13 = arith.addf %10, %12 : vector<1x256xf32>
    %c0_11 = arith.constant 0 : index
    %c0_12 = arith.constant 0 : index
    %14 = vector.load %arg6[%c0_11, %c0_12] : memref<1x256xf32, #tpu.memory_space<vmem>>, vector<1x256xf32>
    tpu.vector_store %arg6[%c0_11, %c0_12], %13 {strides = array<i32>} : memref<1x256xf32, #tpu.memory_space<vmem>>, vector<1x256xf32>,
    %c0_13 = arith.constant 0 : index
    %c0_14 = arith.constant 0 : index
    %15 = vector.load %arg7[%c0_13, %c0_14] : memref<1x256xf32, #tpu.memory_space<vmem>>, vector<1x256xf32>
    %16 = arith.mulf %5, %5 : vector<72x256xf32>
    %cst_15 = arith.constant dense<0.000000e+00> : vector<256xf32>
    %17 = vector.multi_reduction <add>, %16, %cst_15 [0] : vector<72x256xf32> to vector<256xf32>
    %18 = vector.shape_cast %17 : vector<256xf32> to vector<1x256xf32>
    %19 = arith.addf %15, %18 : vector<1x256xf32>
    %c0_16 = arith.constant 0 : index
    %c0_17 = arith.constant 0 : index
    %20 = vector.load %arg7[%c0_16, %c0_17] : memref<1x256xf32, #tpu.memory_space<vmem>>, vector<1x256xf32>
    tpu.vector_store %arg7[%c0_16, %c0_17], %19 {strides = array<i32>} : memref<1x256xf32, #tpu.memory_space<vmem>>, vector<1x256xf32>,
    return
  }
  func.func @transform_0(%arg0: i32, %arg1: i32) -> (i32, i32) {
    %c0_i32 = arith.constant 0 : i32
    %c0_i32_0 = arith.constant 0 : i32
    return %arg1, %c0_i32 : i32, i32
  }
  func.func @transform_1(%arg0: i32, %arg1: i32) -> (i32, i32) {
    %c0_i32 = arith.constant 0 : i32
    %c0_i32_0 = arith.constant 0 : i32
    return %c0_i32, %arg0 : i32, i32
  }
  func.func @transform_2(%arg0: i32, %arg1: i32) -> (i32, i32) {
    %c0_i32 = arith.constant 0 : i32
    %c0_i32_0 = arith.constant 0 : i32
    return %c0_i32, %arg0 : i32, i32
  }
  func.func @transform_3(%arg0: i32, %arg1: i32) -> (i32, i32) {
    %c0_i32 = arith.constant 0 : i32
    return %arg1, %arg0 : i32, i32
  }
  func.func @transform_4(%arg0: i32, %arg1: i32) -> (i32, i32) {
    %c0_i32 = arith.constant 0 : i32
    %c0_i32_0 = arith.constant 0 : i32
    return %c0_i32, %arg0 : i32, i32
  }
  func.func @transform_5(%arg0: i32, %arg1: i32) -> (i32, i32) {
    %c0_i32 = arith.constant 0 : i32
    %c0_i32_0 = arith.constant 0 : i32
    return %c0_i32, %arg0 : i32, i32
  }
}

module attributes {stable_mosaic.version = 11 : i64} {
  func.func @_affine_relu_matmul_kernel(%arg0: i32, %arg1: i32, %arg2: memref<32x2304xf32, #tpu.memory_space<vmem>>, %arg3: memref<1x2304xf32, #tpu.memory_space<vmem>>, %arg4: memref<1x2304xf32, #tpu.memory_space<vmem>>, %arg5: memref<2304x256xbf16, #tpu.memory_space<vmem>>, %arg6: memref<1x256xf32, #tpu.memory_space<vmem>>, %arg7: memref<32x256xf32, #tpu.memory_space<vmem>>) attributes {dimension_semantics = [#tpu.dimension_semantics<parallel>, #tpu.dimension_semantics<parallel>], iteration_bounds = array<i64: 1, 1>, scalar_prefetch = 0 : i64, scratch_operands = 0 : i64, tpu.core_type = #tpu.core_type<tc>, window_params = [{transform_indices = @transform_0, window_bounds = array<i64: 32, 2304>}, {pipeline_mode = #tpu.pipeline_mode<synchronous>, transform_indices = @transform_1, window_bounds = array<i64: 1, 2304>}, {pipeline_mode = #tpu.pipeline_mode<synchronous>, transform_indices = @transform_2, window_bounds = array<i64: 1, 2304>}, {transform_indices = @transform_3, window_bounds = array<i64: 2304, 256>}, {transform_indices = @transform_4, window_bounds = array<i64: 1, 256>}, {transform_indices = @transform_5, window_bounds = array<i64: 32, 256>}]} {
    %c0 = arith.constant 0 : index
    %c0_0 = arith.constant 0 : index
    %0 = vector.load %arg2[%c0, %c0_0] : memref<32x2304xf32, #tpu.memory_space<vmem>>, vector<32x2304xf32>
    %c0_1 = arith.constant 0 : index
    %c0_2 = arith.constant 0 : index
    %1 = vector.load %arg3[%c0_1, %c0_2] : memref<1x2304xf32, #tpu.memory_space<vmem>>, vector<1x2304xf32>
    %2 = vector.broadcast %1 : vector<1x2304xf32> to vector<32x2304xf32>
    %3 = arith.mulf %0, %2 : vector<32x2304xf32>
    %c0_3 = arith.constant 0 : index
    %c0_4 = arith.constant 0 : index
    %4 = vector.load %arg4[%c0_3, %c0_4] : memref<1x2304xf32, #tpu.memory_space<vmem>>, vector<1x2304xf32>
    %5 = vector.broadcast %4 : vector<1x2304xf32> to vector<32x2304xf32>
    %6 = arith.addf %3, %5 : vector<32x2304xf32>
    %cst = arith.constant 0.000000e+00 : f32
    %7 = vector.broadcast %cst : f32 to vector<32x2304xf32>
    %8 = arith.maximumf %6, %7 : vector<32x2304xf32>
    %9 = arith.truncf %8 : vector<32x2304xf32> to vector<32x2304xbf16>
    %c0_5 = arith.constant 0 : index
    %c0_6 = arith.constant 0 : index
    %10 = vector.load %arg5[%c0_5, %c0_6] : memref<2304x256xbf16, #tpu.memory_space<vmem>>, vector<2304x256xbf16>
    %cst_7 = arith.constant dense<0.000000e+00> : vector<32x256xf32>
    %11 = tpu.matmul %9, %10, %cst_7 {dimension_numbers = #tpu.dot_dimension_numbers<[1], [0], [0], [1], [0, 0, 1, 1], [], []>} : vector<32x2304xbf16>, vector<2304x256xbf16>, vector<32x256xf32> -> vector<32x256xf32>
    %c0_8 = arith.constant 0 : index
    %c0_9 = arith.constant 0 : index
    %12 = vector.load %arg6[%c0_8, %c0_9] : memref<1x256xf32, #tpu.memory_space<vmem>>, vector<1x256xf32>
    %13 = vector.broadcast %12 : vector<1x256xf32> to vector<32x256xf32>
    %14 = arith.addf %11, %13 : vector<32x256xf32>
    %c0_10 = arith.constant 0 : index
    %c0_11 = arith.constant 0 : index
    %15 = vector.load %arg7[%c0_10, %c0_11] : memref<32x256xf32, #tpu.memory_space<vmem>>, vector<32x256xf32>
    tpu.vector_store %arg7[%c0_10, %c0_11], %14 {strides = array<i32>} : memref<32x256xf32, #tpu.memory_space<vmem>>, vector<32x256xf32>,
    return
  }
  func.func @transform_0(%arg0: i32, %arg1: i32) -> (i32, i32) {
    %c0_i32 = arith.constant 0 : i32
    %c0_i32_0 = arith.constant 0 : i32
    return %arg1, %c0_i32 : i32, i32
  }
  func.func @transform_1(%arg0: i32, %arg1: i32) -> (i32, i32) {
    %c0_i32 = arith.constant 0 : i32
    %c0_i32_0 = arith.constant 0 : i32
    %c0_i32_1 = arith.constant 0 : i32
    return %c0_i32, %c0_i32_0 : i32, i32
  }
  func.func @transform_2(%arg0: i32, %arg1: i32) -> (i32, i32) {
    %c0_i32 = arith.constant 0 : i32
    %c0_i32_0 = arith.constant 0 : i32
    %c0_i32_1 = arith.constant 0 : i32
    return %c0_i32, %c0_i32_0 : i32, i32
  }
  func.func @transform_3(%arg0: i32, %arg1: i32) -> (i32, i32) {
    %c0_i32 = arith.constant 0 : i32
    %c0_i32_0 = arith.constant 0 : i32
    return %c0_i32, %arg0 : i32, i32
  }
  func.func @transform_4(%arg0: i32, %arg1: i32) -> (i32, i32) {
    %c0_i32 = arith.constant 0 : i32
    %c0_i32_0 = arith.constant 0 : i32
    return %c0_i32, %arg0 : i32, i32
  }
  func.func @transform_5(%arg0: i32, %arg1: i32) -> (i32, i32) {
    %c0_i32 = arith.constant 0 : i32
    return %arg1, %arg0 : i32, i32
  }
}

module attributes {stable_mosaic.version = 11 : i64} {
  func.func @_head_kernel(%arg0: memref<8x2x512xf32, #tpu.memory_space<vmem>>, %arg1: memref<8x4x16x512xf32, #tpu.memory_space<vmem>>, %arg2: memref<4x16x384xf32, #tpu.memory_space<vmem>>, %arg3: memref<1x384xf32, #tpu.memory_space<vmem>>, %arg4: memref<384x256xf32, #tpu.memory_space<vmem>>, %arg5: memref<1x256xf32, #tpu.memory_space<vmem>>, %arg6: memref<256x64xf32, #tpu.memory_space<vmem>>, %arg7: memref<1x64xf32, #tpu.memory_space<vmem>>, %arg8: memref<2x4xf32, #tpu.memory_space<vmem>>, %arg9: memref<2x64xf32, #tpu.memory_space<vmem>>) attributes {dimension_semantics = [], scalar_prefetch = 0 : i64, scratch_operands = 0 : i64, tpu.core_type = #tpu.core_type<tc>} {
    %c0 = arith.constant 0 : index
    %c0_0 = arith.constant 0 : index
    %c0_1 = arith.constant 0 : index
    %0 = vector.load %arg0[%c0, %c0_0, %c0_1] : memref<8x2x512xf32, #tpu.memory_space<vmem>>, vector<8x2x512xf32>
    %1 = arith.mulf %0, %0 : vector<8x2x512xf32>
    %cst = arith.constant dense<0.000000e+00> : vector<2x512xf32>
    %2 = vector.multi_reduction <add>, %1, %cst [0] : vector<8x2x512xf32> to vector<2x512xf32>
    %cst_2 = arith.constant 1.000000e+00 : f32
    %3 = vector.broadcast %cst_2 : f32 to vector<2x512xf32>
    %4 = arith.addf %3, %2 : vector<2x512xf32>
    %5 = arith.divf %2, %4 : vector<2x512xf32>
    %6 = math.sqrt %2 : vector<2x512xf32>
    %cst_3 = arith.constant 9.99999993E-9 : f32
    %7 = vector.broadcast %cst_3 : f32 to vector<2x512xf32>
    %8 = arith.addf %6, %7 : vector<2x512xf32>
    %9 = arith.divf %5, %8 : vector<2x512xf32>
    %10 = vector.shape_cast %9 : vector<2x512xf32> to vector<1x2x512xf32>
    %11 = vector.broadcast %10 : vector<1x2x512xf32> to vector<8x2x512xf32>
    %12 = arith.mulf %0, %11 : vector<8x2x512xf32>
    %c0_4 = arith.constant 0 : index
    %c0_5 = arith.constant 0 : index
    %c0_6 = arith.constant 0 : index
    %c0_7 = arith.constant 0 : index
    %13 = vector.load %arg1[%c0_4, %c0_5, %c0_6, %c0_7] : memref<8x4x16x512xf32, #tpu.memory_space<vmem>>, vector<8x4x16x512xf32>
    %cst_8 = arith.constant 0.000000e+00 : f32
    %14 = vector.broadcast %cst_8 : f32 to vector<2x4x16x512xf32>
    %15 = vector.extract_strided_slice %13 {offsets = [0, 0, 0, 0], sizes = [1, 4, 16, 512], strides = [1, 1, 1, 1]} : vector<8x4x16x512xf32> to vector<1x4x16x512xf32>
    %16 = vector.shape_cast %15 : vector<1x4x16x512xf32> to vector<4x16x512xf32>
    %17 = vector.shape_cast %16 : vector<4x16x512xf32> to vector<1x4x16x512xf32>
    %18 = vector.extract_strided_slice %12 {offsets = [0, 0, 0], sizes = [1, 2, 512], strides = [1, 1, 1]} : vector<8x2x512xf32> to vector<1x2x512xf32>
    %19 = vector.shape_cast %18 : vector<1x2x512xf32> to vector<2x512xf32>
    %20 = vector.shape_cast %19 : vector<2x512xf32> to vector<2x1x1x512xf32>
    %21 = vector.broadcast %17 : vector<1x4x16x512xf32> to vector<2x4x16x512xf32>
    %22 = vector.broadcast %20 : vector<2x1x1x512xf32> to vector<2x4x16x512xf32>
    %23 = arith.mulf %21, %22 : vector<2x4x16x512xf32>
    %24 = arith.addf %14, %23 : vector<2x4x16x512xf32>
    %25 = vector.extract_strided_slice %13 {offsets = [1, 0, 0, 0], sizes = [1, 4, 16, 512], strides = [1, 1, 1, 1]} : vector<8x4x16x512xf32> to vector<1x4x16x512xf32>
    %26 = vector.shape_cast %25 : vector<1x4x16x512xf32> to vector<4x16x512xf32>
    %27 = vector.shape_cast %26 : vector<4x16x512xf32> to vector<1x4x16x512xf32>
    %28 = vector.extract_strided_slice %12 {offsets = [1, 0, 0], sizes = [1, 2, 512], strides = [1, 1, 1]} : vector<8x2x512xf32> to vector<1x2x512xf32>
    %29 = vector.shape_cast %28 : vector<1x2x512xf32> to vector<2x512xf32>
    %30 = vector.shape_cast %29 : vector<2x512xf32> to vector<2x1x1x512xf32>
    %31 = vector.broadcast %27 : vector<1x4x16x512xf32> to vector<2x4x16x512xf32>
    %32 = vector.broadcast %30 : vector<2x1x1x512xf32> to vector<2x4x16x512xf32>
    %33 = arith.mulf %31, %32 : vector<2x4x16x512xf32>
    %34 = arith.addf %24, %33 : vector<2x4x16x512xf32>
    %35 = vector.extract_strided_slice %13 {offsets = [2, 0, 0, 0], sizes = [1, 4, 16, 512], strides = [1, 1, 1, 1]} : vector<8x4x16x512xf32> to vector<1x4x16x512xf32>
    %36 = vector.shape_cast %35 : vector<1x4x16x512xf32> to vector<4x16x512xf32>
    %37 = vector.shape_cast %36 : vector<4x16x512xf32> to vector<1x4x16x512xf32>
    %38 = vector.extract_strided_slice %12 {offsets = [2, 0, 0], sizes = [1, 2, 512], strides = [1, 1, 1]} : vector<8x2x512xf32> to vector<1x2x512xf32>
    %39 = vector.shape_cast %38 : vector<1x2x512xf32> to vector<2x512xf32>
    %40 = vector.shape_cast %39 : vector<2x512xf32> to vector<2x1x1x512xf32>
    %41 = vector.broadcast %37 : vector<1x4x16x512xf32> to vector<2x4x16x512xf32>
    %42 = vector.broadcast %40 : vector<2x1x1x512xf32> to vector<2x4x16x512xf32>
    %43 = arith.mulf %41, %42 : vector<2x4x16x512xf32>
    %44 = arith.addf %34, %43 : vector<2x4x16x512xf32>
    %45 = vector.extract_strided_slice %13 {offsets = [3, 0, 0, 0], sizes = [1, 4, 16, 512], strides = [1, 1, 1, 1]} : vector<8x4x16x512xf32> to vector<1x4x16x512xf32>
    %46 = vector.shape_cast %45 : vector<1x4x16x512xf32> to vector<4x16x512xf32>
    %47 = vector.shape_cast %46 : vector<4x16x512xf32> to vector<1x4x16x512xf32>
    %48 = vector.extract_strided_slice %12 {offsets = [3, 0, 0], sizes = [1, 2, 512], strides = [1, 1, 1]} : vector<8x2x512xf32> to vector<1x2x512xf32>
    %49 = vector.shape_cast %48 : vector<1x2x512xf32> to vector<2x512xf32>
    %50 = vector.shape_cast %49 : vector<2x512xf32> to vector<2x1x1x512xf32>
    %51 = vector.broadcast %47 : vector<1x4x16x512xf32> to vector<2x4x16x512xf32>
    %52 = vector.broadcast %50 : vector<2x1x1x512xf32> to vector<2x4x16x512xf32>
    %53 = arith.mulf %51, %52 : vector<2x4x16x512xf32>
    %54 = arith.addf %44, %53 : vector<2x4x16x512xf32>
    %55 = vector.extract_strided_slice %13 {offsets = [4, 0, 0, 0], sizes = [1, 4, 16, 512], strides = [1, 1, 1, 1]} : vector<8x4x16x512xf32> to vector<1x4x16x512xf32>
    %56 = vector.shape_cast %55 : vector<1x4x16x512xf32> to vector<4x16x512xf32>
    %57 = vector.shape_cast %56 : vector<4x16x512xf32> to vector<1x4x16x512xf32>
    %58 = vector.extract_strided_slice %12 {offsets = [4, 0, 0], sizes = [1, 2, 512], strides = [1, 1, 1]} : vector<8x2x512xf32> to vector<1x2x512xf32>
    %59 = vector.shape_cast %58 : vector<1x2x512xf32> to vector<2x512xf32>
    %60 = vector.shape_cast %59 : vector<2x512xf32> to vector<2x1x1x512xf32>
    %61 = vector.broadcast %57 : vector<1x4x16x512xf32> to vector<2x4x16x512xf32>
    %62 = vector.broadcast %60 : vector<2x1x1x512xf32> to vector<2x4x16x512xf32>
    %63 = arith.mulf %61, %62 : vector<2x4x16x512xf32>
    %64 = arith.addf %54, %63 : vector<2x4x16x512xf32>
    %65 = vector.extract_strided_slice %13 {offsets = [5, 0, 0, 0], sizes = [1, 4, 16, 512], strides = [1, 1, 1, 1]} : vector<8x4x16x512xf32> to vector<1x4x16x512xf32>
    %66 = vector.shape_cast %65 : vector<1x4x16x512xf32> to vector<4x16x512xf32>
    %67 = vector.shape_cast %66 : vector<4x16x512xf32> to vector<1x4x16x512xf32>
    %68 = vector.extract_strided_slice %12 {offsets = [5, 0, 0], sizes = [1, 2, 512], strides = [1, 1, 1]} : vector<8x2x512xf32> to vector<1x2x512xf32>
    %69 = vector.shape_cast %68 : vector<1x2x512xf32> to vector<2x512xf32>
    %70 = vector.shape_cast %69 : vector<2x512xf32> to vector<2x1x1x512xf32>
    %71 = vector.broadcast %67 : vector<1x4x16x512xf32> to vector<2x4x16x512xf32>
    %72 = vector.broadcast %70 : vector<2x1x1x512xf32> to vector<2x4x16x512xf32>
    %73 = arith.mulf %71, %72 : vector<2x4x16x512xf32>
    %74 = arith.addf %64, %73 : vector<2x4x16x512xf32>
    %75 = vector.extract_strided_slice %13 {offsets = [6, 0, 0, 0], sizes = [1, 4, 16, 512], strides = [1, 1, 1, 1]} : vector<8x4x16x512xf32> to vector<1x4x16x512xf32>
    %76 = vector.shape_cast %75 : vector<1x4x16x512xf32> to vector<4x16x512xf32>
    %77 = vector.shape_cast %76 : vector<4x16x512xf32> to vector<1x4x16x512xf32>
    %78 = vector.extract_strided_slice %12 {offsets = [6, 0, 0], sizes = [1, 2, 512], strides = [1, 1, 1]} : vector<8x2x512xf32> to vector<1x2x512xf32>
    %79 = vector.shape_cast %78 : vector<1x2x512xf32> to vector<2x512xf32>
    %80 = vector.shape_cast %79 : vector<2x512xf32> to vector<2x1x1x512xf32>
    %81 = vector.broadcast %77 : vector<1x4x16x512xf32> to vector<2x4x16x512xf32>
    %82 = vector.broadcast %80 : vector<2x1x1x512xf32> to vector<2x4x16x512xf32>
    %83 = arith.mulf %81, %82 : vector<2x4x16x512xf32>
    %84 = arith.addf %74, %83 : vector<2x4x16x512xf32>
    %85 = vector.extract_strided_slice %13 {offsets = [7, 0, 0, 0], sizes = [1, 4, 16, 512], strides = [1, 1, 1, 1]} : vector<8x4x16x512xf32> to vector<1x4x16x512xf32>
    %86 = vector.shape_cast %85 : vector<1x4x16x512xf32> to vector<4x16x512xf32>
    %87 = vector.shape_cast %86 : vector<4x16x512xf32> to vector<1x4x16x512xf32>
    %88 = vector.extract_strided_slice %12 {offsets = [7, 0, 0], sizes = [1, 2, 512], strides = [1, 1, 1]} : vector<8x2x512xf32> to vector<1x2x512xf32>
    %89 = vector.shape_cast %88 : vector<1x2x512xf32> to vector<2x512xf32>
    %90 = vector.shape_cast %89 : vector<2x512xf32> to vector<2x1x1x512xf32>
    %91 = vector.broadcast %87 : vector<1x4x16x512xf32> to vector<2x4x16x512xf32>
    %92 = vector.broadcast %90 : vector<2x1x1x512xf32> to vector<2x4x16x512xf32>
    %93 = arith.mulf %91, %92 : vector<2x4x16x512xf32>
    %94 = arith.addf %84, %93 : vector<2x4x16x512xf32>
    %cst_9 = arith.constant 0.000000e+00 : f32
    %95 = vector.broadcast %cst_9 : f32 to vector<2x4x512xf32>
    %cst_10 = arith.constant dense<0xFF800000> : vector<2x512xf32>
    %96 = vector.multi_reduction <maximumf>, %95, %cst_10 [1] : vector<2x4x512xf32> to vector<2x512xf32>
    %cst_11 = arith.constant 0xFF800000 : f32
    %97 = vector.broadcast %cst_11 : f32 to vector<2x512xf32>
    %98 = arith.maximumf %97, %96 : vector<2x512xf32>
    %99 = vector.shape_cast %98 : vector<2x512xf32> to vector<2x1x512xf32>
    %100 = vector.broadcast %99 : vector<2x1x512xf32> to vector<2x4x512xf32>
    %101 = arith.subf %95, %100 : vector<2x4x512xf32>
    %102 = math.exp %101 : vector<2x4x512xf32>
    %cst_12 = arith.constant dense<0.000000e+00> : vector<2x512xf32>
    %103 = vector.multi_reduction <add>, %102, %cst_12 [1] : vector<2x4x512xf32> to vector<2x512xf32>
    %104 = vector.shape_cast %103 : vector<2x512xf32> to vector<2x1x512xf32>
    %105 = vector.broadcast %104 : vector<2x1x512xf32> to vector<2x4x512xf32>
    %106 = arith.divf %102, %105 : vector<2x4x512xf32>
    %107 = vector.shape_cast %106 : vector<2x4x512xf32> to vector<2x4x1x512xf32>
    %108 = vector.broadcast %107 : vector<2x4x1x512xf32> to vector<2x4x16x512xf32>
    %109 = arith.mulf %108, %94 : vector<2x4x16x512xf32>
    %cst_13 = arith.constant dense<0.000000e+00> : vector<2x4x16xf32>
    %110 = vector.multi_reduction <add>, %109, %cst_13 [3] : vector<2x4x16x512xf32> to vector<2x4x16xf32>
    %111 = arith.mulf %110, %110 : vector<2x4x16xf32>
    %cst_14 = arith.constant dense<0.000000e+00> : vector<2x4xf32>
    %112 = vector.multi_reduction <add>, %111, %cst_14 [2] : vector<2x4x16xf32> to vector<2x4xf32>
    %113 = vector.shape_cast %112 : vector<2x4xf32> to vector<2x4x1xf32>
    %cst_15 = arith.constant 1.000000e+00 : f32
    %114 = vector.broadcast %cst_15 : f32 to vector<2x4x1xf32>
    %115 = arith.addf %114, %113 : vector<2x4x1xf32>
    %116 = arith.divf %113, %115 : vector<2x4x1xf32>
    %117 = math.sqrt %113 : vector<2x4x1xf32>
    %cst_16 = arith.constant 9.99999993E-9 : f32
    %118 = vector.broadcast %cst_16 : f32 to vector<2x4x1xf32>
    %119 = arith.addf %117, %118 : vector<2x4x1xf32>
    %120 = arith.divf %116, %119 : vector<2x4x1xf32>
    %121 = vector.broadcast %120 : vector<2x4x1xf32> to vector<2x4x16xf32>
    %122 = arith.mulf %110, %121 : vector<2x4x16xf32>
    %123 = vector.shape_cast %122 : vector<2x4x16xf32> to vector<2x4x16x1xf32>
    %124 = vector.broadcast %123 : vector<2x4x16x1xf32> to vector<2x4x16x512xf32>
    %125 = arith.mulf %124, %94 : vector<2x4x16x512xf32>
    %cst_17 = arith.constant dense<0.000000e+00> : vector<2x4x512xf32>
    %126 = vector.multi_reduction <add>, %125, %cst_17 [2] : vector<2x4x16x512xf32> to vector<2x4x512xf32>
    %127 = arith.addf %95, %126 : vector<2x4x512xf32>
    %cst_18 = arith.constant dense<0xFF800000> : vector<2x512xf32>
    %128 = vector.multi_reduction <maximumf>, %127, %cst_18 [1] : vector<2x4x512xf32> to vector<2x512xf32>
    %cst_19 = arith.constant 0xFF800000 : f32
    %129 = vector.broadcast %cst_19 : f32 to vector<2x512xf32>
    %130 = arith.maximumf %129, %128 : vector<2x512xf32>
    %131 = vector.shape_cast %130 : vector<2x512xf32> to vector<2x1x512xf32>
    %132 = vector.broadcast %131 : vector<2x1x512xf32> to vector<2x4x512xf32>
    %133 = arith.subf %127, %132 : vector<2x4x512xf32>
    %134 = math.exp %133 : vector<2x4x512xf32>
    %cst_20 = arith.constant dense<0.000000e+00> : vector<2x512xf32>
    %135 = vector.multi_reduction <add>, %134, %cst_20 [1] : vector<2x4x512xf32> to vector<2x512xf32>
    %136 = vector.shape_cast %135 : vector<2x512xf32> to vector<2x1x512xf32>
    %137 = vector.broadcast %136 : vector<2x1x512xf32> to vector<2x4x512xf32>
    %138 = arith.divf %134, %137 : vector<2x4x512xf32>
    %139 = vector.shape_cast %138 : vector<2x4x512xf32> to vector<2x4x1x512xf32>
    %140 = vector.broadcast %139 : vector<2x4x1x512xf32> to vector<2x4x16x512xf32>
    %141 = arith.mulf %140, %94 : vector<2x4x16x512xf32>
    %cst_21 = arith.constant dense<0.000000e+00> : vector<2x4x16xf32>
    %142 = vector.multi_reduction <add>, %141, %cst_21 [3] : vector<2x4x16x512xf32> to vector<2x4x16xf32>
    %143 = arith.mulf %142, %142 : vector<2x4x16xf32>
    %cst_22 = arith.constant dense<0.000000e+00> : vector<2x4xf32>
    %144 = vector.multi_reduction <add>, %143, %cst_22 [2] : vector<2x4x16xf32> to vector<2x4xf32>
    %145 = vector.shape_cast %144 : vector<2x4xf32> to vector<2x4x1xf32>
    %cst_23 = arith.constant 1.000000e+00 : f32
    %146 = vector.broadcast %cst_23 : f32 to vector<2x4x1xf32>
    %147 = arith.addf %146, %145 : vector<2x4x1xf32>
    %148 = arith.divf %145, %147 : vector<2x4x1xf32>
    %149 = math.sqrt %145 : vector<2x4x1xf32>
    %cst_24 = arith.constant 9.99999993E-9 : f32
    %150 = vector.broadcast %cst_24 : f32 to vector<2x4x1xf32>
    %151 = arith.addf %149, %150 : vector<2x4x1xf32>
    %152 = arith.divf %148, %151 : vector<2x4x1xf32>
    %153 = vector.broadcast %152 : vector<2x4x1xf32> to vector<2x4x16xf32>
    %154 = arith.mulf %142, %153 : vector<2x4x16xf32>
    %155 = vector.shape_cast %154 : vector<2x4x16xf32> to vector<2x4x16x1xf32>
    %156 = vector.broadcast %155 : vector<2x4x16x1xf32> to vector<2x4x16x512xf32>
    %157 = arith.mulf %156, %94 : vector<2x4x16x512xf32>
    %cst_25 = arith.constant dense<0.000000e+00> : vector<2x4x512xf32>
    %158 = vector.multi_reduction <add>, %157, %cst_25 [2] : vector<2x4x16x512xf32> to vector<2x4x512xf32>
    %159 = arith.addf %127, %158 : vector<2x4x512xf32>
    %cst_26 = arith.constant dense<0xFF800000> : vector<2x512xf32>
    %160 = vector.multi_reduction <maximumf>, %159, %cst_26 [1] : vector<2x4x512xf32> to vector<2x512xf32>
    %cst_27 = arith.constant 0xFF800000 : f32
    %161 = vector.broadcast %cst_27 : f32 to vector<2x512xf32>
    %162 = arith.maximumf %161, %160 : vector<2x512xf32>
    %163 = vector.shape_cast %162 : vector<2x512xf32> to vector<2x1x512xf32>
    %164 = vector.broadcast %163 : vector<2x1x512xf32> to vector<2x4x512xf32>
    %165 = arith.subf %159, %164 : vector<2x4x512xf32>
    %166 = math.exp %165 : vector<2x4x512xf32>
    %cst_28 = arith.constant dense<0.000000e+00> : vector<2x512xf32>
    %167 = vector.multi_reduction <add>, %166, %cst_28 [1] : vector<2x4x512xf32> to vector<2x512xf32>
    %168 = vector.shape_cast %167 : vector<2x512xf32> to vector<2x1x512xf32>
    %169 = vector.broadcast %168 : vector<2x1x512xf32> to vector<2x4x512xf32>
    %170 = arith.divf %166, %169 : vector<2x4x512xf32>
    %171 = vector.shape_cast %170 : vector<2x4x512xf32> to vector<2x4x1x512xf32>
    %172 = vector.broadcast %171 : vector<2x4x1x512xf32> to vector<2x4x16x512xf32>
    %173 = arith.mulf %172, %94 : vector<2x4x16x512xf32>
    %cst_29 = arith.constant dense<0.000000e+00> : vector<2x4x16xf32>
    %174 = vector.multi_reduction <add>, %173, %cst_29 [3] : vector<2x4x16x512xf32> to vector<2x4x16xf32>
    %175 = arith.mulf %174, %174 : vector<2x4x16xf32>
    %cst_30 = arith.constant dense<0.000000e+00> : vector<2x4xf32>
    %176 = vector.multi_reduction <add>, %175, %cst_30 [2] : vector<2x4x16xf32> to vector<2x4xf32>
    %177 = vector.shape_cast %176 : vector<2x4xf32> to vector<2x4x1xf32>
    %cst_31 = arith.constant 1.000000e+00 : f32
    %178 = vector.broadcast %cst_31 : f32 to vector<2x4x1xf32>
    %179 = arith.addf %178, %177 : vector<2x4x1xf32>
    %180 = arith.divf %177, %179 : vector<2x4x1xf32>
    %181 = math.sqrt %177 : vector<2x4x1xf32>
    %cst_32 = arith.constant 9.99999993E-9 : f32
    %182 = vector.broadcast %cst_32 : f32 to vector<2x4x1xf32>
    %183 = arith.addf %181, %182 : vector<2x4x1xf32>
    %184 = arith.divf %180, %183 : vector<2x4x1xf32>
    %185 = vector.broadcast %184 : vector<2x4x1xf32> to vector<2x4x16xf32>
    %186 = arith.mulf %174, %185 : vector<2x4x16xf32>
    %187 = arith.mulf %186, %186 : vector<2x4x16xf32>
    %cst_33 = arith.constant dense<0.000000e+00> : vector<2x4xf32>
    %188 = vector.multi_reduction <add>, %187, %cst_33 [2] : vector<2x4x16xf32> to vector<2x4xf32>
    %189 = math.sqrt %188 : vector<2x4xf32>
    %c0_34 = arith.constant 0 : index
    %c0_35 = arith.constant 0 : index
    %190 = vector.load %arg8[%c0_34, %c0_35] : memref<2x4xf32, #tpu.memory_space<vmem>>, vector<2x4xf32>
    tpu.vector_store %arg8[%c0_34, %c0_35], %189 {strides = array<i32>} : memref<2x4xf32, #tpu.memory_space<vmem>>, vector<2x4xf32>,
    %191 = tpu.iota {dimensions = array<i32: 1>} : vector<2x4xi32>
    %cst_36 = arith.constant dense<0xFF800000> : vector<2xf32>
    %192 = vector.multi_reduction <maximumf>, %189, %cst_36 [1] : vector<2x4xf32> to vector<2xf32>
    %193 = vector.shape_cast %192 : vector<2xf32> to vector<2x1xf32>
    %194 = vector.broadcast %193 : vector<2x1xf32> to vector<2x4xf32>
    %195 = arith.cmpf oge, %189, %194 : vector<2x4xf32>
    %c4_i32 = arith.constant 4 : i32
    %196 = vector.broadcast %c4_i32 : i32 to vector<2x4xi32>
    %197 = arith.select %195, %191, %196 : vector<2x4xi1>, vector<2x4xi32>
    %cst_37 = arith.constant dense<2147483647> : vector<2xi32>
    %198 = vector.multi_reduction <minsi>, %197, %cst_37 [1] : vector<2x4xi32> to vector<2xi32>
    %199 = vector.shape_cast %198 : vector<2xi32> to vector<2x1xi32>
    %200 = vector.broadcast %199 : vector<2x1xi32> to vector<2x4xi32>
    %201 = arith.cmpi eq, %191, %200 : vector<2x4xi32>
    %202 = arith.extui %201 : vector<2x4xi1> to vector<2x4xi32>
    %203 = arith.sitofp %202 : vector<2x4xi32> to vector<2x4xf32>
    %204 = vector.shape_cast %203 : vector<2x4xf32> to vector<2x4x1xf32>
    %205 = vector.broadcast %204 : vector<2x4x1xf32> to vector<2x4x16xf32>
    %206 = arith.mulf %186, %205 : vector<2x4x16xf32>
    %c0_38 = arith.constant 0 : index
    %c0_39 = arith.constant 0 : index
    %c0_40 = arith.constant 0 : index
    %207 = vector.load %arg2[%c0_38, %c0_39, %c0_40] : memref<4x16x384xf32, #tpu.memory_space<vmem>>, vector<4x16x384xf32>
    %cst_41 = arith.constant 0.000000e+00 : f32
    %208 = vector.broadcast %cst_41 : f32 to vector<2x384xf32>
    %209 = vector.extract_strided_slice %206 {offsets = [0, 0, 0], sizes = [2, 1, 16], strides = [1, 1, 1]} : vector<2x4x16xf32> to vector<2x1x16xf32>
    %210 = vector.shape_cast %209 : vector<2x1x16xf32> to vector<2x16xf32>
    %211 = vector.extract_strided_slice %207 {offsets = [0, 0, 0], sizes = [1, 16, 384], strides = [1, 1, 1]} : vector<4x16x384xf32> to vector<1x16x384xf32>
    %212 = vector.shape_cast %211 : vector<1x16x384xf32> to vector<16x384xf32>
    %cst_42 = arith.constant dense<0.000000e+00> : vector<2x384xf32>
    %213 = tpu.matmul %210, %212, %cst_42 {dimension_numbers = #tpu.dot_dimension_numbers<[1], [0], [0], [1], [0, 0, 1, 1], [], []>} : vector<2x16xf32>, vector<16x384xf32>, vector<2x384xf32> -> vector<2x384xf32>
    %214 = arith.addf %208, %213 : vector<2x384xf32>
    %215 = vector.extract_strided_slice %206 {offsets = [0, 1, 0], sizes = [2, 1, 16], strides = [1, 1, 1]} : vector<2x4x16xf32> to vector<2x1x16xf32>
    %216 = vector.shape_cast %215 : vector<2x1x16xf32> to vector<2x16xf32>
    %217 = vector.extract_strided_slice %207 {offsets = [1, 0, 0], sizes = [1, 16, 384], strides = [1, 1, 1]} : vector<4x16x384xf32> to vector<1x16x384xf32>
    %218 = vector.shape_cast %217 : vector<1x16x384xf32> to vector<16x384xf32>
    %cst_43 = arith.constant dense<0.000000e+00> : vector<2x384xf32>
    %219 = tpu.matmul %216, %218, %cst_43 {dimension_numbers = #tpu.dot_dimension_numbers<[1], [0], [0], [1], [0, 0, 1, 1], [], []>} : vector<2x16xf32>, vector<16x384xf32>, vector<2x384xf32> -> vector<2x384xf32>
    %220 = arith.addf %214, %219 : vector<2x384xf32>
    %221 = vector.extract_strided_slice %206 {offsets = [0, 2, 0], sizes = [2, 1, 16], strides = [1, 1, 1]} : vector<2x4x16xf32> to vector<2x1x16xf32>
    %222 = vector.shape_cast %221 : vector<2x1x16xf32> to vector<2x16xf32>
    %223 = vector.extract_strided_slice %207 {offsets = [2, 0, 0], sizes = [1, 16, 384], strides = [1, 1, 1]} : vector<4x16x384xf32> to vector<1x16x384xf32>
    %224 = vector.shape_cast %223 : vector<1x16x384xf32> to vector<16x384xf32>
    %cst_44 = arith.constant dense<0.000000e+00> : vector<2x384xf32>
    %225 = tpu.matmul %222, %224, %cst_44 {dimension_numbers = #tpu.dot_dimension_numbers<[1], [0], [0], [1], [0, 0, 1, 1], [], []>} : vector<2x16xf32>, vector<16x384xf32>, vector<2x384xf32> -> vector<2x384xf32>
    %226 = arith.addf %220, %225 : vector<2x384xf32>
    %227 = vector.extract_strided_slice %206 {offsets = [0, 3, 0], sizes = [2, 1, 16], strides = [1, 1, 1]} : vector<2x4x16xf32> to vector<2x1x16xf32>
    %228 = vector.shape_cast %227 : vector<2x1x16xf32> to vector<2x16xf32>
    %229 = vector.extract_strided_slice %207 {offsets = [3, 0, 0], sizes = [1, 16, 384], strides = [1, 1, 1]} : vector<4x16x384xf32> to vector<1x16x384xf32>
    %230 = vector.shape_cast %229 : vector<1x16x384xf32> to vector<16x384xf32>
    %cst_45 = arith.constant dense<0.000000e+00> : vector<2x384xf32>
    %231 = tpu.matmul %228, %230, %cst_45 {dimension_numbers = #tpu.dot_dimension_numbers<[1], [0], [0], [1], [0, 0, 1, 1], [], []>} : vector<2x16xf32>, vector<16x384xf32>, vector<2x384xf32> -> vector<2x384xf32>
    %232 = arith.addf %226, %231 : vector<2x384xf32>
    %c0_46 = arith.constant 0 : index
    %c0_47 = arith.constant 0 : index
    %233 = vector.load %arg3[%c0_46, %c0_47] : memref<1x384xf32, #tpu.memory_space<vmem>>, vector<1x384xf32>
    %234 = vector.broadcast %233 : vector<1x384xf32> to vector<2x384xf32>
    %235 = arith.addf %232, %234 : vector<2x384xf32>
    %236 = arith.negf %235 : vector<2x384xf32>
    %237 = math.exp %236 : vector<2x384xf32>
    %cst_48 = arith.constant 1.000000e+00 : f32
    %238 = vector.broadcast %cst_48 : f32 to vector<2x384xf32>
    %239 = arith.addf %238, %237 : vector<2x384xf32>
    %240 = arith.divf %238, %239 : vector<2x384xf32>
    %c0_49 = arith.constant 0 : index
    %c0_50 = arith.constant 0 : index
    %241 = vector.load %arg4[%c0_49, %c0_50] : memref<384x256xf32, #tpu.memory_space<vmem>>, vector<384x256xf32>
    %cst_51 = arith.constant dense<0.000000e+00> : vector<2x256xf32>
    %242 = tpu.matmul %240, %241, %cst_51 {dimension_numbers = #tpu.dot_dimension_numbers<[1], [0], [0], [1], [0, 0, 1, 1], [], []>} : vector<2x384xf32>, vector<384x256xf32>, vector<2x256xf32> -> vector<2x256xf32>
    %c0_52 = arith.constant 0 : index
    %c0_53 = arith.constant 0 : index
    %243 = vector.load %arg5[%c0_52, %c0_53] : memref<1x256xf32, #tpu.memory_space<vmem>>, vector<1x256xf32>
    %244 = vector.broadcast %243 : vector<1x256xf32> to vector<2x256xf32>
    %245 = arith.addf %242, %244 : vector<2x256xf32>
    %246 = arith.negf %245 : vector<2x256xf32>
    %247 = math.exp %246 : vector<2x256xf32>
    %cst_54 = arith.constant 1.000000e+00 : f32
    %248 = vector.broadcast %cst_54 : f32 to vector<2x256xf32>
    %249 = arith.addf %248, %247 : vector<2x256xf32>
    %250 = arith.divf %248, %249 : vector<2x256xf32>
    %c0_55 = arith.constant 0 : index
    %c0_56 = arith.constant 0 : index
    %251 = vector.load %arg6[%c0_55, %c0_56] : memref<256x64xf32, #tpu.memory_space<vmem>>, vector<256x64xf32>
    %cst_57 = arith.constant dense<0.000000e+00> : vector<2x64xf32>
    %252 = tpu.matmul %250, %251, %cst_57 {dimension_numbers = #tpu.dot_dimension_numbers<[1], [0], [0], [1], [0, 0, 1, 1], [], []>} : vector<2x256xf32>, vector<256x64xf32>, vector<2x64xf32> -> vector<2x64xf32>
    %c0_58 = arith.constant 0 : index
    %c0_59 = arith.constant 0 : index
    %253 = vector.load %arg7[%c0_58, %c0_59] : memref<1x64xf32, #tpu.memory_space<vmem>>, vector<1x64xf32>
    %254 = vector.broadcast %253 : vector<1x64xf32> to vector<2x64xf32>
    %255 = arith.addf %252, %254 : vector<2x64xf32>
    %c0_60 = arith.constant 0 : index
    %c0_61 = arith.constant 0 : index
    %256 = vector.load %arg9[%c0_60, %c0_61] : memref<2x64xf32, #tpu.memory_space<vmem>>, vector<2x64xf32>
    tpu.vector_store %arg9[%c0_60, %c0_61], %255 {strides = array<i32>} : memref<2x64xf32, #tpu.memory_space<vmem>>, vector<2x64xf32>,
    return
  }
}

</mosaic_0001>

<llo_original>
// kernel: capsule_net_forward.3
$region0: #{capsule_net_forward.3}
  #allocation0 [shape = 'u32[]', space=smem, size = 0x4, offset = 0x4, fixed_abs, tag = 'smem constant byte address 0x4 - core index']
  #allocation1 [shape = 'u32[144,128]{1,0:T(1,128)}', space=vmem, size = 0x12000, scoped, tag = 'internal scratch']
  %s0 = inlined_call_operand.vmem [shape: f32[72,9], index: 0, kind: input, shape index: {}]
  %s1 = inlined_call_operand.vmem [shape: f32[9,256], index: 1, kind: input, shape index: {}]
  %s2 = inlined_call_operand.hbm [shape: f32[1,256], index: 2, kind: input, shape index: {}]
  %s3 = inlined_call_operand.vmem [shape: f32[72,256], index: 3, kind: output, shape index: {0}]
  %s4 = inlined_call_operand.vmem [shape: f32[1,256], index: 4, kind: output, shape index: {1}]
  %s5 = inlined_call_operand.vmem [shape: f32[1,256], index: 5, kind: output, shape index: {2}]
  %6 = xla_tuple %s3, %s4, %s5
  %s7 = sld [smem:[#allocation0]]
  $region46: #{capsule_net_forward.3} parent=0
    _
  %s9 = ssub.s32 1, %s7
  %s10 = scalar_select 0, %s9, %s7
  $region1: #{capsule_net_forward.3} parent=0
    #allocation2 [shape = 'u8[1024]{0}', space=vmem, size = 0x400, scoped, tag = 'input window, operand 2, single buffered']
    #allocation3 [shape = 's32[1]{0}', space=sflag, size = 0x4, scoped, tag = 'scoped memory for capsule_net_forward.3']
    %11 = vsyncpa [#allocation3], 0
    // Predicated region
    $region2: #{capsule_net_forward.3} parent=1 // pred_check
      _
    $region3: #{capsule_net_forward.3} parent=1 // pred_check_branch
      %13 = sbr.rel (0) target = $region5
    $region4: #{capsule_net_forward.3} parent=1 // pred_region
      _
    $region5: #{capsule_net_forward.3} parent=1 // pred_fallthru
      _
    // Predicated region
    $region6: #{capsule_net_forward.3} parent=1 // pred_check
      _
    $region7: #{capsule_net_forward.3} parent=1 // pred_check_branch
      %15 = sbr.rel (0) target = $region9
    $region8: #{capsule_net_forward.3} parent=1 // pred_region
      _
    $region9: #{capsule_net_forward.3} parent=1 // pred_fallthru
      _
    // Predicated region
    $region10: #{capsule_net_forward.3} parent=1 // pred_check
      _
    $region11: #{capsule_net_forward.3} parent=1 // pred_check_branch
      %17 = sbr.rel (0) target = $region13
    $region12: #{capsule_net_forward.3} parent=1 // pred_region
      %s19 = ssub.s32 32, 32
      %20 = vsyncadd [#allocation3], %s19
      %s22 = sshll.u32 [#allocation2], 4
      %s23 = int_to_ptr.vmem [resolvable:$true] %s22
      %25 = dma.hbm_to_vmem [thread:$0]  %s2, 32, %s23, [#allocation3]
    $region13: #{capsule_net_forward.3} parent=1 // pred_fallthru
      _
    // Predicated region
    $region14: #{capsule_net_forward.3} parent=1 // pred_check
      _
    $region15: #{capsule_net_forward.3} parent=1 // pred_check_branch
      %27 = sbr.rel (0) target = $region17
    $region16: #{capsule_net_forward.3} parent=1 // pred_region
      %28 = dma.done [#allocation3], 32
    $region17: #{capsule_net_forward.3} parent=1 // pred_fallthru
      _
    %v29 = vld [vmem:[%s0] sm:$0xff]
    %v30 = vld [vmem:[%s0 + $0x8] sm:$0xff]
    %v31 = vld [vmem:[%s0 + $0x10] sm:$0xff]
    %v32 = vld [vmem:[%s0 + $0x18] sm:$0xff]
    %v33 = vld [vmem:[%s0 + $0x20] sm:$0xff]
    %v34 = vld [vmem:[%s0 + $0x28] sm:$0xff]
    %v35 = vld [vmem:[%s0 + $0x30] sm:$0xff]
    %v36 = vld [vmem:[%s0 + $0x38] sm:$0xff]
    %v37 = vld [vmem:[%s0 + $0x40] sm:$0xff]
    %v38 = vld [vmem:[%s1] sm:$0xff]
    %v39 = vld [vmem:[%s1 + $0x8] sm:$0xff]
    %v40 = vld [vmem:[%s1 + $0x10] sm:$0x1]
    %v41 = vld [vmem:[%s1 + $0x18] sm:$0x1]
    %v42 = vld [vmem:[#allocation2] sm:$0x3]
    %v44 = vlaneseq
    %v45 = vshrl.u32 %v44, 7
    %v46 = vsub.s32 0, %v45
    %v47 = vrot.slane %v42, %v46
    %v48 = vlaneseq
    %v49 = vshrl.u32 %v48, 7
    %v50 = vsub.s32 1, %v49
    %v51 = vrot.slane %v42, %v50
    %vm54 = vcmask 72704
    %v56 = vsel %vm54, %v29, 0
    %v59 = vsel %vm54, %v30, 0
    %v62 = vsel %vm54, %v31, 0
    %v65 = vsel %vm54, %v32, 0
    %v68 = vsel %vm54, %v33, 0
    %v71 = vsel %vm54, %v34, 0
    %v74 = vsel %vm54, %v35, 0
    %v77 = vsel %vm54, %v36, 0
    %v80 = vsel %vm54, %v37, 0
    %vm82 = vcmask 1040384
    %v84 = vsel %vm82, %v40, 0
    %v87 = vsel %vm82, %v41, 0
    %89 = vmatprep.subr.mxu0 0.0
    %90 = vmatpush1.msra.mxu0 0.0
    %91 = vmatprep.subr.mxu0 0.0
    %92 = vmatpush1.msra.mxu0 0.0
    %93 = vmatprep.subr.mxu0 0.0
    %94 = vmatpush1.msra.mxu0 0.0
    %95 = vmatprep.subr.mxu0 0.0
    %96 = vmatpush1.msra.mxu0 0.0
    %97 = vmatprep.subr.mxu0 0.0
    %98 = vmatpush1.msra.mxu0 0.0
    %99 = vmatprep.subr.mxu0 0.0
    %100 = vmatpush1.msra.mxu0 0.0
    %101 = vmatprep.subr.mxu0 0.0
    %102 = vmatpush1.msra.mxu0 0.0
    %103 = vmatprep.subr.mxu0 0.0
    %104 = vmatpush1.msra.mxu0 0.0
    %105 = vmatprep.subr.mxu0 0.0
    %106 = vmatpush1.msra.mxu0 0.0
    %107 = vmatprep.subr.mxu0 0.0
    %108 = vmatpush1.msra.mxu0 0.0
    %109 = vmatprep.subr.mxu0 0.0
    %110 = vmatpush1.msra.mxu0 0.0
    %111 = vmatprep.subr.mxu0 0.0
    %112 = vmatpush1.msra.mxu0 0.0
    %113 = vmatprep.subr.mxu0 0.0
    %114 = vmatpush1.msra.mxu0 0.0
    %115 = vmatprep.subr.mxu0 0.0
    %116 = vmatpush1.msra.mxu0 0.0
    %117 = vmatprep.subr.mxu0 %v87
    %118 = vmatpush1.msra.mxu0 %v84
    %119 = vmatprep.subr.mxu0 %v39
    %120 = vmatpush1.msra.mxu0 %v38
    %121 = vmatprep.subr.mxu0 0.0
    %122 = vmatpush2.msra.mxu0 0.0
    %123 = vmatprep.subr.mxu0 0.0
    %124 = vmatpush2.msra.mxu0 0.0
    %125 = vmatprep.subr.mxu0 0.0
    %126 = vmatpush2.msra.mxu0 0.0
    %127 = vmatprep.subr.mxu0 0.0
    %128 = vmatpush2.msra.mxu0 0.0
    %129 = vmatprep.subr.mxu0 0.0
    %130 = vmatpush2.msra.mxu0 0.0
    %131 = vmatprep.subr.mxu0 0.0
    %132 = vmatpush2.msra.mxu0 0.0
    %133 = vmatprep.subr.mxu0 0.0
    %134 = vmatpush2.msra.mxu0 0.0
    %135 = vmatprep.subr.mxu0 0.0
    %136 = vmatpush2.msra.mxu0 0.0
    %137 = vmatprep.subr.mxu0 0.0
    %138 = vmatpush2.msra.mxu0 0.0
    %139 = vmatprep.subr.mxu0 0.0
    %140 = vmatpush2.msra.mxu0 0.0
    %141 = vmatprep.subr.mxu0 0.0
    %142 = vmatpush2.msra.mxu0 0.0
    %143 = vmatprep.subr.mxu0 0.0
    %144 = vmatpush2.msra.mxu0 0.0
    %145 = vmatprep.subr.mxu0 0.0
    %146 = vmatpush2.msra.mxu0 0.0
    %147 = vmatprep.subr.mxu0 0.0
    %148 = vmatpush2.msra.mxu0 0.0
    %149 = vmatprep.subr.mxu0 0.0
    %150 = vmatpush2.msra.mxu0 0.0
    %151 = vmatprep.subr.mxu0 0.0
    %152 = vmatpush2.msra.mxu0 0.0
    %153 = vmatprep.mubr.f32.mxu0 0.0
    %154 = vmatmul.mubr.f32.gmra.mxu0 %v56
    %v155 = vpop.f32.mrf.mxu0
    %v156 = vadd.f32 %v47, %v155
    %v157 = vpop.f32.mrf.mxu0
    %v158 = vadd.f32 %v51, %v157
    %159 = vmatprep.mubr.f32.mxu0 0.0
    %160 = vmatmul.mubr.f32.gmra.mxu0 %v59
    %v161 = vpop.f32.mrf.mxu0
    %v162 = vadd.f32 %v47, %v161
    %v163 = vpop.f32.mrf.mxu0
    %v164 = vadd.f32 %v51, %v163
    %165 = vmatprep.mubr.f32.mxu0 0.0
    %166 = vmatmul.mubr.f32.gmra.mxu0 %v62
    %v167 = vpop.f32.mrf.mxu0
    %v168 = vadd.f32 %v47, %v167
    %v169 = vpop.f32.mrf.mxu0
    %v170 = vadd.f32 %v51, %v169
    %171 = vmatprep.mubr.f32.mxu0 0.0
    %172 = vmatmul.mubr.f32.gmra.mxu0 %v65
    %v173 = vpop.f32.mrf.mxu0
    %v174 = vadd.f32 %v47, %v173
    %v175 = vpop.f32.mrf.mxu0
    %v176 = vadd.f32 %v51, %v175
    %177 = vmatprep.mubr.f32.mxu0 0.0
    %178 = vmatmul.mubr.f32.gmra.mxu0 %v68
    %v179 = vpop.f32.mrf.mxu0
    %v180 = vadd.f32 %v47, %v179
    %v181 = vpop.f32.mrf.mxu0
    %v182 = vadd.f32 %v51, %v181
    %183 = vmatprep.mubr.f32.mxu0 0.0
    %184 = vmatmul.mubr.f32.gmra.mxu0 %v71
    %v185 = vpop.f32.mrf.mxu0
    %v186 = vadd.f32 %v47, %v185
    %v187 = vpop.f32.mrf.mxu0
    %v188 = vadd.f32 %v51, %v187
    %189 = vmatprep.mubr.f32.mxu0 0.0
    %190 = vmatmul.mubr.f32.gmra.mxu0 %v74
    %v191 = vpop.f32.mrf.mxu0
    %v192 = vadd.f32 %v47, %v191
    %v193 = vpop.f32.mrf.mxu0
    %v194 = vadd.f32 %v51, %v193
    %195 = vmatprep.mubr.f32.mxu0 0.0
    %196 = vmatmul.mubr.f32.gmra.mxu0 %v77
    %v197 = vpop.f32.mrf.mxu0
    %v198 = vadd.f32 %v47, %v197
    %v199 = vpop.f32.mrf.mxu0
    %v200 = vadd.f32 %v51, %v199
    %201 = vmatprep.mubr.f32.mxu0 0.0
    %202 = vmatmul.mubr.f32.gmra.mxu0 %v80
    %v203 = vpop.f32.mrf.mxu0
    %v204 = vadd.f32 %v47, %v203
    %v205 = vpop.f32.mrf.mxu0
    %v206 = vadd.f32 %v51, %v205
    %207 = vdwg.mxu0
    %208 = vst [vmem:[%s3] sm:$0xff] %v156
    %209 = vst [vmem:[%s3 + $0x8] sm:$0xff] %v158
    %210 = vst [vmem:[%s3 + $0x10] sm:$0xff] %v162
    %211 = vst [vmem:[%s3 + $0x18] sm:$0xff] %v164
    %212 = vst [vmem:[%s3 + $0x20] sm:$0xff] %v168
    %213 = vst [vmem:[%s3 + $0x28] sm:$0xff] %v170
    %214 = vst [vmem:[%s3 + $0x30] sm:$0xff] %v174
    %215 = vst [vmem:[%s3 + $0x38] sm:$0xff] %v176
    %216 = vst [vmem:[%s3 + $0x40] sm:$0xff] %v180
    %217 = vst [vmem:[%s3 + $0x48] sm:$0xff] %v182
    %218 = vst [vmem:[%s3 + $0x50] sm:$0xff] %v186
    %219 = vst [vmem:[%s3 + $0x58] sm:$0xff] %v188
    %220 = vst [vmem:[%s3 + $0x60] sm:$0xff] %v192
    %221 = vst [vmem:[%s3 + $0x68] sm:$0xff] %v194
    %222 = vst [vmem:[%s3 + $0x70] sm:$0xff] %v198
    %223 = vst [vmem:[%s3 + $0x78] sm:$0xff] %v200
    %224 = vst [vmem:[%s3 + $0x80] sm:$0xff] %v204
    %225 = vst [vmem:[%s3 + $0x88] sm:$0xff] %v206
    %p226 = scmp.eq.s32.totalorder 0, 0
    // Predicated region
    $region18: #{capsule_net_forward.3} parent=1 // pred_check
      %p227 = pneg %p226
    $region19: #{capsule_net_forward.3} parent=1 // pred_check_branch
      %229 = sbr.rel (%p227) target = $region21
    $region20: #{capsule_net_forward.3} parent=1 // pred_region
      %v230 = vlaneseq
      %vm231 = vcmp.ge.s32.totalorder %v230, 0
      %vm232 = vcmp.lt.s32.totalorder %v230, 256
      %vm233 = vmand %vm231, %vm232
      %234 = vst.msk [vmem:[%s4] sm:$0x3] %vm233, 0.0
      %235 = vst.msk [vmem:[%s5] sm:$0x3] %vm233, 0.0
    $region21: #{capsule_net_forward.3} parent=1 // pred_fallthru
      _
    %v236 = vld [vmem:[%s4] sm:$0x3]
    %v237 = vadd.f32 %v156, %v162
    %v238 = vadd.f32 %v237, %v168
    %v239 = vadd.f32 %v238, %v174
    %v240 = vadd.f32 %v239, %v180
    %v241 = vadd.f32 %v240, %v186
    %v242 = vadd.f32 %v241, %v192
    %v243 = vadd.f32 %v242, %v198
    %v244 = vadd.f32 %v243, %v204
    %v245 = vrot.slane %v244, 4
    %v246 = vadd.f32 %v244, %v245
    %v247 = vrot.slane %v246, 2
    %v248 = vadd.f32 %v246, %v247
    %v249 = vrot.slane %v248, 1
    %v250 = vadd.f32 %v248, %v249
    %v251 = vadd.f32 %v158, %v164
    %v252 = vadd.f32 %v251, %v170
    %v253 = vadd.f32 %v252, %v176
    %v254 = vadd.f32 %v253, %v182
    %v255 = vadd.f32 %v254, %v188
    %v256 = vadd.f32 %v255, %v194
    %v257 = vadd.f32 %v256, %v200
    %v258 = vadd.f32 %v257, %v206
    %v259 = vrot.slane %v258, 4
    %v260 = vadd.f32 %v258, %v259
    %v261 = vrot.slane %v260, 2
    %v262 = vadd.f32 %v260, %v261
    %v263 = vrot.slane %v262, 1
    %v264 = vadd.f32 %v262, %v263
    %v267 = vcombine.low %v250, %v264
    %v269 = vunpack.c.l.s4 1966171168
    %v270 = vunpack.c.0.s8 %v269
    %v271 = vlaneseq
    %v272 = vshrl.u32 %v271, 7
    %v273 = vsub.s32 %v270, %v272
    %v274 = vrot.slane %v267, %v273
    %v276 = vunpack.c.l.s4 1966171168
    %v277 = vunpack.c.0.s8 %v276
    %v278 = vlaneseq
    %v279 = vshrl.u32 %v278, 7
    %v280 = vsub.s32 %v277, %v279
    %v281 = vrot.slane %v274, %v280
    %v283 = vadd.f32 %v236, %v281
    %v284 = vlaneseq
    %vm285 = vcmp.ge.s32.totalorder %v284, 0
    %vm286 = vcmp.lt.s32.totalorder %v284, 256
    %vm287 = vmand %vm285, %vm286
    %288 = vst.msk [vmem:[%s4] sm:$0x3] %vm287, %v283
    %v289 = vld [vmem:[%s5] sm:$0x3]
    %v290 = vmul.f32 %v156, %v156
    %v291 = vmul.f32 %v158, %v158
    %v292 = vmul.f32 %v162, %v162
    %v293 = vmul.f32 %v164, %v164
    %v294 = vmul.f32 %v168, %v168
    %v295 = vmul.f32 %v170, %v170
    %v296 = vmul.f32 %v174, %v174
    %v297 = vmul.f32 %v176, %v176
    %v298 = vmul.f32 %v180, %v180
    %v299 = vmul.f32 %v182, %v182
    %v300 = vmul.f32 %v186, %v186
    %v301 = vmul.f32 %v188, %v188
    %v302 = vmul.f32 %v192, %v192
    %v303 = vmul.f32 %v194, %v194
    %v304 = vmul.f32 %v198, %v198
    %v305 = vmul.f32 %v200, %v200
    %v306 = vmul.f32 %v204, %v204
    %v307 = vmul.f32 %v206, %v206
    %v308 = vadd.f32 %v290, %v292
    %v309 = vadd.f32 %v308, %v294
    %v310 = vadd.f32 %v309, %v296
    %v311 = vadd.f32 %v310, %v298
    %v312 = vadd.f32 %v311, %v300
    %v313 = vadd.f32 %v312, %v302
    %v314 = vadd.f32 %v313, %v304
    %v315 = vadd.f32 %v314, %v306
    %v316 = vrot.slane %v315, 4
    %v317 = vadd.f32 %v315, %v316
    %v318 = vrot.slane %v317, 2
    %v319 = vadd.f32 %v317, %v318
    %v320 = vrot.slane %v319, 1
    %v321 = vadd.f32 %v319, %v320
    %v322 = vadd.f32 %v291, %v293
    %v323 = vadd.f32 %v322, %v295
    %v324 = vadd.f32 %v323, %v297
    %v325 = vadd.f32 %v324, %v299
    %v326 = vadd.f32 %v325, %v301
    %v327 = vadd.f32 %v326, %v303
    %v328 = vadd.f32 %v327, %v305
    %v329 = vadd.f32 %v328, %v307
    %v330 = vrot.slane %v329, 4
    %v331 = vadd.f32 %v329, %v330
    %v332 = vrot.slane %v331, 2
    %v333 = vadd.f32 %v331, %v332
    %v334 = vrot.slane %v333, 1
    %v335 = vadd.f32 %v333, %v334
    %v338 = vcombine.low %v321, %v335
    %v340 = vunpack.c.l.s4 1966171168
    %v341 = vunpack.c.0.s8 %v340
    %v342 = vlaneseq
    %v343 = vshrl.u32 %v342, 7
    %v344 = vsub.s32 %v341, %v343
    %v345 = vrot.slane %v338, %v344
    %v347 = vunpack.c.l.s4 1966171168
    %v348 = vunpack.c.0.s8 %v347
    %v349 = vlaneseq
    %v350 = vshrl.u32 %v349, 7
    %v351 = vsub.s32 %v348, %v350
    %v352 = vrot.slane %v345, %v351
    %v354 = vadd.f32 %v289, %v352
    %355 = vst.msk [vmem:[%s5] sm:$0x3] %vm287, %v354
    // Predicated region
    $region22: #{capsule_net_forward.3} parent=1 // pred_check
      _
    $region23: #{capsule_net_forward.3} parent=1 // pred_check_branch
      %357 = sbr.rel (0) target = $region25
    $region24: #{capsule_net_forward.3} parent=1 // pred_region
      _
    $region25: #{capsule_net_forward.3} parent=1 // pred_fallthru
      _
    // Predicated region
    $region26: #{capsule_net_forward.3} parent=1 // pred_check
      _
    $region27: #{capsule_net_forward.3} parent=1 // pred_check_branch
      %359 = sbr.rel (0) target = $region29
    $region28: #{capsule_net_forward.3} parent=1 // pred_region
      _
    $region29: #{capsule_net_forward.3} parent=1 // pred_fallthru
      _
    // Predicated region
    $region30: #{capsule_net_forward.3} parent=1 // pred_check
      _
    $region31: #{capsule_net_forward.3} parent=1 // pred_check_branch
      %361 = sbr.rel (0) target = $region33
    $region32: #{capsule_net_forward.3} parent=1 // pred_region
      _
    $region33: #{capsule_net_forward.3} parent=1 // pred_fallthru
      _
    // Predicated region
    $region34: #{capsule_net_forward.3} parent=1 // pred_check
      _
    $region35: #{capsule_net_forward.3} parent=1 // pred_check_branch
      %363 = sbr.rel (0) target = $region37
    $region36: #{capsule_net_forward.3} parent=1 // pred_region
      _
    $region37: #{capsule_net_forward.3} parent=1 // pred_fallthru
      _
    // Predicated region
    $region38: #{capsule_net_forward.3} parent=1 // pred_check
      _
    $region39: #{capsule_net_forward.3} parent=1 // pred_check_branch
      %365 = sbr.rel (0) target = $region41
    $region40: #{capsule_net_forward.3} parent=1 // pred_region
      _
    $region41: #{capsule_net_forward.3} parent=1 // pred_fallthru
      _
    // Predicated region
    $region42: #{capsule_net_forward.3} parent=1 // pred_check
      _
    $region43: #{capsule_net_forward.3} parent=1 // pred_check_branch
      %367 = sbr.rel (0) target = $region45
    $region44: #{capsule_net_forward.3} parent=1 // pred_region
      _
    $region45: #{capsule_net_forward.3} parent=1 // pred_fallthru
      _
    %368 = vsyncpa [#allocation3], 1

// kernel: capsule_net_forward.4
$region0: #{capsule_net_forward.4}
  #allocation0 [shape = 'u32[]', space=smem, size = 0x4, offset = 0x4, fixed_abs, tag = 'smem constant byte address 0x4 - core index']
  #allocation1 [shape = 'u32[144,128]{1,0:T(1,128)}', space=vmem, size = 0x12000, scoped, tag = 'internal scratch']
  %s0 = inlined_call_operand.vmem [shape: f32[32,2304], index: 0, kind: input, shape index: {}]
  %s1 = inlined_call_operand.vmem [shape: f32[1,2304], index: 1, kind: input, shape index: {}]
  %s2 = inlined_call_operand.vmem [shape: f32[1,2304], index: 2, kind: input, shape index: {}]
  %s3 = inlined_call_operand.vmem [shape: bf16[2304,256], index: 3, kind: input, shape index: {}]
  %s4 = inlined_call_operand.vmem [shape: f32[1,256], index: 4, kind: input, shape index: {}]
  %s5 = inlined_call_operand.vmem [shape: f32[32,256], index: 5, kind: output, shape index: {}]
  %s6 = sld [smem:[#allocation0]]
  $region30: #{capsule_net_forward.4} parent=0
    _
  %s8 = ssub.s32 1, %s6
  %s9 = scalar_select 0, %s8, %s6
  // Predicated region
  $region2: #{capsule_net_forward.4} parent=0 // pred_check
    _
  $region3: #{capsule_net_forward.4} parent=0 // pred_check_branch
    %11 = sbr.rel (0) target = $region5
  $region4: #{capsule_net_forward.4} parent=0 // pred_region
    _
  $region5: #{capsule_net_forward.4} parent=0 // pred_fallthru
    _
  // Predicated region
  $region6: #{capsule_net_forward.4} parent=0 // pred_check
    _
  $region7: #{capsule_net_forward.4} parent=0 // pred_check_branch
    %13 = sbr.rel (0) target = $region9
  $region8: #{capsule_net_forward.4} parent=0 // pred_region
    _
  $region9: #{capsule_net_forward.4} parent=0 // pred_fallthru
    _
  // Predicated region
  $region10: #{capsule_net_forward.4} parent=0 // pred_check
    _
  $region11: #{capsule_net_forward.4} parent=0 // pred_check_branch
    %15 = sbr.rel (0) target = $region13
  $region12: #{capsule_net_forward.4} parent=0 // pred_region
    _
  $region13: #{capsule_net_forward.4} parent=0 // pred_fallthru
    _
  // Predicated region
  $region14: #{capsule_net_forward.4} parent=0 // pred_check
    _
  $region15: #{capsule_net_forward.4} parent=0 // pred_check_branch
    %17 = sbr.rel (0) target = $region17
  $region16: #{capsule_net_forward.4} parent=0 // pred_region
    _
  $region17: #{capsule_net_forward.4} parent=0 // pred_fallthru
    _
  // Predicated region
  $region18: #{capsule_net_forward.4} parent=0 // pred_check
    _
  $region19: #{capsule_net_forward.4} parent=0 // pred_check_branch
    %19 = sbr.rel (0) target = $region21
  $region20: #{capsule_net_forward.4} parent=0 // pred_region
    _
  $region21: #{capsule_net_forward.4} parent=0 // pred_fallthru
    _
  %v20 = vld [vmem:[%s0] sm:$0xff]
  %v21 = vld [vmem:[%s0 + $0x8] sm:$0xff]
  %v22 = vld [vmem:[%s0 + $0x10] sm:$0xff]
  %v23 = vld [vmem:[%s0 + $0x18] sm:$0xff]
  %v24 = vld [vmem:[%s0 + $0x20] sm:$0xff]
  %v25 = vld [vmem:[%s0 + $0x28] sm:$0xff]
  %v26 = vld [vmem:[%s0 + $0x30] sm:$0xff]
  %v27 = vld [vmem:[%s0 + $0x38] sm:$0xff]
  %v28 = vld [vmem:[%s0 + $0x40] sm:$0xff]
  %v29 = vld [vmem:[%s0 + $0x48] sm:$0xff]
  %v30 = vld [vmem:[%s0 + $0x50] sm:$0xff]
  %v31 = vld [vmem:[%s0 + $0x58] sm:$0xff]
  %v32 = vld [vmem:[%s0 + $0x60] sm:$0xff]
  %v33 = vld [vmem:[%s0 + $0x68] sm:$0xff]
  %v34 = vld [vmem:[%s0 + $0x70] sm:$0xff]
  %v35 = vld [vmem:[%s0 + $0x78] sm:$0xff]
  %v36 = vld [vmem:[%s0 + $0x80] sm:$0xff]
  %v37 = vld [vmem:[%s0 + $0x88] sm:$0xff]
  %v38 = vld [vmem:[%s0 + $0x90] sm:$0xff]
  %v39 = vld [vmem:[%s0 + $0x98] sm:$0xff]
  %v40 = vld [vmem:[%s0 + $0xa0] sm:$0xff]
  %v41 = vld [vmem:[%s0 + $0xa8] sm:$0xff]
  %v42 = vld [vmem:[%s0 + $0xb0] sm:$0xff]
  %v43 = vld [vmem:[%s0 + $0xb8] sm:$0xff]
  %v44 = vld [vmem:[%s0 + $0xc0] sm:$0xff]
  %v45 = vld [vmem:[%s0 + $0xc8] sm:$0xff]
  %v46 = vld [vmem:[%s0 + $0xd0] sm:$0xff]
  %v47 = vld [vmem:[%s0 + $0xd8] sm:$0xff]
  %v48 = vld [vmem:[%s0 + $0xe0] sm:$0xff]
  %v49 = vld [vmem:[%s0 + $0xe8] sm:$0xff]
  %v50 = vld [vmem:[%s0 + $0xf0] sm:$0xff]
  %v51 = vld [vmem:[%s0 + $0xf8] sm:$0xff]
  %v52 = vld [vmem:[%s0 + $0x100] sm:$0xff]
  %v53 = vld [vmem:[%s0 + $0x108] sm:$0xff]
  %v54 = vld [vmem:[%s0 + $0x110] sm:$0xff]
  %v55 = vld [vmem:[%s0 + $0x118] sm:$0xff]
  %v56 = vld [vmem:[%s0 + $0x120] sm:$0xff]
  %v57 = vld [vmem:[%s0 + $0x128] sm:$0xff]
  %v58 = vld [vmem:[%s0 + $0x130] sm:$0xff]
  %v59 = vld [vmem:[%s0 + $0x138] sm:$0xff]
  %v60 = vld [vmem:[%s0 + $0x140] sm:$0xff]
  %v61 = vld [vmem:[%s0 + $0x148] sm:$0xff]
  %v62 = vld [vmem:[%s0 + $0x150] sm:$0xff]
  %v63 = vld [vmem:[%s0 + $0x158] sm:$0xff]
  %v64 = vld [vmem:[%s0 + $0x160] sm:$0xff]
  %v65 = vld [vmem:[%s0 + $0x168] sm:$0xff]
  %v66 = vld [vmem:[%s0 + $0x170] sm:$0xff]
  %v67 = vld [vmem:[%s0 + $0x178] sm:$0xff]
  %v68 = vld [vmem:[%s0 + $0x180] sm:$0xff]
  %v69 = vld [vmem:[%s0 + $0x188] sm:$0xff]
  %v70 = vld [vmem:[%s0 + $0x190] sm:$0xff]
  %v71 = vld [vmem:[%s0 + $0x198] sm:$0xff]
  %v72 = vld [vmem:[%s0 + $0x1a0] sm:$0xff]
  %v73 = vld [vmem:[%s0 + $0x1a8] sm:$0xff]
  %v74 = vld [vmem:[%s0 + $0x1b0] sm:$0xff]
  %v75 = vld [vmem:[%s0 + $0x1b8] sm:$0xff]
  %v76 = vld [vmem:[%s0 + $0x1c0] sm:$0xff]
  %v77 = vld [vmem:[%s0 + $0x1c8] sm:$0xff]
  %v78 = vld [vmem:[%s0 + $0x1d0] sm:$0xff]
  %v79 = vld [vmem:[%s0 + $0x1d8] sm:$0xff]
  %v80 = vld [vmem:[%s0 + $0x1e0] sm:$0xff]
  %v81 = vld [vmem:[%s0 + $0x1e8] sm:$0xff]
  %v82 = vld [vmem:[%s0 + $0x1f0] sm:$0xff]
  %v83 = vld [vmem:[%s0 + $0x1f8] sm:$0xff]
  %v84 = vld [vmem:[%s0 + $0x200] sm:$0xff]
  %v85 = vld [vmem:[%s0 + $0x208] sm:$0xff]
  %v86 = vld [vmem:[%s0 + $0x210] sm:$0xff]
  %v87 = vld [vmem:[%s0 + $0x218] sm:$0xff]
  %v88 = vld [vmem:[%s0 + $0x220] sm:$0xff]
  %v89 = vld [vmem:[%s0 + $0x228] sm:$0xff]
  %v90 = vld [vmem:[%s0 + $0x230] sm:$0xff]
  %v91 = vld [vmem:[%s0 + $0x238] sm:$0xff]
  %v92 = vld [vmem:[%s1] sm:$0xff]
  %v93 = vld [vmem:[%s1 + $0x8] sm:$0xff]
  %v94 = vld [vmem:[%s1 + $0x10] sm:$0x3]
  %v98 = vlaneseq
  %v99 = vshrl.u32 %v98, 7
  %v100 = vsub.s32 0, %v99
  %v101 = vrot.slane %v92, %v100
  %v102 = vlaneseq
  %v103 = vshrl.u32 %v102, 7
  %v104 = vsub.s32 1, %v103
  %v105 = vrot.slane %v92, %v104
  %v106 = vlaneseq
  %v107 = vshrl.u32 %v106, 7
  %v108 = vsub.s32 2, %v107
  %v109 = vrot.slane %v92, %v108
  %v110 = vlaneseq
  %v111 = vshrl.u32 %v110, 7
  %v112 = vsub.s32 3, %v111
  %v113 = vrot.slane %v92, %v112
  %v114 = vlaneseq
  %v115 = vshrl.u32 %v114, 7
  %v116 = vsub.s32 4, %v115
  %v117 = vrot.slane %v92, %v116
  %v118 = vlaneseq
  %v119 = vshrl.u32 %v118, 7
  %v120 = vsub.s32 5, %v119
  %v121 = vrot.slane %v92, %v120
  %v122 = vlaneseq
  %v123 = vshrl.u32 %v122, 7
  %v124 = vsub.s32 6, %v123
  %v125 = vrot.slane %v92, %v124
  %v126 = vlaneseq
  %v127 = vshrl.u32 %v126, 7
  %v128 = vsub.s32 7, %v127
  %v129 = vrot.slane %v92, %v128
  %v130 = vlaneseq
  %v131 = vshrl.u32 %v130, 7
  %v132 = vsub.s32 0, %v131
  %v133 = vrot.slane %v93, %v132
  %v134 = vlaneseq
  %v135 = vshrl.u32 %v134, 7
  %v136 = vsub.s32 1, %v135
  %v137 = vrot.slane %v93, %v136
  %v138 = vlaneseq
  %v139 = vshrl.u32 %v138, 7
  %v140 = vsub.s32 2, %v139
  %v141 = vrot.slane %v93, %v140
  %v142 = vlaneseq
  %v143 = vshrl.u32 %v142, 7
  %v144 = vsub.s32 3, %v143
  %v145 = vrot.slane %v93, %v144
  %v146 = vlaneseq
  %v147 = vshrl.u32 %v146, 7
  %v148 = vsub.s32 4, %v147
  %v149 = vrot.slane %v93, %v148
  %v150 = vlaneseq
  %v151 = vshrl.u32 %v150, 7
  %v152 = vsub.s32 5, %v151
  %v153 = vrot.slane %v93, %v152
  %v154 = vlaneseq
  %v155 = vshrl.u32 %v154, 7
  %v156 = vsub.s32 6, %v155
  %v157 = vrot.slane %v93, %v156
  %v158 = vlaneseq
  %v159 = vshrl.u32 %v158, 7
  %v160 = vsub.s32 7, %v159
  %v161 = vrot.slane %v93, %v160
  %v162 = vlaneseq
  %v163 = vshrl.u32 %v162, 7
  %v164 = vsub.s32 0, %v163
  %v165 = vrot.slane %v94, %v164
  %v166 = vlaneseq
  %v167 = vshrl.u32 %v166, 7
  %v168 = vsub.s32 1, %v167
  %v169 = vrot.slane %v94, %v168
  %v188 = vmul.f32 %v20, %v101
  %v189 = vmul.f32 %v21, %v105
  %v190 = vmul.f32 %v22, %v109
  %v191 = vmul.f32 %v23, %v113
  %v192 = vmul.f32 %v24, %v117
  %v193 = vmul.f32 %v25, %v121
  %v194 = vmul.f32 %v26, %v125
  %v195 = vmul.f32 %v27, %v129
  %v196 = vmul.f32 %v28, %v133
  %v197 = vmul.f32 %v29, %v137
  %v198 = vmul.f32 %v30, %v141
  %v199 = vmul.f32 %v31, %v145
  %v200 = vmul.f32 %v32, %v149
  %v201 = vmul.f32 %v33, %v153
  %v202 = vmul.f32 %v34, %v157
  %v203 = vmul.f32 %v35, %v161
  %v204 = vmul.f32 %v36, %v165
  %v205 = vmul.f32 %v37, %v169
  %v206 = vmul.f32 %v38, %v101
  %v207 = vmul.f32 %v39, %v105
  %v208 = vmul.f32 %v40, %v109
  %v209 = vmul.f32 %v41, %v113
  %v210 = vmul.f32 %v42, %v117
  %v211 = vmul.f32 %v43, %v121
  %v212 = vmul.f32 %v44, %v125
  %v213 = vmul.f32 %v45, %v129
  %v214 = vmul.f32 %v46, %v133
  %v215 = vmul.f32 %v47, %v137
  %v216 = vmul.f32 %v48, %v141
  %v217 = vmul.f32 %v49, %v145
  %v218 = vmul.f32 %v50, %v149
  %v219 = vmul.f32 %v51, %v153
  %v220 = vmul.f32 %v52, %v157
  %v221 = vmul.f32 %v53, %v161
  %v222 = vmul.f32 %v54, %v165
  %v223 = vmul.f32 %v55, %v169
  %v224 = vmul.f32 %v56, %v101
  %v225 = vmul.f32 %v57, %v105
  %v226 = vmul.f32 %v58, %v109
  %v227 = vmul.f32 %v59, %v113
  %v228 = vmul.f32 %v60, %v117
  %v229 = vmul.f32 %v61, %v121
  %v230 = vmul.f32 %v62, %v125
  %v231 = vmul.f32 %v63, %v129
  %v232 = vmul.f32 %v64, %v133
  %v233 = vmul.f32 %v65, %v137
  %v234 = vmul.f32 %v66, %v141
  %v235 = vmul.f32 %v67, %v145
  %v236 = vmul.f32 %v68, %v149
  %v237 = vmul.f32 %v69, %v153
  %v238 = vmul.f32 %v70, %v157
  %v239 = vmul.f32 %v71, %v161
  %v240 = vmul.f32 %v72, %v165
  %v241 = vmul.f32 %v73, %v169
  %v242 = vmul.f32 %v74, %v101
  %v243 = vmul.f32 %v75, %v105
  %v244 = vmul.f32 %v76, %v109
  %v245 = vmul.f32 %v77, %v113
  %v246 = vmul.f32 %v78, %v117
  %v247 = vmul.f32 %v79, %v121
  %v248 = vmul.f32 %v80, %v125
  %v249 = vmul.f32 %v81, %v129
  %v250 = vmul.f32 %v82, %v133
  %v251 = vmul.f32 %v83, %v137
  %v252 = vmul.f32 %v84, %v141
  %v253 = vmul.f32 %v85, %v145
  %v254 = vmul.f32 %v86, %v149
  %v255 = vmul.f32 %v87, %v153
  %v256 = vmul.f32 %v88, %v157
  %v257 = vmul.f32 %v89, %v161
  %v258 = vmul.f32 %v90, %v165
  %v259 = vmul.f32 %v91, %v169
  %v260 = vld [vmem:[%s2] sm:$0xff]
  %v261 = vld [vmem:[%s2 + $0x8] sm:$0xff]
  %v262 = vld [vmem:[%s2 + $0x10] sm:$0x3]
  %v266 = vlaneseq
  %v267 = vshrl.u32 %v266, 7
  %v268 = vsub.s32 0, %v267
  %v269 = vrot.slane %v260, %v268
  %v270 = vlaneseq
  %v271 = vshrl.u32 %v270, 7
  %v272 = vsub.s32 1, %v271
  %v273 = vrot.slane %v260, %v272
  %v274 = vlaneseq
  %v275 = vshrl.u32 %v274, 7
  %v276 = vsub.s32 2, %v275
  %v277 = vrot.slane %v260, %v276
  %v278 = vlaneseq
  %v279 = vshrl.u32 %v278, 7
  %v280 = vsub.s32 3, %v279
  %v281 = vrot.slane %v260, %v280
  %v282 = vlaneseq
  %v283 = vshrl.u32 %v282, 7
  %v284 = vsub.s32 4, %v283
  %v285 = vrot.slane %v260, %v284
  %v286 = vlaneseq
  %v287 = vshrl.u32 %v286, 7
  %v288 = vsub.s32 5, %v287
  %v289 = vrot.slane %v260, %v288
  %v290 = vlaneseq
  %v291 = vshrl.u32 %v290, 7
  %v292 = vsub.s32 6, %v291
  %v293 = vrot.slane %v260, %v292
  %v294 = vlaneseq
  %v295 = vshrl.u32 %v294, 7
  %v296 = vsub.s32 7, %v295
  %v297 = vrot.slane %v260, %v296
  %v298 = vlaneseq
  %v299 = vshrl.u32 %v298, 7
  %v300 = vsub.s32 0, %v299
  %v301 = vrot.slane %v261, %v300
  %v302 = vlaneseq
  %v303 = vshrl.u32 %v302, 7
  %v304 = vsub.s32 1, %v303
  %v305 = vrot.slane %v261, %v304
  %v306 = vlaneseq
  %v307 = vshrl.u32 %v306, 7
  %v308 = vsub.s32 2, %v307
  %v309 = vrot.slane %v261, %v308
  %v310 = vlaneseq
  %v311 = vshrl.u32 %v310, 7
  %v312 = vsub.s32 3, %v311
  %v313 = vrot.slane %v261, %v312
  %v314 = vlaneseq
  %v315 = vshrl.u32 %v314, 7
  %v316 = vsub.s32 4, %v315
  %v317 = vrot.slane %v261, %v316
  %v318 = vlaneseq
  %v319 = vshrl.u32 %v318, 7
  %v320 = vsub.s32 5, %v319
  %v321 = vrot.slane %v261, %v320
  %v322 = vlaneseq
  %v323 = vshrl.u32 %v322, 7
  %v324 = vsub.s32 6, %v323
  %v325 = vrot.slane %v261, %v324
  %v326 = vlaneseq
  %v327 = vshrl.u32 %v326, 7
  %v328 = vsub.s32 7, %v327
  %v329 = vrot.slane %v261, %v328
  %v330 = vlaneseq
  %v331 = vshrl.u32 %v330, 7
  %v332 = vsub.s32 0, %v331
  %v333 = vrot.slane %v262, %v332
  %v334 = vlaneseq
  %v335 = vshrl.u32 %v334, 7
  %v336 = vsub.s32 1, %v335
  %v337 = vrot.slane %v262, %v336
  %v356 = vadd.f32 %v188, %v269
  %v357 = vadd.f32 %v189, %v273
  %v358 = vadd.f32 %v190, %v277
  %v359 = vadd.f32 %v191, %v281
  %v360 = vadd.f32 %v192, %v285
  %v361 = vadd.f32 %v193, %v289
  %v362 = vadd.f32 %v194, %v293
  %v363 = vadd.f32 %v195, %v297
  %v364 = vadd.f32 %v196, %v301
  %v365 = vadd.f32 %v197, %v305
  %v366 = vadd.f32 %v198, %v309
  %v367 = vadd.f32 %v199, %v313
  %v368 = vadd.f32 %v200, %v317
  %v369 = vadd.f32 %v201, %v321
  %v370 = vadd.f32 %v202, %v325
  %v371 = vadd.f32 %v203, %v329
  %v372 = vadd.f32 %v204, %v333
  %v373 = vadd.f32 %v205, %v337
  %v374 = vadd.f32 %v206, %v269
  %v375 = vadd.f32 %v207, %v273
  %v376 = vadd.f32 %v208, %v277
  %v377 = vadd.f32 %v209, %v281
  %v378 = vadd.f32 %v210, %v285
  %v379 = vadd.f32 %v211, %v289
  %v380 = vadd.f32 %v212, %v293
  %v381 = vadd.f32 %v213, %v297
  %v382 = vadd.f32 %v214, %v301
  %v383 = vadd.f32 %v215, %v305
  %v384 = vadd.f32 %v216, %v309
  %v385 = vadd.f32 %v217, %v313
  %v386 = vadd.f32 %v218, %v317
  %v387 = vadd.f32 %v219, %v321
  %v388 = vadd.f32 %v220, %v325
  %v389 = vadd.f32 %v221, %v329
  %v390 = vadd.f32 %v222, %v333
  %v391 = vadd.f32 %v223, %v337
  %v392 = vadd.f32 %v224, %v269
  %v393 = vadd.f32 %v225, %v273
  %v394 = vadd.f32 %v226, %v277
  %v395 = vadd.f32 %v227, %v281
  %v396 = vadd.f32 %v228, %v285
  %v397 = vadd.f32 %v229, %v289
  %v398 = vadd.f32 %v230, %v293
  %v399 = vadd.f32 %v231, %v297
  %v400 = vadd.f32 %v232, %v301
  %v401 = vadd.f32 %v233, %v305
  %v402 = vadd.f32 %v234, %v309
  %v403 = vadd.f32 %v235, %v313
  %v404 = vadd.f32 %v236, %v317
  %v405 = vadd.f32 %v237, %v321
  %v406 = vadd.f32 %v238, %v325
  %v407 = vadd.f32 %v239, %v329
  %v408 = vadd.f32 %v240, %v333
  %v409 = vadd.f32 %v241, %v337
  %v410 = vadd.f32 %v242, %v269
  %v411 = vadd.f32 %v243, %v273
  %v412 = vadd.f32 %v244, %v277
  %v413 = vadd.f32 %v245, %v281
  %v414 = vadd.f32 %v246, %v285
  %v415 = vadd.f32 %v247, %v289
  %v416 = vadd.f32 %v248, %v293
  %v417 = vadd.f32 %v249, %v297
  %v418 = vadd.f32 %v250, %v301
  %v419 = vadd.f32 %v251, %v305
  %v420 = vadd.f32 %v252, %v309
  %v421 = vadd.f32 %v253, %v313
  %v422 = vadd.f32 %v254, %v317
  %v423 = vadd.f32 %v255, %v321
  %v424 = vadd.f32 %v256, %v325
  %v425 = vadd.f32 %v257, %v329
  %v426 = vadd.f32 %v258, %v333
  %v427 = vadd.f32 %v259, %v337
  %v428 = vmax.f32 %v356, 0.0
  %v429 = vmax.f32 %v357, 0.0
  %v430 = vmax.f32 %v358, 0.0
  %v431 = vmax.f32 %v359, 0.0
  %v432 = vmax.f32 %v360, 0.0
  %v433 = vmax.f32 %v361, 0.0
  %v434 = vmax.f32 %v362, 0.0
  %v435 = vmax.f32 %v363, 0.0
  %v436 = vmax.f32 %v364, 0.0
  %v437 = vmax.f32 %v365, 0.0
  %v438 = vmax.f32 %v366, 0.0
  %v439 = vmax.f32 %v367, 0.0
  %v440 = vmax.f32 %v368, 0.0
  %v441 = vmax.f32 %v369, 0.0
  %v442 = vmax.f32 %v370, 0.0
  %v443 = vmax.f32 %v371, 0.0
  %v444 = vmax.f32 %v372, 0.0
  %v445 = vmax.f32 %v373, 0.0
  %v446 = vmax.f32 %v374, 0.0
  %v447 = vmax.f32 %v375, 0.0
  %v448 = vmax.f32 %v376, 0.0
  %v449 = vmax.f32 %v377, 0.0
  %v450 = vmax.f32 %v378, 0.0
  %v451 = vmax.f32 %v379, 0.0
  %v452 = vmax.f32 %v380, 0.0
  %v453 = vmax.f32 %v381, 0.0
  %v454 = vmax.f32 %v382, 0.0
  %v455 = vmax.f32 %v383, 0.0
  %v456 = vmax.f32 %v384, 0.0
  %v457 = vmax.f32 %v385, 0.0
  %v458 = vmax.f32 %v386, 0.0
  %v459 = vmax.f32 %v387, 0.0
  %v460 = vmax.f32 %v388, 0.0
  %v461 = vmax.f32 %v389, 0.0
  %v462 = vmax.f32 %v390, 0.0
  %v463 = vmax.f32 %v391, 0.0
  %v464 = vmax.f32 %v392, 0.0
  %v465 = vmax.f32 %v393, 0.0
  %v466 = vmax.f32 %v394, 0.0
  %v467 = vmax.f32 %v395, 0.0
  %v468 = vmax.f32 %v396, 0.0
  %v469 = vmax.f32 %v397, 0.0
  %v470 = vmax.f32 %v398, 0.0
  %v471 = vmax.f32 %v399, 0.0
  %v472 = vmax.f32 %v400, 0.0
  %v473 = vmax.f32 %v401, 0.0
  %v474 = vmax.f32 %v402, 0.0
  %v475 = vmax.f32 %v403, 0.0
  %v476 = vmax.f32 %v404, 0.0
  %v477 = vmax.f32 %v405, 0.0
  %v478 = vmax.f32 %v406, 0.0
  %v479 = vmax.f32 %v407, 0.0
  %v480 = vmax.f32 %v408, 0.0
  %v481 = vmax.f32 %v409, 0.0
  %v482 = vmax.f32 %v410, 0.0
  %v483 = vmax.f32 %v411, 0.0
  %v484 = vmax.f32 %v412, 0.0
  %v485 = vmax.f32 %v413, 0.0
  %v486 = vmax.f32 %v414, 0.0
  %v487 = vmax.f32 %v415, 0.0
  %v488 = vmax.f32 %v416, 0.0
  %v489 = vmax.f32 %v417, 0.0
  %v490 = vmax.f32 %v418, 0.0
  %v491 = vmax.f32 %v419, 0.0
  %v492 = vmax.f32 %v420, 0.0
  %v493 = vmax.f32 %v421, 0.0
  %v494 = vmax.f32 %v422, 0.0
  %v495 = vmax.f32 %v423, 0.0
  %v496 = vmax.f32 %v424, 0.0
  %v497 = vmax.f32 %v425, 0.0
  %v498 = vmax.f32 %v426, 0.0
  %v499 = vmax.f32 %v427, 0.0
  %v500 = vpack.c.bf16 %v446, %v428
  %v501 = vpack.c.bf16 %v447, %v429
  %v502 = vpack.c.bf16 %v448, %v430
  %v503 = vpack.c.bf16 %v449, %v431
  %v504 = vpack.c.bf16 %v450, %v432
  %v505 = vpack.c.bf16 %v451, %v433
  %v506 = vpack.c.bf16 %v452, %v434
  %v507 = vpack.c.bf16 %v453, %v435
  %v508 = vpack.c.bf16 %v454, %v436
  %v509 = vpack.c.bf16 %v455, %v437
  %v510 = vpack.c.bf16 %v456, %v438
  %v511 = vpack.c.bf16 %v457, %v439
  %v512 = vpack.c.bf16 %v458, %v440
  %v513 = vpack.c.bf16 %v459, %v441
  %v514 = vpack.c.bf16 %v460, %v442
  %v515 = vpack.c.bf16 %v461, %v443
  %v516 = vpack.c.bf16 %v462, %v444
  %v517 = vpack.c.bf16 %v463, %v445
  %v518 = vpack.c.bf16 %v482, %v464
  %v519 = vpack.c.bf16 %v483, %v465
  %v520 = vpack.c.bf16 %v484, %v466
  %v521 = vpack.c.bf16 %v485, %v467
  %v522 = vpack.c.bf16 %v486, %v468
  %v523 = vpack.c.bf16 %v487, %v469
  %v524 = vpack.c.bf16 %v488, %v470
  %v525 = vpack.c.bf16 %v489, %v471
  %v526 = vpack.c.bf16 %v490, %v472
  %v527 = vpack.c.bf16 %v491, %v473
  %v528 = vpack.c.bf16 %v492, %v474
  %v529 = vpack.c.bf16 %v493, %v475
  %v530 = vpack.c.bf16 %v494, %v476
  %v531 = vpack.c.bf16 %v495, %v477
  %v532 = vpack.c.bf16 %v496, %v478
  %v533 = vpack.c.bf16 %v497, %v479
  %v534 = vpack.c.bf16 %v498, %v480
  %v535 = vpack.c.bf16 %v499, %v481
  %v536 = vld [vmem:[%s3] sm:$0xff]
  %v537 = vld [vmem:[%s3 + $0x8] sm:$0xff]
  %v538 = vld [vmem:[%s3 + $0x10] sm:$0xff]
  %v539 = vld [vmem:[%s3 + $0x18] sm:$0xff]
  %v540 = vld [vmem:[%s3 + $0x20] sm:$0xff]
  %v541 = vld [vmem:[%s3 + $0x28] sm:$0xff]
  %v542 = vld [vmem:[%s3 + $0x30] sm:$0xff]
  %v543 = vld [vmem:[%s3 + $0x38] sm:$0xff]
  %v544 = vld [vmem:[%s3 + $0x40] sm:$0xff]
  %v545 = vld [vmem:[%s3 + $0x48] sm:$0xff]
  %v546 = vld [vmem:[%s3 + $0x50] sm:$0xff]
  %v547 = vld [vmem:[%s3 + $0x58] sm:$0xff]
  %v548 = vld [vmem:[%s3 + $0x60] sm:$0xff]
  %v549 = vld [vmem:[%s3 + $0x68] sm:$0xff]
  %v550 = vld [vmem:[%s3 + $0x70] sm:$0xff]
  %v551 = vld [vmem:[%s3 + $0x78] sm:$0xff]
  %v552 = vld [vmem:[%s3 + $0x80] sm:$0xff]
  %v553 = vld [vmem:[%s3 + $0x88] sm:$0xff]
  %v554 = vld [vmem:[%s3 + $0x90] sm:$0xff]
  %v555 = vld [vmem:[%s3 + $0x98] sm:$0xff]
  %v556 = vld [vmem:[%s3 + $0xa0] sm:$0xff]
  %v557 = vld [vmem:[%s3 + $0xa8] sm:$0xff]
  %v558 = vld [vmem:[%s3 + $0xb0] sm:$0xff]
  %v559 = vld [vmem:[%s3 + $0xb8] sm:$0xff]
  %v560 = vld [vmem:[%s3 + $0xc0] sm:$0xff]
  %v561 = vld [vmem:[%s3 + $0xc8] sm:$0xff]
  %v562 = vld [vmem:[%s3 + $0xd0] sm:$0xff]
  %v563 = vld [vmem:[%s3 + $0xd8] sm:$0xff]
  %v564 = vld [vmem:[%s3 + $0xe0] sm:$0xff]
  %v565 = vld [vmem:[%s3 + $0xe8] sm:$0xff]
  %v566 = vld [vmem:[%s3 + $0xf0] sm:$0xff]
  %v567 = vld [vmem:[%s3 + $0xf8] sm:$0xff]
  %v568 = vld [vmem:[%s3 + $0x100] sm:$0xff]
  %v569 = vld [vmem:[%s3 + $0x108] sm:$0xff]
  %v570 = vld [vmem:[%s3 + $0x110] sm:$0xff]
  %v571 = vld [vmem:[%s3 + $0x118] sm:$0xff]
  %v572 = vld [vmem:[%s3 + $0x120] sm:$0xff]
  %v573 = vld [vmem:[%s3 + $0x128] sm:$0xff]
  %v574 = vld [vmem:[%s3 + $0x130] sm:$0xff]
  %v575 = vld [vmem:[%s3 + $0x138] sm:$0xff]
  %v576 = vld [vmem:[%s3 + $0x140] sm:$0xff]
  %v577 = vld [vmem:[%s3 + $0x148] sm:$0xff]
  %v578 = vld [vmem:[%s3 + $0x150] sm:$0xff]
  %v579 = vld [vmem:[%s3 + $0x158] sm:$0xff]
  %v580 = vld [vmem:[%s3 + $0x160] sm:$0xff]
  %v581 = vld [vmem:[%s3 + $0x168] sm:$0xff]
  %v582 = vld [vmem:[%s3 + $0x170] sm:$0xff]
  %v583 = vld [vmem:[%s3 + $0x178] sm:$0xff]
  %v584 = vld [vmem:[%s3 + $0x180] sm:$0xff]
  %v585 = vld [vmem:[%s3 + $0x188] sm:$0xff]
  %v586 = vld [vmem:[%s3 + $0x190] sm:$0xff]
  %v587 = vld [vmem:[%s3 + $0x198] sm:$0xff]
  %v588 = vld [vmem:[%s3 + $0x1a0] sm:$0xff]
  %v589 = vld [vmem:[%s3 + $0x1a8] sm:$0xff]
  %v590 = vld [vmem:[%s3 + $0x1b0] sm:$0xff]
  %v591 = vld [vmem:[%s3 + $0x1b8] sm:$0xff]
  %v592 = vld [vmem:[%s3 + $0x1c0] sm:$0xff]
  %v593 = vld [vmem:[%s3 + $0x1c8] sm:$0xff]
  %v594 = vld [vmem:[%s3 + $0x1d0] sm:$0xff]
  %v595 = vld [vmem:[%s3 + $0x1d8] sm:$0xff]
  %v596 = vld [vmem:[%s3 + $0x1e0] sm:$0xff]
  %v597 = vld [vmem:[%s3 + $0x1e8] sm:$0xff]
  %v598 = vld [vmem:[%s3 + $0x1f0] sm:$0xff]
  %v599 = vld [vmem:[%s3 + $0x1f8] sm:$0xff]
  %v600 = vld [vmem:[%s3 + $0x200] sm:$0xff]
  %v601 = vld [vmem:[%s3 + $0x208] sm:$0xff]
  %v602 = vld [vmem:[%s3 + $0x210] sm:$0xff]
  %v603 = vld [vmem:[%s3 + $0x218] sm:$0xff]
  %v604 = vld [vmem:[%s3 + $0x220] sm:$0xff]
  %v605 = vld [vmem:[%s3 + $0x228] sm:$0xff]
  %v606 = vld [vmem:[%s3 + $0x230] sm:$0xff]
  %v607 = vld [vmem:[%s3 + $0x238] sm:$0xff]
  %v608 = vld [vmem:[%s3 + $0x240] sm:$0xff]
  %v609 = vld [vmem:[%s3 + $0x248] sm:$0xff]
  %v610 = vld [vmem:[%s3 + $0x250] sm:$0xff]
  %v611 = vld [vmem:[%s3 + $0x258] sm:$0xff]
  %v612 = vld [vmem:[%s3 + $0x260] sm:$0xff]
  %v613 = vld [vmem:[%s3 + $0x268] sm:$0xff]
  %v614 = vld [vmem:[%s3 + $0x270] sm:$0xff]
  %v615 = vld [vmem:[%s3 + $0x278] sm:$0xff]
  %v616 = vld [vmem:[%s3 + $0x280] sm:$0xff]
  %v617 = vld [vmem:[%s3 + $0x288] sm:$0xff]
  %v618 = vld [vmem:[%s3 + $0x290] sm:$0xff]
  %v619 = vld [vmem:[%s3 + $0x298] sm:$0xff]
  %v620 = vld [vmem:[%s3 + $0x2a0] sm:$0xff]
  %v621 = vld [vmem:[%s3 + $0x2a8] sm:$0xff]
  %v622 = vld [vmem:[%s3 + $0x2b0] sm:$0xff]
  %v623 = vld [vmem:[%s3 + $0x2b8] sm:$0xff]
  %v624 = vld [vmem:[%s3 + $0x2c0] sm:$0xff]
  %v625 = vld [vmem:[%s3 + $0x2c8] sm:$0xff]
  %v626 = vld [vmem:[%s3 + $0x2d0] sm:$0xff]
  %v627 = vld [vmem:[%s3 + $0x2d8] sm:$0xff]
  %v628 = vld [vmem:[%s3 + $0x2e0] sm:$0xff]
  %v629 = vld [vmem:[%s3 + $0x2e8] sm:$0xff]
  %v630 = vld [vmem:[%s3 + $0x2f0] sm:$0xff]
  %v631 = vld [vmem:[%s3 + $0x2f8] sm:$0xff]
  %v632 = vld [vmem:[%s3 + $0x300] sm:$0xff]
  %v633 = vld [vmem:[%s3 + $0x308] sm:$0xff]
  %v634 = vld [vmem:[%s3 + $0x310] sm:$0xff]
  %v635 = vld [vmem:[%s3 + $0x318] sm:$0xff]
  %v636 = vld [vmem:[%s3 + $0x320] sm:$0xff]
  %v637 = vld [vmem:[%s3 + $0x328] sm:$0xff]
  %v638 = vld [vmem:[%s3 + $0x330] sm:$0xff]
  %v639 = vld [vmem:[%s3 + $0x338] sm:$0xff]
  %v640 = vld [vmem:[%s3 + $0x340] sm:$0xff]
  %v641 = vld [vmem:[%s3 + $0x348] sm:$0xff]
  %v642 = vld [vmem:[%s3 + $0x350] sm:$0xff]
  %v643 = vld [vmem:[%s3 + $0x358] sm:$0xff]
  %v644 = vld [vmem:[%s3 + $0x360] sm:$0xff]
  %v645 = vld [vmem:[%s3 + $0x368] sm:$0xff]
  %v646 = vld [vmem:[%s3 + $0x370] sm:$0xff]
  %v647 = vld [vmem:[%s3 + $0x378] sm:$0xff]
  %v648 = vld [vmem:[%s3 + $0x380] sm:$0xff]
  %v649 = vld [vmem:[%s3 + $0x388] sm:$0xff]
  %v650 = vld [vmem:[%s3 + $0x390] sm:$0xff]
  %v651 = vld [vmem:[%s3 + $0x398] sm:$0xff]
  %v652 = vld [vmem:[%s3 + $0x3a0] sm:$0xff]
  %v653 = vld [vmem:[%s3 + $0x3a8] sm:$0xff]
  %v654 = vld [vmem:[%s3 + $0x3b0] sm:$0xff]
  %v655 = vld [vmem:[%s3 + $0x3b8] sm:$0xff]
  %v656 = vld [vmem:[%s3 + $0x3c0] sm:$0xff]
  %v657 = vld [vmem:[%s3 + $0x3c8] sm:$0xff]
  %v658 = vld [vmem:[%s3 + $0x3d0] sm:$0xff]
  %v659 = vld [vmem:[%s3 + $0x3d8] sm:$0xff]
  %v660 = vld [vmem:[%s3 + $0x3e0] sm:$0xff]
  %v661 = vld [vmem:[%s3 + $0x3e8] sm:$0xff]
  %v662 = vld [vmem:[%s3 + $0x3f0] sm:$0xff]
  %v663 = vld [vmem:[%s3 + $0x3f8] sm:$0xff]
  %v664 = vld [vmem:[%s3 + $0x400] sm:$0xff]
  %v665 = vld [vmem:[%s3 + $0x408] sm:$0xff]
  %v666 = vld [vmem:[%s3 + $0x410] sm:$0xff]
  %v667 = vld [vmem:[%s3 + $0x418] sm:$0xff]
  %v668 = vld [vmem:[%s3 + $0x420] sm:$0xff]
  %v669 = vld [vmem:[%s3 + $0x428] sm:$0xff]
  %v670 = vld [vmem:[%s3 + $0x430] sm:$0xff]
  %v671 = vld [vmem:[%s3 + $0x438] sm:$0xff]
  %v672 = vld [vmem:[%s3 + $0x440] sm:$0xff]
  %v673 = vld [vmem:[%s3 + $0x448] sm:$0xff]
  %v674 = vld [vmem:[%s3 + $0x450] sm:$0xff]
  %v675 = vld [vmem:[%s3 + $0x458] sm:$0xff]
  %v676 = vld [vmem:[%s3 + $0x460] sm:$0xff]
  %v677 = vld [vmem:[%s3 + $0x468] sm:$0xff]
  %v678 = vld [vmem:[%s3 + $0x470] sm:$0xff]
  %v679 = vld [vmem:[%s3 + $0x478] sm:$0xff]
  %v680 = vld [vmem:[%s3 + $0x480] sm:$0xff]
  %v681 = vld [vmem:[%s3 + $0x488] sm:$0xff]
  %v682 = vld [vmem:[%s3 + $0x490] sm:$0xff]
  %v683 = vld [vmem:[%s3 + $0x498] sm:$0xff]
  %v684 = vld [vmem:[%s3 + $0x4a0] sm:$0xff]
  %v685 = vld [vmem:[%s3 + $0x4a8] sm:$0xff]
  %v686 = vld [vmem:[%s3 + $0x4b0] sm:$0xff]
  %v687 = vld [vmem:[%s3 + $0x4b8] sm:$0xff]
  %v688 = vld [vmem:[%s3 + $0x4c0] sm:$0xff]
  %v689 = vld [vmem:[%s3 + $0x4c8] sm:$0xff]
  %v690 = vld [vmem:[%s3 + $0x4d0] sm:$0xff]
  %v691 = vld [vmem:[%s3 + $0x4d8] sm:$0xff]
  %v692 = vld [vmem:[%s3 + $0x4e0] sm:$0xff]
  %v693 = vld [vmem:[%s3 + $0x4e8] sm:$0xff]
  %v694 = vld [vmem:[%s3 + $0x4f0] sm:$0xff]
  %v695 = vld [vmem:[%s3 + $0x4f8] sm:$0xff]
  %v696 = vld [vmem:[%s3 + $0x500] sm:$0xff]
  %v697 = vld [vmem:[%s3 + $0x508] sm:$0xff]
  %v698 = vld [vmem:[%s3 + $0x510] sm:$0xff]
  %v699 = vld [vmem:[%s3 + $0x518] sm:$0xff]
  %v700 = vld [vmem:[%s3 + $0x520] sm:$0xff]
  %v701 = vld [vmem:[%s3 + $0x528] sm:$0xff]
  %v702 = vld [vmem:[%s3 + $0x530] sm:$0xff]
  %v703 = vld [vmem:[%s3 + $0x538] sm:$0xff]
  %v704 = vld [vmem:[%s3 + $0x540] sm:$0xff]
  %v705 = vld [vmem:[%s3 + $0x548] sm:$0xff]
  %v706 = vld [vmem:[%s3 + $0x550] sm:$0xff]
  %v707 = vld [vmem:[%s3 + $0x558] sm:$0xff]
  %v708 = vld [vmem:[%s3 + $0x560] sm:$0xff]
  %v709 = vld [vmem:[%s3 + $0x568] sm:$0xff]
  %v710 = vld [vmem:[%s3 + $0x570] sm:$0xff]
  %v711 = vld [vmem:[%s3 + $0x578] sm:$0xff]
  %v712 = vld [vmem:[%s3 + $0x580] sm:$0xff]
  %v713 = vld [vmem:[%s3 + $0x588] sm:$0xff]
  %v714 = vld [vmem:[%s3 + $0x590] sm:$0xff]
  %v715 = vld [vmem:[%s3 + $0x598] sm:$0xff]
  %v716 = vld [vmem:[%s3 + $0x5a0] sm:$0xff]
  %v717 = vld [vmem:[%s3 + $0x5a8] sm:$0xff]
  %v718 = vld [vmem:[%s3 + $0x5b0] sm:$0xff]
  %v719 = vld [vmem:[%s3 + $0x5b8] sm:$0xff]
  %v720 = vld [vmem:[%s3 + $0x5c0] sm:$0xff]
  %v721 = vld [vmem:[%s3 + $0x5c8] sm:$0xff]
  %v722 = vld [vmem:[%s3 + $0x5d0] sm:$0xff]
  %v723 = vld [vmem:[%s3 + $0x5d8] sm:$0xff]
  %v724 = vld [vmem:[%s3 + $0x5e0] sm:$0xff]
  %v725 = vld [vmem:[%s3 + $0x5e8] sm:$0xff]
  %v726 = vld [vmem:[%s3 + $0x5f0] sm:$0xff]
  %v727 = vld [vmem:[%s3 + $0x5f8] sm:$0xff]
  %v728 = vld [vmem:[%s3 + $0x600] sm:$0xff]
  %v729 = vld [vmem:[%s3 + $0x608] sm:$0xff]
  %v730 = vld [vmem:[%s3 + $0x610] sm:$0xff]
  %v731 = vld [vmem:[%s3 + $0x618] sm:$0xff]
  %v732 = vld [vmem:[%s3 + $0x620] sm:$0xff]
  %v733 = vld [vmem:[%s3 + $0x628] sm:$0xff]
  %v734 = vld [vmem:[%s3 + $0x630] sm:$0xff]
  %v735 = vld [vmem:[%s3 + $0x638] sm:$0xff]
  %v736 = vld [vmem:[%s3 + $0x640] sm:$0xff]
  %v737 = vld [vmem:[%s3 + $0x648] sm:$0xff]
  %v738 = vld [vmem:[%s3 + $0x650] sm:$0xff]
  %v739 = vld [vmem:[%s3 + $0x658] sm:$0xff]
  %v740 = vld [vmem:[%s3 + $0x660] sm:$0xff]
  %v741 = vld [vmem:[%s3 + $0x668] sm:$0xff]
  %v742 = vld [vmem:[%s3 + $0x670] sm:$0xff]
  %v743 = vld [vmem:[%s3 + $0x678] sm:$0xff]
  %v744 = vld [vmem:[%s3 + $0x680] sm:$0xff]
  %v745 = vld [vmem:[%s3 + $0x688] sm:$0xff]
  %v746 = vld [vmem:[%s3 + $0x690] sm:$0xff]
  %v747 = vld [vmem:[%s3 + $0x698] sm:$0xff]
  %v748 = vld [vmem:[%s3 + $0x6a0] sm:$0xff]
  %v749 = vld [vmem:[%s3 + $0x6a8] sm:$0xff]
  %v750 = vld [vmem:[%s3 + $0x6b0] sm:$0xff]
  %v751 = vld [vmem:[%s3 + $0x6b8] sm:$0xff]
  %v752 = vld [vmem:[%s3 + $0x6c0] sm:$0xff]
  %v753 = vld [vmem:[%s3 + $0x6c8] sm:$0xff]
  %v754 = vld [vmem:[%s3 + $0x6d0] sm:$0xff]
  %v755 = vld [vmem:[%s3 + $0x6d8] sm:$0xff]
  %v756 = vld [vmem:[%s3 + $0x6e0] sm:$0xff]
  %v757 = vld [vmem:[%s3 + $0x6e8] sm:$0xff]
  %v758 = vld [vmem:[%s3 + $0x6f0] sm:$0xff]
  %v759 = vld [vmem:[%s3 + $0x6f8] sm:$0xff]
  %v760 = vld [vmem:[%s3 + $0x700] sm:$0xff]
  %v761 = vld [vmem:[%s3 + $0x708] sm:$0xff]
  %v762 = vld [vmem:[%s3 + $0x710] sm:$0xff]
  %v763 = vld [vmem:[%s3 + $0x718] sm:$0xff]
  %v764 = vld [vmem:[%s3 + $0x720] sm:$0xff]
  %v765 = vld [vmem:[%s3 + $0x728] sm:$0xff]
  %v766 = vld [vmem:[%s3 + $0x730] sm:$0xff]
  %v767 = vld [vmem:[%s3 + $0x738] sm:$0xff]
  %v768 = vld [vmem:[%s3 + $0x740] sm:$0xff]
  %v769 = vld [vmem:[%s3 + $0x748] sm:$0xff]
  %v770 = vld [vmem:[%s3 + $0x750] sm:$0xff]
  %v771 = vld [vmem:[%s3 + $0x758] sm:$0xff]
  %v772 = vld [vmem:[%s3 + $0x760] sm:$0xff]
  %v773 = vld [vmem:[%s3 + $0x768] sm:$0xff]
  %v774 = vld [vmem:[%s3 + $0x770] sm:$0xff]
  %v775 = vld [vmem:[%s3 + $0x778] sm:$0xff]
  %v776 = vld [vmem:[%s3 + $0x780] sm:$0xff]
  %v777 = vld [vmem:[%s3 + $0x788] sm:$0xff]
  %v778 = vld [vmem:[%s3 + $0x790] sm:$0xff]
  %v779 = vld [vmem:[%s3 + $0x798] sm:$0xff]
  %v780 = vld [vmem:[%s3 + $0x7a0] sm:$0xff]
  %v781 = vld [vmem:[%s3 + $0x7a8] sm:$0xff]
  %v782 = vld [vmem:[%s3 + $0x7b0] sm:$0xff]
  %v783 = vld [vmem:[%s3 + $0x7b8] sm:$0xff]
  %v784 = vld [vmem:[%s3 + $0x7c0] sm:$0xff]
  %v785 = vld [vmem:[%s3 + $0x7c8] sm:$0xff]
  %v786 = vld [vmem:[%s3 + $0x7d0] sm:$0xff]
  %v787 = vld [vmem:[%s3 + $0x7d8] sm:$0xff]
  %v788 = vld [vmem:[%s3 + $0x7e0] sm:$0xff]
  %v789 = vld [vmem:[%s3 + $0x7e8] sm:$0xff]
  %v790 = vld [vmem:[%s3 + $0x7f0] sm:$0xff]
  %v791 = vld [vmem:[%s3 + $0x7f8] sm:$0xff]
  %v792 = vld [vmem:[%s3 + $0x800] sm:$0xff]
  %v793 = vld [vmem:[%s3 + $0x808] sm:$0xff]
  %v794 = vld [vmem:[%s3 + $0x810] sm:$0xff]
  %v795 = vld [vmem:[%s3 + $0x818] sm:$0xff]
  %v796 = vld [vmem:[%s3 + $0x820] sm:$0xff]
  %v797 = vld [vmem:[%s3 + $0x828] sm:$0xff]
  %v798 = vld [vmem:[%s3 + $0x830] sm:$0xff]
  %v799 = vld [vmem:[%s3 + $0x838] sm:$0xff]
  %v800 = vld [vmem:[%s3 + $0x840] sm:$0xff]
  %v801 = vld [vmem:[%s3 + $0x848] sm:$0xff]
  %v802 = vld [vmem:[%s3 + $0x850] sm:$0xff]
  %v803 = vld [vmem:[%s3 + $0x858] sm:$0xff]
  %v804 = vld [vmem:[%s3 + $0x860] sm:$0xff]
  %v805 = vld [vmem:[%s3 + $0x868] sm:$0xff]
  %v806 = vld [vmem:[%s3 + $0x870] sm:$0xff]
  %v807 = vld [vmem:[%s3 + $0x878] sm:$0xff]
  %v808 = vld [vmem:[%s3 + $0x880] sm:$0xff]
  %v809 = vld [vmem:[%s3 + $0x888] sm:$0xff]
  %v810 = vld [vmem:[%s3 + $0x890] sm:$0xff]
  %v811 = vld [vmem:[%s3 + $0x898] sm:$0xff]
  %v812 = vld [vmem:[%s3 + $0x8a0] sm:$0xff]
  %v813 = vld [vmem:[%s3 + $0x8a8] sm:$0xff]
  %v814 = vld [vmem:[%s3 + $0x8b0] sm:$0xff]
  %v815 = vld [vmem:[%s3 + $0x8b8] sm:$0xff]
  %v816 = vld [vmem:[%s3 + $0x8c0] sm:$0xff]
  %v817 = vld [vmem:[%s3 + $0x8c8] sm:$0xff]
  %v818 = vld [vmem:[%s3 + $0x8d0] sm:$0xff]
  %v819 = vld [vmem:[%s3 + $0x8d8] sm:$0xff]
  %v820 = vld [vmem:[%s3 + $0x8e0] sm:$0xff]
  %v821 = vld [vmem:[%s3 + $0x8e8] sm:$0xff]
  %v822 = vld [vmem:[%s3 + $0x8f0] sm:$0xff]
  %v823 = vld [vmem:[%s3 + $0x8f8] sm:$0xff]
  %v824 = vld [vmem:[%s4] sm:$0x3]
  %v826 = vlaneseq
  %v827 = vshrl.u32 %v826, 7
  %v828 = vsub.s32 0, %v827
  %v829 = vrot.slane %v824, %v828
  %v830 = vlaneseq
  %v831 = vshrl.u32 %v830, 7
  %v832 = vsub.s32 1, %v831
  %v833 = vrot.slane %v824, %v832
  %v1124 = vunpack.c.l.b16 %v536
  %v1125 = vunpack.c.h.b16 %v536
  %v1126 = vunpack.c.l.b16 %v537
  %v1127 = vunpack.c.h.b16 %v537
  %v1128 = vunpack.c.l.b16 %v538
  %v1129 = vunpack.c.h.b16 %v538
  %v1130 = vunpack.c.l.b16 %v539
  %v1131 = vunpack.c.h.b16 %v539
  %v1132 = vunpack.c.l.b16 %v540
  %v1133 = vunpack.c.h.b16 %v540
  %v1134 = vunpack.c.l.b16 %v541
  %v1135 = vunpack.c.h.b16 %v541
  %v1136 = vunpack.c.l.b16 %v542
  %v1137 = vunpack.c.h.b16 %v542
  %v1138 = vunpack.c.l.b16 %v543
  %v1139 = vunpack.c.h.b16 %v543
  %v1140 = vunpack.c.l.b16 %v544
  %v1141 = vunpack.c.h.b16 %v544
  %v1142 = vunpack.c.l.b16 %v545
  %v1143 = vunpack.c.h.b16 %v545
  %v1144 = vunpack.c.l.b16 %v546
  %v1145 = vunpack.c.h.b16 %v546
  %v1146 = vunpack.c.l.b16 %v547
  %v1147 = vunpack.c.h.b16 %v547
  %v1148 = vunpack.c.l.b16 %v548
  %v1149 = vunpack.c.h.b16 %v548
  %v1150 = vunpack.c.l.b16 %v549
  %v1151 = vunpack.c.h.b16 %v549
  %v1152 = vunpack.c.l.b16 %v550
  %v1153 = vunpack.c.h.b16 %v550
  %v1154 = vunpack.c.l.b16 %v551
  %v1155 = vunpack.c.h.b16 %v551
  %v1156 = vunpack.c.l.b16 %v552
  %v1157 = vunpack.c.h.b16 %v552
  %v1158 = vunpack.c.l.b16 %v553
  %v1159 = vunpack.c.h.b16 %v553
  %v1160 = vunpack.c.l.b16 %v554
  %v1161 = vunpack.c.h.b16 %v554
  %v1162 = vunpack.c.l.b16 %v555
  %v1163 = vunpack.c.h.b16 %v555
  %v1164 = vunpack.c.l.b16 %v556
  %v1165 = vunpack.c.h.b16 %v556
  %v1166 = vunpack.c.l.b16 %v557
  %v1167 = vunpack.c.h.b16 %v557
  %v1168 = vunpack.c.l.b16 %v558
  %v1169 = vunpack.c.h.b16 %v558
  %v1170 = vunpack.c.l.b16 %v559
  %v1171 = vunpack.c.h.b16 %v559
  %v1172 = vunpack.c.l.b16 %v560
  %v1173 = vunpack.c.h.b16 %v560
  %v1174 = vunpack.c.l.b16 %v561
  %v1175 = vunpack.c.h.b16 %v561
  %v1176 = vunpack.c.l.b16 %v562
  %v1177 = vunpack.c.h.b16 %v562
  %v1178 = vunpack.c.l.b16 %v563
  %v1179 = vunpack.c.h.b16 %v563
  %v1180 = vunpack.c.l.b16 %v564
  %v1181 = vunpack.c.h.b16 %v564
  %v1182 = vunpack.c.l.b16 %v565
  %v1183 = vunpack.c.h.b16 %v565
  %v1184 = vunpack.c.l.b16 %v566
  %v1185 = vunpack.c.h.b16 %v566
  %v1186 = vunpack.c.l.b16 %v567
  %v1187 = vunpack.c.h.b16 %v567
  %v1188 = vunpack.c.l.b16 %v568
  %v1189 = vunpack.c.h.b16 %v568
  %v1190 = vunpack.c.l.b16 %v569
  %v1191 = vunpack.c.h.b16 %v569
  %v1192 = vunpack.c.l.b16 %v570
  %v1193 = vunpack.c.h.b16 %v570
  %v1194 = vunpack.c.l.b16 %v571
  %v1195 = vunpack.c.h.b16 %v571
  %v1196 = vunpack.c.l.b16 %v572
  %v1197 = vunpack.c.h.b16 %v572
  %v1198 = vunpack.c.l.b16 %v573
  %v1199 = vunpack.c.h.b16 %v573
  %v1200 = vunpack.c.l.b16 %v574
  %v1201 = vunpack.c.h.b16 %v574
  %v1202 = vunpack.c.l.b16 %v575
  %v1203 = vunpack.c.h.b16 %v575
  %v1204 = vunpack.c.l.b16 %v576
  %v1205 = vunpack.c.h.b16 %v576
  %v1206 = vunpack.c.l.b16 %v577
  %v1207 = vunpack.c.h.b16 %v577
  %v1208 = vunpack.c.l.b16 %v578
  %v1209 = vunpack.c.h.b16 %v578
  %v1210 = vunpack.c.l.b16 %v579
  %v1211 = vunpack.c.h.b16 %v579
  %v1212 = vunpack.c.l.b16 %v580
  %v1213 = vunpack.c.h.b16 %v580
  %v1214 = vunpack.c.l.b16 %v581
  %v1215 = vunpack.c.h.b16 %v581
  %v1216 = vunpack.c.l.b16 %v582
  %v1217 = vunpack.c.h.b16 %v582
  %v1218 = vunpack.c.l.b16 %v583
  %v1219 = vunpack.c.h.b16 %v583
  %v1220 = vunpack.c.l.b16 %v584
  %v1221 = vunpack.c.h.b16 %v584
  %v1222 = vunpack.c.l.b16 %v585
  %v1223 = vunpack.c.h.b16 %v585
  %v1224 = vunpack.c.l.b16 %v586
  %v1225 = vunpack.c.h.b16 %v586
  %v1226 = vunpack.c.l.b16 %v587
  %v1227 = vunpack.c.h.b16 %v587
  %v1228 = vunpack.c.l.b16 %v588
  %v1229 = vunpack.c.h.b16 %v588
  %v1230 = vunpack.c.l.b16 %v589
  %v1231 = vunpack.c.h.b16 %v589
  %v1232 = vunpack.c.l.b16 %v590
  %v1233 = vunpack.c.h.b16 %v590
  %v1234 = vunpack.c.l.b16 %v591
  %v1235 = vunpack.c.h.b16 %v591
  %v1236 = vunpack.c.l.b16 %v592
  %v1237 = vunpack.c.h.b16 %v592
  %v1238 = vunpack.c.l.b16 %v593
  %v1239 = vunpack.c.h.b16 %v593
  %v1240 = vunpack.c.l.b16 %v594
  %v1241 = vunpack.c.h.b16 %v594
  %v1242 = vunpack.c.l.b16 %v595
  %v1243 = vunpack.c.h.b16 %v595
  %v1244 = vunpack.c.l.b16 %v596
  %v1245 = vunpack.c.h.b16 %v596
  %v1246 = vunpack.c.l.b16 %v597
  %v1247 = vunpack.c.h.b16 %v597
  %v1248 = vunpack.c.l.b16 %v598
  %v1249 = vunpack.c.h.b16 %v598
  %v1250 = vunpack.c.l.b16 %v599
  %v1251 = vunpack.c.h.b16 %v599
  %v1252 = vunpack.c.l.b16 %v600
  %v1253 = vunpack.c.h.b16 %v600
  %v1254 = vunpack.c.l.b16 %v601
  %v1255 = vunpack.c.h.b16 %v601
  %v1256 = vunpack.c.l.b16 %v602
  %v1257 = vunpack.c.h.b16 %v602
  %v1258 = vunpack.c.l.b16 %v603
  %v1259 = vunpack.c.h.b16 %v603
  %v1260 = vunpack.c.l.b16 %v604
  %v1261 = vunpack.c.h.b16 %v604
  %v1262 = vunpack.c.l.b16 %v605
  %v1263 = vunpack.c.h.b16 %v605
  %v1264 = vunpack.c.l.b16 %v606
  %v1265 = vunpack.c.h.b16 %v606
  %v1266 = vunpack.c.l.b16 %v607
  %v1267 = vunpack.c.h.b16 %v607
  %v1268 = vunpack.c.l.b16 %v608
  %v1269 = vunpack.c.h.b16 %v608
  %v1270 = vunpack.c.l.b16 %v609
  %v1271 = vunpack.c.h.b16 %v609
  %v1272 = vunpack.c.l.b16 %v610
  %v1273 = vunpack.c.h.b16 %v610
  %v1274 = vunpack.c.l.b16 %v611
  %v1275 = vunpack.c.h.b16 %v611
  %v1276 = vunpack.c.l.b16 %v612
  %v1277 = vunpack.c.h.b16 %v612
  %v1278 = vunpack.c.l.b16 %v613
  %v1279 = vunpack.c.h.b16 %v613
  %v1280 = vunpack.c.l.b16 %v614
  %v1281 = vunpack.c.h.b16 %v614
  %v1282 = vunpack.c.l.b16 %v615
  %v1283 = vunpack.c.h.b16 %v615
  %v1284 = vunpack.c.l.b16 %v616
  %v1285 = vunpack.c.h.b16 %v616
  %v1286 = vunpack.c.l.b16 %v617
  %v1287 = vunpack.c.h.b16 %v617
  %v1288 = vunpack.c.l.b16 %v618
  %v1289 = vunpack.c.h.b16 %v618
  %v1290 = vunpack.c.l.b16 %v619
  %v1291 = vunpack.c.h.b16 %v619
  %v1292 = vunpack.c.l.b16 %v620
  %v1293 = vunpack.c.h.b16 %v620
  %v1294 = vunpack.c.l.b16 %v621
  %v1295 = vunpack.c.h.b16 %v621
  %v1296 = vunpack.c.l.b16 %v622
  %v1297 = vunpack.c.h.b16 %v622
  %v1298 = vunpack.c.l.b16 %v623
  %v1299 = vunpack.c.h.b16 %v623
  %v1300 = vunpack.c.l.b16 %v624
  %v1301 = vunpack.c.h.b16 %v624
  %v1302 = vunpack.c.l.b16 %v625
  %v1303 = vunpack.c.h.b16 %v625
  %v1304 = vunpack.c.l.b16 %v626
  %v1305 = vunpack.c.h.b16 %v626
  %v1306 = vunpack.c.l.b16 %v627
  %v1307 = vunpack.c.h.b16 %v627
  %v1308 = vunpack.c.l.b16 %v628
  %v1309 = vunpack.c.h.b16 %v628
  %v1310 = vunpack.c.l.b16 %v629
  %v1311 = vunpack.c.h.b16 %v629
  %v1312 = vunpack.c.l.b16 %v630
  %v1313 = vunpack.c.h.b16 %v630
  %v1314 = vunpack.c.l.b16 %v631
  %v1315 = vunpack.c.h.b16 %v631
  %v1316 = vunpack.c.l.b16 %v632
  %v1317 = vunpack.c.h.b16 %v632
  %v1318 = vunpack.c.l.b16 %v633
  %v1319 = vunpack.c.h.b16 %v633
  %v1320 = vunpack.c.l.b16 %v634
  %v1321 = vunpack.c.h.b16 %v634
  %v1322 = vunpack.c.l.b16 %v635
  %v1323 = vunpack.c.h.b16 %v635
  %v1324 = vunpack.c.l.b16 %v636
  %v1325 = vunpack.c.h.b16 %v636
  %v1326 = vunpack.c.l.b16 %v637
  %v1327 = vunpack.c.h.b16 %v637
  %v1328 = vunpack.c.l.b16 %v638
  %v1329 = vunpack.c.h.b16 %v638
  %v1330 = vunpack.c.l.b16 %v639
  %v1331 = vunpack.c.h.b16 %v639
  %v1332 = vunpack.c.l.b16 %v640
  %v1333 = vunpack.c.h.b16 %v640
  %v1334 = vunpack.c.l.b16 %v641
  %v1335 = vunpack.c.h.b16 %v641
  %v1336 = vunpack.c.l.b16 %v642
  %v1337 = vunpack.c.h.b16 %v642
  %v1338 = vunpack.c.l.b16 %v643
  %v1339 = vunpack.c.h.b16 %v643
  %v1340 = vunpack.c.l.b16 %v644
  %v1341 = vunpack.c.h.b16 %v644
  %v1342 = vunpack.c.l.b16 %v645
  %v1343 = vunpack.c.h.b16 %v645
  %v1344 = vunpack.c.l.b16 %v646
  %v1345 = vunpack.c.h.b16 %v646
  %v1346 = vunpack.c.l.b16 %v647
  %v1347 = vunpack.c.h.b16 %v647
  %v1348 = vunpack.c.l.b16 %v648
  %v1349 = vunpack.c.h.b16 %v648
  %v1350 = vunpack.c.l.b16 %v649
  %v1351 = vunpack.c.h.b16 %v649
  %v1352 = vunpack.c.l.b16 %v650
  %v1353 = vunpack.c.h.b16 %v650
  %v1354 = vunpack.c.l.b16 %v651
  %v1355 = vunpack.c.h.b16 %v651
  %v1356 = vunpack.c.l.b16 %v652
  %v1357 = vunpack.c.h.b16 %v652
  %v1358 = vunpack.c.l.b16 %v653
  %v1359 = vunpack.c.h.b16 %v653
  %v1360 = vunpack.c.l.b16 %v654
  %v1361 = vunpack.c.h.b16 %v654
  %v1362 = vunpack.c.l.b16 %v655
  %v1363 = vunpack.c.h.b16 %v655
  %v1364 = vunpack.c.l.b16 %v656
  %v1365 = vunpack.c.h.b16 %v656
  %v1366 = vunpack.c.l.b16 %v657
  %v1367 = vunpack.c.h.b16 %v657
  %v1368 = vunpack.c.l.b16 %v658
  %v1369 = vunpack.c.h.b16 %v658
  %v1370 = vunpack.c.l.b16 %v659
  %v1371 = vunpack.c.h.b16 %v659
  %v1372 = vunpack.c.l.b16 %v660
  %v1373 = vunpack.c.h.b16 %v660
  %v1374 = vunpack.c.l.b16 %v661
  %v1375 = vunpack.c.h.b16 %v661
  %v1376 = vunpack.c.l.b16 %v662
  %v1377 = vunpack.c.h.b16 %v662
  %v1378 = vunpack.c.l.b16 %v663
  %v1379 = vunpack.c.h.b16 %v663
  %v1380 = vunpack.c.l.b16 %v664
  %v1381 = vunpack.c.h.b16 %v664
  %v1382 = vunpack.c.l.b16 %v665
  %v1383 = vunpack.c.h.b16 %v665
  %v1384 = vunpack.c.l.b16 %v666
  %v1385 = vunpack.c.h.b16 %v666
  %v1386 = vunpack.c.l.b16 %v667
  %v1387 = vunpack.c.h.b16 %v667
  %v1388 = vunpack.c.l.b16 %v668
  %v1389 = vunpack.c.h.b16 %v668
  %v1390 = vunpack.c.l.b16 %v669
  %v1391 = vunpack.c.h.b16 %v669
  %v1392 = vunpack.c.l.b16 %v670
  %v1393 = vunpack.c.h.b16 %v670
  %v1394 = vunpack.c.l.b16 %v671
  %v1395 = vunpack.c.h.b16 %v671
  %v1396 = vunpack.c.l.b16 %v672
  %v1397 = vunpack.c.h.b16 %v672
  %v1398 = vunpack.c.l.b16 %v673
  %v1399 = vunpack.c.h.b16 %v673
  %v1400 = vunpack.c.l.b16 %v674
  %v1401 = vunpack.c.h.b16 %v674
  %v1402 = vunpack.c.l.b16 %v675
  %v1403 = vunpack.c.h.b16 %v675
  %v1404 = vunpack.c.l.b16 %v676
  %v1405 = vunpack.c.h.b16 %v676
  %v1406 = vunpack.c.l.b16 %v677
  %v1407 = vunpack.c.h.b16 %v677
  %v1408 = vunpack.c.l.b16 %v678
  %v1409 = vunpack.c.h.b16 %v678
  %v1410 = vunpack.c.l.b16 %v679
  %v1411 = vunpack.c.h.b16 %v679
  %v1412 = vunpack.c.l.b16 %v680
  %v1413 = vunpack.c.h.b16 %v680
  %v1414 = vunpack.c.l.b16 %v681
  %v1415 = vunpack.c.h.b16 %v681
  %v1416 = vunpack.c.l.b16 %v682
  %v1417 = vunpack.c.h.b16 %v682
  %v1418 = vunpack.c.l.b16 %v683
  %v1419 = vunpack.c.h.b16 %v683
  %v1420 = vunpack.c.l.b16 %v684
  %v1421 = vunpack.c.h.b16 %v684
  %v1422 = vunpack.c.l.b16 %v685
  %v1423 = vunpack.c.h.b16 %v685
  %v1424 = vunpack.c.l.b16 %v686
  %v1425 = vunpack.c.h.b16 %v686
  %v1426 = vunpack.c.l.b16 %v687
  %v1427 = vunpack.c.h.b16 %v687
  %v1428 = vunpack.c.l.b16 %v688
  %v1429 = vunpack.c.h.b16 %v688
  %v1430 = vunpack.c.l.b16 %v689
  %v1431 = vunpack.c.h.b16 %v689
  %v1432 = vunpack.c.l.b16 %v690
  %v1433 = vunpack.c.h.b16 %v690
  %v1434 = vunpack.c.l.b16 %v691
  %v1435 = vunpack.c.h.b16 %v691
  %v1436 = vunpack.c.l.b16 %v692
  %v1437 = vunpack.c.h.b16 %v692
  %v1438 = vunpack.c.l.b16 %v693
  %v1439 = vunpack.c.h.b16 %v693
  %v1440 = vunpack.c.l.b16 %v694
  %v1441 = vunpack.c.h.b16 %v694
  %v1442 = vunpack.c.l.b16 %v695
  %v1443 = vunpack.c.h.b16 %v695
  %v1444 = vunpack.c.l.b16 %v696
  %v1445 = vunpack.c.h.b16 %v696
  %v1446 = vunpack.c.l.b16 %v697
  %v1447 = vunpack.c.h.b16 %v697
  %v1448 = vunpack.c.l.b16 %v698
  %v1449 = vunpack.c.h.b16 %v698
  %v1450 = vunpack.c.l.b16 %v699
  %v1451 = vunpack.c.h.b16 %v699
  %v1452 = vunpack.c.l.b16 %v700
  %v1453 = vunpack.c.h.b16 %v700
  %v1454 = vunpack.c.l.b16 %v701
  %v1455 = vunpack.c.h.b16 %v701
  %v1456 = vunpack.c.l.b16 %v702
  %v1457 = vunpack.c.h.b16 %v702
  %v1458 = vunpack.c.l.b16 %v703
  %v1459 = vunpack.c.h.b16 %v703
  %v1460 = vunpack.c.l.b16 %v704
  %v1461 = vunpack.c.h.b16 %v704
  %v1462 = vunpack.c.l.b16 %v705
  %v1463 = vunpack.c.h.b16 %v705
  %v1464 = vunpack.c.l.b16 %v706
  %v1465 = vunpack.c.h.b16 %v706
  %v1466 = vunpack.c.l.b16 %v707
  %v1467 = vunpack.c.h.b16 %v707
  %v1468 = vunpack.c.l.b16 %v708
  %v1469 = vunpack.c.h.b16 %v708
  %v1470 = vunpack.c.l.b16 %v709
  %v1471 = vunpack.c.h.b16 %v709
  %v1472 = vunpack.c.l.b16 %v710
  %v1473 = vunpack.c.h.b16 %v710
  %v1474 = vunpack.c.l.b16 %v711
  %v1475 = vunpack.c.h.b16 %v711
  %v1476 = vunpack.c.l.b16 %v712
  %v1477 = vunpack.c.h.b16 %v712
  %v1478 = vunpack.c.l.b16 %v713
  %v1479 = vunpack.c.h.b16 %v713
  %v1480 = vunpack.c.l.b16 %v714
  %v1481 = vunpack.c.h.b16 %v714
  %v1482 = vunpack.c.l.b16 %v715
  %v1483 = vunpack.c.h.b16 %v715
  %v1484 = vunpack.c.l.b16 %v716
  %v1485 = vunpack.c.h.b16 %v716
  %v1486 = vunpack.c.l.b16 %v717
  %v1487 = vunpack.c.h.b16 %v717
  %v1488 = vunpack.c.l.b16 %v718
  %v1489 = vunpack.c.h.b16 %v718
  %v1490 = vunpack.c.l.b16 %v719
  %v1491 = vunpack.c.h.b16 %v719
  %v1492 = vunpack.c.l.b16 %v720
  %v1493 = vunpack.c.h.b16 %v720
  %v1494 = vunpack.c.l.b16 %v721
  %v1495 = vunpack.c.h.b16 %v721
  %v1496 = vunpack.c.l.b16 %v722
  %v1497 = vunpack.c.h.b16 %v722
  %v1498 = vunpack.c.l.b16 %v723
  %v1499 = vunpack.c.h.b16 %v723
  %v1500 = vunpack.c.l.b16 %v724
  %v1501 = vunpack.c.h.b16 %v724
  %v1502 = vunpack.c.l.b16 %v725
  %v1503 = vunpack.c.h.b16 %v725
  %v1504 = vunpack.c.l.b16 %v726
  %v1505 = vunpack.c.h.b16 %v726
  %v1506 = vunpack.c.l.b16 %v727
  %v1507 = vunpack.c.h.b16 %v727
  %v1508 = vunpack.c.l.b16 %v728
  %v1509 = vunpack.c.h.b16 %v728
  %v1510 = vunpack.c.l.b16 %v729
  %v1511 = vunpack.c.h.b16 %v729
  %v1512 = vunpack.c.l.b16 %v730
  %v1513 = vunpack.c.h.b16 %v730
  %v1514 = vunpack.c.l.b16 %v731
  %v1515 = vunpack.c.h.b16 %v731
  %v1516 = vunpack.c.l.b16 %v732
  %v1517 = vunpack.c.h.b16 %v732
  %v1518 = vunpack.c.l.b16 %v733
  %v1519 = vunpack.c.h.b16 %v733
  %v1520 = vunpack.c.l.b16 %v734
  %v1521 = vunpack.c.h.b16 %v734
  %v1522 = vunpack.c.l.b16 %v735
  %v1523 = vunpack.c.h.b16 %v735
  %v1524 = vunpack.c.l.b16 %v736
  %v1525 = vunpack.c.h.b16 %v736
  %v1526 = vunpack.c.l.b16 %v737
  %v1527 = vunpack.c.h.b16 %v737
  %v1528 = vunpack.c.l.b16 %v738
  %v1529 = vunpack.c.h.b16 %v738
  %v1530 = vunpack.c.l.b16 %v739
  %v1531 = vunpack.c.h.b16 %v739
  %v1532 = vunpack.c.l.b16 %v740
  %v1533 = vunpack.c.h.b16 %v740
  %v1534 = vunpack.c.l.b16 %v741
  %v1535 = vunpack.c.h.b16 %v741
  %v1536 = vunpack.c.l.b16 %v742
  %v1537 = vunpack.c.h.b16 %v742
  %v1538 = vunpack.c.l.b16 %v743
  %v1539 = vunpack.c.h.b16 %v743
  %v1540 = vunpack.c.l.b16 %v744
  %v1541 = vunpack.c.h.b16 %v744
  %v1542 = vunpack.c.l.b16 %v745
  %v1543 = vunpack.c.h.b16 %v745
  %v1544 = vunpack.c.l.b16 %v746
  %v1545 = vunpack.c.h.b16 %v746
  %v1546 = vunpack.c.l.b16 %v747
  %v1547 = vunpack.c.h.b16 %v747
  %v1548 = vunpack.c.l.b16 %v748
  %v1549 = vunpack.c.h.b16 %v748
  %v1550 = vunpack.c.l.b16 %v749
  %v1551 = vunpack.c.h.b16 %v749
  %v1552 = vunpack.c.l.b16 %v750
  %v1553 = vunpack.c.h.b16 %v750
  %v1554 = vunpack.c.l.b16 %v751
  %v1555 = vunpack.c.h.b16 %v751
  %v1556 = vunpack.c.l.b16 %v752
  %v1557 = vunpack.c.h.b16 %v752
  %v1558 = vunpack.c.l.b16 %v753
  %v1559 = vunpack.c.h.b16 %v753
  %v1560 = vunpack.c.l.b16 %v754
  %v1561 = vunpack.c.h.b16 %v754
  %v1562 = vunpack.c.l.b16 %v755
  %v1563 = vunpack.c.h.b16 %v755
  %v1564 = vunpack.c.l.b16 %v756
  %v1565 = vunpack.c.h.b16 %v756
  %v1566 = vunpack.c.l.b16 %v757
  %v1567 = vunpack.c.h.b16 %v757
  %v1568 = vunpack.c.l.b16 %v758
  %v1569 = vunpack.c.h.b16 %v758
  %v1570 = vunpack.c.l.b16 %v759
  %v1571 = vunpack.c.h.b16 %v759
  %v1572 = vunpack.c.l.b16 %v760
  %v1573 = vunpack.c.h.b16 %v760
  %v1574 = vunpack.c.l.b16 %v761
  %v1575 = vunpack.c.h.b16 %v761
  %v1576 = vunpack.c.l.b16 %v762
  %v1577 = vunpack.c.h.b16 %v762
  %v1578 = vunpack.c.l.b16 %v763
  %v1579 = vunpack.c.h.b16 %v763
  %v1580 = vunpack.c.l.b16 %v764
  %v1581 = vunpack.c.h.b16 %v764
  %v1582 = vunpack.c.l.b16 %v765
  %v1583 = vunpack.c.h.b16 %v765
  %v1584 = vunpack.c.l.b16 %v766
  %v1585 = vunpack.c.h.b16 %v766
  %v1586 = vunpack.c.l.b16 %v767
  %v1587 = vunpack.c.h.b16 %v767
  %v1588 = vunpack.c.l.b16 %v768
  %v1589 = vunpack.c.h.b16 %v768
  %v1590 = vunpack.c.l.b16 %v769
  %v1591 = vunpack.c.h.b16 %v769
  %v1592 = vunpack.c.l.b16 %v770
  %v1593 = vunpack.c.h.b16 %v770
  %v1594 = vunpack.c.l.b16 %v771
  %v1595 = vunpack.c.h.b16 %v771
  %v1596 = vunpack.c.l.b16 %v772
  %v1597 = vunpack.c.h.b16 %v772
  %v1598 = vunpack.c.l.b16 %v773
  %v1599 = vunpack.c.h.b16 %v773
  %v1600 = vunpack.c.l.b16 %v774
  %v1601 = vunpack.c.h.b16 %v774
  %v1602 = vunpack.c.l.b16 %v775
  %v1603 = vunpack.c.h.b16 %v775
  %v1604 = vunpack.c.l.b16 %v776
  %v1605 = vunpack.c.h.b16 %v776
  %v1606 = vunpack.c.l.b16 %v777
  %v1607 = vunpack.c.h.b16 %v777
  %v1608 = vunpack.c.l.b16 %v778
  %v1609 = vunpack.c.h.b16 %v778
  %v1610 = vunpack.c.l.b16 %v779
  %v1611 = vunpack.c.h.b16 %v779
  %v1612 = vunpack.c.l.b16 %v780
  %v1613 = vunpack.c.h.b16 %v780
  %v1614 = vunpack.c.l.b16 %v781
  %v1615 = vunpack.c.h.b16 %v781
  %v1616 = vunpack.c.l.b16 %v782
  %v1617 = vunpack.c.h.b16 %v782
  %v1618 = vunpack.c.l.b16 %v783
  %v1619 = vunpack.c.h.b16 %v783
  %v1620 = vunpack.c.l.b16 %v784
  %v1621 = vunpack.c.h.b16 %v784
  %v1622 = vunpack.c.l.b16 %v785
  %v1623 = vunpack.c.h.b16 %v785
  %v1624 = vunpack.c.l.b16 %v786
  %v1625 = vunpack.c.h.b16 %v786
  %v1626 = vunpack.c.l.b16 %v787
  %v1627 = vunpack.c.h.b16 %v787
  %v1628 = vunpack.c.l.b16 %v788
  %v1629 = vunpack.c.h.b16 %v788
  %v1630 = vunpack.c.l.b16 %v789
  %v1631 = vunpack.c.h.b16 %v789
  %v1632 = vunpack.c.l.b16 %v790
  %v1633 = vunpack.c.h.b16 %v790
  %v1634 = vunpack.c.l.b16 %v791
  %v1635 = vunpack.c.h.b16 %v791
  %v1636 = vunpack.c.l.b16 %v792
  %v1637 = vunpack.c.h.b16 %v792
  %v1638 = vunpack.c.l.b16 %v793
  %v1639 = vunpack.c.h.b16 %v793
  %v1640 = vunpack.c.l.b16 %v794
  %v1641 = vunpack.c.h.b16 %v794
  %v1642 = vunpack.c.l.b16 %v795
  %v1643 = vunpack.c.h.b16 %v795
  %v1644 = vunpack.c.l.b16 %v796
  %v1645 = vunpack.c.h.b16 %v796
  %v1646 = vunpack.c.l.b16 %v797
  %v1647 = vunpack.c.h.b16 %v797
  %v1648 = vunpack.c.l.b16 %v798
  %v1649 = vunpack.c.h.b16 %v798
  %v1650 = vunpack.c.l.b16 %v799
  %v1651 = vunpack.c.h.b16 %v799
  %v1652 = vunpack.c.l.b16 %v800
  %v1653 = vunpack.c.h.b16 %v800
  %v1654 = vunpack.c.l.b16 %v801
  %v1655 = vunpack.c.h.b16 %v801
  %v1656 = vunpack.c.l.b16 %v802
  %v1657 = vunpack.c.h.b16 %v802
  %v1658 = vunpack.c.l.b16 %v803
  %v1659 = vunpack.c.h.b16 %v803
  %v1660 = vunpack.c.l.b16 %v804
  %v1661 = vunpack.c.h.b16 %v804
  %v1662 = vunpack.c.l.b16 %v805
  %v1663 = vunpack.c.h.b16 %v805
  %v1664 = vunpack.c.l.b16 %v806
  %v1665 = vunpack.c.h.b16 %v806
  %v1666 = vunpack.c.l.b16 %v807
  %v1667 = vunpack.c.h.b16 %v807
  %v1668 = vunpack.c.l.b16 %v808
  %v1669 = vunpack.c.h.b16 %v808
  %v1670 = vunpack.c.l.b16 %v809
  %v1671 = vunpack.c.h.b16 %v809
  %v1672 = vunpack.c.l.b16 %v810
  %v1673 = vunpack.c.h.b16 %v810
  %v1674 = vunpack.c.l.b16 %v811
  %v1675 = vunpack.c.h.b16 %v811
  %v1676 = vunpack.c.l.b16 %v812
  %v1677 = vunpack.c.h.b16 %v812
  %v1678 = vunpack.c.l.b16 %v813
  %v1679 = vunpack.c.h.b16 %v813
  %v1680 = vunpack.c.l.b16 %v814
  %v1681 = vunpack.c.h.b16 %v814
  %v1682 = vunpack.c.l.b16 %v815
  %v1683 = vunpack.c.h.b16 %v815
  %v1684 = vunpack.c.l.b16 %v816
  %v1685 = vunpack.c.h.b16 %v816
  %v1686 = vunpack.c.l.b16 %v817
  %v1687 = vunpack.c.h.b16 %v817
  %v1688 = vunpack.c.l.b16 %v818
  %v1689 = vunpack.c.h.b16 %v818
  %v1690 = vunpack.c.l.b16 %v819
  %v1691 = vunpack.c.h.b16 %v819
  %v1692 = vunpack.c.l.b16 %v820
  %v1693 = vunpack.c.h.b16 %v820
  %v1694 = vunpack.c.l.b16 %v821
  %v1695 = vunpack.c.h.b16 %v821
  %v1696 = vunpack.c.l.b16 %v822
  %v1697 = vunpack.c.h.b16 %v822
  %v1698 = vunpack.c.l.b16 %v823
  %v1699 = vunpack.c.h.b16 %v823
  %v1700 = vpack.c.b16 %v1126, %v1124
  %v1701 = vpack.c.b16 %v1127, %v1125
  %v1702 = vpack.c.b16 %v1130, %v1128
  %v1703 = vpack.c.b16 %v1131, %v1129
  %v1704 = vpack.c.b16 %v1134, %v1132
  %v1705 = vpack.c.b16 %v1135, %v1133
  %v1706 = vpack.c.b16 %v1138, %v1136
  %v1707 = vpack.c.b16 %v1139, %v1137
  %v1708 = vpack.c.b16 %v1142, %v1140
  %v1709 = vpack.c.b16 %v1143, %v1141
  %v1710 = vpack.c.b16 %v1146, %v1144
  %v1711 = vpack.c.b16 %v1147, %v1145
  %v1712 = vpack.c.b16 %v1150, %v1148
  %v1713 = vpack.c.b16 %v1151, %v1149
  %v1714 = vpack.c.b16 %v1154, %v1152
  %v1715 = vpack.c.b16 %v1155, %v1153
  %v1716 = vpack.c.b16 %v1158, %v1156
  %v1717 = vpack.c.b16 %v1159, %v1157
  %v1718 = vpack.c.b16 %v1162, %v1160
  %v1719 = vpack.c.b16 %v1163, %v1161
  %v1720 = vpack.c.b16 %v1166, %v1164
  %v1721 = vpack.c.b16 %v1167, %v1165
  %v1722 = vpack.c.b16 %v1170, %v1168
  %v1723 = vpack.c.b16 %v1171, %v1169
  %v1724 = vpack.c.b16 %v1174, %v1172
  %v1725 = vpack.c.b16 %v1175, %v1173
  %v1726 = vpack.c.b16 %v1178, %v1176
  %v1727 = vpack.c.b16 %v1179, %v1177
  %v1728 = vpack.c.b16 %v1182, %v1180
  %v1729 = vpack.c.b16 %v1183, %v1181
  %v1730 = vpack.c.b16 %v1186, %v1184
  %v1731 = vpack.c.b16 %v1187, %v1185
  %v1732 = vpack.c.b16 %v1190, %v1188
  %v1733 = vpack.c.b16 %v1191, %v1189
  %v1734 = vpack.c.b16 %v1194, %v1192
  %v1735 = vpack.c.b16 %v1195, %v1193
  %v1736 = vpack.c.b16 %v1198, %v1196
  %v1737 = vpack.c.b16 %v1199, %v1197
  %v1738 = vpack.c.b16 %v1202, %v1200
  %v1739 = vpack.c.b16 %v1203, %v1201
  %v1740 = vpack.c.b16 %v1206, %v1204
  %v1741 = vpack.c.b16 %v1207, %v1205
  %v1742 = vpack.c.b16 %v1210, %v1208
  %v1743 = vpack.c.b16 %v1211, %v1209
  %v1744 = vpack.c.b16 %v1214, %v1212
  %v1745 = vpack.c.b16 %v1215, %v1213
  %v1746 = vpack.c.b16 %v1218, %v1216
  %v1747 = vpack.c.b16 %v1219, %v1217
  %v1748 = vpack.c.b16 %v1222, %v1220
  %v1749 = vpack.c.b16 %v1223, %v1221
  %v1750 = vpack.c.b16 %v1226, %v1224
  %v1751 = vpack.c.b16 %v1227, %v1225
  %v1752 = vpack.c.b16 %v1230, %v1228
  %v1753 = vpack.c.b16 %v1231, %v1229
  %v1754 = vpack.c.b16 %v1234, %v1232
  %v1755 = vpack.c.b16 %v1235, %v1233
  %v1756 = vpack.c.b16 %v1238, %v1236
  %v1757 = vpack.c.b16 %v1239, %v1237
  %v1758 = vpack.c.b16 %v1242, %v1240
  %v1759 = vpack.c.b16 %v1243, %v1241
  %v1760 = vpack.c.b16 %v1246, %v1244
  %v1761 = vpack.c.b16 %v1247, %v1245
  %v1762 = vpack.c.b16 %v1250, %v1248
  %v1763 = vpack.c.b16 %v1251, %v1249
  %v1764 = vpack.c.b16 %v1254, %v1252
  %v1765 = vpack.c.b16 %v1255, %v1253
  %v1766 = vpack.c.b16 %v1258, %v1256
  %v1767 = vpack.c.b16 %v1259, %v1257
  %v1768 = vpack.c.b16 %v1262, %v1260
  %v1769 = vpack.c.b16 %v1263, %v1261
  %v1770 = vpack.c.b16 %v1266, %v1264
  %v1771 = vpack.c.b16 %v1267, %v1265
  %v1772 = vpack.c.b16 %v1270, %v1268
  %v1773 = vpack.c.b16 %v1271, %v1269
  %v1774 = vpack.c.b16 %v1274, %v1272
  %v1775 = vpack.c.b16 %v1275, %v1273
  %v1776 = vpack.c.b16 %v1278, %v1276
  %v1777 = vpack.c.b16 %v1279, %v1277
  %v1778 = vpack.c.b16 %v1282, %v1280
  %v1779 = vpack.c.b16 %v1283, %v1281
  %v1780 = vpack.c.b16 %v1286, %v1284
  %v1781 = vpack.c.b16 %v1287, %v1285
  %v1782 = vpack.c.b16 %v1290, %v1288
  %v1783 = vpack.c.b16 %v1291, %v1289
  %v1784 = vpack.c.b16 %v1294, %v1292
  %v1785 = vpack.c.b16 %v1295, %v1293
  %v1786 = vpack.c.b16 %v1298, %v1296
  %v1787 = vpack.c.b16 %v1299, %v1297
  %v1788 = vpack.c.b16 %v1302, %v1300
  %v1789 = vpack.c.b16 %v1303, %v1301
  %v1790 = vpack.c.b16 %v1306, %v1304
  %v1791 = vpack.c.b16 %v1307, %v1305
  %v1792 = vpack.c.b16 %v1310, %v1308
  %v1793 = vpack.c.b16 %v1311, %v1309
  %v1794 = vpack.c.b16 %v1314, %v1312
  %v1795 = vpack.c.b16 %v1315, %v1313
  %v1796 = vpack.c.b16 %v1318, %v1316
  %v1797 = vpack.c.b16 %v1319, %v1317
  %v1798 = vpack.c.b16 %v1322, %v1320
  %v1799 = vpack.c.b16 %v1323, %v1321
  %v1800 = vpack.c.b16 %v1326, %v1324
  %v1801 = vpack.c.b16 %v1327, %v1325
  %v1802 = vpack.c.b16 %v1330, %v1328
  %v1803 = vpack.c.b16 %v1331, %v1329
  %v1804 = vpack.c.b16 %v1334, %v1332
  %v1805 = vpack.c.b16 %v1335, %v1333
  %v1806 = vpack.c.b16 %v1338, %v1336
  %v1807 = vpack.c.b16 %v1339, %v1337
  %v1808 = vpack.c.b16 %v1342, %v1340
  %v1809 = vpack.c.b16 %v1343, %v1341
  %v1810 = vpack.c.b16 %v1346, %v1344
  %v1811 = vpack.c.b16 %v1347, %v1345
  %v1812 = vpack.c.b16 %v1350, %v1348
  %v1813 = vpack.c.b16 %v1351, %v1349
  %v1814 = vpack.c.b16 %v1354, %v1352
  %v1815 = vpack.c.b16 %v1355, %v1353
  %v1816 = vpack.c.b16 %v1358, %v1356
  %v1817 = vpack.c.b16 %v1359, %v1357
  %v1818 = vpack.c.b16 %v1362, %v1360
  %v1819 = vpack.c.b16 %v1363, %v1361
  %v1820 = vpack.c.b16 %v1366, %v1364
  %v1821 = vpack.c.b16 %v1367, %v1365
  %v1822 = vpack.c.b16 %v1370, %v1368
  %v1823 = vpack.c.b16 %v1371, %v1369
  %v1824 = vpack.c.b16 %v1374, %v1372
  %v1825 = vpack.c.b16 %v1375, %v1373
  %v1826 = vpack.c.b16 %v1378, %v1376
  %v1827 = vpack.c.b16 %v1379, %v1377
  %v1828 = vpack.c.b16 %v1382, %v1380
  %v1829 = vpack.c.b16 %v1383, %v1381
  %v1830 = vpack.c.b16 %v1386, %v1384
  %v1831 = vpack.c.b16 %v1387, %v1385
  %v1832 = vpack.c.b16 %v1390, %v1388
  %v1833 = vpack.c.b16 %v1391, %v1389
  %v1834 = vpack.c.b16 %v1394, %v1392
  %v1835 = vpack.c.b16 %v1395, %v1393
  %v1836 = vpack.c.b16 %v1398, %v1396
  %v1837 = vpack.c.b16 %v1399, %v1397
  %v1838 = vpack.c.b16 %v1402, %v1400
  %v1839 = vpack.c.b16 %v1403, %v1401
  %v1840 = vpack.c.b16 %v1406, %v1404
  %v1841 = vpack.c.b16 %v1407, %v1405
  %v1842 = vpack.c.b16 %v1410, %v1408
  %v1843 = vpack.c.b16 %v1411, %v1409
  %v1844 = vpack.c.b16 %v1414, %v1412
  %v1845 = vpack.c.b16 %v1415, %v1413
  %v1846 = vpack.c.b16 %v1418, %v1416
  %v1847 = vpack.c.b16 %v1419, %v1417
  %v1848 = vpack.c.b16 %v1422, %v1420
  %v1849 = vpack.c.b16 %v1423, %v1421
  %v1850 = vpack.c.b16 %v1426, %v1424
  %v1851 = vpack.c.b16 %v1427, %v1425
  %v1852 = vpack.c.b16 %v1430, %v1428
  %v1853 = vpack.c.b16 %v1431, %v1429
  %v1854 = vpack.c.b16 %v1434, %v1432
  %v1855 = vpack.c.b16 %v1435, %v1433
  %v1856 = vpack.c.b16 %v1438, %v1436
  %v1857 = vpack.c.b16 %v1439, %v1437
  %v1858 = vpack.c.b16 %v1442, %v1440
  %v1859 = vpack.c.b16 %v1443, %v1441
  %v1860 = vpack.c.b16 %v1446, %v1444
  %v1861 = vpack.c.b16 %v1447, %v1445
  %v1862 = vpack.c.b16 %v1450, %v1448
  %v1863 = vpack.c.b16 %v1451, %v1449
  %v1864 = vpack.c.b16 %v1454, %v1452
  %v1865 = vpack.c.b16 %v1455, %v1453
  %v1866 = vpack.c.b16 %v1458, %v1456
  %v1867 = vpack.c.b16 %v1459, %v1457
  %v1868 = vpack.c.b16 %v1462, %v1460
  %v1869 = vpack.c.b16 %v1463, %v1461
  %v1870 = vpack.c.b16 %v1466, %v1464
  %v1871 = vpack.c.b16 %v1467, %v1465
  %v1872 = vpack.c.b16 %v1470, %v1468
  %v1873 = vpack.c.b16 %v1471, %v1469
  %v1874 = vpack.c.b16 %v1474, %v1472
  %v1875 = vpack.c.b16 %v1475, %v1473
  %v1876 = vpack.c.b16 %v1478, %v1476
  %v1877 = vpack.c.b16 %v1479, %v1477
  %v1878 = vpack.c.b16 %v1482, %v1480
  %v1879 = vpack.c.b16 %v1483, %v1481
  %v1880 = vpack.c.b16 %v1486, %v1484
  %v1881 = vpack.c.b16 %v1487, %v1485
  %v1882 = vpack.c.b16 %v1490, %v1488
  %v1883 = vpack.c.b16 %v1491, %v1489
  %v1884 = vpack.c.b16 %v1494, %v1492
  %v1885 = vpack.c.b16 %v1495, %v1493
  %v1886 = vpack.c.b16 %v1498, %v1496
  %v1887 = vpack.c.b16 %v1499, %v1497
  %v1888 = vpack.c.b16 %v1502, %v1500
  %v1889 = vpack.c.b16 %v1503, %v1501
  %v1890 = vpack.c.b16 %v1506, %v1504
  %v1891 = vpack.c.b16 %v1507, %v1505
  %v1892 = vpack.c.b16 %v1510, %v1508
  %v1893 = vpack.c.b16 %v1511, %v1509
  %v1894 = vpack.c.b16 %v1514, %v1512
  %v1895 = vpack.c.b16 %v1515, %v1513
  %v1896 = vpack.c.b16 %v1518, %v1516
  %v1897 = vpack.c.b16 %v1519, %v1517
  %v1898 = vpack.c.b16 %v1522, %v1520
  %v1899 = vpack.c.b16 %v1523, %v1521
  %v1900 = vpack.c.b16 %v1526, %v1524
  %v1901 = vpack.c.b16 %v1527, %v1525
  %v1902 = vpack.c.b16 %v1530, %v1528
  %v1903 = vpack.c.b16 %v1531, %v1529
  %v1904 = vpack.c.b16 %v1534, %v1532
  %v1905 = vpack.c.b16 %v1535, %v1533
  %v1906 = vpack.c.b16 %v1538, %v1536
  %v1907 = vpack.c.b16 %v1539, %v1537
  %v1908 = vpack.c.b16 %v1542, %v1540
  %v1909 = vpack.c.b16 %v1543, %v1541
  %v1910 = vpack.c.b16 %v1546, %v1544
  %v1911 = vpack.c.b16 %v1547, %v1545
  %v1912 = vpack.c.b16 %v1550, %v1548
  %v1913 = vpack.c.b16 %v1551, %v1549
  %v1914 = vpack.c.b16 %v1554, %v1552
  %v1915 = vpack.c.b16 %v1555, %v1553
  %v1916 = vpack.c.b16 %v1558, %v1556
  %v1917 = vpack.c.b16 %v1559, %v1557
  %v1918 = vpack.c.b16 %v1562, %v1560
  %v1919 = vpack.c.b16 %v1563, %v1561
  %v1920 = vpack.c.b16 %v1566, %v1564
  %v1921 = vpack.c.b16 %v1567, %v1565
  %v1922 = vpack.c.b16 %v1570, %v1568
  %v1923 = vpack.c.b16 %v1571, %v1569
  %v1924 = vpack.c.b16 %v1574, %v1572
  %v1925 = vpack.c.b16 %v1575, %v1573
  %v1926 = vpack.c.b16 %v1578, %v1576
  %v1927 = vpack.c.b16 %v1579, %v1577
  %v1928 = vpack.c.b16 %v1582, %v1580
  %v1929 = vpack.c.b16 %v1583, %v1581
  %v1930 = vpack.c.b16 %v1586, %v1584
  %v1931 = vpack.c.b16 %v1587, %v1585
  %v1932 = vpack.c.b16 %v1590, %v1588
  %v1933 = vpack.c.b16 %v1591, %v1589
  %v1934 = vpack.c.b16 %v1594, %v1592
  %v1935 = vpack.c.b16 %v1595, %v1593
  %v1936 = vpack.c.b16 %v1598, %v1596
  %v1937 = vpack.c.b16 %v1599, %v1597
  %v1938 = vpack.c.b16 %v1602, %v1600
  %v1939 = vpack.c.b16 %v1603, %v1601
  %v1940 = vpack.c.b16 %v1606, %v1604
  %v1941 = vpack.c.b16 %v1607, %v1605
  %v1942 = vpack.c.b16 %v1610, %v1608
  %v1943 = vpack.c.b16 %v1611, %v1609
  %v1944 = vpack.c.b16 %v1614, %v1612
  %v1945 = vpack.c.b16 %v1615, %v1613
  %v1946 = vpack.c.b16 %v1618, %v1616
  %v1947 = vpack.c.b16 %v1619, %v1617
  %v1948 = vpack.c.b16 %v1622, %v1620
  %v1949 = vpack.c.b16 %v1623, %v1621
  %v1950 = vpack.c.b16 %v1626, %v1624
  %v1951 = vpack.c.b16 %v1627, %v1625
  %v1952 = vpack.c.b16 %v1630, %v1628
  %v1953 = vpack.c.b16 %v1631, %v1629
  %v1954 = vpack.c.b16 %v1634, %v1632
  %v1955 = vpack.c.b16 %v1635, %v1633
  %v1956 = vpack.c.b16 %v1638, %v1636
  %v1957 = vpack.c.b16 %v1639, %v1637
  %v1958 = vpack.c.b16 %v1642, %v1640
  %v1959 = vpack.c.b16 %v1643, %v1641
  %v1960 = vpack.c.b16 %v1646, %v1644
  %v1961 = vpack.c.b16 %v1647, %v1645
  %v1962 = vpack.c.b16 %v1650, %v1648
  %v1963 = vpack.c.b16 %v1651, %v1649
  %v1964 = vpack.c.b16 %v1654, %v1652
  %v1965 = vpack.c.b16 %v1655, %v1653
  %v1966 = vpack.c.b16 %v1658, %v1656
  %v1967 = vpack.c.b16 %v1659, %v1657
  %v1968 = vpack.c.b16 %v1662, %v1660
  %v1969 = vpack.c.b16 %v1663, %v1661
  %v1970 = vpack.c.b16 %v1666, %v1664
  %v1971 = vpack.c.b16 %v1667, %v1665
  %v1972 = vpack.c.b16 %v1670, %v1668
  %v1973 = vpack.c.b16 %v1671, %v1669
  %v1974 = vpack.c.b16 %v1674, %v1672
  %v1975 = vpack.c.b16 %v1675, %v1673
  %v1976 = vpack.c.b16 %v1678, %v1676
  %v1977 = vpack.c.b16 %v1679, %v1677
  %v1978 = vpack.c.b16 %v1682, %v1680
  %v1979 = vpack.c.b16 %v1683, %v1681
  %v1980 = vpack.c.b16 %v1686, %v1684
  %v1981 = vpack.c.b16 %v1687, %v1685
  %v1982 = vpack.c.b16 %v1690, %v1688
  %v1983 = vpack.c.b16 %v1691, %v1689
  %v1984 = vpack.c.b16 %v1694, %v1692
  %v1985 = vpack.c.b16 %v1695, %v1693
  %v1986 = vpack.c.b16 %v1698, %v1696
  %v1987 = vpack.c.b16 %v1699, %v1697
  %2276 = vmatprep.subr.bf16.mxu0 %v1715
  %2277 = vmatpush1.bf16.msra.mxu0 %v1714
  %2278 = vmatprep.subr.bf16.mxu0 %v1713
  %2279 = vmatpush1.bf16.msra.mxu0 %v1712
  %2280 = vmatprep.subr.bf16.mxu0 %v1711
  %2281 = vmatpush1.bf16.msra.mxu0 %v1710
  %2282 = vmatprep.subr.bf16.mxu0 %v1709
  %2283 = vmatpush1.bf16.msra.mxu0 %v1708
  %2284 = vmatprep.subr.bf16.mxu0 %v1707
  %2285 = vmatpush1.bf16.msra.mxu0 %v1706
  %2286 = vmatprep.subr.bf16.mxu0 %v1705
  %2287 = vmatpush1.bf16.msra.mxu0 %v1704
  %2288 = vmatprep.subr.bf16.mxu0 %v1703
  %2289 = vmatpush1.bf16.msra.mxu0 %v1702
  %2290 = vmatprep.subr.bf16.mxu0 %v1701
  %2291 = vmatpush1.bf16.msra.mxu0 %v1700
  %2292 = vmatprep.subr.bf16.mxu0 %v1731
  %2293 = vmatpush2.bf16.msra.mxu0 %v1730
  %2294 = vmatprep.subr.bf16.mxu0 %v1729
  %2295 = vmatpush2.bf16.msra.mxu0 %v1728
  %2296 = vmatprep.subr.bf16.mxu0 %v1727
  %2297 = vmatpush2.bf16.msra.mxu0 %v1726
  %2298 = vmatprep.subr.bf16.mxu0 %v1725
  %2299 = vmatpush2.bf16.msra.mxu0 %v1724
  %2300 = vmatprep.subr.bf16.mxu0 %v1723
  %2301 = vmatpush2.bf16.msra.mxu0 %v1722
  %2302 = vmatprep.subr.bf16.mxu0 %v1721
  %2303 = vmatpush2.bf16.msra.mxu0 %v1720
  %2304 = vmatprep.subr.bf16.mxu0 %v1719
  %2305 = vmatpush2.bf16.msra.mxu0 %v1718
  %2306 = vmatprep.subr.bf16.mxu0 %v1717
  %2307 = vmatpush2.bf16.msra.mxu0 %v1716
  %2308 = vmatprep.mubr.bf16.mxu0 %v501
  %2309 = vmatmul.mubr.bf16.gmra.mxu0 %v500
  %v2310 = vpop.f32.mrf.mxu0
  %v2311 = vadd.f32 %v829, %v2310
  %v2312 = vpop.f32.mrf.mxu0
  %v2313 = vadd.f32 %v833, %v2312
  %v2314 = vpop.f32.mrf.mxu0
  %v2315 = vadd.f32 %v829, %v2314
  %v2316 = vpop.f32.mrf.mxu0
  %v2317 = vadd.f32 %v833, %v2316
  %2318 = vmatprep.mubr.bf16.mxu0 %v519
  %2319 = vmatmul.mubr.bf16.gmra.mxu0 %v518
  %v2320 = vpop.f32.mrf.mxu0
  %v2321 = vadd.f32 %v829, %v2320
  %v2322 = vpop.f32.mrf.mxu0
  %v2323 = vadd.f32 %v833, %v2322
  %v2324 = vpop.f32.mrf.mxu0
  %v2325 = vadd.f32 %v829, %v2324
  %v2326 = vpop.f32.mrf.mxu0
  %v2327 = vadd.f32 %v833, %v2326
  %2328 = vdwg.mxu0
  %2329 = vmatprep.subr.bf16.mxu0 %v1747
  %2330 = vmatpush1.bf16.msra.mxu0 %v1746
  %2331 = vmatprep.subr.bf16.mxu0 %v1745
  %2332 = vmatpush1.bf16.msra.mxu0 %v1744
  %2333 = vmatprep.subr.bf16.mxu0 %v1743
  %2334 = vmatpush1.bf16.msra.mxu0 %v1742
  %2335 = vmatprep.subr.bf16.mxu0 %v1741
  %2336 = vmatpush1.bf16.msra.mxu0 %v1740
  %2337 = vmatprep.subr.bf16.mxu0 %v1739
  %2338 = vmatpush1.bf16.msra.mxu0 %v1738
  %2339 = vmatprep.subr.bf16.mxu0 %v1737
  %2340 = vmatpush1.bf16.msra.mxu0 %v1736
  %2341 = vmatprep.subr.bf16.mxu0 %v1735
  %2342 = vmatpush1.bf16.msra.mxu0 %v1734
  %2343 = vmatprep.subr.bf16.mxu0 %v1733
  %2344 = vmatpush1.bf16.msra.mxu0 %v1732
  %2345 = vmatprep.subr.bf16.mxu0 %v1763
  %2346 = vmatpush2.bf16.msra.mxu0 %v1762
  %2347 = vmatprep.subr.bf16.mxu0 %v1761
  %2348 = vmatpush2.bf16.msra.mxu0 %v1760
  %2349 = vmatprep.subr.bf16.mxu0 %v1759
  %2350 = vmatpush2.bf16.msra.mxu0 %v1758
  %2351 = vmatprep.subr.bf16.mxu0 %v1757
  %2352 = vmatpush2.bf16.msra.mxu0 %v1756
  %2353 = vmatprep.subr.bf16.mxu0 %v1755
  %2354 = vmatpush2.bf16.msra.mxu0 %v1754
  %2355 = vmatprep.subr.bf16.mxu0 %v1753
  %2356 = vmatpush2.bf16.msra.mxu0 %v1752
  %2357 = vmatprep.subr.bf16.mxu0 %v1751
  %2358 = vmatpush2.bf16.msra.mxu0 %v1750
  %2359 = vmatprep.subr.bf16.mxu0 %v1749
  %2360 = vmatpush2.bf16.msra.mxu0 %v1748
  %2361 = vmatprep.mubr.bf16.mxu0 %v503
  %2362 = vmatmul.mubr.bf16.gmra.mxu0 %v502
  %v2363 = vpop.f32.mrf.mxu0
  %v2364 = vadd.f32 %v2311, %v2363
  %v2365 = vpop.f32.mrf.mxu0
  %v2366 = vadd.f32 %v2313, %v2365
  %v2367 = vpop.f32.mrf.mxu0
  %v2368 = vadd.f32 %v2315, %v2367
  %v2369 = vpop.f32.mrf.mxu0
  %v2370 = vadd.f32 %v2317, %v2369
  %2371 = vmatprep.mubr.bf16.mxu0 %v521
  %2372 = vmatmul.mubr.bf16.gmra.mxu0 %v520
  %v2373 = vpop.f32.mrf.mxu0
  %v2374 = vadd.f32 %v2321, %v2373
  %v2375 = vpop.f32.mrf.mxu0
  %v2376 = vadd.f32 %v2323, %v2375
  %v2377 = vpop.f32.mrf.mxu0
  %v2378 = vadd.f32 %v2325, %v2377
  %v2379 = vpop.f32.mrf.mxu0
  %v2380 = vadd.f32 %v2327, %v2379
  %2381 = vdwg.mxu0
  %2382 = vmatprep.subr.bf16.mxu0 %v1779
  %2383 = vmatpush1.bf16.msra.mxu0 %v1778
  %2384 = vmatprep.subr.bf16.mxu0 %v1777
  %2385 = vmatpush1.bf16.msra.mxu0 %v1776
  %2386 = vmatprep.subr.bf16.mxu0 %v1775
  %2387 = vmatpush1.bf16.msra.mxu0 %v1774
  %2388 = vmatprep.subr.bf16.mxu0 %v1773
  %2389 = vmatpush1.bf16.msra.mxu0 %v1772
  %2390 = vmatprep.subr.bf16.mxu0 %v1771
  %2391 = vmatpush1.bf16.msra.mxu0 %v1770
  %2392 = vmatprep.subr.bf16.mxu0 %v1769
  %2393 = vmatpush1.bf16.msra.mxu0 %v1768
  %2394 = vmatprep.subr.bf16.mxu0 %v1767
  %2395 = vmatpush1.bf16.msra.mxu0 %v1766
  %2396 = vmatprep.subr.bf16.mxu0 %v1765
  %2397 = vmatpush1.bf16.msra.mxu0 %v1764
  %2398 = vmatprep.subr.bf16.mxu0 %v1795
  %2399 = vmatpush2.bf16.msra.mxu0 %v1794
  %2400 = vmatprep.subr.bf16.mxu0 %v1793
  %2401 = vmatpush2.bf16.msra.mxu0 %v1792
  %2402 = vmatprep.subr.bf16.mxu0 %v1791
  %2403 = vmatpush2.bf16.msra.mxu0 %v1790
  %2404 = vmatprep.subr.bf16.mxu0 %v1789
  %2405 = vmatpush2.bf16.msra.mxu0 %v1788
  %2406 = vmatprep.subr.bf16.mxu0 %v1787
  %2407 = vmatpush2.bf16.msra.mxu0 %v1786
  %2408 = vmatprep.subr.bf16.mxu0 %v1785
  %2409 = vmatpush2.bf16.msra.mxu0 %v1784
  %2410 = vmatprep.subr.bf16.mxu0 %v1783
  %2411 = vmatpush2.bf16.msra.mxu0 %v1782
  %2412 = vmatprep.subr.bf16.mxu0 %v1781
  %2413 = vmatpush2.bf16.msra.mxu0 %v1780
  %2414 = vmatprep.mubr.bf16.mxu0 %v505
  %2415 = vmatmul.mubr.bf16.gmra.mxu0 %v504
  %v2416 = vpop.f32.mrf.mxu0
  %v2417 = vadd.f32 %v2364, %v2416
  %v2418 = vpop.f32.mrf.mxu0
  %v2419 = vadd.f32 %v2366, %v2418
  %v2420 = vpop.f32.mrf.mxu0
  %v2421 = vadd.f32 %v2368, %v2420
  %v2422 = vpop.f32.mrf.mxu0
  %v2423 = vadd.f32 %v2370, %v2422
  %2424 = vmatprep.mubr.bf16.mxu0 %v523
  %2425 = vmatmul.mubr.bf16.gmra.mxu0 %v522
  %v2426 = vpop.f32.mrf.mxu0
  %v2427 = vadd.f32 %v2374, %v2426
  %v2428 = vpop.f32.mrf.mxu0
  %v2429 = vadd.f32 %v2376, %v2428
  %v2430 = vpop.f32.mrf.mxu0
  %v2431 = vadd.f32 %v2378, %v2430
  %v2432 = vpop.f32.mrf.mxu0
  %v2433 = vadd.f32 %v2380, %v2432
  %2434 = vdwg.mxu0
  %2435 = vmatprep.subr.bf16.mxu0 %v1811
  %2436 = vmatpush1.bf16.msra.mxu0 %v1810
  %2437 = vmatprep.subr.bf16.mxu0 %v1809
  %2438 = vmatpush1.bf16.msra.mxu0 %v1808
  %2439 = vmatprep.subr.bf16.mxu0 %v1807
  %2440 = vmatpush1.bf16.msra.mxu0 %v1806
  %2441 = vmatprep.subr.bf16.mxu0 %v1805
  %2442 = vmatpush1.bf16.msra.mxu0 %v1804
  %2443 = vmatprep.subr.bf16.mxu0 %v1803
  %2444 = vmatpush1.bf16.msra.mxu0 %v1802
  %2445 = vmatprep.subr.bf16.mxu0 %v1801
  %2446 = vmatpush1.bf16.msra.mxu0 %v1800
  %2447 = vmatprep.subr.bf16.mxu0 %v1799
  %2448 = vmatpush1.bf16.msra.mxu0 %v1798
  %2449 = vmatprep.subr.bf16.mxu0 %v1797
  %2450 = vmatpush1.bf16.msra.mxu0 %v1796
  %2451 = vmatprep.subr.bf16.mxu0 %v1827
  %2452 = vmatpush2.bf16.msra.mxu0 %v1826
  %2453 = vmatprep.subr.bf16.mxu0 %v1825
  %2454 = vmatpush2.bf16.msra.mxu0 %v1824
  %2455 = vmatprep.subr.bf16.mxu0 %v1823
  %2456 = vmatpush2.bf16.msra.mxu0 %v1822
  %2457 = vmatprep.subr.bf16.mxu0 %v1821
  %2458 = vmatpush2.bf16.msra.mxu0 %v1820
  %2459 = vmatprep.subr.bf16.mxu0 %v1819
  %2460 = vmatpush2.bf16.msra.mxu0 %v1818
  %2461 = vmatprep.subr.bf16.mxu0 %v1817
  %2462 = vmatpush2.bf16.msra.mxu0 %v1816
  %2463 = vmatprep.subr.bf16.mxu0 %v1815
  %2464 = vmatpush2.bf16.msra.mxu0 %v1814
  %2465 = vmatprep.subr.bf16.mxu0 %v1813
  %2466 = vmatpush2.bf16.msra.mxu0 %v1812
  %2467 = vmatprep.mubr.bf16.mxu0 %v507
  %2468 = vmatmul.mubr.bf16.gmra.mxu0 %v506
  %v2469 = vpop.f32.mrf.mxu0
  %v2470 = vadd.f32 %v2417, %v2469
  %v2471 = vpop.f32.mrf.mxu0
  %v2472 = vadd.f32 %v2419, %v2471
  %v2473 = vpop.f32.mrf.mxu0
  %v2474 = vadd.f32 %v2421, %v2473
  %v2475 = vpop.f32.mrf.mxu0
  %v2476 = vadd.f32 %v2423, %v2475
  %2477 = vmatprep.mubr.bf16.mxu0 %v525
  %2478 = vmatmul.mubr.bf16.gmra.mxu0 %v524
  %v2479 = vpop.f32.mrf.mxu0
  %v2480 = vadd.f32 %v2427, %v2479
  %v2481 = vpop.f32.mrf.mxu0
  %v2482 = vadd.f32 %v2429, %v2481
  %v2483 = vpop.f32.mrf.mxu0
  %v2484 = vadd.f32 %v2431, %v2483
  %v2485 = vpop.f32.mrf.mxu0
  %v2486 = vadd.f32 %v2433, %v2485
  %2487 = vdwg.mxu0
  %2488 = vmatprep.subr.bf16.mxu0 %v1843
  %2489 = vmatpush1.bf16.msra.mxu0 %v1842
  %2490 = vmatprep.subr.bf16.mxu0 %v1841
  %2491 = vmatpush1.bf16.msra.mxu0 %v1840
  %2492 = vmatprep.subr.bf16.mxu0 %v1839
  %2493 = vmatpush1.bf16.msra.mxu0 %v1838
  %2494 = vmatprep.subr.bf16.mxu0 %v1837
  %2495 = vmatpush1.bf16.msra.mxu0 %v1836
  %2496 = vmatprep.subr.bf16.mxu0 %v1835
  %2497 = vmatpush1.bf16.msra.mxu0 %v1834
  %2498 = vmatprep.subr.bf16.mxu0 %v1833
  %2499 = vmatpush1.bf16.msra.mxu0 %v1832
  %2500 = vmatprep.subr.bf16.mxu0 %v1831
  %2501 = vmatpush1.bf16.msra.mxu0 %v1830
  %2502 = vmatprep.subr.bf16.mxu0 %v1829
  %2503 = vmatpush1.bf16.msra.mxu0 %v1828
  %2504 = vmatprep.subr.bf16.mxu0 %v1859
  %2505 = vmatpush2.bf16.msra.mxu0 %v1858
  %2506 = vmatprep.subr.bf16.mxu0 %v1857
  %2507 = vmatpush2.bf16.msra.mxu0 %v1856
  %2508 = vmatprep.subr.bf16.mxu0 %v1855
  %2509 = vmatpush2.bf16.msra.mxu0 %v1854
  %2510 = vmatprep.subr.bf16.mxu0 %v1853
  %2511 = vmatpush2.bf16.msra.mxu0 %v1852
  %2512 = vmatprep.subr.bf16.mxu0 %v1851
  %2513 = vmatpush2.bf16.msra.mxu0 %v1850
  %2514 = vmatprep.subr.bf16.mxu0 %v1849
  %2515 = vmatpush2.bf16.msra.mxu0 %v1848
  %2516 = vmatprep.subr.bf16.mxu0 %v1847
  %2517 = vmatpush2.bf16.msra.mxu0 %v1846
  %2518 = vmatprep.subr.bf16.mxu0 %v1845
  %2519 = vmatpush2.bf16.msra.mxu0 %v1844
  %2520 = vmatprep.mubr.bf16.mxu0 %v509
  %2521 = vmatmul.mubr.bf16.gmra.mxu0 %v508
  %v2522 = vpop.f32.mrf.mxu0
  %v2523 = vadd.f32 %v2470, %v2522
  %v2524 = vpop.f32.mrf.mxu0
  %v2525 = vadd.f32 %v2472, %v2524
  %v2526 = vpop.f32.mrf.mxu0
  %v2527 = vadd.f32 %v2474, %v2526
  %v2528 = vpop.f32.mrf.mxu0
  %v2529 = vadd.f32 %v2476, %v2528
  %2530 = vmatprep.mubr.bf16.mxu0 %v527
  %2531 = vmatmul.mubr.bf16.gmra.mxu0 %v526
  %v2532 = vpop.f32.mrf.mxu0
  %v2533 = vadd.f32 %v2480, %v2532
  %v2534 = vpop.f32.mrf.mxu0
  %v2535 = vadd.f32 %v2482, %v2534
  %v2536 = vpop.f32.mrf.mxu0
  %v2537 = vadd.f32 %v2484, %v2536
  %v2538 = vpop.f32.mrf.mxu0
  %v2539 = vadd.f32 %v2486, %v2538
  %2540 = vdwg.mxu0
  %2541 = vmatprep.subr.bf16.mxu0 %v1875
  %2542 = vmatpush1.bf16.msra.mxu0 %v1874
  %2543 = vmatprep.subr.bf16.mxu0 %v1873
  %2544 = vmatpush1.bf16.msra.mxu0 %v1872
  %2545 = vmatprep.subr.bf16.mxu0 %v1871
  %2546 = vmatpush1.bf16.msra.mxu0 %v1870
  %2547 = vmatprep.subr.bf16.mxu0 %v1869
  %2548 = vmatpush1.bf16.msra.mxu0 %v1868
  %2549 = vmatprep.subr.bf16.mxu0 %v1867
  %2550 = vmatpush1.bf16.msra.mxu0 %v1866
  %2551 = vmatprep.subr.bf16.mxu0 %v1865
  %2552 = vmatpush1.bf16.msra.mxu0 %v1864
  %2553 = vmatprep.subr.bf16.mxu0 %v1863
  %2554 = vmatpush1.bf16.msra.mxu0 %v1862
  %2555 = vmatprep.subr.bf16.mxu0 %v1861
  %2556 = vmatpush1.bf16.msra.mxu0 %v1860
  %2557 = vmatprep.subr.bf16.mxu0 %v1891
  %2558 = vmatpush2.bf16.msra.mxu0 %v1890
  %2559 = vmatprep.subr.bf16.mxu0 %v1889
  %2560 = vmatpush2.bf16.msra.mxu0 %v1888
  %2561 = vmatprep.subr.bf16.mxu0 %v1887
  %2562 = vmatpush2.bf16.msra.mxu0 %v1886
  %2563 = vmatprep.subr.bf16.mxu0 %v1885
  %2564 = vmatpush2.bf16.msra.mxu0 %v1884
  %2565 = vmatprep.subr.bf16.mxu0 %v1883
  %2566 = vmatpush2.bf16.msra.mxu0 %v1882
  %2567 = vmatprep.subr.bf16.mxu0 %v1881
  %2568 = vmatpush2.bf16.msra.mxu0 %v1880
  %2569 = vmatprep.subr.bf16.mxu0 %v1879
  %2570 = vmatpush2.bf16.msra.mxu0 %v1878
  %2571 = vmatprep.subr.bf16.mxu0 %v1877
  %2572 = vmatpush2.bf16.msra.mxu0 %v1876
  %2573 = vmatprep.mubr.bf16.mxu0 %v511
  %2574 = vmatmul.mubr.bf16.gmra.mxu0 %v510
  %v2575 = vpop.f32.mrf.mxu0
  %v2576 = vadd.f32 %v2523, %v2575
  %v2577 = vpop.f32.mrf.mxu0
  %v2578 = vadd.f32 %v2525, %v2577
  %v2579 = vpop.f32.mrf.mxu0
  %v2580 = vadd.f32 %v2527, %v2579
  %v2581 = vpop.f32.mrf.mxu0
  %v2582 = vadd.f32 %v2529, %v2581
  %2583 = vmatprep.mubr.bf16.mxu0 %v529
  %2584 = vmatmul.mubr.bf16.gmra.mxu0 %v528
  %v2585 = vpop.f32.mrf.mxu0
  %v2586 = vadd.f32 %v2533, %v2585
  %v2587 = vpop.f32.mrf.mxu0
  %v2588 = vadd.f32 %v2535, %v2587
  %v2589 = vpop.f32.mrf.mxu0
  %v2590 = vadd.f32 %v2537, %v2589
  %v2591 = vpop.f32.mrf.mxu0
  %v2592 = vadd.f32 %v2539, %v2591
  %2593 = vdwg.mxu0
  %2594 = vmatprep.subr.bf16.mxu0 %v1907
  %2595 = vmatpush1.bf16.msra.mxu0 %v1906
  %2596 = vmatprep.subr.bf16.mxu0 %v1905
  %2597 = vmatpush1.bf16.msra.mxu0 %v1904
  %2598 = vmatprep.subr.bf16.mxu0 %v1903
  %2599 = vmatpush1.bf16.msra.mxu0 %v1902
  %2600 = vmatprep.subr.bf16.mxu0 %v1901
  %2601 = vmatpush1.bf16.msra.mxu0 %v1900
  %2602 = vmatprep.subr.bf16.mxu0 %v1899
  %2603 = vmatpush1.bf16.msra.mxu0 %v1898
  %2604 = vmatprep.subr.bf16.mxu0 %v1897
  %2605 = vmatpush1.bf16.msra.mxu0 %v1896
  %2606 = vmatprep.subr.bf16.mxu0 %v1895
  %2607 = vmatpush1.bf16.msra.mxu0 %v1894
  %2608 = vmatprep.subr.bf16.mxu0 %v1893
  %2609 = vmatpush1.bf16.msra.mxu0 %v1892
  %2610 = vmatprep.subr.bf16.mxu0 %v1923
  %2611 = vmatpush2.bf16.msra.mxu0 %v1922
  %2612 = vmatprep.subr.bf16.mxu0 %v1921
  %2613 = vmatpush2.bf16.msra.mxu0 %v1920
  %2614 = vmatprep.subr.bf16.mxu0 %v1919
  %2615 = vmatpush2.bf16.msra.mxu0 %v1918
  %2616 = vmatprep.subr.bf16.mxu0 %v1917
  %2617 = vmatpush2.bf16.msra.mxu0 %v1916
  %2618 = vmatprep.subr.bf16.mxu0 %v1915
  %2619 = vmatpush2.bf16.msra.mxu0 %v1914
  %2620 = vmatprep.subr.bf16.mxu0 %v1913
  %2621 = vmatpush2.bf16.msra.mxu0 %v1912
  %2622 = vmatprep.subr.bf16.mxu0 %v1911
  %2623 = vmatpush2.bf16.msra.mxu0 %v1910
  %2624 = vmatprep.subr.bf16.mxu0 %v1909
  %2625 = vmatpush2.bf16.msra.mxu0 %v1908
  %2626 = vmatprep.mubr.bf16.mxu0 %v513
  %2627 = vmatmul.mubr.bf16.gmra.mxu0 %v512
  %v2628 = vpop.f32.mrf.mxu0
  %v2629 = vadd.f32 %v2576, %v2628
  %v2630 = vpop.f32.mrf.mxu0
  %v2631 = vadd.f32 %v2578, %v2630
  %v2632 = vpop.f32.mrf.mxu0
  %v2633 = vadd.f32 %v2580, %v2632
  %v2634 = vpop.f32.mrf.mxu0
  %v2635 = vadd.f32 %v2582, %v2634
  %2636 = vmatprep.mubr.bf16.mxu0 %v531
  %2637 = vmatmul.mubr.bf16.gmra.mxu0 %v530
  %v2638 = vpop.f32.mrf.mxu0
  %v2639 = vadd.f32 %v2586, %v2638
  %v2640 = vpop.f32.mrf.mxu0
  %v2641 = vadd.f32 %v2588, %v2640
  %v2642 = vpop.f32.mrf.mxu0
  %v2643 = vadd.f32 %v2590, %v2642
  %v2644 = vpop.f32.mrf.mxu0
  %v2645 = vadd.f32 %v2592, %v2644
  %2646 = vdwg.mxu0
  %2647 = vmatprep.subr.bf16.mxu0 %v1939
  %2648 = vmatpush1.bf16.msra.mxu0 %v1938
  %2649 = vmatprep.subr.bf16.mxu0 %v1937
  %2650 = vmatpush1.bf16.msra.mxu0 %v1936
  %2651 = vmatprep.subr.bf16.mxu0 %v1935
  %2652 = vmatpush1.bf16.msra.mxu0 %v1934
  %2653 = vmatprep.subr.bf16.mxu0 %v1933
  %2654 = vmatpush1.bf16.msra.mxu0 %v1932
  %2655 = vmatprep.subr.bf16.mxu0 %v1931
  %2656 = vmatpush1.bf16.msra.mxu0 %v1930
  %2657 = vmatprep.subr.bf16.mxu0 %v1929
  %2658 = vmatpush1.bf16.msra.mxu0 %v1928
  %2659 = vmatprep.subr.bf16.mxu0 %v1927
  %2660 = vmatpush1.bf16.msra.mxu0 %v1926
  %2661 = vmatprep.subr.bf16.mxu0 %v1925
  %2662 = vmatpush1.bf16.msra.mxu0 %v1924
  %2663 = vmatprep.subr.bf16.mxu0 %v1955
  %2664 = vmatpush2.bf16.msra.mxu0 %v1954
  %2665 = vmatprep.subr.bf16.mxu0 %v1953
  %2666 = vmatpush2.bf16.msra.mxu0 %v1952
  %2667 = vmatprep.subr.bf16.mxu0 %v1951
  %2668 = vmatpush2.bf16.msra.mxu0 %v1950
  %2669 = vmatprep.subr.bf16.mxu0 %v1949
  %2670 = vmatpush2.bf16.msra.mxu0 %v1948
  %2671 = vmatprep.subr.bf16.mxu0 %v1947
  %2672 = vmatpush2.bf16.msra.mxu0 %v1946
  %2673 = vmatprep.subr.bf16.mxu0 %v1945
  %2674 = vmatpush2.bf16.msra.mxu0 %v1944
  %2675 = vmatprep.subr.bf16.mxu0 %v1943
  %2676 = vmatpush2.bf16.msra.mxu0 %v1942
  %2677 = vmatprep.subr.bf16.mxu0 %v1941
  %2678 = vmatpush2.bf16.msra.mxu0 %v1940
  %2679 = vmatprep.mubr.bf16.mxu0 %v515
  %2680 = vmatmul.mubr.bf16.gmra.mxu0 %v514
  %v2681 = vpop.f32.mrf.mxu0
  %v2682 = vadd.f32 %v2629, %v2681
  %v2683 = vpop.f32.mrf.mxu0
  %v2684 = vadd.f32 %v2631, %v2683
  %v2685 = vpop.f32.mrf.mxu0
  %v2686 = vadd.f32 %v2633, %v2685
  %v2687 = vpop.f32.mrf.mxu0
  %v2688 = vadd.f32 %v2635, %v2687
  %2689 = vmatprep.mubr.bf16.mxu0 %v533
  %2690 = vmatmul.mubr.bf16.gmra.mxu0 %v532
  %v2691 = vpop.f32.mrf.mxu0
  %v2692 = vadd.f32 %v2639, %v2691
  %v2693 = vpop.f32.mrf.mxu0
  %v2694 = vadd.f32 %v2641, %v2693
  %v2695 = vpop.f32.mrf.mxu0
  %v2696 = vadd.f32 %v2643, %v2695
  %v2697 = vpop.f32.mrf.mxu0
  %v2698 = vadd.f32 %v2645, %v2697
  %2699 = vdwg.mxu0
  %2700 = vmatprep.subr.bf16.mxu0 %v1971
  %2701 = vmatpush1.bf16.msra.mxu0 %v1970
  %2702 = vmatprep.subr.bf16.mxu0 %v1969
  %2703 = vmatpush1.bf16.msra.mxu0 %v1968
  %2704 = vmatprep.subr.bf16.mxu0 %v1967
  %2705 = vmatpush1.bf16.msra.mxu0 %v1966
  %2706 = vmatprep.subr.bf16.mxu0 %v1965
  %2707 = vmatpush1.bf16.msra.mxu0 %v1964
  %2708 = vmatprep.subr.bf16.mxu0 %v1963
  %2709 = vmatpush1.bf16.msra.mxu0 %v1962
  %2710 = vmatprep.subr.bf16.mxu0 %v1961
  %2711 = vmatpush1.bf16.msra.mxu0 %v1960
  %2712 = vmatprep.subr.bf16.mxu0 %v1959
  %2713 = vmatpush1.bf16.msra.mxu0 %v1958
  %2714 = vmatprep.subr.bf16.mxu0 %v1957
  %2715 = vmatpush1.bf16.msra.mxu0 %v1956
  %2716 = vmatprep.subr.bf16.mxu0 %v1987
  %2717 = vmatpush2.bf16.msra.mxu0 %v1986
  %2718 = vmatprep.subr.bf16.mxu0 %v1985
  %2719 = vmatpush2.bf16.msra.mxu0 %v1984
  %2720 = vmatprep.subr.bf16.mxu0 %v1983
  %2721 = vmatpush2.bf16.msra.mxu0 %v1982
  %2722 = vmatprep.subr.bf16.mxu0 %v1981
  %2723 = vmatpush2.bf16.msra.mxu0 %v1980
  %2724 = vmatprep.subr.bf16.mxu0 %v1979
  %2725 = vmatpush2.bf16.msra.mxu0 %v1978
  %2726 = vmatprep.subr.bf16.mxu0 %v1977
  %2727 = vmatpush2.bf16.msra.mxu0 %v1976
  %2728 = vmatprep.subr.bf16.mxu0 %v1975
  %2729 = vmatpush2.bf16.msra.mxu0 %v1974
  %2730 = vmatprep.subr.bf16.mxu0 %v1973
  %2731 = vmatpush2.bf16.msra.mxu0 %v1972
  %2732 = vmatprep.mubr.bf16.mxu0 %v517
  %2733 = vmatmul.mubr.bf16.gmra.mxu0 %v516
  %v2734 = vpop.f32.mrf.mxu0
  %v2735 = vadd.f32 %v2682, %v2734
  %v2736 = vpop.f32.mrf.mxu0
  %v2737 = vadd.f32 %v2684, %v2736
  %v2738 = vpop.f32.mrf.mxu0
  %v2739 = vadd.f32 %v2686, %v2738
  %v2740 = vpop.f32.mrf.mxu0
  %v2741 = vadd.f32 %v2688, %v2740
  %2742 = vmatprep.mubr.bf16.mxu0 %v535
  %2743 = vmatmul.mubr.bf16.gmra.mxu0 %v534
  %v2744 = vpop.f32.mrf.mxu0
  %v2745 = vadd.f32 %v2692, %v2744
  %v2746 = vpop.f32.mrf.mxu0
  %v2747 = vadd.f32 %v2694, %v2746
  %v2748 = vpop.f32.mrf.mxu0
  %v2749 = vadd.f32 %v2696, %v2748
  %v2750 = vpop.f32.mrf.mxu0
  %v2751 = vadd.f32 %v2698, %v2750
  %2752 = vdwg.mxu0
  %2753 = vst [vmem:[%s5] sm:$0xff] %v2735
  %2754 = vst [vmem:[%s5 + $0x8] sm:$0xff] %v2737
  %2755 = vst [vmem:[%s5 + $0x10] sm:$0xff] %v2739
  %2756 = vst [vmem:[%s5 + $0x18] sm:$0xff] %v2741
  %2757 = vst [vmem:[%s5 + $0x20] sm:$0xff] %v2745
  %2758 = vst [vmem:[%s5 + $0x28] sm:$0xff] %v2747
  %2759 = vst [vmem:[%s5 + $0x30] sm:$0xff] %v2749
  %2760 = vst [vmem:[%s5 + $0x38] sm:$0xff] %v2751
  // Predicated region
  $region22: #{capsule_net_forward.4} parent=0 // pred_check
    _
  $region23: #{capsule_net_forward.4} parent=0 // pred_check_branch
    %2762 = sbr.rel (0) target = $region25
  $region24: #{capsule_net_forward.4} parent=0 // pred_region
    _
  $region25: #{capsule_net_forward.4} parent=0 // pred_fallthru
    _
  // Predicated region
  $region26: #{capsule_net_forward.4} parent=0 // pred_check
    _
  $region27: #{capsule_net_forward.4} parent=0 // pred_check_branch
    %2764 = sbr.rel (0) target = $region29
  $region28: #{capsule_net_forward.4} parent=0 // pred_region
    _
  $region29: #{capsule_net_forward.4} parent=0 // pred_fallthru
    _

// kernel: capsule_net_forward.5
$region0: #{capsule_net_forward.5}
  #allocation0 [shape = 'u32[]', space=smem, size = 0x4, offset = 0x4, fixed_abs, tag = 'smem constant byte address 0x4 - core index']
  #allocation1 [shape = 'u32[144,128]{1,0:T(1,128)}', space=vmem, size = 0x12000, scoped, tag = 'internal scratch']
  %s0 = inlined_call_operand.vmem [shape: f32[8,2,512], index: 0, kind: input, shape index: {}]
  %s1 = inlined_call_operand.vmem [shape: f32[8,4,16,512], index: 1, kind: input, shape index: {}]
  %s2 = inlined_call_operand.vmem [shape: f32[4,16,384], index: 2, kind: input, shape index: {}]
  %s3 = inlined_call_operand.vmem [shape: f32[1,384], index: 3, kind: input, shape index: {}]
  %s4 = inlined_call_operand.vmem [shape: f32[384,256], index: 4, kind: input, shape index: {}]
  %s5 = inlined_call_operand.vmem [shape: f32[1,256], index: 5, kind: input, shape index: {}]
  %s6 = inlined_call_operand.vmem [shape: f32[256,64], index: 6, kind: input, shape index: {}]
  %s7 = inlined_call_operand.vmem [shape: f32[1,64], index: 7, kind: input, shape index: {}]
  %s8 = inlined_call_operand.hbm [shape: f32[2,4], index: 8, kind: output, shape index: {0}]
  %s9 = inlined_call_operand.vmem [shape: f32[2,64], index: 9, kind: output, shape index: {1}]
  %10 = xla_tuple %s8, %s9
  %s11 = sld [smem:[#allocation0]]
  $region50: #{capsule_net_forward.5} parent=0
    _
  %s13 = ssub.s32 1, %s11
  %s14 = scalar_select 0, %s13, %s11
  $region1: #{capsule_net_forward.5} parent=0
    #allocation2 [shape = 'u8[1024]{0}', space=vmem, size = 0x400, scoped, tag = 'output window, operand 0, single buffered']
    #allocation3 [shape = 's32[1]{0}', space=sflag, size = 0x4, scoped, tag = 'scoped memory for capsule_net_forward.5']
    %15 = vsyncpa [#allocation3], 0
    // Predicated region
    $region2: #{capsule_net_forward.5} parent=1 // pred_check
      _
    $region3: #{capsule_net_forward.5} parent=1 // pred_check_branch
      %17 = sbr.rel (0) target = $region5
    $region4: #{capsule_net_forward.5} parent=1 // pred_region
      _
    $region5: #{capsule_net_forward.5} parent=1 // pred_fallthru
      _
    // Predicated region
    $region6: #{capsule_net_forward.5} parent=1 // pred_check
      _
    $region7: #{capsule_net_forward.5} parent=1 // pred_check_branch
      %19 = sbr.rel (0) target = $region9
    $region8: #{capsule_net_forward.5} parent=1 // pred_region
      _
    $region9: #{capsule_net_forward.5} parent=1 // pred_fallthru
      _
    // Predicated region
    $region10: #{capsule_net_forward.5} parent=1 // pred_check
      _
    $region11: #{capsule_net_forward.5} parent=1 // pred_check_branch
      %21 = sbr.rel (0) target = $region13
    $region12: #{capsule_net_forward.5} parent=1 // pred_region
      _
    $region13: #{capsule_net_forward.5} parent=1 // pred_fallthru
      _
    // Predicated region
    $region14: #{capsule_net_forward.5} parent=1 // pred_check
      _
    $region15: #{capsule_net_forward.5} parent=1 // pred_check_branch
      %23 = sbr.rel (0) target = $region17
    $region16: #{capsule_net_forward.5} parent=1 // pred_region
      _
    $region17: #{capsule_net_forward.5} parent=1 // pred_fallthru
      _
    // Predicated region
    $region18: #{capsule_net_forward.5} parent=1 // pred_check
      _
    $region19: #{capsule_net_forward.5} parent=1 // pred_check_branch
      %25 = sbr.rel (0) target = $region21
    $region20: #{capsule_net_forward.5} parent=1 // pred_region
      _
    $region21: #{capsule_net_forward.5} parent=1 // pred_fallthru
      _
    // Predicated region
    $region22: #{capsule_net_forward.5} parent=1 // pred_check
      _
    $region23: #{capsule_net_forward.5} parent=1 // pred_check_branch
      %27 = sbr.rel (0) target = $region25
    $region24: #{capsule_net_forward.5} parent=1 // pred_region
      _
    $region25: #{capsule_net_forward.5} parent=1 // pred_fallthru
      _
    // Predicated region
    $region26: #{capsule_net_forward.5} parent=1 // pred_check
      _
    $region27: #{capsule_net_forward.5} parent=1 // pred_check_branch
      %29 = sbr.rel (0) target = $region29
    $region28: #{capsule_net_forward.5} parent=1 // pred_region
      _
    $region29: #{capsule_net_forward.5} parent=1 // pred_fallthru
      _
    // Predicated region
    $region30: #{capsule_net_forward.5} parent=1 // pred_check
      _
    $region31: #{capsule_net_forward.5} parent=1 // pred_check_branch
      %31 = sbr.rel (0) target = $region33
    $region32: #{capsule_net_forward.5} parent=1 // pred_region
      _
    $region33: #{capsule_net_forward.5} parent=1 // pred_fallthru
      _
    %v32 = vld [vmem:[%s0] sm:$0xff]
    %v33 = vld [vmem:[%s0 + $0x8] sm:$0xff]
    %v34 = vld [vmem:[%s0 + $0x10] sm:$0xff]
    %v35 = vld [vmem:[%s0 + $0x18] sm:$0xff]
    %v36 = vld [vmem:[%s0 + $0x20] sm:$0xff]
    %v37 = vld [vmem:[%s0 + $0x28] sm:$0xff]
    %v38 = vld [vmem:[%s0 + $0x30] sm:$0xff]
    %v39 = vld [vmem:[%s0 + $0x38] sm:$0xff]
    %v40 = vmul.f32 %v32, %v32
    %v41 = vmul.f32 %v33, %v33
    %v42 = vmul.f32 %v34, %v34
    %v43 = vmul.f32 %v35, %v35
    %v44 = vmul.f32 %v36, %v36
    %v45 = vmul.f32 %v37, %v37
    %v46 = vmul.f32 %v38, %v38
    %v47 = vmul.f32 %v39, %v39
    %v56 = vcombine.high %v40, %v40
    %v58 = vunpack.c.l.s4 1983009808
    %v59 = vunpack.c.0.s8 %v58
    %v60 = vlaneseq
    %v61 = vshrl.u32 %v60, 7
    %v62 = vsub.s32 %v59, %v61
    %v63 = vrot.slane %v40, %v62
    %v65 = vunpack.c.l.s4 1983009808
    %v66 = vunpack.c.0.s8 %v65
    %v67 = vlaneseq
    %v68 = vshrl.u32 %v67, 7
    %v69 = vsub.s32 %v66, %v68
    %v70 = vrot.slane %v56, %v69
    %v71 = vcombine.high %v63, %v63
    %v72 = vcombine.high %v70, %v70
    %v73 = vcombine.high %v41, %v41
    %v75 = vunpack.c.l.s4 1983009808
    %v76 = vunpack.c.0.s8 %v75
    %v77 = vlaneseq
    %v78 = vshrl.u32 %v77, 7
    %v79 = vsub.s32 %v76, %v78
    %v80 = vrot.slane %v41, %v79
    %v82 = vunpack.c.l.s4 1983009808
    %v83 = vunpack.c.0.s8 %v82
    %v84 = vlaneseq
    %v85 = vshrl.u32 %v84, 7
    %v86 = vsub.s32 %v83, %v85
    %v87 = vrot.slane %v73, %v86
    %v88 = vcombine.high %v80, %v80
    %v89 = vcombine.high %v87, %v87
    %v90 = vcombine.high %v42, %v42
    %v92 = vunpack.c.l.s4 1983009808
    %v93 = vunpack.c.0.s8 %v92
    %v94 = vlaneseq
    %v95 = vshrl.u32 %v94, 7
    %v96 = vsub.s32 %v93, %v95
    %v97 = vrot.slane %v42, %v96
    %v99 = vunpack.c.l.s4 1983009808
    %v100 = vunpack.c.0.s8 %v99
    %v101 = vlaneseq
    %v102 = vshrl.u32 %v101, 7
    %v103 = vsub.s32 %v100, %v102
    %v104 = vrot.slane %v90, %v103
    %v105 = vcombine.high %v97, %v97
    %v106 = vcombine.high %v104, %v104
    %v107 = vcombine.high %v43, %v43
    %v109 = vunpack.c.l.s4 1983009808
    %v110 = vunpack.c.0.s8 %v109
    %v111 = vlaneseq
    %v112 = vshrl.u32 %v111, 7
    %v113 = vsub.s32 %v110, %v112
    %v114 = vrot.slane %v43, %v113
    %v116 = vunpack.c.l.s4 1983009808
    %v117 = vunpack.c.0.s8 %v116
    %v118 = vlaneseq
    %v119 = vshrl.u32 %v118, 7
    %v120 = vsub.s32 %v117, %v119
    %v121 = vrot.slane %v107, %v120
    %v122 = vcombine.high %v114, %v114
    %v123 = vcombine.high %v121, %v121
    %v124 = vcombine.high %v44, %v44
    %v126 = vunpack.c.l.s4 1983009808
    %v127 = vunpack.c.0.s8 %v126
    %v128 = vlaneseq
    %v129 = vshrl.u32 %v128, 7
    %v130 = vsub.s32 %v127, %v129
    %v131 = vrot.slane %v44, %v130
    %v133 = vunpack.c.l.s4 1983009808
    %v134 = vunpack.c.0.s8 %v133
    %v135 = vlaneseq
    %v136 = vshrl.u32 %v135, 7
    %v137 = vsub.s32 %v134, %v136
    %v138 = vrot.slane %v124, %v137
    %v139 = vcombine.high %v131, %v131
    %v140 = vcombine.high %v138, %v138
    %v141 = vcombine.high %v45, %v45
    %v143 = vunpack.c.l.s4 1983009808
    %v144 = vunpack.c.0.s8 %v143
    %v145 = vlaneseq
    %v146 = vshrl.u32 %v145, 7
    %v147 = vsub.s32 %v144, %v146
    %v148 = vrot.slane %v45, %v147
    %v150 = vunpack.c.l.s4 1983009808
    %v151 = vunpack.c.0.s8 %v150
    %v152 = vlaneseq
    %v153 = vshrl.u32 %v152, 7
    %v154 = vsub.s32 %v151, %v153
    %v155 = vrot.slane %v141, %v154
    %v156 = vcombine.high %v148, %v148
    %v157 = vcombine.high %v155, %v155
    %v158 = vcombine.high %v46, %v46
    %v160 = vunpack.c.l.s4 1983009808
    %v161 = vunpack.c.0.s8 %v160
    %v162 = vlaneseq
    %v163 = vshrl.u32 %v162, 7
    %v164 = vsub.s32 %v161, %v163
    %v165 = vrot.slane %v46, %v164
    %v167 = vunpack.c.l.s4 1983009808
    %v168 = vunpack.c.0.s8 %v167
    %v169 = vlaneseq
    %v170 = vshrl.u32 %v169, 7
    %v171 = vsub.s32 %v168, %v170
    %v172 = vrot.slane %v158, %v171
    %v173 = vcombine.high %v165, %v165
    %v174 = vcombine.high %v172, %v172
    %v175 = vcombine.high %v47, %v47
    %v177 = vunpack.c.l.s4 1983009808
    %v178 = vunpack.c.0.s8 %v177
    %v179 = vlaneseq
    %v180 = vshrl.u32 %v179, 7
    %v181 = vsub.s32 %v178, %v180
    %v182 = vrot.slane %v47, %v181
    %v184 = vunpack.c.l.s4 1983009808
    %v185 = vunpack.c.0.s8 %v184
    %v186 = vlaneseq
    %v187 = vshrl.u32 %v186, 7
    %v188 = vsub.s32 %v185, %v187
    %v189 = vrot.slane %v175, %v188
    %v190 = vcombine.high %v182, %v182
    %v191 = vcombine.high %v189, %v189
    %vm224 = vcmask 1041408
    %v225 = vsel %vm224, %v63, 0.0
    %v226 = vsel %vm224, %v80, 0.0
    %v227 = vadd.f32 %v225, %v226
    %v228 = vsel %vm224, %v97, 0.0
    %v229 = vadd.f32 %v227, %v228
    %v230 = vsel %vm224, %v114, 0.0
    %v231 = vadd.f32 %v229, %v230
    %v232 = vsel %vm224, %v131, 0.0
    %v233 = vadd.f32 %v231, %v232
    %v234 = vsel %vm224, %v148, 0.0
    %v235 = vadd.f32 %v233, %v234
    %v236 = vsel %vm224, %v165, 0.0
    %v237 = vadd.f32 %v235, %v236
    %v238 = vsel %vm224, %v182, 0.0
    %v239 = vadd.f32 %v237, %v238
    %v240 = vsel %vm224, %v71, 0.0
    %v241 = vsel %vm224, %v88, 0.0
    %v242 = vadd.f32 %v240, %v241
    %v243 = vsel %vm224, %v105, 0.0
    %v244 = vadd.f32 %v242, %v243
    %v245 = vsel %vm224, %v122, 0.0
    %v246 = vadd.f32 %v244, %v245
    %v247 = vsel %vm224, %v139, 0.0
    %v248 = vadd.f32 %v246, %v247
    %v249 = vsel %vm224, %v156, 0.0
    %v250 = vadd.f32 %v248, %v249
    %v251 = vsel %vm224, %v173, 0.0
    %v252 = vadd.f32 %v250, %v251
    %v253 = vsel %vm224, %v190, 0.0
    %v254 = vadd.f32 %v252, %v253
    %v255 = vsel %vm224, %v70, 0.0
    %v256 = vsel %vm224, %v87, 0.0
    %v257 = vadd.f32 %v255, %v256
    %v258 = vsel %vm224, %v104, 0.0
    %v259 = vadd.f32 %v257, %v258
    %v260 = vsel %vm224, %v121, 0.0
    %v261 = vadd.f32 %v259, %v260
    %v262 = vsel %vm224, %v138, 0.0
    %v263 = vadd.f32 %v261, %v262
    %v264 = vsel %vm224, %v155, 0.0
    %v265 = vadd.f32 %v263, %v264
    %v266 = vsel %vm224, %v172, 0.0
    %v267 = vadd.f32 %v265, %v266
    %v268 = vsel %vm224, %v189, 0.0
    %v269 = vadd.f32 %v267, %v268
    %v270 = vsel %vm224, %v72, 0.0
    %v271 = vsel %vm224, %v89, 0.0
    %v272 = vadd.f32 %v270, %v271
    %v273 = vsel %vm224, %v106, 0.0
    %v274 = vadd.f32 %v272, %v273
    %v275 = vsel %vm224, %v123, 0.0
    %v276 = vadd.f32 %v274, %v275
    %v277 = vsel %vm224, %v140, 0.0
    %v278 = vadd.f32 %v276, %v277
    %v279 = vsel %vm224, %v157, 0.0
    %v280 = vadd.f32 %v278, %v279
    %v281 = vsel %vm224, %v174, 0.0
    %v282 = vadd.f32 %v280, %v281
    %v283 = vsel %vm224, %v191, 0.0
    %v284 = vadd.f32 %v282, %v283
    %v285 = vadd.f32 %v239, 1.0
    %v286 = vadd.f32 %v254, 1.0
    %v287 = vadd.f32 %v269, 1.0
    %v288 = vadd.f32 %v284, 1.0
    %v289 = vrcp.pop %v285
    %v290 = vmul.f32 %v239, %v289
    %v291 = vrcp.pop %v286
    %v292 = vmul.f32 %v254, %v291
    %v293 = vrcp.pop %v287
    %v294 = vmul.f32 %v269, %v293
    %v295 = vrcp.pop %v288
    %v296 = vmul.f32 %v284, %v295
    %v297 = vrsqrt.pop %v239
    %v298 = vmul.f32 %v239, %v297
    %vm299 = vcmp.eq.f32.partialorder %v239, inf
    %v300 = vsel %vm299, %v239, %v298
    %vm301 = vcmp.eq.f32.partialorder %v239, 0.0
    %v302 = vand.u32 %v239, 2147483648
    %v303 = vsel %vm301, %v302, %v300
    %v304 = vrsqrt.pop %v254
    %v305 = vmul.f32 %v254, %v304
    %vm306 = vcmp.eq.f32.partialorder %v254, inf
    %v307 = vsel %vm306, %v254, %v305
    %vm308 = vcmp.eq.f32.partialorder %v254, 0.0
    %v309 = vand.u32 %v254, 2147483648
    %v310 = vsel %vm308, %v309, %v307
    %v311 = vrsqrt.pop %v269
    %v312 = vmul.f32 %v269, %v311
    %vm313 = vcmp.eq.f32.partialorder %v269, inf
    %v314 = vsel %vm313, %v269, %v312
    %vm315 = vcmp.eq.f32.partialorder %v269, 0.0
    %v316 = vand.u32 %v269, 2147483648
    %v317 = vsel %vm315, %v316, %v314
    %v318 = vrsqrt.pop %v284
    %v319 = vmul.f32 %v284, %v318
    %vm320 = vcmp.eq.f32.partialorder %v284, inf
    %v321 = vsel %vm320, %v284, %v319
    %vm322 = vcmp.eq.f32.partialorder %v284, 0.0
    %v323 = vand.u32 %v284, 2147483648
    %v324 = vsel %vm322, %v323, %v321
    %v325 = vadd.f32 %v303, 1e-08
    %v326 = vadd.f32 %v310, 1e-08
    %v327 = vadd.f32 %v317, 1e-08
    %v328 = vadd.f32 %v324, 1e-08
    %v329 = vrcp.pop %v325
    %v330 = vmul.f32 %v290, %v329
    %v331 = vrcp.pop %v326
    %v332 = vmul.f32 %v292, %v331
    %v333 = vrcp.pop %v327
    %v334 = vmul.f32 %v294, %v333
    %v335 = vrcp.pop %v328
    %v336 = vmul.f32 %v296, %v335
    %v341 = vcombine.low %v330, %v332
    %v342 = vcombine.low %v334, %v336
    %v344 = vunpack.c.l.s4 1983009808
    %v345 = vunpack.c.0.s8 %v344
    %v346 = vlaneseq
    %v347 = vshrl.u32 %v346, 7
    %v348 = vsub.s32 %v345, %v347
    %v349 = vrot.slane %v341, %v348
    %v351 = vunpack.c.l.s4 1983009808
    %v352 = vunpack.c.0.s8 %v351
    %v353 = vlaneseq
    %v354 = vshrl.u32 %v353, 7
    %v355 = vsub.s32 %v352, %v354
    %v356 = vrot.slane %v342, %v355
    %v357 = vcombine.low %v349, %v356
    %v359 = vmul.f32 %v32, %v357
    %v360 = vmul.f32 %v33, %v357
    %v361 = vmul.f32 %v34, %v357
    %v362 = vmul.f32 %v35, %v357
    %v363 = vmul.f32 %v36, %v357
    %v364 = vmul.f32 %v37, %v357
    %v365 = vmul.f32 %v38, %v357
    %v366 = vmul.f32 %v39, %v357
    %v367 = vld [vmem:[%s1] sm:$0xff]
    %v368 = vld [vmem:[%s1 + $0x8] sm:$0xff]
    %v369 = vld [vmem:[%s1 + $0x10] sm:$0xff]
    %v370 = vld [vmem:[%s1 + $0x18] sm:$0xff]
    %v371 = vld [vmem:[%s1 + $0x20] sm:$0xff]
    %v372 = vld [vmem:[%s1 + $0x28] sm:$0xff]
    %v373 = vld [vmem:[%s1 + $0x30] sm:$0xff]
    %v374 = vld [vmem:[%s1 + $0x38] sm:$0xff]
    %v375 = vld [vmem:[%s1 + $0x40] sm:$0xff]
    %v376 = vld [vmem:[%s1 + $0x48] sm:$0xff]
    %v377 = vld [vmem:[%s1 + $0x50] sm:$0xff]
    %v378 = vld [vmem:[%s1 + $0x58] sm:$0xff]
    %v379 = vld [vmem:[%s1 + $0x60] sm:$0xff]
    %v380 = vld [vmem:[%s1 + $0x68] sm:$0xff]
    %v381 = vld [vmem:[%s1 + $0x70] sm:$0xff]
    %v382 = vld [vmem:[%s1 + $0x78] sm:$0xff]
    %v383 = vld [vmem:[%s1 + $0x80] sm:$0xff]
    %v384 = vld [vmem:[%s1 + $0x88] sm:$0xff]
    %v385 = vld [vmem:[%s1 + $0x90] sm:$0xff]
    %v386 = vld [vmem:[%s1 + $0x98] sm:$0xff]
    %v387 = vld [vmem:[%s1 + $0xa0] sm:$0xff]
    %v388 = vld [vmem:[%s1 + $0xa8] sm:$0xff]
    %v389 = vld [vmem:[%s1 + $0xb0] sm:$0xff]
    %v390 = vld [vmem:[%s1 + $0xb8] sm:$0xff]
    %v391 = vld [vmem:[%s1 + $0xc0] sm:$0xff]
    %v392 = vld [vmem:[%s1 + $0xc8] sm:$0xff]
    %v393 = vld [vmem:[%s1 + $0xd0] sm:$0xff]
    %v394 = vld [vmem:[%s1 + $0xd8] sm:$0xff]
    %v395 = vld [vmem:[%s1 + $0xe0] sm:$0xff]
    %v396 = vld [vmem:[%s1 + $0xe8] sm:$0xff]
    %v397 = vld [vmem:[%s1 + $0xf0] sm:$0xff]
    %v398 = vld [vmem:[%s1 + $0xf8] sm:$0xff]
    %v399 = vld [vmem:[%s1 + $0x100] sm:$0xff]
    %v400 = vld [vmem:[%s1 + $0x108] sm:$0xff]
    %v401 = vld [vmem:[%s1 + $0x110] sm:$0xff]
    %v402 = vld [vmem:[%s1 + $0x118] sm:$0xff]
    %v403 = vld [vmem:[%s1 + $0x120] sm:$0xff]
    %v404 = vld [vmem:[%s1 + $0x128] sm:$0xff]
    %v405 = vld [vmem:[%s1 + $0x130] sm:$0xff]
    %v406 = vld [vmem:[%s1 + $0x138] sm:$0xff]
    %v407 = vld [vmem:[%s1 + $0x140] sm:$0xff]
    %v408 = vld [vmem:[%s1 + $0x148] sm:$0xff]
    %v409 = vld [vmem:[%s1 + $0x150] sm:$0xff]
    %v410 = vld [vmem:[%s1 + $0x158] sm:$0xff]
    %v411 = vld [vmem:[%s1 + $0x160] sm:$0xff]
    %v412 = vld [vmem:[%s1 + $0x168] sm:$0xff]
    %v413 = vld [vmem:[%s1 + $0x170] sm:$0xff]
    %v414 = vld [vmem:[%s1 + $0x178] sm:$0xff]
    %v415 = vld [vmem:[%s1 + $0x180] sm:$0xff]
    %v416 = vld [vmem:[%s1 + $0x188] sm:$0xff]
    %v417 = vld [vmem:[%s1 + $0x190] sm:$0xff]
    %v418 = vld [vmem:[%s1 + $0x198] sm:$0xff]
    %v419 = vld [vmem:[%s1 + $0x1a0] sm:$0xff]
    %v420 = vld [vmem:[%s1 + $0x1a8] sm:$0xff]
    %v421 = vld [vmem:[%s1 + $0x1b0] sm:$0xff]
    %v422 = vld [vmem:[%s1 + $0x1b8] sm:$0xff]
    %v423 = vld [vmem:[%s1 + $0x1c0] sm:$0xff]
    %v424 = vld [vmem:[%s1 + $0x1c8] sm:$0xff]
    %v425 = vld [vmem:[%s1 + $0x1d0] sm:$0xff]
    %v426 = vld [vmem:[%s1 + $0x1d8] sm:$0xff]
    %v427 = vld [vmem:[%s1 + $0x1e0] sm:$0xff]
    %v428 = vld [vmem:[%s1 + $0x1e8] sm:$0xff]
    %v429 = vld [vmem:[%s1 + $0x1f0] sm:$0xff]
    %v430 = vld [vmem:[%s1 + $0x1f8] sm:$0xff]
    %v431 = vld [vmem:[%s1 + $0x200] sm:$0xff]
    %v432 = vld [vmem:[%s1 + $0x208] sm:$0xff]
    %v433 = vld [vmem:[%s1 + $0x210] sm:$0xff]
    %v434 = vld [vmem:[%s1 + $0x218] sm:$0xff]
    %v435 = vld [vmem:[%s1 + $0x220] sm:$0xff]
    %v436 = vld [vmem:[%s1 + $0x228] sm:$0xff]
    %v437 = vld [vmem:[%s1 + $0x230] sm:$0xff]
    %v438 = vld [vmem:[%s1 + $0x238] sm:$0xff]
    %v439 = vld [vmem:[%s1 + $0x240] sm:$0xff]
    %v440 = vld [vmem:[%s1 + $0x248] sm:$0xff]
    %v441 = vld [vmem:[%s1 + $0x250] sm:$0xff]
    %v442 = vld [vmem:[%s1 + $0x258] sm:$0xff]
    %v443 = vld [vmem:[%s1 + $0x260] sm:$0xff]
    %v444 = vld [vmem:[%s1 + $0x268] sm:$0xff]
    %v445 = vld [vmem:[%s1 + $0x270] sm:$0xff]
    %v446 = vld [vmem:[%s1 + $0x278] sm:$0xff]
    %v447 = vld [vmem:[%s1 + $0x280] sm:$0xff]
    %v448 = vld [vmem:[%s1 + $0x288] sm:$0xff]
    %v449 = vld [vmem:[%s1 + $0x290] sm:$0xff]
    %v450 = vld [vmem:[%s1 + $0x298] sm:$0xff]
    %v451 = vld [vmem:[%s1 + $0x2a0] sm:$0xff]
    %v452 = vld [vmem:[%s1 + $0x2a8] sm:$0xff]
    %v453 = vld [vmem:[%s1 + $0x2b0] sm:$0xff]
    %v454 = vld [vmem:[%s1 + $0x2b8] sm:$0xff]
    %v455 = vld [vmem:[%s1 + $0x2c0] sm:$0xff]
    %v456 = vld [vmem:[%s1 + $0x2c8] sm:$0xff]
    %v457 = vld [vmem:[%s1 + $0x2d0] sm:$0xff]
    %v458 = vld [vmem:[%s1 + $0x2d8] sm:$0xff]
    %v459 = vld [vmem:[%s1 + $0x2e0] sm:$0xff]
    %v460 = vld [vmem:[%s1 + $0x2e8] sm:$0xff]
    %v461 = vld [vmem:[%s1 + $0x2f0] sm:$0xff]
    %v462 = vld [vmem:[%s1 + $0x2f8] sm:$0xff]
    %v463 = vld [vmem:[%s1 + $0x300] sm:$0xff]
    %v464 = vld [vmem:[%s1 + $0x308] sm:$0xff]
    %v465 = vld [vmem:[%s1 + $0x310] sm:$0xff]
    %v466 = vld [vmem:[%s1 + $0x318] sm:$0xff]
    %v467 = vld [vmem:[%s1 + $0x320] sm:$0xff]
    %v468 = vld [vmem:[%s1 + $0x328] sm:$0xff]
    %v469 = vld [vmem:[%s1 + $0x330] sm:$0xff]
    %v470 = vld [vmem:[%s1 + $0x338] sm:$0xff]
    %v471 = vld [vmem:[%s1 + $0x340] sm:$0xff]
    %v472 = vld [vmem:[%s1 + $0x348] sm:$0xff]
    %v473 = vld [vmem:[%s1 + $0x350] sm:$0xff]
    %v474 = vld [vmem:[%s1 + $0x358] sm:$0xff]
    %v475 = vld [vmem:[%s1 + $0x360] sm:$0xff]
    %v476 = vld [vmem:[%s1 + $0x368] sm:$0xff]
    %v477 = vld [vmem:[%s1 + $0x370] sm:$0xff]
    %v478 = vld [vmem:[%s1 + $0x378] sm:$0xff]
    %v479 = vld [vmem:[%s1 + $0x380] sm:$0xff]
    %v480 = vld [vmem:[%s1 + $0x388] sm:$0xff]
    %v481 = vld [vmem:[%s1 + $0x390] sm:$0xff]
    %v482 = vld [vmem:[%s1 + $0x398] sm:$0xff]
    %v483 = vld [vmem:[%s1 + $0x3a0] sm:$0xff]
    %v484 = vld [vmem:[%s1 + $0x3a8] sm:$0xff]
    %v485 = vld [vmem:[%s1 + $0x3b0] sm:$0xff]
    %v486 = vld [vmem:[%s1 + $0x3b8] sm:$0xff]
    %v487 = vld [vmem:[%s1 + $0x3c0] sm:$0xff]
    %v488 = vld [vmem:[%s1 + $0x3c8] sm:$0xff]
    %v489 = vld [vmem:[%s1 + $0x3d0] sm:$0xff]
    %v490 = vld [vmem:[%s1 + $0x3d8] sm:$0xff]
    %v491 = vld [vmem:[%s1 + $0x3e0] sm:$0xff]
    %v492 = vld [vmem:[%s1 + $0x3e8] sm:$0xff]
    %v493 = vld [vmem:[%s1 + $0x3f0] sm:$0xff]
    %v494 = vld [vmem:[%s1 + $0x3f8] sm:$0xff]
    %v495 = vld [vmem:[%s1 + $0x400] sm:$0xff]
    %v496 = vld [vmem:[%s1 + $0x408] sm:$0xff]
    %v497 = vld [vmem:[%s1 + $0x410] sm:$0xff]
    %v498 = vld [vmem:[%s1 + $0x418] sm:$0xff]
    %v499 = vld [vmem:[%s1 + $0x420] sm:$0xff]
    %v500 = vld [vmem:[%s1 + $0x428] sm:$0xff]
    %v501 = vld [vmem:[%s1 + $0x430] sm:$0xff]
    %v502 = vld [vmem:[%s1 + $0x438] sm:$0xff]
    %v503 = vld [vmem:[%s1 + $0x440] sm:$0xff]
    %v504 = vld [vmem:[%s1 + $0x448] sm:$0xff]
    %v505 = vld [vmem:[%s1 + $0x450] sm:$0xff]
    %v506 = vld [vmem:[%s1 + $0x458] sm:$0xff]
    %v507 = vld [vmem:[%s1 + $0x460] sm:$0xff]
    %v508 = vld [vmem:[%s1 + $0x468] sm:$0xff]
    %v509 = vld [vmem:[%s1 + $0x470] sm:$0xff]
    %v510 = vld [vmem:[%s1 + $0x478] sm:$0xff]
    %v511 = vld [vmem:[%s1 + $0x480] sm:$0xff]
    %v512 = vld [vmem:[%s1 + $0x488] sm:$0xff]
    %v513 = vld [vmem:[%s1 + $0x490] sm:$0xff]
    %v514 = vld [vmem:[%s1 + $0x498] sm:$0xff]
    %v515 = vld [vmem:[%s1 + $0x4a0] sm:$0xff]
    %v516 = vld [vmem:[%s1 + $0x4a8] sm:$0xff]
    %v517 = vld [vmem:[%s1 + $0x4b0] sm:$0xff]
    %v518 = vld [vmem:[%s1 + $0x4b8] sm:$0xff]
    %v519 = vld [vmem:[%s1 + $0x4c0] sm:$0xff]
    %v520 = vld [vmem:[%s1 + $0x4c8] sm:$0xff]
    %v521 = vld [vmem:[%s1 + $0x4d0] sm:$0xff]
    %v522 = vld [vmem:[%s1 + $0x4d8] sm:$0xff]
    %v523 = vld [vmem:[%s1 + $0x4e0] sm:$0xff]
    %v524 = vld [vmem:[%s1 + $0x4e8] sm:$0xff]
    %v525 = vld [vmem:[%s1 + $0x4f0] sm:$0xff]
    %v526 = vld [vmem:[%s1 + $0x4f8] sm:$0xff]
    %v527 = vld [vmem:[%s1 + $0x500] sm:$0xff]
    %v528 = vld [vmem:[%s1 + $0x508] sm:$0xff]
    %v529 = vld [vmem:[%s1 + $0x510] sm:$0xff]
    %v530 = vld [vmem:[%s1 + $0x518] sm:$0xff]
    %v531 = vld [vmem:[%s1 + $0x520] sm:$0xff]
    %v532 = vld [vmem:[%s1 + $0x528] sm:$0xff]
    %v533 = vld [vmem:[%s1 + $0x530] sm:$0xff]
    %v534 = vld [vmem:[%s1 + $0x538] sm:$0xff]
    %v535 = vld [vmem:[%s1 + $0x540] sm:$0xff]
    %v536 = vld [vmem:[%s1 + $0x548] sm:$0xff]
    %v537 = vld [vmem:[%s1 + $0x550] sm:$0xff]
    %v538 = vld [vmem:[%s1 + $0x558] sm:$0xff]
    %v539 = vld [vmem:[%s1 + $0x560] sm:$0xff]
    %v540 = vld [vmem:[%s1 + $0x568] sm:$0xff]
    %v541 = vld [vmem:[%s1 + $0x570] sm:$0xff]
    %v542 = vld [vmem:[%s1 + $0x578] sm:$0xff]
    %v543 = vld [vmem:[%s1 + $0x580] sm:$0xff]
    %v544 = vld [vmem:[%s1 + $0x588] sm:$0xff]
    %v545 = vld [vmem:[%s1 + $0x590] sm:$0xff]
    %v546 = vld [vmem:[%s1 + $0x598] sm:$0xff]
    %v547 = vld [vmem:[%s1 + $0x5a0] sm:$0xff]
    %v548 = vld [vmem:[%s1 + $0x5a8] sm:$0xff]
    %v549 = vld [vmem:[%s1 + $0x5b0] sm:$0xff]
    %v550 = vld [vmem:[%s1 + $0x5b8] sm:$0xff]
    %v551 = vld [vmem:[%s1 + $0x5c0] sm:$0xff]
    %v552 = vld [vmem:[%s1 + $0x5c8] sm:$0xff]
    %v553 = vld [vmem:[%s1 + $0x5d0] sm:$0xff]
    %v554 = vld [vmem:[%s1 + $0x5d8] sm:$0xff]
    %v555 = vld [vmem:[%s1 + $0x5e0] sm:$0xff]
    %v556 = vld [vmem:[%s1 + $0x5e8] sm:$0xff]
    %v557 = vld [vmem:[%s1 + $0x5f0] sm:$0xff]
    %v558 = vld [vmem:[%s1 + $0x5f8] sm:$0xff]
    %v559 = vld [vmem:[%s1 + $0x600] sm:$0xff]
    %v560 = vld [vmem:[%s1 + $0x608] sm:$0xff]
    %v561 = vld [vmem:[%s1 + $0x610] sm:$0xff]
    %v562 = vld [vmem:[%s1 + $0x618] sm:$0xff]
    %v563 = vld [vmem:[%s1 + $0x620] sm:$0xff]
    %v564 = vld [vmem:[%s1 + $0x628] sm:$0xff]
    %v565 = vld [vmem:[%s1 + $0x630] sm:$0xff]
    %v566 = vld [vmem:[%s1 + $0x638] sm:$0xff]
    %v567 = vld [vmem:[%s1 + $0x640] sm:$0xff]
    %v568 = vld [vmem:[%s1 + $0x648] sm:$0xff]
    %v569 = vld [vmem:[%s1 + $0x650] sm:$0xff]
    %v570 = vld [vmem:[%s1 + $0x658] sm:$0xff]
    %v571 = vld [vmem:[%s1 + $0x660] sm:$0xff]
    %v572 = vld [vmem:[%s1 + $0x668] sm:$0xff]
    %v573 = vld [vmem:[%s1 + $0x670] sm:$0xff]
    %v574 = vld [vmem:[%s1 + $0x678] sm:$0xff]
    %v575 = vld [vmem:[%s1 + $0x680] sm:$0xff]
    %v576 = vld [vmem:[%s1 + $0x688] sm:$0xff]
    %v577 = vld [vmem:[%s1 + $0x690] sm:$0xff]
    %v578 = vld [vmem:[%s1 + $0x698] sm:$0xff]
    %v579 = vld [vmem:[%s1 + $0x6a0] sm:$0xff]
    %v580 = vld [vmem:[%s1 + $0x6a8] sm:$0xff]
    %v581 = vld [vmem:[%s1 + $0x6b0] sm:$0xff]
    %v582 = vld [vmem:[%s1 + $0x6b8] sm:$0xff]
    %v583 = vld [vmem:[%s1 + $0x6c0] sm:$0xff]
    %v584 = vld [vmem:[%s1 + $0x6c8] sm:$0xff]
    %v585 = vld [vmem:[%s1 + $0x6d0] sm:$0xff]
    %v586 = vld [vmem:[%s1 + $0x6d8] sm:$0xff]
    %v587 = vld [vmem:[%s1 + $0x6e0] sm:$0xff]
    %v588 = vld [vmem:[%s1 + $0x6e8] sm:$0xff]
    %v589 = vld [vmem:[%s1 + $0x6f0] sm:$0xff]
    %v590 = vld [vmem:[%s1 + $0x6f8] sm:$0xff]
    %v591 = vld [vmem:[%s1 + $0x700] sm:$0xff]
    %v592 = vld [vmem:[%s1 + $0x708] sm:$0xff]
    %v593 = vld [vmem:[%s1 + $0x710] sm:$0xff]
    %v594 = vld [vmem:[%s1 + $0x718] sm:$0xff]
    %v595 = vld [vmem:[%s1 + $0x720] sm:$0xff]
    %v596 = vld [vmem:[%s1 + $0x728] sm:$0xff]
    %v597 = vld [vmem:[%s1 + $0x730] sm:$0xff]
    %v598 = vld [vmem:[%s1 + $0x738] sm:$0xff]
    %v599 = vld [vmem:[%s1 + $0x740] sm:$0xff]
    %v600 = vld [vmem:[%s1 + $0x748] sm:$0xff]
    %v601 = vld [vmem:[%s1 + $0x750] sm:$0xff]
    %v602 = vld [vmem:[%s1 + $0x758] sm:$0xff]
    %v603 = vld [vmem:[%s1 + $0x760] sm:$0xff]
    %v604 = vld [vmem:[%s1 + $0x768] sm:$0xff]
    %v605 = vld [vmem:[%s1 + $0x770] sm:$0xff]
    %v606 = vld [vmem:[%s1 + $0x778] sm:$0xff]
    %v607 = vld [vmem:[%s1 + $0x780] sm:$0xff]
    %v608 = vld [vmem:[%s1 + $0x788] sm:$0xff]
    %v609 = vld [vmem:[%s1 + $0x790] sm:$0xff]
    %v610 = vld [vmem:[%s1 + $0x798] sm:$0xff]
    %v611 = vld [vmem:[%s1 + $0x7a0] sm:$0xff]
    %v612 = vld [vmem:[%s1 + $0x7a8] sm:$0xff]
    %v613 = vld [vmem:[%s1 + $0x7b0] sm:$0xff]
    %v614 = vld [vmem:[%s1 + $0x7b8] sm:$0xff]
    %v615 = vld [vmem:[%s1 + $0x7c0] sm:$0xff]
    %v616 = vld [vmem:[%s1 + $0x7c8] sm:$0xff]
    %v617 = vld [vmem:[%s1 + $0x7d0] sm:$0xff]
    %v618 = vld [vmem:[%s1 + $0x7d8] sm:$0xff]
    %v619 = vld [vmem:[%s1 + $0x7e0] sm:$0xff]
    %v620 = vld [vmem:[%s1 + $0x7e8] sm:$0xff]
    %v621 = vld [vmem:[%s1 + $0x7f0] sm:$0xff]
    %v622 = vld [vmem:[%s1 + $0x7f8] sm:$0xff]
    %v625 = vunpack.c.l.s4 1966171168
    %v626 = vunpack.c.0.s8 %v625
    %v627 = vlaneseq
    %v628 = vshrl.u32 %v627, 7
    %v629 = vsub.s32 %v626, %v628
    %v630 = vrot.slane %v359, %v629
    %v631 = vcombine.high %v630, %v630
    %v632 = vlaneseq
    %v633 = vshrl.u32 %v632, 7
    %v634 = vsub.s32 0, %v633
    %v635 = vrot.slane %v630, %v634
    %v636 = vlaneseq
    %v637 = vshrl.u32 %v636, 7
    %v638 = vsub.s32 1, %v637
    %v639 = vrot.slane %v630, %v638
    %v640 = vlaneseq
    %v641 = vshrl.u32 %v640, 7
    %v642 = vsub.s32 2, %v641
    %v643 = vrot.slane %v630, %v642
    %v644 = vlaneseq
    %v645 = vshrl.u32 %v644, 7
    %v646 = vsub.s32 3, %v645
    %v647 = vrot.slane %v630, %v646
    %v648 = vlaneseq
    %v649 = vshrl.u32 %v648, 7
    %v650 = vsub.s32 0, %v649
    %v651 = vrot.slane %v631, %v650
    %v652 = vlaneseq
    %v653 = vshrl.u32 %v652, 7
    %v654 = vsub.s32 1, %v653
    %v655 = vrot.slane %v631, %v654
    %v656 = vlaneseq
    %v657 = vshrl.u32 %v656, 7
    %v658 = vsub.s32 2, %v657
    %v659 = vrot.slane %v631, %v658
    %v660 = vlaneseq
    %v661 = vshrl.u32 %v660, 7
    %v662 = vsub.s32 3, %v661
    %v663 = vrot.slane %v631, %v662
    %v672 = vmul.f32 %v367, %v635
    %v673 = vmul.f32 %v368, %v639
    %v674 = vmul.f32 %v369, %v643
    %v675 = vmul.f32 %v370, %v647
    %v676 = vmul.f32 %v371, %v635
    %v677 = vmul.f32 %v372, %v639
    %v678 = vmul.f32 %v373, %v643
    %v679 = vmul.f32 %v374, %v647
    %v680 = vmul.f32 %v375, %v635
    %v681 = vmul.f32 %v376, %v639
    %v682 = vmul.f32 %v377, %v643
    %v683 = vmul.f32 %v378, %v647
    %v684 = vmul.f32 %v379, %v635
    %v685 = vmul.f32 %v380, %v639
    %v686 = vmul.f32 %v381, %v643
    %v687 = vmul.f32 %v382, %v647
    %v688 = vmul.f32 %v383, %v635
    %v689 = vmul.f32 %v384, %v639
    %v690 = vmul.f32 %v385, %v643
    %v691 = vmul.f32 %v386, %v647
    %v692 = vmul.f32 %v387, %v635
    %v693 = vmul.f32 %v388, %v639
    %v694 = vmul.f32 %v389, %v643
    %v695 = vmul.f32 %v390, %v647
    %v696 = vmul.f32 %v391, %v635
    %v697 = vmul.f32 %v392, %v639
    %v698 = vmul.f32 %v393, %v643
    %v699 = vmul.f32 %v394, %v647
    %v700 = vmul.f32 %v395, %v635
    %v701 = vmul.f32 %v396, %v639
    %v702 = vmul.f32 %v397, %v643
    %v703 = vmul.f32 %v398, %v647
    %v704 = vmul.f32 %v367, %v651
    %v705 = vmul.f32 %v368, %v655
    %v706 = vmul.f32 %v369, %v659
    %v707 = vmul.f32 %v370, %v663
    %v708 = vmul.f32 %v371, %v651
    %v709 = vmul.f32 %v372, %v655
    %v710 = vmul.f32 %v373, %v659
    %v711 = vmul.f32 %v374, %v663
    %v712 = vmul.f32 %v375, %v651
    %v713 = vmul.f32 %v376, %v655
    %v714 = vmul.f32 %v377, %v659
    %v715 = vmul.f32 %v378, %v663
    %v716 = vmul.f32 %v379, %v651
    %v717 = vmul.f32 %v380, %v655
    %v718 = vmul.f32 %v381, %v659
    %v719 = vmul.f32 %v382, %v663
    %v720 = vmul.f32 %v383, %v651
    %v721 = vmul.f32 %v384, %v655
    %v722 = vmul.f32 %v385, %v659
    %v723 = vmul.f32 %v386, %v663
    %v724 = vmul.f32 %v387, %v651
    %v725 = vmul.f32 %v388, %v655
    %v726 = vmul.f32 %v389, %v659
    %v727 = vmul.f32 %v390, %v663
    %v728 = vmul.f32 %v391, %v651
    %v729 = vmul.f32 %v392, %v655
    %v730 = vmul.f32 %v393, %v659
    %v731 = vmul.f32 %v394, %v663
    %v732 = vmul.f32 %v395, %v651
    %v733 = vmul.f32 %v396, %v655
    %v734 = vmul.f32 %v397, %v659
    %v735 = vmul.f32 %v398, %v663
    %v736 = vadd.f32 %v672, 0.0
    %v737 = vadd.f32 %v673, 0.0
    %v738 = vadd.f32 %v674, 0.0
    %v739 = vadd.f32 %v675, 0.0
    %v740 = vadd.f32 %v676, 0.0
    %v741 = vadd.f32 %v677, 0.0
    %v742 = vadd.f32 %v678, 0.0
    %v743 = vadd.f32 %v679, 0.0
    %v744 = vadd.f32 %v680, 0.0
    %v745 = vadd.f32 %v681, 0.0
    %v746 = vadd.f32 %v682, 0.0
    %v747 = vadd.f32 %v683, 0.0
    %v748 = vadd.f32 %v684, 0.0
    %v749 = vadd.f32 %v685, 0.0
    %v750 = vadd.f32 %v686, 0.0
    %v751 = vadd.f32 %v687, 0.0
    %v752 = vadd.f32 %v688, 0.0
    %v753 = vadd.f32 %v689, 0.0
    %v754 = vadd.f32 %v690, 0.0
    %v755 = vadd.f32 %v691, 0.0
    %v756 = vadd.f32 %v692, 0.0
    %v757 = vadd.f32 %v693, 0.0
    %v758 = vadd.f32 %v694, 0.0
    %v759 = vadd.f32 %v695, 0.0
    %v760 = vadd.f32 %v696, 0.0
    %v761 = vadd.f32 %v697, 0.0
    %v762 = vadd.f32 %v698, 0.0
    %v763 = vadd.f32 %v699, 0.0
    %v764 = vadd.f32 %v700, 0.0
    %v765 = vadd.f32 %v701, 0.0
    %v766 = vadd.f32 %v702, 0.0
    %v767 = vadd.f32 %v703, 0.0
    %v768 = vadd.f32 %v704, 0.0
    %v769 = vadd.f32 %v705, 0.0
    %v770 = vadd.f32 %v706, 0.0
    %v771 = vadd.f32 %v707, 0.0
    %v772 = vadd.f32 %v708, 0.0
    %v773 = vadd.f32 %v709, 0.0
    %v774 = vadd.f32 %v710, 0.0
    %v775 = vadd.f32 %v711, 0.0
    %v776 = vadd.f32 %v712, 0.0
    %v777 = vadd.f32 %v713, 0.0
    %v778 = vadd.f32 %v714, 0.0
    %v779 = vadd.f32 %v715, 0.0
    %v780 = vadd.f32 %v716, 0.0
    %v781 = vadd.f32 %v717, 0.0
    %v782 = vadd.f32 %v718, 0.0
    %v783 = vadd.f32 %v719, 0.0
    %v784 = vadd.f32 %v720, 0.0
    %v785 = vadd.f32 %v721, 0.0
    %v786 = vadd.f32 %v722, 0.0
    %v787 = vadd.f32 %v723, 0.0
    %v788 = vadd.f32 %v724, 0.0
    %v789 = vadd.f32 %v725, 0.0
    %v790 = vadd.f32 %v726, 0.0
    %v791 = vadd.f32 %v727, 0.0
    %v792 = vadd.f32 %v728, 0.0
    %v793 = vadd.f32 %v729, 0.0
    %v794 = vadd.f32 %v730, 0.0
    %v795 = vadd.f32 %v731, 0.0
    %v796 = vadd.f32 %v732, 0.0
    %v797 = vadd.f32 %v733, 0.0
    %v798 = vadd.f32 %v734, 0.0
    %v799 = vadd.f32 %v735, 0.0
    %v802 = vunpack.c.l.s4 1966171168
    %v803 = vunpack.c.0.s8 %v802
    %v804 = vlaneseq
    %v805 = vshrl.u32 %v804, 7
    %v806 = vsub.s32 %v803, %v805
    %v807 = vrot.slane %v360, %v806
    %v808 = vcombine.high %v807, %v807
    %v809 = vlaneseq
    %v810 = vshrl.u32 %v809, 7
    %v811 = vsub.s32 0, %v810
    %v812 = vrot.slane %v807, %v811
    %v813 = vlaneseq
    %v814 = vshrl.u32 %v813, 7
    %v815 = vsub.s32 1, %v814
    %v816 = vrot.slane %v807, %v815
    %v817 = vlaneseq
    %v818 = vshrl.u32 %v817, 7
    %v819 = vsub.s32 2, %v818
    %v820 = vrot.slane %v807, %v819
    %v821 = vlaneseq
    %v822 = vshrl.u32 %v821, 7
    %v823 = vsub.s32 3, %v822
    %v824 = vrot.slane %v807, %v823
    %v825 = vlaneseq
    %v826 = vshrl.u32 %v825, 7
    %v827 = vsub.s32 0, %v826
    %v828 = vrot.slane %v808, %v827
    %v829 = vlaneseq
    %v830 = vshrl.u32 %v829, 7
    %v831 = vsub.s32 1, %v830
    %v832 = vrot.slane %v808, %v831
    %v833 = vlaneseq
    %v834 = vshrl.u32 %v833, 7
    %v835 = vsub.s32 2, %v834
    %v836 = vrot.slane %v808, %v835
    %v837 = vlaneseq
    %v838 = vshrl.u32 %v837, 7
    %v839 = vsub.s32 3, %v838
    %v840 = vrot.slane %v808, %v839
    %v849 = vmul.f32 %v399, %v812
    %v850 = vmul.f32 %v400, %v816
    %v851 = vmul.f32 %v401, %v820
    %v852 = vmul.f32 %v402, %v824
    %v853 = vmul.f32 %v403, %v812
    %v854 = vmul.f32 %v404, %v816
    %v855 = vmul.f32 %v405, %v820
    %v856 = vmul.f32 %v406, %v824
    %v857 = vmul.f32 %v407, %v812
    %v858 = vmul.f32 %v408, %v816
    %v859 = vmul.f32 %v409, %v820
    %v860 = vmul.f32 %v410, %v824
    %v861 = vmul.f32 %v411, %v812
    %v862 = vmul.f32 %v412, %v816
    %v863 = vmul.f32 %v413, %v820
    %v864 = vmul.f32 %v414, %v824
    %v865 = vmul.f32 %v415, %v812
    %v866 = vmul.f32 %v416, %v816
    %v867 = vmul.f32 %v417, %v820
    %v868 = vmul.f32 %v418, %v824
    %v869 = vmul.f32 %v419, %v812
    %v870 = vmul.f32 %v420, %v816
    %v871 = vmul.f32 %v421, %v820
    %v872 = vmul.f32 %v422, %v824
    %v873 = vmul.f32 %v423, %v812
    %v874 = vmul.f32 %v424, %v816
    %v875 = vmul.f32 %v425, %v820
    %v876 = vmul.f32 %v426, %v824
    %v877 = vmul.f32 %v427, %v812
    %v878 = vmul.f32 %v428, %v816
    %v879 = vmul.f32 %v429, %v820
    %v880 = vmul.f32 %v430, %v824
    %v881 = vmul.f32 %v399, %v828
    %v882 = vmul.f32 %v400, %v832
    %v883 = vmul.f32 %v401, %v836
    %v884 = vmul.f32 %v402, %v840
    %v885 = vmul.f32 %v403, %v828
    %v886 = vmul.f32 %v404, %v832
    %v887 = vmul.f32 %v405, %v836
    %v888 = vmul.f32 %v406, %v840
    %v889 = vmul.f32 %v407, %v828
    %v890 = vmul.f32 %v408, %v832
    %v891 = vmul.f32 %v409, %v836
    %v892 = vmul.f32 %v410, %v840
    %v893 = vmul.f32 %v411, %v828
    %v894 = vmul.f32 %v412, %v832
    %v895 = vmul.f32 %v413, %v836
    %v896 = vmul.f32 %v414, %v840
    %v897 = vmul.f32 %v415, %v828
    %v898 = vmul.f32 %v416, %v832
    %v899 = vmul.f32 %v417, %v836
    %v900 = vmul.f32 %v418, %v840
    %v901 = vmul.f32 %v419, %v828
    %v902 = vmul.f32 %v420, %v832
    %v903 = vmul.f32 %v421, %v836
    %v904 = vmul.f32 %v422, %v840
    %v905 = vmul.f32 %v423, %v828
    %v906 = vmul.f32 %v424, %v832
    %v907 = vmul.f32 %v425, %v836
    %v908 = vmul.f32 %v426, %v840
    %v909 = vmul.f32 %v427, %v828
    %v910 = vmul.f32 %v428, %v832
    %v911 = vmul.f32 %v429, %v836
    %v912 = vmul.f32 %v430, %v840
    %v913 = vadd.f32 %v736, %v849
    %v914 = vadd.f32 %v737, %v850
    %v915 = vadd.f32 %v738, %v851
    %v916 = vadd.f32 %v739, %v852
    %v917 = vadd.f32 %v740, %v853
    %v918 = vadd.f32 %v741, %v854
    %v919 = vadd.f32 %v742, %v855
    %v920 = vadd.f32 %v743, %v856
    %v921 = vadd.f32 %v744, %v857
    %v922 = vadd.f32 %v745, %v858
    %v923 = vadd.f32 %v746, %v859
    %v924 = vadd.f32 %v747, %v860
    %v925 = vadd.f32 %v748, %v861
    %v926 = vadd.f32 %v749, %v862
    %v927 = vadd.f32 %v750, %v863
    %v928 = vadd.f32 %v751, %v864
    %v929 = vadd.f32 %v752, %v865
    %v930 = vadd.f32 %v753, %v866
    %v931 = vadd.f32 %v754, %v867
    %v932 = vadd.f32 %v755, %v868
    %v933 = vadd.f32 %v756, %v869
    %v934 = vadd.f32 %v757, %v870
    %v935 = vadd.f32 %v758, %v871
    %v936 = vadd.f32 %v759, %v872
    %v937 = vadd.f32 %v760, %v873
    %v938 = vadd.f32 %v761, %v874
    %v939 = vadd.f32 %v762, %v875
    %v940 = vadd.f32 %v763, %v876
    %v941 = vadd.f32 %v764, %v877
    %v942 = vadd.f32 %v765, %v878
    %v943 = vadd.f32 %v766, %v879
    %v944 = vadd.f32 %v767, %v880
    %v945 = vadd.f32 %v768, %v881
    %v946 = vadd.f32 %v769, %v882
    %v947 = vadd.f32 %v770, %v883
    %v948 = vadd.f32 %v771, %v884
    %v949 = vadd.f32 %v772, %v885
    %v950 = vadd.f32 %v773, %v886
    %v951 = vadd.f32 %v774, %v887
    %v952 = vadd.f32 %v775, %v888
    %v953 = vadd.f32 %v776, %v889
    %v954 = vadd.f32 %v777, %v890
    %v955 = vadd.f32 %v778, %v891
    %v956 = vadd.f32 %v779, %v892
    %v957 = vadd.f32 %v780, %v893
    %v958 = vadd.f32 %v781, %v894
    %v959 = vadd.f32 %v782, %v895
    %v960 = vadd.f32 %v783, %v896
    %v961 = vadd.f32 %v784, %v897
    %v962 = vadd.f32 %v785, %v898
    %v963 = vadd.f32 %v786, %v899
    %v964 = vadd.f32 %v787, %v900
    %v965 = vadd.f32 %v788, %v901
    %v966 = vadd.f32 %v789, %v902
    %v967 = vadd.f32 %v790, %v903
    %v968 = vadd.f32 %v791, %v904
    %v969 = vadd.f32 %v792, %v905
    %v970 = vadd.f32 %v793, %v906
    %v971 = vadd.f32 %v794, %v907
    %v972 = vadd.f32 %v795, %v908
    %v973 = vadd.f32 %v796, %v909
    %v974 = vadd.f32 %v797, %v910
    %v975 = vadd.f32 %v798, %v911
    %v976 = vadd.f32 %v799, %v912
    %v979 = vunpack.c.l.s4 1966171168
    %v980 = vunpack.c.0.s8 %v979
    %v981 = vlaneseq
    %v982 = vshrl.u32 %v981, 7
    %v983 = vsub.s32 %v980, %v982
    %v984 = vrot.slane %v361, %v983
    %v985 = vcombine.high %v984, %v984
    %v986 = vlaneseq
    %v987 = vshrl.u32 %v986, 7
    %v988 = vsub.s32 0, %v987
    %v989 = vrot.slane %v984, %v988
    %v990 = vlaneseq
    %v991 = vshrl.u32 %v990, 7
    %v992 = vsub.s32 1, %v991
    %v993 = vrot.slane %v984, %v992
    %v994 = vlaneseq
    %v995 = vshrl.u32 %v994, 7
    %v996 = vsub.s32 2, %v995
    %v997 = vrot.slane %v984, %v996
    %v998 = vlaneseq
    %v999 = vshrl.u32 %v998, 7
    %v1000 = vsub.s32 3, %v999
    %v1001 = vrot.slane %v984, %v1000
    %v1002 = vlaneseq
    %v1003 = vshrl.u32 %v1002, 7
    %v1004 = vsub.s32 0, %v1003
    %v1005 = vrot.slane %v985, %v1004
    %v1006 = vlaneseq
    %v1007 = vshrl.u32 %v1006, 7
    %v1008 = vsub.s32 1, %v1007
    %v1009 = vrot.slane %v985, %v1008
    %v1010 = vlaneseq
    %v1011 = vshrl.u32 %v1010, 7
    %v1012 = vsub.s32 2, %v1011
    %v1013 = vrot.slane %v985, %v1012
    %v1014 = vlaneseq
    %v1015 = vshrl.u32 %v1014, 7
    %v1016 = vsub.s32 3, %v1015
    %v1017 = vrot.slane %v985, %v1016
    %v1026 = vmul.f32 %v431, %v989
    %v1027 = vmul.f32 %v432, %v993
    %v1028 = vmul.f32 %v433, %v997
    %v1029 = vmul.f32 %v434, %v1001
    %v1030 = vmul.f32 %v435, %v989
    %v1031 = vmul.f32 %v436, %v993
    %v1032 = vmul.f32 %v437, %v997
    %v1033 = vmul.f32 %v438, %v1001
    %v1034 = vmul.f32 %v439, %v989
    %v1035 = vmul.f32 %v440, %v993
    %v1036 = vmul.f32 %v441, %v997
    %v1037 = vmul.f32 %v442, %v1001
    %v1038 = vmul.f32 %v443, %v989
    %v1039 = vmul.f32 %v444, %v993
    %v1040 = vmul.f32 %v445, %v997
    %v1041 = vmul.f32 %v446, %v1001
    %v1042 = vmul.f32 %v447, %v989
    %v1043 = vmul.f32 %v448, %v993
    %v1044 = vmul.f32 %v449, %v997
    %v1045 = vmul.f32 %v450, %v1001
    %v1046 = vmul.f32 %v451, %v989
    %v1047 = vmul.f32 %v452, %v993
    %v1048 = vmul.f32 %v453, %v997
    %v1049 = vmul.f32 %v454, %v1001
    %v1050 = vmul.f32 %v455, %v989
    %v1051 = vmul.f32 %v456, %v993
    %v1052 = vmul.f32 %v457, %v997
    %v1053 = vmul.f32 %v458, %v1001
    %v1054 = vmul.f32 %v459, %v989
    %v1055 = vmul.f32 %v460, %v993
    %v1056 = vmul.f32 %v461, %v997
    %v1057 = vmul.f32 %v462, %v1001
    %v1058 = vmul.f32 %v431, %v1005
    %v1059 = vmul.f32 %v432, %v1009
    %v1060 = vmul.f32 %v433, %v1013
    %v1061 = vmul.f32 %v434, %v1017
    %v1062 = vmul.f32 %v435, %v1005
    %v1063 = vmul.f32 %v436, %v1009
    %v1064 = vmul.f32 %v437, %v1013
    %v1065 = vmul.f32 %v438, %v1017
    %v1066 = vmul.f32 %v439, %v1005
    %v1067 = vmul.f32 %v440, %v1009
    %v1068 = vmul.f32 %v441, %v1013
    %v1069 = vmul.f32 %v442, %v1017
    %v1070 = vmul.f32 %v443, %v1005
    %v1071 = vmul.f32 %v444, %v1009
    %v1072 = vmul.f32 %v445, %v1013
    %v1073 = vmul.f32 %v446, %v1017
    %v1074 = vmul.f32 %v447, %v1005
    %v1075 = vmul.f32 %v448, %v1009
    %v1076 = vmul.f32 %v449, %v1013
    %v1077 = vmul.f32 %v450, %v1017
    %v1078 = vmul.f32 %v451, %v1005
    %v1079 = vmul.f32 %v452, %v1009
    %v1080 = vmul.f32 %v453, %v1013
    %v1081 = vmul.f32 %v454, %v1017
    %v1082 = vmul.f32 %v455, %v1005
    %v1083 = vmul.f32 %v456, %v1009
    %v1084 = vmul.f32 %v457, %v1013
    %v1085 = vmul.f32 %v458, %v1017
    %v1086 = vmul.f32 %v459, %v1005
    %v1087 = vmul.f32 %v460, %v1009
    %v1088 = vmul.f32 %v461, %v1013
    %v1089 = vmul.f32 %v462, %v1017
    %v1090 = vadd.f32 %v913, %v1026
    %v1091 = vadd.f32 %v914, %v1027
    %v1092 = vadd.f32 %v915, %v1028
    %v1093 = vadd.f32 %v916, %v1029
    %v1094 = vadd.f32 %v917, %v1030
    %v1095 = vadd.f32 %v918, %v1031
    %v1096 = vadd.f32 %v919, %v1032
    %v1097 = vadd.f32 %v920, %v1033
    %v1098 = vadd.f32 %v921, %v1034
    %v1099 = vadd.f32 %v922, %v1035
    %v1100 = vadd.f32 %v923, %v1036
    %v1101 = vadd.f32 %v924, %v1037
    %v1102 = vadd.f32 %v925, %v1038
    %v1103 = vadd.f32 %v926, %v1039
    %v1104 = vadd.f32 %v927, %v1040
    %v1105 = vadd.f32 %v928, %v1041
    %v1106 = vadd.f32 %v929, %v1042
    %v1107 = vadd.f32 %v930, %v1043
    %v1108 = vadd.f32 %v931, %v1044
    %v1109 = vadd.f32 %v932, %v1045
    %v1110 = vadd.f32 %v933, %v1046
    %v1111 = vadd.f32 %v934, %v1047
    %v1112 = vadd.f32 %v935, %v1048
    %v1113 = vadd.f32 %v936, %v1049
    %v1114 = vadd.f32 %v937, %v1050
    %v1115 = vadd.f32 %v938, %v1051
    %v1116 = vadd.f32 %v939, %v1052
    %v1117 = vadd.f32 %v940, %v1053
    %v1118 = vadd.f32 %v941, %v1054
    %v1119 = vadd.f32 %v942, %v1055
    %v1120 = vadd.f32 %v943, %v1056
    %v1121 = vadd.f32 %v944, %v1057
    %v1122 = vadd.f32 %v945, %v1058
    %v1123 = vadd.f32 %v946, %v1059
    %v1124 = vadd.f32 %v947, %v1060
    %v1125 = vadd.f32 %v948, %v1061
    %v1126 = vadd.f32 %v949, %v1062
    %v1127 = vadd.f32 %v950, %v1063
    %v1128 = vadd.f32 %v951, %v1064
    %v1129 = vadd.f32 %v952, %v1065
    %v1130 = vadd.f32 %v953, %v1066
    %v1131 = vadd.f32 %v954, %v1067
    %v1132 = vadd.f32 %v955, %v1068
    %v1133 = vadd.f32 %v956, %v1069
    %v1134 = vadd.f32 %v957, %v1070
    %v1135 = vadd.f32 %v958, %v1071
    %v1136 = vadd.f32 %v959, %v1072
    %v1137 = vadd.f32 %v960, %v1073
    %v1138 = vadd.f32 %v961, %v1074
    %v1139 = vadd.f32 %v962, %v1075
    %v1140 = vadd.f32 %v963, %v1076
    %v1141 = vadd.f32 %v964, %v1077
    %v1142 = vadd.f32 %v965, %v1078
    %v1143 = vadd.f32 %v966, %v1079
    %v1144 = vadd.f32 %v967, %v1080
    %v1145 = vadd.f32 %v968, %v1081
    %v1146 = vadd.f32 %v969, %v1082
    %v1147 = vadd.f32 %v970, %v1083
    %v1148 = vadd.f32 %v971, %v1084
    %v1149 = vadd.f32 %v972, %v1085
    %v1150 = vadd.f32 %v973, %v1086
    %v1151 = vadd.f32 %v974, %v1087
    %v1152 = vadd.f32 %v975, %v1088
    %v1153 = vadd.f32 %v976, %v1089
    %v1156 = vunpack.c.l.s4 1966171168
    %v1157 = vunpack.c.0.s8 %v1156
    %v1158 = vlaneseq
    %v1159 = vshrl.u32 %v1158, 7
    %v1160 = vsub.s32 %v1157, %v1159
    %v1161 = vrot.slane %v362, %v1160
    %v1162 = vcombine.high %v1161, %v1161
    %v1163 = vlaneseq
    %v1164 = vshrl.u32 %v1163, 7
    %v1165 = vsub.s32 0, %v1164
    %v1166 = vrot.slane %v1161, %v1165
    %v1167 = vlaneseq
    %v1168 = vshrl.u32 %v1167, 7
    %v1169 = vsub.s32 1, %v1168
    %v1170 = vrot.slane %v1161, %v1169
    %v1171 = vlaneseq
    %v1172 = vshrl.u32 %v1171, 7
    %v1173 = vsub.s32 2, %v1172
    %v1174 = vrot.slane %v1161, %v1173
    %v1175 = vlaneseq
    %v1176 = vshrl.u32 %v1175, 7
    %v1177 = vsub.s32 3, %v1176
    %v1178 = vrot.slane %v1161, %v1177
    %v1179 = vlaneseq
    %v1180 = vshrl.u32 %v1179, 7
    %v1181 = vsub.s32 0, %v1180
    %v1182 = vrot.slane %v1162, %v1181
    %v1183 = vlaneseq
    %v1184 = vshrl.u32 %v1183, 7
    %v1185 = vsub.s32 1, %v1184
    %v1186 = vrot.slane %v1162, %v1185
    %v1187 = vlaneseq
    %v1188 = vshrl.u32 %v1187, 7
    %v1189 = vsub.s32 2, %v1188
    %v1190 = vrot.slane %v1162, %v1189
    %v1191 = vlaneseq
    %v1192 = vshrl.u32 %v1191, 7
    %v1193 = vsub.s32 3, %v1192
    %v1194 = vrot.slane %v1162, %v1193
    %v1203 = vmul.f32 %v463, %v1166
    %v1204 = vmul.f32 %v464, %v1170
    %v1205 = vmul.f32 %v465, %v1174
    %v1206 = vmul.f32 %v466, %v1178
    %v1207 = vmul.f32 %v467, %v1166
    %v1208 = vmul.f32 %v468, %v1170
    %v1209 = vmul.f32 %v469, %v1174
    %v1210 = vmul.f32 %v470, %v1178
    %v1211 = vmul.f32 %v471, %v1166
    %v1212 = vmul.f32 %v472, %v1170
    %v1213 = vmul.f32 %v473, %v1174
    %v1214 = vmul.f32 %v474, %v1178
    %v1215 = vmul.f32 %v475, %v1166
    %v1216 = vmul.f32 %v476, %v1170
    %v1217 = vmul.f32 %v477, %v1174
    %v1218 = vmul.f32 %v478, %v1178
    %v1219 = vmul.f32 %v479, %v1166
    %v1220 = vmul.f32 %v480, %v1170
    %v1221 = vmul.f32 %v481, %v1174
    %v1222 = vmul.f32 %v482, %v1178
    %v1223 = vmul.f32 %v483, %v1166
    %v1224 = vmul.f32 %v484, %v1170
    %v1225 = vmul.f32 %v485, %v1174
    %v1226 = vmul.f32 %v486, %v1178
    %v1227 = vmul.f32 %v487, %v1166
    %v1228 = vmul.f32 %v488, %v1170
    %v1229 = vmul.f32 %v489, %v1174
    %v1230 = vmul.f32 %v490, %v1178
    %v1231 = vmul.f32 %v491, %v1166
    %v1232 = vmul.f32 %v492, %v1170
    %v1233 = vmul.f32 %v493, %v1174
    %v1234 = vmul.f32 %v494, %v1178
    %v1235 = vmul.f32 %v463, %v1182
    %v1236 = vmul.f32 %v464, %v1186
    %v1237 = vmul.f32 %v465, %v1190
    %v1238 = vmul.f32 %v466, %v1194
    %v1239 = vmul.f32 %v467, %v1182
    %v1240 = vmul.f32 %v468, %v1186
    %v1241 = vmul.f32 %v469, %v1190
    %v1242 = vmul.f32 %v470, %v1194
    %v1243 = vmul.f32 %v471, %v1182
    %v1244 = vmul.f32 %v472, %v1186
    %v1245 = vmul.f32 %v473, %v1190
    %v1246 = vmul.f32 %v474, %v1194
    %v1247 = vmul.f32 %v475, %v1182
    %v1248 = vmul.f32 %v476, %v1186
    %v1249 = vmul.f32 %v477, %v1190
    %v1250 = vmul.f32 %v478, %v1194
    %v1251 = vmul.f32 %v479, %v1182
    %v1252 = vmul.f32 %v480, %v1186
    %v1253 = vmul.f32 %v481, %v1190
    %v1254 = vmul.f32 %v482, %v1194
    %v1255 = vmul.f32 %v483, %v1182
    %v1256 = vmul.f32 %v484, %v1186
    %v1257 = vmul.f32 %v485, %v1190
    %v1258 = vmul.f32 %v486, %v1194
    %v1259 = vmul.f32 %v487, %v1182
    %v1260 = vmul.f32 %v488, %v1186
    %v1261 = vmul.f32 %v489, %v1190
    %v1262 = vmul.f32 %v490, %v1194
    %v1263 = vmul.f32 %v491, %v1182
    %v1264 = vmul.f32 %v492, %v1186
    %v1265 = vmul.f32 %v493, %v1190
    %v1266 = vmul.f32 %v494, %v1194
    %v1267 = vadd.f32 %v1090, %v1203
    %v1268 = vadd.f32 %v1091, %v1204
    %v1269 = vadd.f32 %v1092, %v1205
    %v1270 = vadd.f32 %v1093, %v1206
    %v1271 = vadd.f32 %v1094, %v1207
    %v1272 = vadd.f32 %v1095, %v1208
    %v1273 = vadd.f32 %v1096, %v1209
    %v1274 = vadd.f32 %v1097, %v1210
    %v1275 = vadd.f32 %v1098, %v1211
    %v1276 = vadd.f32 %v1099, %v1212
    %v1277 = vadd.f32 %v1100, %v1213
    %v1278 = vadd.f32 %v1101, %v1214
    %v1279 = vadd.f32 %v1102, %v1215
    %v1280 = vadd.f32 %v1103, %v1216
    %v1281 = vadd.f32 %v1104, %v1217
    %v1282 = vadd.f32 %v1105, %v1218
    %v1283 = vadd.f32 %v1106, %v1219
    %v1284 = vadd.f32 %v1107, %v1220
    %v1285 = vadd.f32 %v1108, %v1221
    %v1286 = vadd.f32 %v1109, %v1222
    %v1287 = vadd.f32 %v1110, %v1223
    %v1288 = vadd.f32 %v1111, %v1224
    %v1289 = vadd.f32 %v1112, %v1225
    %v1290 = vadd.f32 %v1113, %v1226
    %v1291 = vadd.f32 %v1114, %v1227
    %v1292 = vadd.f32 %v1115, %v1228
    %v1293 = vadd.f32 %v1116, %v1229
    %v1294 = vadd.f32 %v1117, %v1230
    %v1295 = vadd.f32 %v1118, %v1231
    %v1296 = vadd.f32 %v1119, %v1232
    %v1297 = vadd.f32 %v1120, %v1233
    %v1298 = vadd.f32 %v1121, %v1234
    %v1299 = vadd.f32 %v1122, %v1235
    %v1300 = vadd.f32 %v1123, %v1236
    %v1301 = vadd.f32 %v1124, %v1237
    %v1302 = vadd.f32 %v1125, %v1238
    %v1303 = vadd.f32 %v1126, %v1239
    %v1304 = vadd.f32 %v1127, %v1240
    %v1305 = vadd.f32 %v1128, %v1241
    %v1306 = vadd.f32 %v1129, %v1242
    %v1307 = vadd.f32 %v1130, %v1243
    %v1308 = vadd.f32 %v1131, %v1244
    %v1309 = vadd.f32 %v1132, %v1245
    %v1310 = vadd.f32 %v1133, %v1246
    %v1311 = vadd.f32 %v1134, %v1247
    %v1312 = vadd.f32 %v1135, %v1248
    %v1313 = vadd.f32 %v1136, %v1249
    %v1314 = vadd.f32 %v1137, %v1250
    %v1315 = vadd.f32 %v1138, %v1251
    %v1316 = vadd.f32 %v1139, %v1252
    %v1317 = vadd.f32 %v1140, %v1253
    %v1318 = vadd.f32 %v1141, %v1254
    %v1319 = vadd.f32 %v1142, %v1255
    %v1320 = vadd.f32 %v1143, %v1256
    %v1321 = vadd.f32 %v1144, %v1257
    %v1322 = vadd.f32 %v1145, %v1258
    %v1323 = vadd.f32 %v1146, %v1259
    %v1324 = vadd.f32 %v1147, %v1260
    %v1325 = vadd.f32 %v1148, %v1261
    %v1326 = vadd.f32 %v1149, %v1262
    %v1327 = vadd.f32 %v1150, %v1263
    %v1328 = vadd.f32 %v1151, %v1264
    %v1329 = vadd.f32 %v1152, %v1265
    %v1330 = vadd.f32 %v1153, %v1266
    %v1333 = vunpack.c.l.s4 1966171168
    %v1334 = vunpack.c.0.s8 %v1333
    %v1335 = vlaneseq
    %v1336 = vshrl.u32 %v1335, 7
    %v1337 = vsub.s32 %v1334, %v1336
    %v1338 = vrot.slane %v363, %v1337
    %v1339 = vcombine.high %v1338, %v1338
    %v1340 = vlaneseq
    %v1341 = vshrl.u32 %v1340, 7
    %v1342 = vsub.s32 0, %v1341
    %v1343 = vrot.slane %v1338, %v1342
    %v1344 = vlaneseq
    %v1345 = vshrl.u32 %v1344, 7
    %v1346 = vsub.s32 1, %v1345
    %v1347 = vrot.slane %v1338, %v1346
    %v1348 = vlaneseq
    %v1349 = vshrl.u32 %v1348, 7
    %v1350 = vsub.s32 2, %v1349
    %v1351 = vrot.slane %v1338, %v1350
    %v1352 = vlaneseq
    %v1353 = vshrl.u32 %v1352, 7
    %v1354 = vsub.s32 3, %v1353
    %v1355 = vrot.slane %v1338, %v1354
    %v1356 = vlaneseq
    %v1357 = vshrl.u32 %v1356, 7
    %v1358 = vsub.s32 0, %v1357
    %v1359 = vrot.slane %v1339, %v1358
    %v1360 = vlaneseq
    %v1361 = vshrl.u32 %v1360, 7
    %v1362 = vsub.s32 1, %v1361
    %v1363 = vrot.slane %v1339, %v1362
    %v1364 = vlaneseq
    %v1365 = vshrl.u32 %v1364, 7
    %v1366 = vsub.s32 2, %v1365
    %v1367 = vrot.slane %v1339, %v1366
    %v1368 = vlaneseq
    %v1369 = vshrl.u32 %v1368, 7
    %v1370 = vsub.s32 3, %v1369
    %v1371 = vrot.slane %v1339, %v1370
    %v1380 = vmul.f32 %v495, %v1343
    %v1381 = vmul.f32 %v496, %v1347
    %v1382 = vmul.f32 %v497, %v1351
    %v1383 = vmul.f32 %v498, %v1355
    %v1384 = vmul.f32 %v499, %v1343
    %v1385 = vmul.f32 %v500, %v1347
    %v1386 = vmul.f32 %v501, %v1351
    %v1387 = vmul.f32 %v502, %v1355
    %v1388 = vmul.f32 %v503, %v1343
    %v1389 = vmul.f32 %v504, %v1347
    %v1390 = vmul.f32 %v505, %v1351
    %v1391 = vmul.f32 %v506, %v1355
    %v1392 = vmul.f32 %v507, %v1343
    %v1393 = vmul.f32 %v508, %v1347
    %v1394 = vmul.f32 %v509, %v1351
    %v1395 = vmul.f32 %v510, %v1355
    %v1396 = vmul.f32 %v511, %v1343
    %v1397 = vmul.f32 %v512, %v1347
    %v1398 = vmul.f32 %v513, %v1351
    %v1399 = vmul.f32 %v514, %v1355
    %v1400 = vmul.f32 %v515, %v1343
    %v1401 = vmul.f32 %v516, %v1347
    %v1402 = vmul.f32 %v517, %v1351
    %v1403 = vmul.f32 %v518, %v1355
    %v1404 = vmul.f32 %v519, %v1343
    %v1405 = vmul.f32 %v520, %v1347
    %v1406 = vmul.f32 %v521, %v1351
    %v1407 = vmul.f32 %v522, %v1355
    %v1408 = vmul.f32 %v523, %v1343
    %v1409 = vmul.f32 %v524, %v1347
    %v1410 = vmul.f32 %v525, %v1351
    %v1411 = vmul.f32 %v526, %v1355
    %v1412 = vmul.f32 %v495, %v1359
    %v1413 = vmul.f32 %v496, %v1363
    %v1414 = vmul.f32 %v497, %v1367
    %v1415 = vmul.f32 %v498, %v1371
    %v1416 = vmul.f32 %v499, %v1359
    %v1417 = vmul.f32 %v500, %v1363
    %v1418 = vmul.f32 %v501, %v1367
    %v1419 = vmul.f32 %v502, %v1371
    %v1420 = vmul.f32 %v503, %v1359
    %v1421 = vmul.f32 %v504, %v1363
    %v1422 = vmul.f32 %v505, %v1367
    %v1423 = vmul.f32 %v506, %v1371
    %v1424 = vmul.f32 %v507, %v1359
    %v1425 = vmul.f32 %v508, %v1363
    %v1426 = vmul.f32 %v509, %v1367
    %v1427 = vmul.f32 %v510, %v1371
    %v1428 = vmul.f32 %v511, %v1359
    %v1429 = vmul.f32 %v512, %v1363
    %v1430 = vmul.f32 %v513, %v1367
    %v1431 = vmul.f32 %v514, %v1371
    %v1432 = vmul.f32 %v515, %v1359
    %v1433 = vmul.f32 %v516, %v1363
    %v1434 = vmul.f32 %v517, %v1367
    %v1435 = vmul.f32 %v518, %v1371
    %v1436 = vmul.f32 %v519, %v1359
    %v1437 = vmul.f32 %v520, %v1363
    %v1438 = vmul.f32 %v521, %v1367
    %v1439 = vmul.f32 %v522, %v1371
    %v1440 = vmul.f32 %v523, %v1359
    %v1441 = vmul.f32 %v524, %v1363
    %v1442 = vmul.f32 %v525, %v1367
    %v1443 = vmul.f32 %v526, %v1371
    %v1444 = vadd.f32 %v1267, %v1380
    %v1445 = vadd.f32 %v1268, %v1381
    %v1446 = vadd.f32 %v1269, %v1382
    %v1447 = vadd.f32 %v1270, %v1383
    %v1448 = vadd.f32 %v1271, %v1384
    %v1449 = vadd.f32 %v1272, %v1385
    %v1450 = vadd.f32 %v1273, %v1386
    %v1451 = vadd.f32 %v1274, %v1387
    %v1452 = vadd.f32 %v1275, %v1388
    %v1453 = vadd.f32 %v1276, %v1389
    %v1454 = vadd.f32 %v1277, %v1390
    %v1455 = vadd.f32 %v1278, %v1391
    %v1456 = vadd.f32 %v1279, %v1392
    %v1457 = vadd.f32 %v1280, %v1393
    %v1458 = vadd.f32 %v1281, %v1394
    %v1459 = vadd.f32 %v1282, %v1395
    %v1460 = vadd.f32 %v1283, %v1396
    %v1461 = vadd.f32 %v1284, %v1397
    %v1462 = vadd.f32 %v1285, %v1398
    %v1463 = vadd.f32 %v1286, %v1399
    %v1464 = vadd.f32 %v1287, %v1400
    %v1465 = vadd.f32 %v1288, %v1401
    %v1466 = vadd.f32 %v1289, %v1402
    %v1467 = vadd.f32 %v1290, %v1403
    %v1468 = vadd.f32 %v1291, %v1404
    %v1469 = vadd.f32 %v1292, %v1405
    %v1470 = vadd.f32 %v1293, %v1406
    %v1471 = vadd.f32 %v1294, %v1407
    %v1472 = vadd.f32 %v1295, %v1408
    %v1473 = vadd.f32 %v1296, %v1409
    %v1474 = vadd.f32 %v1297, %v1410
    %v1475 = vadd.f32 %v1298, %v1411
    %v1476 = vadd.f32 %v1299, %v1412
    %v1477 = vadd.f32 %v1300, %v1413
    %v1478 = vadd.f32 %v1301, %v1414
    %v1479 = vadd.f32 %v1302, %v1415
    %v1480 = vadd.f32 %v1303, %v1416
    %v1481 = vadd.f32 %v1304, %v1417
    %v1482 = vadd.f32 %v1305, %v1418
    %v1483 = vadd.f32 %v1306, %v1419
    %v1484 = vadd.f32 %v1307, %v1420
    %v1485 = vadd.f32 %v1308, %v1421
    %v1486 = vadd.f32 %v1309, %v1422
    %v1487 = vadd.f32 %v1310, %v1423
    %v1488 = vadd.f32 %v1311, %v1424
    %v1489 = vadd.f32 %v1312, %v1425
    %v1490 = vadd.f32 %v1313, %v1426
    %v1491 = vadd.f32 %v1314, %v1427
    %v1492 = vadd.f32 %v1315, %v1428
    %v1493 = vadd.f32 %v1316, %v1429
    %v1494 = vadd.f32 %v1317, %v1430
    %v1495 = vadd.f32 %v1318, %v1431
    %v1496 = vadd.f32 %v1319, %v1432
    %v1497 = vadd.f32 %v1320, %v1433
    %v1498 = vadd.f32 %v1321, %v1434
    %v1499 = vadd.f32 %v1322, %v1435
    %v1500 = vadd.f32 %v1323, %v1436
    %v1501 = vadd.f32 %v1324, %v1437
    %v1502 = vadd.f32 %v1325, %v1438
    %v1503 = vadd.f32 %v1326, %v1439
    %v1504 = vadd.f32 %v1327, %v1440
    %v1505 = vadd.f32 %v1328, %v1441
    %v1506 = vadd.f32 %v1329, %v1442
    %v1507 = vadd.f32 %v1330, %v1443
    %v1510 = vunpack.c.l.s4 1966171168
    %v1511 = vunpack.c.0.s8 %v1510
    %v1512 = vlaneseq
    %v1513 = vshrl.u32 %v1512, 7
    %v1514 = vsub.s32 %v1511, %v1513
    %v1515 = vrot.slane %v364, %v1514
    %v1516 = vcombine.high %v1515, %v1515
    %v1517 = vlaneseq
    %v1518 = vshrl.u32 %v1517, 7
    %v1519 = vsub.s32 0, %v1518
    %v1520 = vrot.slane %v1515, %v1519
    %v1521 = vlaneseq
    %v1522 = vshrl.u32 %v1521, 7
    %v1523 = vsub.s32 1, %v1522
    %v1524 = vrot.slane %v1515, %v1523
    %v1525 = vlaneseq
    %v1526 = vshrl.u32 %v1525, 7
    %v1527 = vsub.s32 2, %v1526
    %v1528 = vrot.slane %v1515, %v1527
    %v1529 = vlaneseq
    %v1530 = vshrl.u32 %v1529, 7
    %v1531 = vsub.s32 3, %v1530
    %v1532 = vrot.slane %v1515, %v1531
    %v1533 = vlaneseq
    %v1534 = vshrl.u32 %v1533, 7
    %v1535 = vsub.s32 0, %v1534
    %v1536 = vrot.slane %v1516, %v1535
    %v1537 = vlaneseq
    %v1538 = vshrl.u32 %v1537, 7
    %v1539 = vsub.s32 1, %v1538
    %v1540 = vrot.slane %v1516, %v1539
    %v1541 = vlaneseq
    %v1542 = vshrl.u32 %v1541, 7
    %v1543 = vsub.s32 2, %v1542
    %v1544 = vrot.slane %v1516, %v1543
    %v1545 = vlaneseq
    %v1546 = vshrl.u32 %v1545, 7
    %v1547 = vsub.s32 3, %v1546
    %v1548 = vrot.slane %v1516, %v1547
    %v1557 = vmul.f32 %v527, %v1520
    %v1558 = vmul.f32 %v528, %v1524
    %v1559 = vmul.f32 %v529, %v1528
    %v1560 = vmul.f32 %v530, %v1532
    %v1561 = vmul.f32 %v531, %v1520
    %v1562 = vmul.f32 %v532, %v1524
    %v1563 = vmul.f32 %v533, %v1528
    %v1564 = vmul.f32 %v534, %v1532
    %v1565 = vmul.f32 %v535, %v1520
    %v1566 = vmul.f32 %v536, %v1524
    %v1567 = vmul.f32 %v537, %v1528
    %v1568 = vmul.f32 %v538, %v1532
    %v1569 = vmul.f32 %v539, %v1520
    %v1570 = vmul.f32 %v540, %v1524
    %v1571 = vmul.f32 %v541, %v1528
    %v1572 = vmul.f32 %v542, %v1532
    %v1573 = vmul.f32 %v543, %v1520
    %v1574 = vmul.f32 %v544, %v1524
    %v1575 = vmul.f32 %v545, %v1528
    %v1576 = vmul.f32 %v546, %v1532
    %v1577 = vmul.f32 %v547, %v1520
    %v1578 = vmul.f32 %v548, %v1524
    %v1579 = vmul.f32 %v549, %v1528
    %v1580 = vmul.f32 %v550, %v1532
    %v1581 = vmul.f32 %v551, %v1520
    %v1582 = vmul.f32 %v552, %v1524
    %v1583 = vmul.f32 %v553, %v1528
    %v1584 = vmul.f32 %v554, %v1532
    %v1585 = vmul.f32 %v555, %v1520
    %v1586 = vmul.f32 %v556, %v1524
    %v1587 = vmul.f32 %v557, %v1528
    %v1588 = vmul.f32 %v558, %v1532
    %v1589 = vmul.f32 %v527, %v1536
    %v1590 = vmul.f32 %v528, %v1540
    %v1591 = vmul.f32 %v529, %v1544
    %v1592 = vmul.f32 %v530, %v1548
    %v1593 = vmul.f32 %v531, %v1536
    %v1594 = vmul.f32 %v532, %v1540
    %v1595 = vmul.f32 %v533, %v1544
    %v1596 = vmul.f32 %v534, %v1548
    %v1597 = vmul.f32 %v535, %v1536
    %v1598 = vmul.f32 %v536, %v1540
    %v1599 = vmul.f32 %v537, %v1544
    %v1600 = vmul.f32 %v538, %v1548
    %v1601 = vmul.f32 %v539, %v1536
    %v1602 = vmul.f32 %v540, %v1540
    %v1603 = vmul.f32 %v541, %v1544
    %v1604 = vmul.f32 %v542, %v1548
    %v1605 = vmul.f32 %v543, %v1536
    %v1606 = vmul.f32 %v544, %v1540
    %v1607 = vmul.f32 %v545, %v1544
    %v1608 = vmul.f32 %v546, %v1548
    %v1609 = vmul.f32 %v547, %v1536
    %v1610 = vmul.f32 %v548, %v1540
    %v1611 = vmul.f32 %v549, %v1544
    %v1612 = vmul.f32 %v550, %v1548
    %v1613 = vmul.f32 %v551, %v1536
    %v1614 = vmul.f32 %v552, %v1540
    %v1615 = vmul.f32 %v553, %v1544
    %v1616 = vmul.f32 %v554, %v1548
    %v1617 = vmul.f32 %v555, %v1536
    %v1618 = vmul.f32 %v556, %v1540
    %v1619 = vmul.f32 %v557, %v1544
    %v1620 = vmul.f32 %v558, %v1548
    %v1621 = vadd.f32 %v1444, %v1557
    %v1622 = vadd.f32 %v1445, %v1558
    %v1623 = vadd.f32 %v1446, %v1559
    %v1624 = vadd.f32 %v1447, %v1560
    %v1625 = vadd.f32 %v1448, %v1561
    %v1626 = vadd.f32 %v1449, %v1562
    %v1627 = vadd.f32 %v1450, %v1563
    %v1628 = vadd.f32 %v1451, %v1564
    %v1629 = vadd.f32 %v1452, %v1565
    %v1630 = vadd.f32 %v1453, %v1566
    %v1631 = vadd.f32 %v1454, %v1567
    %v1632 = vadd.f32 %v1455, %v1568
    %v1633 = vadd.f32 %v1456, %v1569
    %v1634 = vadd.f32 %v1457, %v1570
    %v1635 = vadd.f32 %v1458, %v1571
    %v1636 = vadd.f32 %v1459, %v1572
    %v1637 = vadd.f32 %v1460, %v1573
    %v1638 = vadd.f32 %v1461, %v1574
    %v1639 = vadd.f32 %v1462, %v1575
    %v1640 = vadd.f32 %v1463, %v1576
    %v1641 = vadd.f32 %v1464, %v1577
    %v1642 = vadd.f32 %v1465, %v1578
    %v1643 = vadd.f32 %v1466, %v1579
    %v1644 = vadd.f32 %v1467, %v1580
    %v1645 = vadd.f32 %v1468, %v1581
    %v1646 = vadd.f32 %v1469, %v1582
    %v1647 = vadd.f32 %v1470, %v1583
    %v1648 = vadd.f32 %v1471, %v1584
    %v1649 = vadd.f32 %v1472, %v1585
    %v1650 = vadd.f32 %v1473, %v1586
    %v1651 = vadd.f32 %v1474, %v1587
    %v1652 = vadd.f32 %v1475, %v1588
    %v1653 = vadd.f32 %v1476, %v1589
    %v1654 = vadd.f32 %v1477, %v1590
    %v1655 = vadd.f32 %v1478, %v1591
    %v1656 = vadd.f32 %v1479, %v1592
    %v1657 = vadd.f32 %v1480, %v1593
    %v1658 = vadd.f32 %v1481, %v1594
    %v1659 = vadd.f32 %v1482, %v1595
    %v1660 = vadd.f32 %v1483, %v1596
    %v1661 = vadd.f32 %v1484, %v1597
    %v1662 = vadd.f32 %v1485, %v1598
    %v1663 = vadd.f32 %v1486, %v1599
    %v1664 = vadd.f32 %v1487, %v1600
    %v1665 = vadd.f32 %v1488, %v1601
    %v1666 = vadd.f32 %v1489, %v1602
    %v1667 = vadd.f32 %v1490, %v1603
    %v1668 = vadd.f32 %v1491, %v1604
    %v1669 = vadd.f32 %v1492, %v1605
    %v1670 = vadd.f32 %v1493, %v1606
    %v1671 = vadd.f32 %v1494, %v1607
    %v1672 = vadd.f32 %v1495, %v1608
    %v1673 = vadd.f32 %v1496, %v1609
    %v1674 = vadd.f32 %v1497, %v1610
    %v1675 = vadd.f32 %v1498, %v1611
    %v1676 = vadd.f32 %v1499, %v1612
    %v1677 = vadd.f32 %v1500, %v1613
    %v1678 = vadd.f32 %v1501, %v1614
    %v1679 = vadd.f32 %v1502, %v1615
    %v1680 = vadd.f32 %v1503, %v1616
    %v1681 = vadd.f32 %v1504, %v1617
    %v1682 = vadd.f32 %v1505, %v1618
    %v1683 = vadd.f32 %v1506, %v1619
    %v1684 = vadd.f32 %v1507, %v1620
    %v1687 = vunpack.c.l.s4 1966171168
    %v1688 = vunpack.c.0.s8 %v1687
    %v1689 = vlaneseq
    %v1690 = vshrl.u32 %v1689, 7
    %v1691 = vsub.s32 %v1688, %v1690
    %v1692 = vrot.slane %v365, %v1691
    %v1693 = vcombine.high %v1692, %v1692
    %v1694 = vlaneseq
    %v1695 = vshrl.u32 %v1694, 7
    %v1696 = vsub.s32 0, %v1695
    %v1697 = vrot.slane %v1692, %v1696
    %v1698 = vlaneseq
    %v1699 = vshrl.u32 %v1698, 7
    %v1700 = vsub.s32 1, %v1699
    %v1701 = vrot.slane %v1692, %v1700
    %v1702 = vlaneseq
    %v1703 = vshrl.u32 %v1702, 7
    %v1704 = vsub.s32 2, %v1703
    %v1705 = vrot.slane %v1692, %v1704
    %v1706 = vlaneseq
    %v1707 = vshrl.u32 %v1706, 7
    %v1708 = vsub.s32 3, %v1707
    %v1709 = vrot.slane %v1692, %v1708
    %v1710 = vlaneseq
    %v1711 = vshrl.u32 %v1710, 7
    %v1712 = vsub.s32 0, %v1711
    %v1713 = vrot.slane %v1693, %v1712
    %v1714 = vlaneseq
    %v1715 = vshrl.u32 %v1714, 7
    %v1716 = vsub.s32 1, %v1715
    %v1717 = vrot.slane %v1693, %v1716
    %v1718 = vlaneseq
    %v1719 = vshrl.u32 %v1718, 7
    %v1720 = vsub.s32 2, %v1719
    %v1721 = vrot.slane %v1693, %v1720
    %v1722 = vlaneseq
    %v1723 = vshrl.u32 %v1722, 7
    %v1724 = vsub.s32 3, %v1723
    %v1725 = vrot.slane %v1693, %v1724
    %v1734 = vmul.f32 %v559, %v1697
    %v1735 = vmul.f32 %v560, %v1701
    %v1736 = vmul.f32 %v561, %v1705
    %v1737 = vmul.f32 %v562, %v1709
    %v1738 = vmul.f32 %v563, %v1697
    %v1739 = vmul.f32 %v564, %v1701
    %v1740 = vmul.f32 %v565, %v1705
    %v1741 = vmul.f32 %v566, %v1709
    %v1742 = vmul.f32 %v567, %v1697
    %v1743 = vmul.f32 %v568, %v1701
    %v1744 = vmul.f32 %v569, %v1705
    %v1745 = vmul.f32 %v570, %v1709
    %v1746 = vmul.f32 %v571, %v1697
    %v1747 = vmul.f32 %v572, %v1701
    %v1748 = vmul.f32 %v573, %v1705
    %v1749 = vmul.f32 %v574, %v1709
    %v1750 = vmul.f32 %v575, %v1697
    %v1751 = vmul.f32 %v576, %v1701
    %v1752 = vmul.f32 %v577, %v1705
    %v1753 = vmul.f32 %v578, %v1709
    %v1754 = vmul.f32 %v579, %v1697
    %v1755 = vmul.f32 %v580, %v1701
    %v1756 = vmul.f32 %v581, %v1705
    %v1757 = vmul.f32 %v582, %v1709
    %v1758 = vmul.f32 %v583, %v1697
    %v1759 = vmul.f32 %v584, %v1701
    %v1760 = vmul.f32 %v585, %v1705
    %v1761 = vmul.f32 %v586, %v1709
    %v1762 = vmul.f32 %v587, %v1697
    %v1763 = vmul.f32 %v588, %v1701
    %v1764 = vmul.f32 %v589, %v1705
    %v1765 = vmul.f32 %v590, %v1709
    %v1766 = vmul.f32 %v559, %v1713
    %v1767 = vmul.f32 %v560, %v1717
    %v1768 = vmul.f32 %v561, %v1721
    %v1769 = vmul.f32 %v562, %v1725
    %v1770 = vmul.f32 %v563, %v1713
    %v1771 = vmul.f32 %v564, %v1717
    %v1772 = vmul.f32 %v565, %v1721
    %v1773 = vmul.f32 %v566, %v1725
    %v1774 = vmul.f32 %v567, %v1713
    %v1775 = vmul.f32 %v568, %v1717
    %v1776 = vmul.f32 %v569, %v1721
    %v1777 = vmul.f32 %v570, %v1725
    %v1778 = vmul.f32 %v571, %v1713
    %v1779 = vmul.f32 %v572, %v1717
    %v1780 = vmul.f32 %v573, %v1721
    %v1781 = vmul.f32 %v574, %v1725
    %v1782 = vmul.f32 %v575, %v1713
    %v1783 = vmul.f32 %v576, %v1717
    %v1784 = vmul.f32 %v577, %v1721
    %v1785 = vmul.f32 %v578, %v1725
    %v1786 = vmul.f32 %v579, %v1713
    %v1787 = vmul.f32 %v580, %v1717
    %v1788 = vmul.f32 %v581, %v1721
    %v1789 = vmul.f32 %v582, %v1725
    %v1790 = vmul.f32 %v583, %v1713
    %v1791 = vmul.f32 %v584, %v1717
    %v1792 = vmul.f32 %v585, %v1721
    %v1793 = vmul.f32 %v586, %v1725
    %v1794 = vmul.f32 %v587, %v1713
    %v1795 = vmul.f32 %v588, %v1717
    %v1796 = vmul.f32 %v589, %v1721
    %v1797 = vmul.f32 %v590, %v1725
    %v1798 = vadd.f32 %v1621, %v1734
    %v1799 = vadd.f32 %v1622, %v1735
    %v1800 = vadd.f32 %v1623, %v1736
    %v1801 = vadd.f32 %v1624, %v1737
    %v1802 = vadd.f32 %v1625, %v1738
    %v1803 = vadd.f32 %v1626, %v1739
    %v1804 = vadd.f32 %v1627, %v1740
    %v1805 = vadd.f32 %v1628, %v1741
    %v1806 = vadd.f32 %v1629, %v1742
    %v1807 = vadd.f32 %v1630, %v1743
    %v1808 = vadd.f32 %v1631, %v1744
    %v1809 = vadd.f32 %v1632, %v1745
    %v1810 = vadd.f32 %v1633, %v1746
    %v1811 = vadd.f32 %v1634, %v1747
    %v1812 = vadd.f32 %v1635, %v1748
    %v1813 = vadd.f32 %v1636, %v1749
    %v1814 = vadd.f32 %v1637, %v1750
    %v1815 = vadd.f32 %v1638, %v1751
    %v1816 = vadd.f32 %v1639, %v1752
    %v1817 = vadd.f32 %v1640, %v1753
    %v1818 = vadd.f32 %v1641, %v1754
    %v1819 = vadd.f32 %v1642, %v1755
    %v1820 = vadd.f32 %v1643, %v1756
    %v1821 = vadd.f32 %v1644, %v1757
    %v1822 = vadd.f32 %v1645, %v1758
    %v1823 = vadd.f32 %v1646, %v1759
    %v1824 = vadd.f32 %v1647, %v1760
    %v1825 = vadd.f32 %v1648, %v1761
    %v1826 = vadd.f32 %v1649, %v1762
    %v1827 = vadd.f32 %v1650, %v1763
    %v1828 = vadd.f32 %v1651, %v1764
    %v1829 = vadd.f32 %v1652, %v1765
    %v1830 = vadd.f32 %v1653, %v1766
    %v1831 = vadd.f32 %v1654, %v1767
    %v1832 = vadd.f32 %v1655, %v1768
    %v1833 = vadd.f32 %v1656, %v1769
    %v1834 = vadd.f32 %v1657, %v1770
    %v1835 = vadd.f32 %v1658, %v1771
    %v1836 = vadd.f32 %v1659, %v1772
    %v1837 = vadd.f32 %v1660, %v1773
    %v1838 = vadd.f32 %v1661, %v1774
    %v1839 = vadd.f32 %v1662, %v1775
    %v1840 = vadd.f32 %v1663, %v1776
    %v1841 = vadd.f32 %v1664, %v1777
    %v1842 = vadd.f32 %v1665, %v1778
    %v1843 = vadd.f32 %v1666, %v1779
    %v1844 = vadd.f32 %v1667, %v1780
    %v1845 = vadd.f32 %v1668, %v1781
    %v1846 = vadd.f32 %v1669, %v1782
    %v1847 = vadd.f32 %v1670, %v1783
    %v1848 = vadd.f32 %v1671, %v1784
    %v1849 = vadd.f32 %v1672, %v1785
    %v1850 = vadd.f32 %v1673, %v1786
    %v1851 = vadd.f32 %v1674, %v1787
    %v1852 = vadd.f32 %v1675, %v1788
    %v1853 = vadd.f32 %v1676, %v1789
    %v1854 = vadd.f32 %v1677, %v1790
    %v1855 = vadd.f32 %v1678, %v1791
    %v1856 = vadd.f32 %v1679, %v1792
    %v1857 = vadd.f32 %v1680, %v1793
    %v1858 = vadd.f32 %v1681, %v1794
    %v1859 = vadd.f32 %v1682, %v1795
    %v1860 = vadd.f32 %v1683, %v1796
    %v1861 = vadd.f32 %v1684, %v1797
    %v1864 = vunpack.c.l.s4 1966171168
    %v1865 = vunpack.c.0.s8 %v1864
    %v1866 = vlaneseq
    %v1867 = vshrl.u32 %v1866, 7
    %v1868 = vsub.s32 %v1865, %v1867
    %v1869 = vrot.slane %v366, %v1868
    %v1870 = vcombine.high %v1869, %v1869
    %v1871 = vlaneseq
    %v1872 = vshrl.u32 %v1871, 7
    %v1873 = vsub.s32 0, %v1872
    %v1874 = vrot.slane %v1869, %v1873
    %v1875 = vlaneseq
    %v1876 = vshrl.u32 %v1875, 7
    %v1877 = vsub.s32 1, %v1876
    %v1878 = vrot.slane %v1869, %v1877
    %v1879 = vlaneseq
    %v1880 = vshrl.u32 %v1879, 7
    %v1881 = vsub.s32 2, %v1880
    %v1882 = vrot.slane %v1869, %v1881
    %v1883 = vlaneseq
    %v1884 = vshrl.u32 %v1883, 7
    %v1885 = vsub.s32 3, %v1884
    %v1886 = vrot.slane %v1869, %v1885
    %v1887 = vlaneseq
    %v1888 = vshrl.u32 %v1887, 7
    %v1889 = vsub.s32 0, %v1888
    %v1890 = vrot.slane %v1870, %v1889
    %v1891 = vlaneseq
    %v1892 = vshrl.u32 %v1891, 7
    %v1893 = vsub.s32 1, %v1892
    %v1894 = vrot.slane %v1870, %v1893
    %v1895 = vlaneseq
    %v1896 = vshrl.u32 %v1895, 7
    %v1897 = vsub.s32 2, %v1896
    %v1898 = vrot.slane %v1870, %v1897
    %v1899 = vlaneseq
    %v1900 = vshrl.u32 %v1899, 7
    %v1901 = vsub.s32 3, %v1900
    %v1902 = vrot.slane %v1870, %v1901
    %v1911 = vmul.f32 %v591, %v1874
    %v1912 = vmul.f32 %v592, %v1878
    %v1913 = vmul.f32 %v593, %v1882
    %v1914 = vmul.f32 %v594, %v1886
    %v1915 = vmul.f32 %v595, %v1874
    %v1916 = vmul.f32 %v596, %v1878
    %v1917 = vmul.f32 %v597, %v1882
    %v1918 = vmul.f32 %v598, %v1886
    %v1919 = vmul.f32 %v599, %v1874
    %v1920 = vmul.f32 %v600, %v1878
    %v1921 = vmul.f32 %v601, %v1882
    %v1922 = vmul.f32 %v602, %v1886
    %v1923 = vmul.f32 %v603, %v1874
    %v1924 = vmul.f32 %v604, %v1878
    %v1925 = vmul.f32 %v605, %v1882
    %v1926 = vmul.f32 %v606, %v1886
    %v1927 = vmul.f32 %v607, %v1874
    %v1928 = vmul.f32 %v608, %v1878
    %v1929 = vmul.f32 %v609, %v1882
    %v1930 = vmul.f32 %v610, %v1886
    %v1931 = vmul.f32 %v611, %v1874
    %v1932 = vmul.f32 %v612, %v1878
    %v1933 = vmul.f32 %v613, %v1882
    %v1934 = vmul.f32 %v614, %v1886
    %v1935 = vmul.f32 %v615, %v1874
    %v1936 = vmul.f32 %v616, %v1878
    %v1937 = vmul.f32 %v617, %v1882
    %v1938 = vmul.f32 %v618, %v1886
    %v1939 = vmul.f32 %v619, %v1874
    %v1940 = vmul.f32 %v620, %v1878
    %v1941 = vmul.f32 %v621, %v1882
    %v1942 = vmul.f32 %v622, %v1886
    %v1943 = vmul.f32 %v591, %v1890
    %v1944 = vmul.f32 %v592, %v1894
    %v1945 = vmul.f32 %v593, %v1898
    %v1946 = vmul.f32 %v594, %v1902
    %v1947 = vmul.f32 %v595, %v1890
    %v1948 = vmul.f32 %v596, %v1894
    %v1949 = vmul.f32 %v597, %v1898
    %v1950 = vmul.f32 %v598, %v1902
    %v1951 = vmul.f32 %v599, %v1890
    %v1952 = vmul.f32 %v600, %v1894
    %v1953 = vmul.f32 %v601, %v1898
    %v1954 = vmul.f32 %v602, %v1902
    %v1955 = vmul.f32 %v603, %v1890
    %v1956 = vmul.f32 %v604, %v1894
    %v1957 = vmul.f32 %v605, %v1898
    %v1958 = vmul.f32 %v606, %v1902
    %v1959 = vmul.f32 %v607, %v1890
    %v1960 = vmul.f32 %v608, %v1894
    %v1961 = vmul.f32 %v609, %v1898
    %v1962 = vmul.f32 %v610, %v1902
    %v1963 = vmul.f32 %v611, %v1890
    %v1964 = vmul.f32 %v612, %v1894
    %v1965 = vmul.f32 %v613, %v1898
    %v1966 = vmul.f32 %v614, %v1902
    %v1967 = vmul.f32 %v615, %v1890
    %v1968 = vmul.f32 %v616, %v1894
    %v1969 = vmul.f32 %v617, %v1898
    %v1970 = vmul.f32 %v618, %v1902
    %v1971 = vmul.f32 %v619, %v1890
    %v1972 = vmul.f32 %v620, %v1894
    %v1973 = vmul.f32 %v621, %v1898
    %v1974 = vmul.f32 %v622, %v1902
    %v1975 = vadd.f32 %v1798, %v1911
    %v1976 = vadd.f32 %v1799, %v1912
    %v1977 = vadd.f32 %v1800, %v1913
    %v1978 = vadd.f32 %v1801, %v1914
    %v1979 = vadd.f32 %v1802, %v1915
    %v1980 = vadd.f32 %v1803, %v1916
    %v1981 = vadd.f32 %v1804, %v1917
    %v1982 = vadd.f32 %v1805, %v1918
    %v1983 = vadd.f32 %v1806, %v1919
    %v1984 = vadd.f32 %v1807, %v1920
    %v1985 = vadd.f32 %v1808, %v1921
    %v1986 = vadd.f32 %v1809, %v1922
    %v1987 = vadd.f32 %v1810, %v1923
    %v1988 = vadd.f32 %v1811, %v1924
    %v1989 = vadd.f32 %v1812, %v1925
    %v1990 = vadd.f32 %v1813, %v1926
    %v1991 = vadd.f32 %v1814, %v1927
    %v1992 = vadd.f32 %v1815, %v1928
    %v1993 = vadd.f32 %v1816, %v1929
    %v1994 = vadd.f32 %v1817, %v1930
    %v1995 = vadd.f32 %v1818, %v1931
    %v1996 = vadd.f32 %v1819, %v1932
    %v1997 = vadd.f32 %v1820, %v1933
    %v1998 = vadd.f32 %v1821, %v1934
    %v1999 = vadd.f32 %v1822, %v1935
    %v2000 = vadd.f32 %v1823, %v1936
    %v2001 = vadd.f32 %v1824, %v1937
    %v2002 = vadd.f32 %v1825, %v1938
    %v2003 = vadd.f32 %v1826, %v1939
    %v2004 = vadd.f32 %v1827, %v1940
    %v2005 = vadd.f32 %v1828, %v1941
    %v2006 = vadd.f32 %v1829, %v1942
    %v2007 = vadd.f32 %v1830, %v1943
    %v2008 = vadd.f32 %v1831, %v1944
    %v2009 = vadd.f32 %v1832, %v1945
    %v2010 = vadd.f32 %v1833, %v1946
    %v2011 = vadd.f32 %v1834, %v1947
    %v2012 = vadd.f32 %v1835, %v1948
    %v2013 = vadd.f32 %v1836, %v1949
    %v2014 = vadd.f32 %v1837, %v1950
    %v2015 = vadd.f32 %v1838, %v1951
    %v2016 = vadd.f32 %v1839, %v1952
    %v2017 = vadd.f32 %v1840, %v1953
    %v2018 = vadd.f32 %v1841, %v1954
    %v2019 = vadd.f32 %v1842, %v1955
    %v2020 = vadd.f32 %v1843, %v1956
    %v2021 = vadd.f32 %v1844, %v1957
    %v2022 = vadd.f32 %v1845, %v1958
    %v2023 = vadd.f32 %v1846, %v1959
    %v2024 = vadd.f32 %v1847, %v1960
    %v2025 = vadd.f32 %v1848, %v1961
    %v2026 = vadd.f32 %v1849, %v1962
    %v2027 = vadd.f32 %v1850, %v1963
    %v2028 = vadd.f32 %v1851, %v1964
    %v2029 = vadd.f32 %v1852, %v1965
    %v2030 = vadd.f32 %v1853, %v1966
    %v2031 = vadd.f32 %v1854, %v1967
    %v2032 = vadd.f32 %v1855, %v1968
    %v2033 = vadd.f32 %v1856, %v1969
    %v2034 = vadd.f32 %v1857, %v1970
    %v2035 = vadd.f32 %v1858, %v1971
    %v2036 = vadd.f32 %v1859, %v1972
    %v2037 = vadd.f32 %v1860, %v1973
    %v2038 = vadd.f32 %v1861, %v1974
    %vm2039 = vcmask 1043456
    %v2040 = vsel %vm2039, 1.0, 0.0
    %v2041 = vrot.slane %v2040, 4
    %v2042 = vadd.f32 %v2040, %v2041
    %v2043 = vrot.slane %v2042, 2
    %v2044 = vadd.f32 %v2042, %v2043
    %v2045 = vrot.slane %v2044, 1
    %v2046 = vadd.f32 %v2044, %v2045
    %v2047 = vrcp.pop %v2046
    %v2048 = vmul.f32 1.0, %v2047
    %v2049 = vmul.f32 %v2048, %v1975
    %v2050 = vmul.f32 %v2048, %v1976
    %v2051 = vmul.f32 %v2048, %v1977
    %v2052 = vmul.f32 %v2048, %v1978
    %v2053 = vmul.f32 %v2048, %v1979
    %v2054 = vmul.f32 %v2048, %v1980
    %v2055 = vmul.f32 %v2048, %v1981
    %v2056 = vmul.f32 %v2048, %v1982
    %v2057 = vmul.f32 %v2048, %v1983
    %v2058 = vmul.f32 %v2048, %v1984
    %v2059 = vmul.f32 %v2048, %v1985
    %v2060 = vmul.f32 %v2048, %v1986
    %v2061 = vmul.f32 %v2048, %v1987
    %v2062 = vmul.f32 %v2048, %v1988
    %v2063 = vmul.f32 %v2048, %v1989
    %v2064 = vmul.f32 %v2048, %v1990
    %v2065 = vmul.f32 %v2048, %v1991
    %v2066 = vmul.f32 %v2048, %v1992
    %v2067 = vmul.f32 %v2048, %v1993
    %v2068 = vmul.f32 %v2048, %v1994
    %v2069 = vmul.f32 %v2048, %v1995
    %v2070 = vmul.f32 %v2048, %v1996
    %v2071 = vmul.f32 %v2048, %v1997
    %v2072 = vmul.f32 %v2048, %v1998
    %v2073 = vmul.f32 %v2048, %v1999
    %v2074 = vmul.f32 %v2048, %v2000
    %v2075 = vmul.f32 %v2048, %v2001
    %v2076 = vmul.f32 %v2048, %v2002
    %v2077 = vmul.f32 %v2048, %v2003
    %v2078 = vmul.f32 %v2048, %v2004
    %v2079 = vmul.f32 %v2048, %v2005
    %v2080 = vmul.f32 %v2048, %v2006
    %v2081 = vmul.f32 %v2048, %v2007
    %v2082 = vmul.f32 %v2048, %v2008
    %v2083 = vmul.f32 %v2048, %v2009
    %v2084 = vmul.f32 %v2048, %v2010
    %v2085 = vmul.f32 %v2048, %v2011
    %v2086 = vmul.f32 %v2048, %v2012
    %v2087 = vmul.f32 %v2048, %v2013
    %v2088 = vmul.f32 %v2048, %v2014
    %v2089 = vmul.f32 %v2048, %v2015
    %v2090 = vmul.f32 %v2048, %v2016
    %v2091 = vmul.f32 %v2048, %v2017
    %v2092 = vmul.f32 %v2048, %v2018
    %v2093 = vmul.f32 %v2048, %v2019
    %v2094 = vmul.f32 %v2048, %v2020
    %v2095 = vmul.f32 %v2048, %v2021
    %v2096 = vmul.f32 %v2048, %v2022
    %v2097 = vmul.f32 %v2048, %v2023
    %v2098 = vmul.f32 %v2048, %v2024
    %v2099 = vmul.f32 %v2048, %v2025
    %v2100 = vmul.f32 %v2048, %v2026
    %v2101 = vmul.f32 %v2048, %v2027
    %v2102 = vmul.f32 %v2048, %v2028
    %v2103 = vmul.f32 %v2048, %v2029
    %v2104 = vmul.f32 %v2048, %v2030
    %v2105 = vmul.f32 %v2048, %v2031
    %v2106 = vmul.f32 %v2048, %v2032
    %v2107 = vmul.f32 %v2048, %v2033
    %v2108 = vmul.f32 %v2048, %v2034
    %v2109 = vmul.f32 %v2048, %v2035
    %v2110 = vmul.f32 %v2048, %v2036
    %v2111 = vmul.f32 %v2048, %v2037
    %v2112 = vmul.f32 %v2048, %v2038
    %v2113 = vadd.f32 %v2049, %v2050
    %v2114 = vadd.f32 %v2113, %v2051
    %v2115 = vadd.f32 %v2114, %v2052
    %2116 = vadd.xlane.f32.xlu0 %v2115
    %v2117 = vpop.xlane.xlu0 %2116
    %v2118 = vadd.f32 %v2053, %v2054
    %v2119 = vadd.f32 %v2118, %v2055
    %v2120 = vadd.f32 %v2119, %v2056
    %2121 = vadd.xlane.f32.xlu0 %v2120
    %v2122 = vpop.xlane.xlu0 %2121
    %v2123 = vadd.f32 %v2057, %v2058
    %v2124 = vadd.f32 %v2123, %v2059
    %v2125 = vadd.f32 %v2124, %v2060
    %2126 = vadd.xlane.f32.xlu0 %v2125
    %v2127 = vpop.xlane.xlu0 %2126
    %v2128 = vadd.f32 %v2061, %v2062
    %v2129 = vadd.f32 %v2128, %v2063
    %v2130 = vadd.f32 %v2129, %v2064
    %2131 = vadd.xlane.f32.xlu0 %v2130
    %v2132 = vpop.xlane.xlu0 %2131
    %v2133 = vadd.f32 %v2065, %v2066
    %v2134 = vadd.f32 %v2133, %v2067
    %v2135 = vadd.f32 %v2134, %v2068
    %2136 = vadd.xlane.f32.xlu0 %v2135
    %v2137 = vpop.xlane.xlu0 %2136
    %v2138 = vadd.f32 %v2069, %v2070
    %v2139 = vadd.f32 %v2138, %v2071
    %v2140 = vadd.f32 %v2139, %v2072
    %2141 = vadd.xlane.f32.xlu0 %v2140
    %v2142 = vpop.xlane.xlu0 %2141
    %v2143 = vadd.f32 %v2073, %v2074
    %v2144 = vadd.f32 %v2143, %v2075
    %v2145 = vadd.f32 %v2144, %v2076
    %2146 = vadd.xlane.f32.xlu0 %v2145
    %v2147 = vpop.xlane.xlu0 %2146
    %v2148 = vadd.f32 %v2077, %v2078
    %v2149 = vadd.f32 %v2148, %v2079
    %v2150 = vadd.f32 %v2149, %v2080
    %2151 = vadd.xlane.f32.xlu0 %v2150
    %v2152 = vpop.xlane.xlu0 %2151
    %v2153 = vadd.f32 %v2081, %v2082
    %v2154 = vadd.f32 %v2153, %v2083
    %v2155 = vadd.f32 %v2154, %v2084
    %2156 = vadd.xlane.f32.xlu0 %v2155
    %v2157 = vpop.xlane.xlu0 %2156
    %v2158 = vadd.f32 %v2085, %v2086
    %v2159 = vadd.f32 %v2158, %v2087
    %v2160 = vadd.f32 %v2159, %v2088
    %2161 = vadd.xlane.f32.xlu0 %v2160
    %v2162 = vpop.xlane.xlu0 %2161
    %v2163 = vadd.f32 %v2089, %v2090
    %v2164 = vadd.f32 %v2163, %v2091
    %v2165 = vadd.f32 %v2164, %v2092
    %2166 = vadd.xlane.f32.xlu0 %v2165
    %v2167 = vpop.xlane.xlu0 %2166
    %v2168 = vadd.f32 %v2093, %v2094
    %v2169 = vadd.f32 %v2168, %v2095
    %v2170 = vadd.f32 %v2169, %v2096
    %2171 = vadd.xlane.f32.xlu0 %v2170
    %v2172 = vpop.xlane.xlu0 %2171
    %v2173 = vadd.f32 %v2097, %v2098
    %v2174 = vadd.f32 %v2173, %v2099
    %v2175 = vadd.f32 %v2174, %v2100
    %2176 = vadd.xlane.f32.xlu0 %v2175
    %v2177 = vpop.xlane.xlu0 %2176
    %v2178 = vadd.f32 %v2101, %v2102
    %v2179 = vadd.f32 %v2178, %v2103
    %v2180 = vadd.f32 %v2179, %v2104
    %2181 = vadd.xlane.f32.xlu0 %v2180
    %v2182 = vpop.xlane.xlu0 %2181
    %v2183 = vadd.f32 %v2105, %v2106
    %v2184 = vadd.f32 %v2183, %v2107
    %v2185 = vadd.f32 %v2184, %v2108
    %2186 = vadd.xlane.f32.xlu0 %v2185
    %v2187 = vpop.xlane.xlu0 %2186
    %v2188 = vadd.f32 %v2109, %v2110
    %v2189 = vadd.f32 %v2188, %v2111
    %v2190 = vadd.f32 %v2189, %v2112
    %2191 = vadd.xlane.f32.xlu0 %v2190
    %v2192 = vpop.xlane.xlu0 %2191
    %v2193 = vmul.f32 %v2117, %v2117
    %v2194 = vmul.f32 %v2122, %v2122
    %v2195 = vmul.f32 %v2127, %v2127
    %v2196 = vmul.f32 %v2132, %v2132
    %v2197 = vmul.f32 %v2137, %v2137
    %v2198 = vmul.f32 %v2142, %v2142
    %v2199 = vmul.f32 %v2147, %v2147
    %v2200 = vmul.f32 %v2152, %v2152
    %v2201 = vmul.f32 %v2157, %v2157
    %v2202 = vmul.f32 %v2162, %v2162
    %v2203 = vmul.f32 %v2167, %v2167
    %v2204 = vmul.f32 %v2172, %v2172
    %v2205 = vmul.f32 %v2177, %v2177
    %v2206 = vmul.f32 %v2182, %v2182
    %v2207 = vmul.f32 %v2187, %v2187
    %v2208 = vmul.f32 %v2192, %v2192
    %v2225 = vlaneseq
    %v2226 = vand.u32 %v2225, 127
    %v2227 = vlaneseq
    %v2228 = vshrl.u32 %v2227, 7
    %v2229 = vsub.s32 %v2226, %v2228
    %v2230 = vrot.slane %v2193, %v2229
    %v2231 = vadd.s32 %v2226, 4294967288
    %v2232 = vlaneseq
    %v2233 = vshrl.u32 %v2232, 7
    %v2234 = vsub.s32 %v2231, %v2233
    %v2235 = vrot.slane %v2194, %v2234
    %vm2236 = vcmask 130112
    %v2237 = vsel %vm2236, %v2235, %v2230
    %v2238 = vlaneseq
    %v2239 = vshrl.u32 %v2238, 7
    %v2240 = vsub.s32 %v2226, %v2239
    %v2241 = vrot.slane %v2195, %v2240
    %v2242 = vlaneseq
    %v2243 = vshrl.u32 %v2242, 7
    %v2244 = vsub.s32 %v2231, %v2243
    %v2245 = vrot.slane %v2196, %v2244
    %v2246 = vsel %vm2236, %v2245, %v2241
    %v2247 = vlaneseq
    %v2248 = vshrl.u32 %v2247, 7
    %v2249 = vsub.s32 %v2226, %v2248
    %v2250 = vrot.slane %v2197, %v2249
    %v2251 = vlaneseq
    %v2252 = vshrl.u32 %v2251, 7
    %v2253 = vsub.s32 %v2231, %v2252
    %v2254 = vrot.slane %v2198, %v2253
    %v2255 = vsel %vm2236, %v2254, %v2250
    %v2256 = vlaneseq
    %v2257 = vshrl.u32 %v2256, 7
    %v2258 = vsub.s32 %v2226, %v2257
    %v2259 = vrot.slane %v2199, %v2258
    %v2260 = vlaneseq
    %v2261 = vshrl.u32 %v2260, 7
    %v2262 = vsub.s32 %v2231, %v2261
    %v2263 = vrot.slane %v2200, %v2262
    %v2264 = vsel %vm2236, %v2263, %v2259
    %v2265 = vlaneseq
    %v2266 = vshrl.u32 %v2265, 7
    %v2267 = vsub.s32 %v2226, %v2266
    %v2268 = vrot.slane %v2201, %v2267
    %v2269 = vlaneseq
    %v2270 = vshrl.u32 %v2269, 7
    %v2271 = vsub.s32 %v2231, %v2270
    %v2272 = vrot.slane %v2202, %v2271
    %v2273 = vsel %vm2236, %v2272, %v2268
    %v2274 = vlaneseq
    %v2275 = vshrl.u32 %v2274, 7
    %v2276 = vsub.s32 %v2226, %v2275
    %v2277 = vrot.slane %v2203, %v2276
    %v2278 = vlaneseq
    %v2279 = vshrl.u32 %v2278, 7
    %v2280 = vsub.s32 %v2231, %v2279
    %v2281 = vrot.slane %v2204, %v2280
    %v2282 = vsel %vm2236, %v2281, %v2277
    %v2283 = vlaneseq
    %v2284 = vshrl.u32 %v2283, 7
    %v2285 = vsub.s32 %v2226, %v2284
    %v2286 = vrot.slane %v2205, %v2285
    %v2287 = vlaneseq
    %v2288 = vshrl.u32 %v2287, 7
    %v2289 = vsub.s32 %v2231, %v2288
    %v2290 = vrot.slane %v2206, %v2289
    %v2291 = vsel %vm2236, %v2290, %v2286
    %v2292 = vlaneseq
    %v2293 = vshrl.u32 %v2292, 7
    %v2294 = vsub.s32 %v2226, %v2293
    %v2295 = vrot.slane %v2207, %v2294
    %v2296 = vlaneseq
    %v2297 = vshrl.u32 %v2296, 7
    %v2298 = vsub.s32 %v2231, %v2297
    %v2299 = vrot.slane %v2208, %v2298
    %v2300 = vsel %vm2236, %v2299, %v2295
    %vm2301 = vcmask 1041409
    %v2302 = vsel %vm2301, %v2246, %v2237
    %vm2303 = vcmask 1042434
    %v2304 = vsel %vm2303, %v2255, %v2302
    %vm2305 = vcmask 1043459
    %v2306 = vsel %vm2305, %v2264, %v2304
    %v2307 = vsel %vm2301, %v2282, %v2273
    %v2308 = vsel %vm2303, %v2291, %v2307
    %v2309 = vsel %vm2305, %v2300, %v2308
    %vm2312 = vcmask 125952
    %v2313 = vsel %vm2312, %v2306, 0.0
    %2314 = vadd.xlane.f32.xlu0 %v2313
    %v2315 = vpop.xlane.xlu0 %2314
    %v2316 = vsel %vm2312, %v2309, 0.0
    %2317 = vadd.xlane.f32.xlu0 %v2316
    %v2318 = vpop.xlane.xlu0 %2317
    %v2319 = vadd.f32 %v2315, 1.0
    %v2320 = vadd.f32 %v2318, 1.0
    %v2321 = vrcp.pop %v2319
    %v2322 = vmul.f32 %v2315, %v2321
    %v2323 = vrcp.pop %v2320
    %v2324 = vmul.f32 %v2318, %v2323
    %v2325 = vrsqrt.pop %v2315
    %v2326 = vmul.f32 %v2315, %v2325
    %vm2327 = vcmp.eq.f32.partialorder %v2315, inf
    %v2328 = vsel %vm2327, %v2315, %v2326
    %vm2329 = vcmp.eq.f32.partialorder %v2315, 0.0
    %v2330 = vand.u32 %v2315, 2147483648
    %v2331 = vsel %vm2329, %v2330, %v2328
    %v2332 = vrsqrt.pop %v2318
    %v2333 = vmul.f32 %v2318, %v2332
    %vm2334 = vcmp.eq.f32.partialorder %v2318, inf
    %v2335 = vsel %vm2334, %v2318, %v2333
    %vm2336 = vcmp.eq.f32.partialorder %v2318, 0.0
    %v2337 = vand.u32 %v2318, 2147483648
    %v2338 = vsel %vm2336, %v2337, %v2335
    %v2339 = vadd.f32 %v2331, 1e-08
    %v2340 = vadd.f32 %v2338, 1e-08
    %v2341 = vrcp.pop %v2339
    %v2342 = vmul.f32 %v2322, %v2341
    %v2343 = vrcp.pop %v2340
    %v2344 = vmul.f32 %v2324, %v2343
    %v2347 = vlaneseq
    %v2348 = vshrl.u32 %v2347, 7
    %v2349 = vsub.s32 0, %v2348
    %v2350 = vrot.slane %v2342, %v2349
    %v2351 = vlaneseq
    %v2352 = vshrl.u32 %v2351, 7
    %v2353 = vsub.s32 1, %v2352
    %v2354 = vrot.slane %v2342, %v2353
    %v2355 = vlaneseq
    %v2356 = vshrl.u32 %v2355, 7
    %v2357 = vsub.s32 2, %v2356
    %v2358 = vrot.slane %v2342, %v2357
    %v2359 = vlaneseq
    %v2360 = vshrl.u32 %v2359, 7
    %v2361 = vsub.s32 3, %v2360
    %v2362 = vrot.slane %v2342, %v2361
    %v2363 = vlaneseq
    %v2364 = vshrl.u32 %v2363, 7
    %v2365 = vsub.s32 0, %v2364
    %v2366 = vrot.slane %v2344, %v2365
    %v2367 = vlaneseq
    %v2368 = vshrl.u32 %v2367, 7
    %v2369 = vsub.s32 1, %v2368
    %v2370 = vrot.slane %v2344, %v2369
    %v2371 = vlaneseq
    %v2372 = vshrl.u32 %v2371, 7
    %v2373 = vsub.s32 2, %v2372
    %v2374 = vrot.slane %v2344, %v2373
    %v2375 = vlaneseq
    %v2376 = vshrl.u32 %v2375, 7
    %v2377 = vsub.s32 3, %v2376
    %v2378 = vrot.slane %v2344, %v2377
    %v2387 = vmul.f32 %v2117, %v2350
    %v2388 = vmul.f32 %v2122, %v2350
    %v2389 = vmul.f32 %v2127, %v2354
    %v2390 = vmul.f32 %v2132, %v2354
    %v2391 = vmul.f32 %v2137, %v2358
    %v2392 = vmul.f32 %v2142, %v2358
    %v2393 = vmul.f32 %v2147, %v2362
    %v2394 = vmul.f32 %v2152, %v2362
    %v2395 = vmul.f32 %v2157, %v2366
    %v2396 = vmul.f32 %v2162, %v2366
    %v2397 = vmul.f32 %v2167, %v2370
    %v2398 = vmul.f32 %v2172, %v2370
    %v2399 = vmul.f32 %v2177, %v2374
    %v2400 = vmul.f32 %v2182, %v2374
    %v2401 = vmul.f32 %v2187, %v2378
    %v2402 = vmul.f32 %v2192, %v2378
    %2404 = vset.pattern.permute.xlu0 0
    %2405 = vperm.xlu0 %2404, %v2387
    %v2406 = vpop.permute.xlu0 %2405
    %2409 = vset.pattern.permute.xlu0 0
    %2410 = vperm.xlu0 %2409, %v2388
    %v2411 = vpop.permute.xlu0 %2410
    %2414 = vset.pattern.permute.xlu0 0
    %2415 = vperm.xlu0 %2414, %v2389
    %v2416 = vpop.permute.xlu0 %2415
    %2419 = vset.pattern.permute.xlu0 0
    %2420 = vperm.xlu0 %2419, %v2390
    %v2421 = vpop.permute.xlu0 %2420
    %2424 = vset.pattern.permute.xlu0 0
    %2425 = vperm.xlu0 %2424, %v2391
    %v2426 = vpop.permute.xlu0 %2425
    %2429 = vset.pattern.permute.xlu0 0
    %2430 = vperm.xlu0 %2429, %v2392
    %v2431 = vpop.permute.xlu0 %2430
    %2434 = vset.pattern.permute.xlu0 0
    %2435 = vperm.xlu0 %2434, %v2393
    %v2436 = vpop.permute.xlu0 %2435
    %2439 = vset.pattern.permute.xlu0 0
    %2440 = vperm.xlu0 %2439, %v2394
    %v2441 = vpop.permute.xlu0 %2440
    %2444 = vset.pattern.permute.xlu0 0
    %2445 = vperm.xlu0 %2444, %v2395
    %v2446 = vpop.permute.xlu0 %2445
    %2449 = vset.pattern.permute.xlu0 0
    %2450 = vperm.xlu0 %2449, %v2396
    %v2451 = vpop.permute.xlu0 %2450
    %2454 = vset.pattern.permute.xlu0 0
    %2455 = vperm.xlu0 %2454, %v2397
    %v2456 = vpop.permute.xlu0 %2455
    %2459 = vset.pattern.permute.xlu0 0
    %2460 = vperm.xlu0 %2459, %v2398
    %v2461 = vpop.permute.xlu0 %2460
    %2464 = vset.pattern.permute.xlu0 0
    %2465 = vperm.xlu0 %2464, %v2399
    %v2466 = vpop.permute.xlu0 %2465
    %2469 = vset.pattern.permute.xlu0 0
    %2470 = vperm.xlu0 %2469, %v2400
    %v2471 = vpop.permute.xlu0 %2470
    %2474 = vset.pattern.permute.xlu0 0
    %2475 = vperm.xlu0 %2474, %v2401
    %v2476 = vpop.permute.xlu0 %2475
    %2479 = vset.pattern.permute.xlu0 0
    %2480 = vperm.xlu0 %2479, %v2402
    %v2481 = vpop.permute.xlu0 %2480
    %v2483 = vmul.f32 %v2406, %v1975
    %v2484 = vmul.f32 %v2406, %v1976
    %v2485 = vmul.f32 %v2406, %v1977
    %v2486 = vmul.f32 %v2406, %v1978
    %v2487 = vmul.f32 %v2411, %v1979
    %v2488 = vmul.f32 %v2411, %v1980
    %v2489 = vmul.f32 %v2411, %v1981
    %v2490 = vmul.f32 %v2411, %v1982
    %v2491 = vmul.f32 %v2416, %v1983
    %v2492 = vmul.f32 %v2416, %v1984
    %v2493 = vmul.f32 %v2416, %v1985
    %v2494 = vmul.f32 %v2416, %v1986
    %v2495 = vmul.f32 %v2421, %v1987
    %v2496 = vmul.f32 %v2421, %v1988
    %v2497 = vmul.f32 %v2421, %v1989
    %v2498 = vmul.f32 %v2421, %v1990
    %v2499 = vmul.f32 %v2426, %v1991
    %v2500 = vmul.f32 %v2426, %v1992
    %v2501 = vmul.f32 %v2426, %v1993
    %v2502 = vmul.f32 %v2426, %v1994
    %v2503 = vmul.f32 %v2431, %v1995
    %v2504 = vmul.f32 %v2431, %v1996
    %v2505 = vmul.f32 %v2431, %v1997
    %v2506 = vmul.f32 %v2431, %v1998
    %v2507 = vmul.f32 %v2436, %v1999
    %v2508 = vmul.f32 %v2436, %v2000
    %v2509 = vmul.f32 %v2436, %v2001
    %v2510 = vmul.f32 %v2436, %v2002
    %v2511 = vmul.f32 %v2441, %v2003
    %v2512 = vmul.f32 %v2441, %v2004
    %v2513 = vmul.f32 %v2441, %v2005
    %v2514 = vmul.f32 %v2441, %v2006
    %v2515 = vmul.f32 %v2446, %v2007
    %v2516 = vmul.f32 %v2446, %v2008
    %v2517 = vmul.f32 %v2446, %v2009
    %v2518 = vmul.f32 %v2446, %v2010
    %v2519 = vmul.f32 %v2451, %v2011
    %v2520 = vmul.f32 %v2451, %v2012
    %v2521 = vmul.f32 %v2451, %v2013
    %v2522 = vmul.f32 %v2451, %v2014
    %v2523 = vmul.f32 %v2456, %v2015
    %v2524 = vmul.f32 %v2456, %v2016
    %v2525 = vmul.f32 %v2456, %v2017
    %v2526 = vmul.f32 %v2456, %v2018
    %v2527 = vmul.f32 %v2461, %v2019
    %v2528 = vmul.f32 %v2461, %v2020
    %v2529 = vmul.f32 %v2461, %v2021
    %v2530 = vmul.f32 %v2461, %v2022
    %v2531 = vmul.f32 %v2466, %v2023
    %v2532 = vmul.f32 %v2466, %v2024
    %v2533 = vmul.f32 %v2466, %v2025
    %v2534 = vmul.f32 %v2466, %v2026
    %v2535 = vmul.f32 %v2471, %v2027
    %v2536 = vmul.f32 %v2471, %v2028
    %v2537 = vmul.f32 %v2471, %v2029
    %v2538 = vmul.f32 %v2471, %v2030
    %v2539 = vmul.f32 %v2476, %v2031
    %v2540 = vmul.f32 %v2476, %v2032
    %v2541 = vmul.f32 %v2476, %v2033
    %v2542 = vmul.f32 %v2476, %v2034
    %v2543 = vmul.f32 %v2481, %v2035
    %v2544 = vmul.f32 %v2481, %v2036
    %v2545 = vmul.f32 %v2481, %v2037
    %v2546 = vmul.f32 %v2481, %v2038
    %v2547 = vadd.f32 %v2483, %v2487
    %v2548 = vrot.slane %v2547, 4
    %v2549 = vadd.f32 %v2547, %v2548
    %v2550 = vrot.slane %v2549, 2
    %v2551 = vadd.f32 %v2549, %v2550
    %v2552 = vrot.slane %v2551, 1
    %v2553 = vadd.f32 %v2551, %v2552
    %v2554 = vadd.f32 %v2484, %v2488
    %v2555 = vrot.slane %v2554, 4
    %v2556 = vadd.f32 %v2554, %v2555
    %v2557 = vrot.slane %v2556, 2
    %v2558 = vadd.f32 %v2556, %v2557
    %v2559 = vrot.slane %v2558, 1
    %v2560 = vadd.f32 %v2558, %v2559
    %v2561 = vadd.f32 %v2485, %v2489
    %v2562 = vrot.slane %v2561, 4
    %v2563 = vadd.f32 %v2561, %v2562
    %v2564 = vrot.slane %v2563, 2
    %v2565 = vadd.f32 %v2563, %v2564
    %v2566 = vrot.slane %v2565, 1
    %v2567 = vadd.f32 %v2565, %v2566
    %v2568 = vadd.f32 %v2486, %v2490
    %v2569 = vrot.slane %v2568, 4
    %v2570 = vadd.f32 %v2568, %v2569
    %v2571 = vrot.slane %v2570, 2
    %v2572 = vadd.f32 %v2570, %v2571
    %v2573 = vrot.slane %v2572, 1
    %v2574 = vadd.f32 %v2572, %v2573
    %v2575 = vadd.f32 %v2491, %v2495
    %v2576 = vrot.slane %v2575, 4
    %v2577 = vadd.f32 %v2575, %v2576
    %v2578 = vrot.slane %v2577, 2
    %v2579 = vadd.f32 %v2577, %v2578
    %v2580 = vrot.slane %v2579, 1
    %v2581 = vadd.f32 %v2579, %v2580
    %v2582 = vadd.f32 %v2492, %v2496
    %v2583 = vrot.slane %v2582, 4
    %v2584 = vadd.f32 %v2582, %v2583
    %v2585 = vrot.slane %v2584, 2
    %v2586 = vadd.f32 %v2584, %v2585
    %v2587 = vrot.slane %v2586, 1
    %v2588 = vadd.f32 %v2586, %v2587
    %v2589 = vadd.f32 %v2493, %v2497
    %v2590 = vrot.slane %v2589, 4
    %v2591 = vadd.f32 %v2589, %v2590
    %v2592 = vrot.slane %v2591, 2
    %v2593 = vadd.f32 %v2591, %v2592
    %v2594 = vrot.slane %v2593, 1
    %v2595 = vadd.f32 %v2593, %v2594
    %v2596 = vadd.f32 %v2494, %v2498
    %v2597 = vrot.slane %v2596, 4
    %v2598 = vadd.f32 %v2596, %v2597
    %v2599 = vrot.slane %v2598, 2
    %v2600 = vadd.f32 %v2598, %v2599
    %v2601 = vrot.slane %v2600, 1
    %v2602 = vadd.f32 %v2600, %v2601
    %v2603 = vadd.f32 %v2499, %v2503
    %v2604 = vrot.slane %v2603, 4
    %v2605 = vadd.f32 %v2603, %v2604
    %v2606 = vrot.slane %v2605, 2
    %v2607 = vadd.f32 %v2605, %v2606
    %v2608 = vrot.slane %v2607, 1
    %v2609 = vadd.f32 %v2607, %v2608
    %v2610 = vadd.f32 %v2500, %v2504
    %v2611 = vrot.slane %v2610, 4
    %v2612 = vadd.f32 %v2610, %v2611
    %v2613 = vrot.slane %v2612, 2
    %v2614 = vadd.f32 %v2612, %v2613
    %v2615 = vrot.slane %v2614, 1
    %v2616 = vadd.f32 %v2614, %v2615
    %v2617 = vadd.f32 %v2501, %v2505
    %v2618 = vrot.slane %v2617, 4
    %v2619 = vadd.f32 %v2617, %v2618
    %v2620 = vrot.slane %v2619, 2
    %v2621 = vadd.f32 %v2619, %v2620
    %v2622 = vrot.slane %v2621, 1
    %v2623 = vadd.f32 %v2621, %v2622
    %v2624 = vadd.f32 %v2502, %v2506
    %v2625 = vrot.slane %v2624, 4
    %v2626 = vadd.f32 %v2624, %v2625
    %v2627 = vrot.slane %v2626, 2
    %v2628 = vadd.f32 %v2626, %v2627
    %v2629 = vrot.slane %v2628, 1
    %v2630 = vadd.f32 %v2628, %v2629
    %v2631 = vadd.f32 %v2507, %v2511
    %v2632 = vrot.slane %v2631, 4
    %v2633 = vadd.f32 %v2631, %v2632
    %v2634 = vrot.slane %v2633, 2
    %v2635 = vadd.f32 %v2633, %v2634
    %v2636 = vrot.slane %v2635, 1
    %v2637 = vadd.f32 %v2635, %v2636
    %v2638 = vadd.f32 %v2508, %v2512
    %v2639 = vrot.slane %v2638, 4
    %v2640 = vadd.f32 %v2638, %v2639
    %v2641 = vrot.slane %v2640, 2
    %v2642 = vadd.f32 %v2640, %v2641
    %v2643 = vrot.slane %v2642, 1
    %v2644 = vadd.f32 %v2642, %v2643
    %v2645 = vadd.f32 %v2509, %v2513
    %v2646 = vrot.slane %v2645, 4
    %v2647 = vadd.f32 %v2645, %v2646
    %v2648 = vrot.slane %v2647, 2
    %v2649 = vadd.f32 %v2647, %v2648
    %v2650 = vrot.slane %v2649, 1
    %v2651 = vadd.f32 %v2649, %v2650
    %v2652 = vadd.f32 %v2510, %v2514
    %v2653 = vrot.slane %v2652, 4
    %v2654 = vadd.f32 %v2652, %v2653
    %v2655 = vrot.slane %v2654, 2
    %v2656 = vadd.f32 %v2654, %v2655
    %v2657 = vrot.slane %v2656, 1
    %v2658 = vadd.f32 %v2656, %v2657
    %v2659 = vadd.f32 %v2515, %v2519
    %v2660 = vrot.slane %v2659, 4
    %v2661 = vadd.f32 %v2659, %v2660
    %v2662 = vrot.slane %v2661, 2
    %v2663 = vadd.f32 %v2661, %v2662
    %v2664 = vrot.slane %v2663, 1
    %v2665 = vadd.f32 %v2663, %v2664
    %v2666 = vadd.f32 %v2516, %v2520
    %v2667 = vrot.slane %v2666, 4
    %v2668 = vadd.f32 %v2666, %v2667
    %v2669 = vrot.slane %v2668, 2
    %v2670 = vadd.f32 %v2668, %v2669
    %v2671 = vrot.slane %v2670, 1
    %v2672 = vadd.f32 %v2670, %v2671
    %v2673 = vadd.f32 %v2517, %v2521
    %v2674 = vrot.slane %v2673, 4
    %v2675 = vadd.f32 %v2673, %v2674
    %v2676 = vrot.slane %v2675, 2
    %v2677 = vadd.f32 %v2675, %v2676
    %v2678 = vrot.slane %v2677, 1
    %v2679 = vadd.f32 %v2677, %v2678
    %v2680 = vadd.f32 %v2518, %v2522
    %v2681 = vrot.slane %v2680, 4
    %v2682 = vadd.f32 %v2680, %v2681
    %v2683 = vrot.slane %v2682, 2
    %v2684 = vadd.f32 %v2682, %v2683
    %v2685 = vrot.slane %v2684, 1
    %v2686 = vadd.f32 %v2684, %v2685
    %v2687 = vadd.f32 %v2523, %v2527
    %v2688 = vrot.slane %v2687, 4
    %v2689 = vadd.f32 %v2687, %v2688
    %v2690 = vrot.slane %v2689, 2
    %v2691 = vadd.f32 %v2689, %v2690
    %v2692 = vrot.slane %v2691, 1
    %v2693 = vadd.f32 %v2691, %v2692
    %v2694 = vadd.f32 %v2524, %v2528
    %v2695 = vrot.slane %v2694, 4
    %v2696 = vadd.f32 %v2694, %v2695
    %v2697 = vrot.slane %v2696, 2
    %v2698 = vadd.f32 %v2696, %v2697
    %v2699 = vrot.slane %v2698, 1
    %v2700 = vadd.f32 %v2698, %v2699
    %v2701 = vadd.f32 %v2525, %v2529
    %v2702 = vrot.slane %v2701, 4
    %v2703 = vadd.f32 %v2701, %v2702
    %v2704 = vrot.slane %v2703, 2
    %v2705 = vadd.f32 %v2703, %v2704
    %v2706 = vrot.slane %v2705, 1
    %v2707 = vadd.f32 %v2705, %v2706
    %v2708 = vadd.f32 %v2526, %v2530
    %v2709 = vrot.slane %v2708, 4
    %v2710 = vadd.f32 %v2708, %v2709
    %v2711 = vrot.slane %v2710, 2
    %v2712 = vadd.f32 %v2710, %v2711
    %v2713 = vrot.slane %v2712, 1
    %v2714 = vadd.f32 %v2712, %v2713
    %v2715 = vadd.f32 %v2531, %v2535
    %v2716 = vrot.slane %v2715, 4
    %v2717 = vadd.f32 %v2715, %v2716
    %v2718 = vrot.slane %v2717, 2
    %v2719 = vadd.f32 %v2717, %v2718
    %v2720 = vrot.slane %v2719, 1
    %v2721 = vadd.f32 %v2719, %v2720
    %v2722 = vadd.f32 %v2532, %v2536
    %v2723 = vrot.slane %v2722, 4
    %v2724 = vadd.f32 %v2722, %v2723
    %v2725 = vrot.slane %v2724, 2
    %v2726 = vadd.f32 %v2724, %v2725
    %v2727 = vrot.slane %v2726, 1
    %v2728 = vadd.f32 %v2726, %v2727
    %v2729 = vadd.f32 %v2533, %v2537
    %v2730 = vrot.slane %v2729, 4
    %v2731 = vadd.f32 %v2729, %v2730
    %v2732 = vrot.slane %v2731, 2
    %v2733 = vadd.f32 %v2731, %v2732
    %v2734 = vrot.slane %v2733, 1
    %v2735 = vadd.f32 %v2733, %v2734
    %v2736 = vadd.f32 %v2534, %v2538
    %v2737 = vrot.slane %v2736, 4
    %v2738 = vadd.f32 %v2736, %v2737
    %v2739 = vrot.slane %v2738, 2
    %v2740 = vadd.f32 %v2738, %v2739
    %v2741 = vrot.slane %v2740, 1
    %v2742 = vadd.f32 %v2740, %v2741
    %v2743 = vadd.f32 %v2539, %v2543
    %v2744 = vrot.slane %v2743, 4
    %v2745 = vadd.f32 %v2743, %v2744
    %v2746 = vrot.slane %v2745, 2
    %v2747 = vadd.f32 %v2745, %v2746
    %v2748 = vrot.slane %v2747, 1
    %v2749 = vadd.f32 %v2747, %v2748
    %v2750 = vadd.f32 %v2540, %v2544
    %v2751 = vrot.slane %v2750, 4
    %v2752 = vadd.f32 %v2750, %v2751
    %v2753 = vrot.slane %v2752, 2
    %v2754 = vadd.f32 %v2752, %v2753
    %v2755 = vrot.slane %v2754, 1
    %v2756 = vadd.f32 %v2754, %v2755
    %v2757 = vadd.f32 %v2541, %v2545
    %v2758 = vrot.slane %v2757, 4
    %v2759 = vadd.f32 %v2757, %v2758
    %v2760 = vrot.slane %v2759, 2
    %v2761 = vadd.f32 %v2759, %v2760
    %v2762 = vrot.slane %v2761, 1
    %v2763 = vadd.f32 %v2761, %v2762
    %v2764 = vadd.f32 %v2542, %v2546
    %v2765 = vrot.slane %v2764, 4
    %v2766 = vadd.f32 %v2764, %v2765
    %v2767 = vrot.slane %v2766, 2
    %v2768 = vadd.f32 %v2766, %v2767
    %v2769 = vrot.slane %v2768, 1
    %v2770 = vadd.f32 %v2768, %v2769
    %v2771 = vadd.f32 %v2553, 0.0
    %v2772 = vadd.f32 %v2560, 0.0
    %v2773 = vadd.f32 %v2567, 0.0
    %v2774 = vadd.f32 %v2574, 0.0
    %v2775 = vadd.f32 %v2581, 0.0
    %v2776 = vadd.f32 %v2588, 0.0
    %v2777 = vadd.f32 %v2595, 0.0
    %v2778 = vadd.f32 %v2602, 0.0
    %v2779 = vadd.f32 %v2609, 0.0
    %v2780 = vadd.f32 %v2616, 0.0
    %v2781 = vadd.f32 %v2623, 0.0
    %v2782 = vadd.f32 %v2630, 0.0
    %v2783 = vadd.f32 %v2637, 0.0
    %v2784 = vadd.f32 %v2644, 0.0
    %v2785 = vadd.f32 %v2651, 0.0
    %v2786 = vadd.f32 %v2658, 0.0
    %v2787 = vadd.f32 %v2665, 0.0
    %v2788 = vadd.f32 %v2672, 0.0
    %v2789 = vadd.f32 %v2679, 0.0
    %v2790 = vadd.f32 %v2686, 0.0
    %v2791 = vadd.f32 %v2693, 0.0
    %v2792 = vadd.f32 %v2700, 0.0
    %v2793 = vadd.f32 %v2707, 0.0
    %v2794 = vadd.f32 %v2714, 0.0
    %v2795 = vadd.f32 %v2721, 0.0
    %v2796 = vadd.f32 %v2728, 0.0
    %v2797 = vadd.f32 %v2735, 0.0
    %v2798 = vadd.f32 %v2742, 0.0
    %v2799 = vadd.f32 %v2749, 0.0
    %v2800 = vadd.f32 %v2756, 0.0
    %v2801 = vadd.f32 %v2763, 0.0
    %v2802 = vadd.f32 %v2770, 0.0
    %v2803 = vmax.f32 %v2771, %v2775
    %v2804 = vmax.f32 %v2803, %v2779
    %v2805 = vmax.f32 %v2804, %v2783
    %v2806 = vmax.f32 %v2772, %v2776
    %v2807 = vmax.f32 %v2806, %v2780
    %v2808 = vmax.f32 %v2807, %v2784
    %v2809 = vmax.f32 %v2773, %v2777
    %v2810 = vmax.f32 %v2809, %v2781
    %v2811 = vmax.f32 %v2810, %v2785
    %v2812 = vmax.f32 %v2774, %v2778
    %v2813 = vmax.f32 %v2812, %v2782
    %v2814 = vmax.f32 %v2813, %v2786
    %v2815 = vmax.f32 %v2787, %v2791
    %v2816 = vmax.f32 %v2815, %v2795
    %v2817 = vmax.f32 %v2816, %v2799
    %v2818 = vmax.f32 %v2788, %v2792
    %v2819 = vmax.f32 %v2818, %v2796
    %v2820 = vmax.f32 %v2819, %v2800
    %v2821 = vmax.f32 %v2789, %v2793
    %v2822 = vmax.f32 %v2821, %v2797
    %v2823 = vmax.f32 %v2822, %v2801
    %v2824 = vmax.f32 %v2790, %v2794
    %v2825 = vmax.f32 %v2824, %v2798
    %v2826 = vmax.f32 %v2825, %v2802
    %v2827 = vsub.f32 %v2771, %v2805
    %v2828 = vsub.f32 %v2772, %v2808
    %v2829 = vsub.f32 %v2773, %v2811
    %v2830 = vsub.f32 %v2774, %v2814
    %v2831 = vsub.f32 %v2775, %v2805
    %v2832 = vsub.f32 %v2776, %v2808
    %v2833 = vsub.f32 %v2777, %v2811
    %v2834 = vsub.f32 %v2778, %v2814
    %v2835 = vsub.f32 %v2779, %v2805
    %v2836 = vsub.f32 %v2780, %v2808
    %v2837 = vsub.f32 %v2781, %v2811
    %v2838 = vsub.f32 %v2782, %v2814
    %v2839 = vsub.f32 %v2783, %v2805
    %v2840 = vsub.f32 %v2784, %v2808
    %v2841 = vsub.f32 %v2785, %v2811
    %v2842 = vsub.f32 %v2786, %v2814
    %v2843 = vsub.f32 %v2787, %v2817
    %v2844 = vsub.f32 %v2788, %v2820
    %v2845 = vsub.f32 %v2789, %v2823
    %v2846 = vsub.f32 %v2790, %v2826
    %v2847 = vsub.f32 %v2791, %v2817
    %v2848 = vsub.f32 %v2792, %v2820
    %v2849 = vsub.f32 %v2793, %v2823
    %v2850 = vsub.f32 %v2794, %v2826
    %v2851 = vsub.f32 %v2795, %v2817
    %v2852 = vsub.f32 %v2796, %v2820
    %v2853 = vsub.f32 %v2797, %v2823
    %v2854 = vsub.f32 %v2798, %v2826
    %v2855 = vsub.f32 %v2799, %v2817
    %v2856 = vsub.f32 %v2800, %v2820
    %v2857 = vsub.f32 %v2801, %v2823
    %v2858 = vsub.f32 %v2802, %v2826
    %v2859 = vmul.f32 %v2827, 1.442695
    %v2860 = vpow.pop %v2859
    %v2861 = vmul.f32 %v2828, 1.442695
    %v2862 = vpow.pop %v2861
    %v2863 = vmul.f32 %v2829, 1.442695
    %v2864 = vpow.pop %v2863
    %v2865 = vmul.f32 %v2830, 1.442695
    %v2866 = vpow.pop %v2865
    %v2867 = vmul.f32 %v2831, 1.442695
    %v2868 = vpow.pop %v2867
    %v2869 = vmul.f32 %v2832, 1.442695
    %v2870 = vpow.pop %v2869
    %v2871 = vmul.f32 %v2833, 1.442695
    %v2872 = vpow.pop %v2871
    %v2873 = vmul.f32 %v2834, 1.442695
    %v2874 = vpow.pop %v2873
    %v2875 = vmul.f32 %v2835, 1.442695
    %v2876 = vpow.pop %v2875
    %v2877 = vmul.f32 %v2836, 1.442695
    %v2878 = vpow.pop %v2877
    %v2879 = vmul.f32 %v2837, 1.442695
    %v2880 = vpow.pop %v2879
    %v2881 = vmul.f32 %v2838, 1.442695
    %v2882 = vpow.pop %v2881
    %v2883 = vmul.f32 %v2839, 1.442695
    %v2884 = vpow.pop %v2883
    %v2885 = vmul.f32 %v2840, 1.442695
    %v2886 = vpow.pop %v2885
    %v2887 = vmul.f32 %v2841, 1.442695
    %v2888 = vpow.pop %v2887
    %v2889 = vmul.f32 %v2842, 1.442695
    %v2890 = vpow.pop %v2889
    %v2891 = vmul.f32 %v2843, 1.442695
    %v2892 = vpow.pop %v2891
    %v2893 = vmul.f32 %v2844, 1.442695
    %v2894 = vpow.pop %v2893
    %v2895 = vmul.f32 %v2845, 1.442695
    %v2896 = vpow.pop %v2895
    %v2897 = vmul.f32 %v2846, 1.442695
    %v2898 = vpow.pop %v2897
    %v2899 = vmul.f32 %v2847, 1.442695
    %v2900 = vpow.pop %v2899
    %v2901 = vmul.f32 %v2848, 1.442695
    %v2902 = vpow.pop %v2901
    %v2903 = vmul.f32 %v2849, 1.442695
    %v2904 = vpow.pop %v2903
    %v2905 = vmul.f32 %v2850, 1.442695
    %v2906 = vpow.pop %v2905
    %v2907 = vmul.f32 %v2851, 1.442695
    %v2908 = vpow.pop %v2907
    %v2909 = vmul.f32 %v2852, 1.442695
    %v2910 = vpow.pop %v2909
    %v2911 = vmul.f32 %v2853, 1.442695
    %v2912 = vpow.pop %v2911
    %v2913 = vmul.f32 %v2854, 1.442695
    %v2914 = vpow.pop %v2913
    %v2915 = vmul.f32 %v2855, 1.442695
    %v2916 = vpow.pop %v2915
    %v2917 = vmul.f32 %v2856, 1.442695
    %v2918 = vpow.pop %v2917
    %v2919 = vmul.f32 %v2857, 1.442695
    %v2920 = vpow.pop %v2919
    %v2921 = vmul.f32 %v2858, 1.442695
    %v2922 = vpow.pop %v2921
    %v2955 = vrot.slane %v2868, 7
    %v2956 = vsel %vm2301, %v2955, %v2860
    %v2957 = vrot.slane %v2876, 6
    %v2958 = vsel %vm2303, %v2957, %v2956
    %v2959 = vrot.slane %v2884, 5
    %v2960 = vsel %vm2305, %v2959, %v2958
    %v2961 = vrot.slane %v2870, 7
    %v2962 = vsel %vm2301, %v2961, %v2862
    %v2963 = vrot.slane %v2878, 6
    %v2964 = vsel %vm2303, %v2963, %v2962
    %v2965 = vrot.slane %v2886, 5
    %v2966 = vsel %vm2305, %v2965, %v2964
    %v2967 = vrot.slane %v2872, 7
    %v2968 = vsel %vm2301, %v2967, %v2864
    %v2969 = vrot.slane %v2880, 6
    %v2970 = vsel %vm2303, %v2969, %v2968
    %v2971 = vrot.slane %v2888, 5
    %v2972 = vsel %vm2305, %v2971, %v2970
    %v2973 = vrot.slane %v2874, 7
    %v2974 = vsel %vm2301, %v2973, %v2866
    %v2975 = vrot.slane %v2882, 6
    %v2976 = vsel %vm2303, %v2975, %v2974
    %v2977 = vrot.slane %v2890, 5
    %v2978 = vsel %vm2305, %v2977, %v2976
    %v2979 = vrot.slane %v2900, 7
    %v2980 = vsel %vm2301, %v2979, %v2892
    %v2981 = vrot.slane %v2908, 6
    %v2982 = vsel %vm2303, %v2981, %v2980
    %v2983 = vrot.slane %v2916, 5
    %v2984 = vsel %vm2305, %v2983, %v2982
    %v2985 = vrot.slane %v2902, 7
    %v2986 = vsel %vm2301, %v2985, %v2894
    %v2987 = vrot.slane %v2910, 6
    %v2988 = vsel %vm2303, %v2987, %v2986
    %v2989 = vrot.slane %v2918, 5
    %v2990 = vsel %vm2305, %v2989, %v2988
    %v2991 = vrot.slane %v2904, 7
    %v2992 = vsel %vm2301, %v2991, %v2896
    %v2993 = vrot.slane %v2912, 6
    %v2994 = vsel %vm2303, %v2993, %v2992
    %v2995 = vrot.slane %v2920, 5
    %v2996 = vsel %vm2305, %v2995, %v2994
    %v2997 = vrot.slane %v2906, 7
    %v2998 = vsel %vm2301, %v2997, %v2898
    %v2999 = vrot.slane %v2914, 6
    %v3000 = vsel %vm2303, %v2999, %v2998
    %v3001 = vrot.slane %v2922, 5
    %v3002 = vsel %vm2305, %v3001, %v3000
    %v3011 = vsel %vm2039, %v2960, 0.0
    %v3012 = vrot.slane %v3011, 4
    %v3013 = vadd.f32 %v3011, %v3012
    %v3014 = vrot.slane %v3013, 2
    %v3015 = vadd.f32 %v3013, %v3014
    %v3016 = vrot.slane %v3015, 1
    %v3017 = vadd.f32 %v3015, %v3016
    %v3018 = vsel %vm2039, %v2966, 0.0
    %v3019 = vrot.slane %v3018, 4
    %v3020 = vadd.f32 %v3018, %v3019
    %v3021 = vrot.slane %v3020, 2
    %v3022 = vadd.f32 %v3020, %v3021
    %v3023 = vrot.slane %v3022, 1
    %v3024 = vadd.f32 %v3022, %v3023
    %v3025 = vsel %vm2039, %v2972, 0.0
    %v3026 = vrot.slane %v3025, 4
    %v3027 = vadd.f32 %v3025, %v3026
    %v3028 = vrot.slane %v3027, 2
    %v3029 = vadd.f32 %v3027, %v3028
    %v3030 = vrot.slane %v3029, 1
    %v3031 = vadd.f32 %v3029, %v3030
    %v3032 = vsel %vm2039, %v2978, 0.0
    %v3033 = vrot.slane %v3032, 4
    %v3034 = vadd.f32 %v3032, %v3033
    %v3035 = vrot.slane %v3034, 2
    %v3036 = vadd.f32 %v3034, %v3035
    %v3037 = vrot.slane %v3036, 1
    %v3038 = vadd.f32 %v3036, %v3037
    %v3039 = vsel %vm2039, %v2984, 0.0
    %v3040 = vrot.slane %v3039, 4
    %v3041 = vadd.f32 %v3039, %v3040
    %v3042 = vrot.slane %v3041, 2
    %v3043 = vadd.f32 %v3041, %v3042
    %v3044 = vrot.slane %v3043, 1
    %v3045 = vadd.f32 %v3043, %v3044
    %v3046 = vsel %vm2039, %v2990, 0.0
    %v3047 = vrot.slane %v3046, 4
    %v3048 = vadd.f32 %v3046, %v3047
    %v3049 = vrot.slane %v3048, 2
    %v3050 = vadd.f32 %v3048, %v3049
    %v3051 = vrot.slane %v3050, 1
    %v3052 = vadd.f32 %v3050, %v3051
    %v3053 = vsel %vm2039, %v2996, 0.0
    %v3054 = vrot.slane %v3053, 4
    %v3055 = vadd.f32 %v3053, %v3054
    %v3056 = vrot.slane %v3055, 2
    %v3057 = vadd.f32 %v3055, %v3056
    %v3058 = vrot.slane %v3057, 1
    %v3059 = vadd.f32 %v3057, %v3058
    %v3060 = vsel %vm2039, %v3002, 0.0
    %v3061 = vrot.slane %v3060, 4
    %v3062 = vadd.f32 %v3060, %v3061
    %v3063 = vrot.slane %v3062, 2
    %v3064 = vadd.f32 %v3062, %v3063
    %v3065 = vrot.slane %v3064, 1
    %v3066 = vadd.f32 %v3064, %v3065
    %v3067 = vlaneseq
    %v3068 = vshrl.u32 %v3067, 7
    %v3069 = vsub.s32 0, %v3068
    %v3070 = vrot.slane %v3017, %v3069
    %v3071 = vlaneseq
    %v3072 = vshrl.u32 %v3071, 7
    %v3073 = vsub.s32 0, %v3072
    %v3074 = vrot.slane %v3024, %v3073
    %v3075 = vlaneseq
    %v3076 = vshrl.u32 %v3075, 7
    %v3077 = vsub.s32 0, %v3076
    %v3078 = vrot.slane %v3031, %v3077
    %v3079 = vlaneseq
    %v3080 = vshrl.u32 %v3079, 7
    %v3081 = vsub.s32 0, %v3080
    %v3082 = vrot.slane %v3038, %v3081
    %v3083 = vlaneseq
    %v3084 = vshrl.u32 %v3083, 7
    %v3085 = vsub.s32 0, %v3084
    %v3086 = vrot.slane %v3045, %v3085
    %v3087 = vlaneseq
    %v3088 = vshrl.u32 %v3087, 7
    %v3089 = vsub.s32 0, %v3088
    %v3090 = vrot.slane %v3052, %v3089
    %v3091 = vlaneseq
    %v3092 = vshrl.u32 %v3091, 7
    %v3093 = vsub.s32 0, %v3092
    %v3094 = vrot.slane %v3059, %v3093
    %v3095 = vlaneseq
    %v3096 = vshrl.u32 %v3095, 7
    %v3097 = vsub.s32 0, %v3096
    %v3098 = vrot.slane %v3066, %v3097
    %v3099 = vrcp.pop %v3070
    %v3100 = vmul.f32 %v2860, %v3099
    %v3101 = vrcp.pop %v3074
    %v3102 = vmul.f32 %v2862, %v3101
    %v3103 = vrcp.pop %v3078
    %v3104 = vmul.f32 %v2864, %v3103
    %v3105 = vrcp.pop %v3082
    %v3106 = vmul.f32 %v2866, %v3105
    %v3107 = vmul.f32 %v2868, %v3099
    %v3108 = vmul.f32 %v2870, %v3101
    %v3109 = vmul.f32 %v2872, %v3103
    %v3110 = vmul.f32 %v2874, %v3105
    %v3111 = vmul.f32 %v2876, %v3099
    %v3112 = vmul.f32 %v2878, %v3101
    %v3113 = vmul.f32 %v2880, %v3103
    %v3114 = vmul.f32 %v2882, %v3105
    %v3115 = vmul.f32 %v2884, %v3099
    %v3116 = vmul.f32 %v2886, %v3101
    %v3117 = vmul.f32 %v2888, %v3103
    %v3118 = vmul.f32 %v2890, %v3105
    %v3119 = vrcp.pop %v3086
    %v3120 = vmul.f32 %v2892, %v3119
    %v3121 = vrcp.pop %v3090
    %v3122 = vmul.f32 %v2894, %v3121
    %v3123 = vrcp.pop %v3094
    %v3124 = vmul.f32 %v2896, %v3123
    %v3125 = vrcp.pop %v3098
    %v3126 = vmul.f32 %v2898, %v3125
    %v3127 = vmul.f32 %v2900, %v3119
    %v3128 = vmul.f32 %v2902, %v3121
    %v3129 = vmul.f32 %v2904, %v3123
    %v3130 = vmul.f32 %v2906, %v3125
    %v3131 = vmul.f32 %v2908, %v3119
    %v3132 = vmul.f32 %v2910, %v3121
    %v3133 = vmul.f32 %v2912, %v3123
    %v3134 = vmul.f32 %v2914, %v3125
    %v3135 = vmul.f32 %v2916, %v3119
    %v3136 = vmul.f32 %v2918, %v3121
    %v3137 = vmul.f32 %v2920, %v3123
    %v3138 = vmul.f32 %v2922, %v3125
    %v3139 = vlaneseq
    %v3140 = vshrl.u32 %v3139, 7
    %v3141 = vsub.s32 0, %v3140
    %v3142 = vrot.slane %v3100, %v3141
    %v3143 = vlaneseq
    %v3144 = vshrl.u32 %v3143, 7
    %v3145 = vsub.s32 0, %v3144
    %v3146 = vrot.slane %v3102, %v3145
    %v3147 = vlaneseq
    %v3148 = vshrl.u32 %v3147, 7
    %v3149 = vsub.s32 0, %v3148
    %v3150 = vrot.slane %v3104, %v3149
    %v3151 = vlaneseq
    %v3152 = vshrl.u32 %v3151, 7
    %v3153 = vsub.s32 0, %v3152
    %v3154 = vrot.slane %v3106, %v3153
    %v3155 = vlaneseq
    %v3156 = vshrl.u32 %v3155, 7
    %v3157 = vsub.s32 0, %v3156
    %v3158 = vrot.slane %v3107, %v3157
    %v3159 = vlaneseq
    %v3160 = vshrl.u32 %v3159, 7
    %v3161 = vsub.s32 0, %v3160
    %v3162 = vrot.slane %v3108, %v3161
    %v3163 = vlaneseq
    %v3164 = vshrl.u32 %v3163, 7
    %v3165 = vsub.s32 0, %v3164
    %v3166 = vrot.slane %v3109, %v3165
    %v3167 = vlaneseq
    %v3168 = vshrl.u32 %v3167, 7
    %v3169 = vsub.s32 0, %v3168
    %v3170 = vrot.slane %v3110, %v3169
    %v3171 = vlaneseq
    %v3172 = vshrl.u32 %v3171, 7
    %v3173 = vsub.s32 0, %v3172
    %v3174 = vrot.slane %v3111, %v3173
    %v3175 = vlaneseq
    %v3176 = vshrl.u32 %v3175, 7
    %v3177 = vsub.s32 0, %v3176
    %v3178 = vrot.slane %v3112, %v3177
    %v3179 = vlaneseq
    %v3180 = vshrl.u32 %v3179, 7
    %v3181 = vsub.s32 0, %v3180
    %v3182 = vrot.slane %v3113, %v3181
    %v3183 = vlaneseq
    %v3184 = vshrl.u32 %v3183, 7
    %v3185 = vsub.s32 0, %v3184
    %v3186 = vrot.slane %v3114, %v3185
    %v3187 = vlaneseq
    %v3188 = vshrl.u32 %v3187, 7
    %v3189 = vsub.s32 0, %v3188
    %v3190 = vrot.slane %v3115, %v3189
    %v3191 = vlaneseq
    %v3192 = vshrl.u32 %v3191, 7
    %v3193 = vsub.s32 0, %v3192
    %v3194 = vrot.slane %v3116, %v3193
    %v3195 = vlaneseq
    %v3196 = vshrl.u32 %v3195, 7
    %v3197 = vsub.s32 0, %v3196
    %v3198 = vrot.slane %v3117, %v3197
    %v3199 = vlaneseq
    %v3200 = vshrl.u32 %v3199, 7
    %v3201 = vsub.s32 0, %v3200
    %v3202 = vrot.slane %v3118, %v3201
    %v3203 = vlaneseq
    %v3204 = vshrl.u32 %v3203, 7
    %v3205 = vsub.s32 0, %v3204
    %v3206 = vrot.slane %v3120, %v3205
    %v3207 = vlaneseq
    %v3208 = vshrl.u32 %v3207, 7
    %v3209 = vsub.s32 0, %v3208
    %v3210 = vrot.slane %v3122, %v3209
    %v3211 = vlaneseq
    %v3212 = vshrl.u32 %v3211, 7
    %v3213 = vsub.s32 0, %v3212
    %v3214 = vrot.slane %v3124, %v3213
    %v3215 = vlaneseq
    %v3216 = vshrl.u32 %v3215, 7
    %v3217 = vsub.s32 0, %v3216
    %v3218 = vrot.slane %v3126, %v3217
    %v3219 = vlaneseq
    %v3220 = vshrl.u32 %v3219, 7
    %v3221 = vsub.s32 0, %v3220
    %v3222 = vrot.slane %v3127, %v3221
    %v3223 = vlaneseq
    %v3224 = vshrl.u32 %v3223, 7
    %v3225 = vsub.s32 0, %v3224
    %v3226 = vrot.slane %v3128, %v3225
    %v3227 = vlaneseq
    %v3228 = vshrl.u32 %v3227, 7
    %v3229 = vsub.s32 0, %v3228
    %v3230 = vrot.slane %v3129, %v3229
    %v3231 = vlaneseq
    %v3232 = vshrl.u32 %v3231, 7
    %v3233 = vsub.s32 0, %v3232
    %v3234 = vrot.slane %v3130, %v3233
    %v3235 = vlaneseq
    %v3236 = vshrl.u32 %v3235, 7
    %v3237 = vsub.s32 0, %v3236
    %v3238 = vrot.slane %v3131, %v3237
    %v3239 = vlaneseq
    %v3240 = vshrl.u32 %v3239, 7
    %v3241 = vsub.s32 0, %v3240
    %v3242 = vrot.slane %v3132, %v3241
    %v3243 = vlaneseq
    %v3244 = vshrl.u32 %v3243, 7
    %v3245 = vsub.s32 0, %v3244
    %v3246 = vrot.slane %v3133, %v3245
    %v3247 = vlaneseq
    %v3248 = vshrl.u32 %v3247, 7
    %v3249 = vsub.s32 0, %v3248
    %v3250 = vrot.slane %v3134, %v3249
    %v3251 = vlaneseq
    %v3252 = vshrl.u32 %v3251, 7
    %v3253 = vsub.s32 0, %v3252
    %v3254 = vrot.slane %v3135, %v3253
    %v3255 = vlaneseq
    %v3256 = vshrl.u32 %v3255, 7
    %v3257 = vsub.s32 0, %v3256
    %v3258 = vrot.slane %v3136, %v3257
    %v3259 = vlaneseq
    %v3260 = vshrl.u32 %v3259, 7
    %v3261 = vsub.s32 0, %v3260
    %v3262 = vrot.slane %v3137, %v3261
    %v3263 = vlaneseq
    %v3264 = vshrl.u32 %v3263, 7
    %v3265 = vsub.s32 0, %v3264
    %v3266 = vrot.slane %v3138, %v3265
    %v3267 = vmul.f32 %v3142, %v1975
    %v3268 = vmul.f32 %v3146, %v1976
    %v3269 = vmul.f32 %v3150, %v1977
    %v3270 = vmul.f32 %v3154, %v1978
    %v3271 = vmul.f32 %v3142, %v1979
    %v3272 = vmul.f32 %v3146, %v1980
    %v3273 = vmul.f32 %v3150, %v1981
    %v3274 = vmul.f32 %v3154, %v1982
    %v3275 = vmul.f32 %v3158, %v1983
    %v3276 = vmul.f32 %v3162, %v1984
    %v3277 = vmul.f32 %v3166, %v1985
    %v3278 = vmul.f32 %v3170, %v1986
    %v3279 = vmul.f32 %v3158, %v1987
    %v3280 = vmul.f32 %v3162, %v1988
    %v3281 = vmul.f32 %v3166, %v1989
    %v3282 = vmul.f32 %v3170, %v1990
    %v3283 = vmul.f32 %v3174, %v1991
    %v3284 = vmul.f32 %v3178, %v1992
    %v3285 = vmul.f32 %v3182, %v1993
    %v3286 = vmul.f32 %v3186, %v1994
    %v3287 = vmul.f32 %v3174, %v1995
    %v3288 = vmul.f32 %v3178, %v1996
    %v3289 = vmul.f32 %v3182, %v1997
    %v3290 = vmul.f32 %v3186, %v1998
    %v3291 = vmul.f32 %v3190, %v1999
    %v3292 = vmul.f32 %v3194, %v2000
    %v3293 = vmul.f32 %v3198, %v2001
    %v3294 = vmul.f32 %v3202, %v2002
    %v3295 = vmul.f32 %v3190, %v2003
    %v3296 = vmul.f32 %v3194, %v2004
    %v3297 = vmul.f32 %v3198, %v2005
    %v3298 = vmul.f32 %v3202, %v2006
    %v3299 = vmul.f32 %v3206, %v2007
    %v3300 = vmul.f32 %v3210, %v2008
    %v3301 = vmul.f32 %v3214, %v2009
    %v3302 = vmul.f32 %v3218, %v2010
    %v3303 = vmul.f32 %v3206, %v2011
    %v3304 = vmul.f32 %v3210, %v2012
    %v3305 = vmul.f32 %v3214, %v2013
    %v3306 = vmul.f32 %v3218, %v2014
    %v3307 = vmul.f32 %v3222, %v2015
    %v3308 = vmul.f32 %v3226, %v2016
    %v3309 = vmul.f32 %v3230, %v2017
    %v3310 = vmul.f32 %v3234, %v2018
    %v3311 = vmul.f32 %v3222, %v2019
    %v3312 = vmul.f32 %v3226, %v2020
    %v3313 = vmul.f32 %v3230, %v2021
    %v3314 = vmul.f32 %v3234, %v2022
    %v3315 = vmul.f32 %v3238, %v2023
    %v3316 = vmul.f32 %v3242, %v2024
    %v3317 = vmul.f32 %v3246, %v2025
    %v3318 = vmul.f32 %v3250, %v2026
    %v3319 = vmul.f32 %v3238, %v2027
    %v3320 = vmul.f32 %v3242, %v2028
    %v3321 = vmul.f32 %v3246, %v2029
    %v3322 = vmul.f32 %v3250, %v2030
    %v3323 = vmul.f32 %v3254, %v2031
    %v3324 = vmul.f32 %v3258, %v2032
    %v3325 = vmul.f32 %v3262, %v2033
    %v3326 = vmul.f32 %v3266, %v2034
    %v3327 = vmul.f32 %v3254, %v2035
    %v3328 = vmul.f32 %v3258, %v2036
    %v3329 = vmul.f32 %v3262, %v2037
    %v3330 = vmul.f32 %v3266, %v2038
    %v3331 = vadd.f32 %v3267, %v3268
    %v3332 = vadd.f32 %v3331, %v3269
    %v3333 = vadd.f32 %v3332, %v3270
    %3334 = vadd.xlane.f32.xlu0 %v3333
    %v3335 = vpop.xlane.xlu0 %3334
    %v3336 = vadd.f32 %v3271, %v3272
    %v3337 = vadd.f32 %v3336, %v3273
    %v3338 = vadd.f32 %v3337, %v3274
    %3339 = vadd.xlane.f32.xlu0 %v3338
    %v3340 = vpop.xlane.xlu0 %3339
    %v3341 = vadd.f32 %v3275, %v3276
    %v3342 = vadd.f32 %v3341, %v3277
    %v3343 = vadd.f32 %v3342, %v3278
    %3344 = vadd.xlane.f32.xlu0 %v3343
    %v3345 = vpop.xlane.xlu0 %3344
    %v3346 = vadd.f32 %v3279, %v3280
    %v3347 = vadd.f32 %v3346, %v3281
    %v3348 = vadd.f32 %v3347, %v3282
    %3349 = vadd.xlane.f32.xlu0 %v3348
    %v3350 = vpop.xlane.xlu0 %3349
    %v3351 = vadd.f32 %v3283, %v3284
    %v3352 = vadd.f32 %v3351, %v3285
    %v3353 = vadd.f32 %v3352, %v3286
    %3354 = vadd.xlane.f32.xlu0 %v3353
    %v3355 = vpop.xlane.xlu0 %3354
    %v3356 = vadd.f32 %v3287, %v3288
    %v3357 = vadd.f32 %v3356, %v3289
    %v3358 = vadd.f32 %v3357, %v3290
    %3359 = vadd.xlane.f32.xlu0 %v3358
    %v3360 = vpop.xlane.xlu0 %3359
    %v3361 = vadd.f32 %v3291, %v3292
    %v3362 = vadd.f32 %v3361, %v3293
    %v3363 = vadd.f32 %v3362, %v3294
    %3364 = vadd.xlane.f32.xlu0 %v3363
    %v3365 = vpop.xlane.xlu0 %3364
    %v3366 = vadd.f32 %v3295, %v3296
    %v3367 = vadd.f32 %v3366, %v3297
    %v3368 = vadd.f32 %v3367, %v3298
    %3369 = vadd.xlane.f32.xlu0 %v3368
    %v3370 = vpop.xlane.xlu0 %3369
    %v3371 = vadd.f32 %v3299, %v3300
    %v3372 = vadd.f32 %v3371, %v3301
    %v3373 = vadd.f32 %v3372, %v3302
    %3374 = vadd.xlane.f32.xlu0 %v3373
    %v3375 = vpop.xlane.xlu0 %3374
    %v3376 = vadd.f32 %v3303, %v3304
    %v3377 = vadd.f32 %v3376, %v3305
    %v3378 = vadd.f32 %v3377, %v3306
    %3379 = vadd.xlane.f32.xlu0 %v3378
    %v3380 = vpop.xlane.xlu0 %3379
    %v3381 = vadd.f32 %v3307, %v3308
    %v3382 = vadd.f32 %v3381, %v3309
    %v3383 = vadd.f32 %v3382, %v3310
    %3384 = vadd.xlane.f32.xlu0 %v3383
    %v3385 = vpop.xlane.xlu0 %3384
    %v3386 = vadd.f32 %v3311, %v3312
    %v3387 = vadd.f32 %v3386, %v3313
    %v3388 = vadd.f32 %v3387, %v3314
    %3389 = vadd.xlane.f32.xlu0 %v3388
    %v3390 = vpop.xlane.xlu0 %3389
    %v3391 = vadd.f32 %v3315, %v3316
    %v3392 = vadd.f32 %v3391, %v3317
    %v3393 = vadd.f32 %v3392, %v3318
    %3394 = vadd.xlane.f32.xlu0 %v3393
    %v3395 = vpop.xlane.xlu0 %3394
    %v3396 = vadd.f32 %v3319, %v3320
    %v3397 = vadd.f32 %v3396, %v3321
    %v3398 = vadd.f32 %v3397, %v3322
    %3399 = vadd.xlane.f32.xlu0 %v3398
    %v3400 = vpop.xlane.xlu0 %3399
    %v3401 = vadd.f32 %v3323, %v3324
    %v3402 = vadd.f32 %v3401, %v3325
    %v3403 = vadd.f32 %v3402, %v3326
    %3404 = vadd.xlane.f32.xlu0 %v3403
    %v3405 = vpop.xlane.xlu0 %3404
    %v3406 = vadd.f32 %v3327, %v3328
    %v3407 = vadd.f32 %v3406, %v3329
    %v3408 = vadd.f32 %v3407, %v3330
    %3409 = vadd.xlane.f32.xlu0 %v3408
    %v3410 = vpop.xlane.xlu0 %3409
    %v3411 = vmul.f32 %v3335, %v3335
    %v3412 = vmul.f32 %v3340, %v3340
    %v3413 = vmul.f32 %v3345, %v3345
    %v3414 = vmul.f32 %v3350, %v3350
    %v3415 = vmul.f32 %v3355, %v3355
    %v3416 = vmul.f32 %v3360, %v3360
    %v3417 = vmul.f32 %v3365, %v3365
    %v3418 = vmul.f32 %v3370, %v3370
    %v3419 = vmul.f32 %v3375, %v3375
    %v3420 = vmul.f32 %v3380, %v3380
    %v3421 = vmul.f32 %v3385, %v3385
    %v3422 = vmul.f32 %v3390, %v3390
    %v3423 = vmul.f32 %v3395, %v3395
    %v3424 = vmul.f32 %v3400, %v3400
    %v3425 = vmul.f32 %v3405, %v3405
    %v3426 = vmul.f32 %v3410, %v3410
    %v3443 = vlaneseq
    %v3444 = vshrl.u32 %v3443, 7
    %v3445 = vsub.s32 %v2226, %v3444
    %v3446 = vrot.slane %v3411, %v3445
    %v3447 = vlaneseq
    %v3448 = vshrl.u32 %v3447, 7
    %v3449 = vsub.s32 %v2231, %v3448
    %v3450 = vrot.slane %v3412, %v3449
    %v3451 = vsel %vm2236, %v3450, %v3446
    %v3452 = vlaneseq
    %v3453 = vshrl.u32 %v3452, 7
    %v3454 = vsub.s32 %v2226, %v3453
    %v3455 = vrot.slane %v3413, %v3454
    %v3456 = vlaneseq
    %v3457 = vshrl.u32 %v3456, 7
    %v3458 = vsub.s32 %v2231, %v3457
    %v3459 = vrot.slane %v3414, %v3458
    %v3460 = vsel %vm2236, %v3459, %v3455
    %v3461 = vlaneseq
    %v3462 = vshrl.u32 %v3461, 7
    %v3463 = vsub.s32 %v2226, %v3462
    %v3464 = vrot.slane %v3415, %v3463
    %v3465 = vlaneseq
    %v3466 = vshrl.u32 %v3465, 7
    %v3467 = vsub.s32 %v2231, %v3466
    %v3468 = vrot.slane %v3416, %v3467
    %v3469 = vsel %vm2236, %v3468, %v3464
    %v3470 = vlaneseq
    %v3471 = vshrl.u32 %v3470, 7
    %v3472 = vsub.s32 %v2226, %v3471
    %v3473 = vrot.slane %v3417, %v3472
    %v3474 = vlaneseq
    %v3475 = vshrl.u32 %v3474, 7
    %v3476 = vsub.s32 %v2231, %v3475
    %v3477 = vrot.slane %v3418, %v3476
    %v3478 = vsel %vm2236, %v3477, %v3473
    %v3479 = vlaneseq
    %v3480 = vshrl.u32 %v3479, 7
    %v3481 = vsub.s32 %v2226, %v3480
    %v3482 = vrot.slane %v3419, %v3481
    %v3483 = vlaneseq
    %v3484 = vshrl.u32 %v3483, 7
    %v3485 = vsub.s32 %v2231, %v3484
    %v3486 = vrot.slane %v3420, %v3485
    %v3487 = vsel %vm2236, %v3486, %v3482
    %v3488 = vlaneseq
    %v3489 = vshrl.u32 %v3488, 7
    %v3490 = vsub.s32 %v2226, %v3489
    %v3491 = vrot.slane %v3421, %v3490
    %v3492 = vlaneseq
    %v3493 = vshrl.u32 %v3492, 7
    %v3494 = vsub.s32 %v2231, %v3493
    %v3495 = vrot.slane %v3422, %v3494
    %v3496 = vsel %vm2236, %v3495, %v3491
    %v3497 = vlaneseq
    %v3498 = vshrl.u32 %v3497, 7
    %v3499 = vsub.s32 %v2226, %v3498
    %v3500 = vrot.slane %v3423, %v3499
    %v3501 = vlaneseq
    %v3502 = vshrl.u32 %v3501, 7
    %v3503 = vsub.s32 %v2231, %v3502
    %v3504 = vrot.slane %v3424, %v3503
    %v3505 = vsel %vm2236, %v3504, %v3500
    %v3506 = vlaneseq
    %v3507 = vshrl.u32 %v3506, 7
    %v3508 = vsub.s32 %v2226, %v3507
    %v3509 = vrot.slane %v3425, %v3508
    %v3510 = vlaneseq
    %v3511 = vshrl.u32 %v3510, 7
    %v3512 = vsub.s32 %v2231, %v3511
    %v3513 = vrot.slane %v3426, %v3512
    %v3514 = vsel %vm2236, %v3513, %v3509
    %v3515 = vsel %vm2301, %v3460, %v3451
    %v3516 = vsel %vm2303, %v3469, %v3515
    %v3517 = vsel %vm2305, %v3478, %v3516
    %v3518 = vsel %vm2301, %v3496, %v3487
    %v3519 = vsel %vm2303, %v3505, %v3518
    %v3520 = vsel %vm2305, %v3514, %v3519
    %v3523 = vsel %vm2312, %v3517, 0.0
    %3524 = vadd.xlane.f32.xlu0 %v3523
    %v3525 = vpop.xlane.xlu0 %3524
    %v3526 = vsel %vm2312, %v3520, 0.0
    %3527 = vadd.xlane.f32.xlu0 %v3526
    %v3528 = vpop.xlane.xlu0 %3527
    %v3529 = vadd.f32 %v3525, 1.0
    %v3530 = vadd.f32 %v3528, 1.0
    %v3531 = vrcp.pop %v3529
    %v3532 = vmul.f32 %v3525, %v3531
    %v3533 = vrcp.pop %v3530
    %v3534 = vmul.f32 %v3528, %v3533
    %v3535 = vrsqrt.pop %v3525
    %v3536 = vmul.f32 %v3525, %v3535
    %vm3537 = vcmp.eq.f32.partialorder %v3525, inf
    %v3538 = vsel %vm3537, %v3525, %v3536
    %vm3539 = vcmp.eq.f32.partialorder %v3525, 0.0
    %v3540 = vand.u32 %v3525, 2147483648
    %v3541 = vsel %vm3539, %v3540, %v3538
    %v3542 = vrsqrt.pop %v3528
    %v3543 = vmul.f32 %v3528, %v3542
    %vm3544 = vcmp.eq.f32.partialorder %v3528, inf
    %v3545 = vsel %vm3544, %v3528, %v3543
    %vm3546 = vcmp.eq.f32.partialorder %v3528, 0.0
    %v3547 = vand.u32 %v3528, 2147483648
    %v3548 = vsel %vm3546, %v3547, %v3545
    %v3549 = vadd.f32 %v3541, 1e-08
    %v3550 = vadd.f32 %v3548, 1e-08
    %v3551 = vrcp.pop %v3549
    %v3552 = vmul.f32 %v3532, %v3551
    %v3553 = vrcp.pop %v3550
    %v3554 = vmul.f32 %v3534, %v3553
    %v3557 = vlaneseq
    %v3558 = vshrl.u32 %v3557, 7
    %v3559 = vsub.s32 0, %v3558
    %v3560 = vrot.slane %v3552, %v3559
    %v3561 = vlaneseq
    %v3562 = vshrl.u32 %v3561, 7
    %v3563 = vsub.s32 1, %v3562
    %v3564 = vrot.slane %v3552, %v3563
    %v3565 = vlaneseq
    %v3566 = vshrl.u32 %v3565, 7
    %v3567 = vsub.s32 2, %v3566
    %v3568 = vrot.slane %v3552, %v3567
    %v3569 = vlaneseq
    %v3570 = vshrl.u32 %v3569, 7
    %v3571 = vsub.s32 3, %v3570
    %v3572 = vrot.slane %v3552, %v3571
    %v3573 = vlaneseq
    %v3574 = vshrl.u32 %v3573, 7
    %v3575 = vsub.s32 0, %v3574
    %v3576 = vrot.slane %v3554, %v3575
    %v3577 = vlaneseq
    %v3578 = vshrl.u32 %v3577, 7
    %v3579 = vsub.s32 1, %v3578
    %v3580 = vrot.slane %v3554, %v3579
    %v3581 = vlaneseq
    %v3582 = vshrl.u32 %v3581, 7
    %v3583 = vsub.s32 2, %v3582
    %v3584 = vrot.slane %v3554, %v3583
    %v3585 = vlaneseq
    %v3586 = vshrl.u32 %v3585, 7
    %v3587 = vsub.s32 3, %v3586
    %v3588 = vrot.slane %v3554, %v3587
    %v3597 = vmul.f32 %v3335, %v3560
    %v3598 = vmul.f32 %v3340, %v3560
    %v3599 = vmul.f32 %v3345, %v3564
    %v3600 = vmul.f32 %v3350, %v3564
    %v3601 = vmul.f32 %v3355, %v3568
    %v3602 = vmul.f32 %v3360, %v3568
    %v3603 = vmul.f32 %v3365, %v3572
    %v3604 = vmul.f32 %v3370, %v3572
    %v3605 = vmul.f32 %v3375, %v3576
    %v3606 = vmul.f32 %v3380, %v3576
    %v3607 = vmul.f32 %v3385, %v3580
    %v3608 = vmul.f32 %v3390, %v3580
    %v3609 = vmul.f32 %v3395, %v3584
    %v3610 = vmul.f32 %v3400, %v3584
    %v3611 = vmul.f32 %v3405, %v3588
    %v3612 = vmul.f32 %v3410, %v3588
    %3614 = vset.pattern.permute.xlu0 0
    %3615 = vperm.xlu0 %3614, %v3597
    %v3616 = vpop.permute.xlu0 %3615
    %3619 = vset.pattern.permute.xlu0 0
    %3620 = vperm.xlu0 %3619, %v3598
    %v3621 = vpop.permute.xlu0 %3620
    %3624 = vset.pattern.permute.xlu0 0
    %3625 = vperm.xlu0 %3624, %v3599
    %v3626 = vpop.permute.xlu0 %3625
    %3629 = vset.pattern.permute.xlu0 0
    %3630 = vperm.xlu0 %3629, %v3600
    %v3631 = vpop.permute.xlu0 %3630
    %3634 = vset.pattern.permute.xlu0 0
    %3635 = vperm.xlu0 %3634, %v3601
    %v3636 = vpop.permute.xlu0 %3635
    %3639 = vset.pattern.permute.xlu0 0
    %3640 = vperm.xlu0 %3639, %v3602
    %v3641 = vpop.permute.xlu0 %3640
    %3644 = vset.pattern.permute.xlu0 0
    %3645 = vperm.xlu0 %3644, %v3603
    %v3646 = vpop.permute.xlu0 %3645
    %3649 = vset.pattern.permute.xlu0 0
    %3650 = vperm.xlu0 %3649, %v3604
    %v3651 = vpop.permute.xlu0 %3650
    %3654 = vset.pattern.permute.xlu0 0
    %3655 = vperm.xlu0 %3654, %v3605
    %v3656 = vpop.permute.xlu0 %3655
    %3659 = vset.pattern.permute.xlu0 0
    %3660 = vperm.xlu0 %3659, %v3606
    %v3661 = vpop.permute.xlu0 %3660
    %3664 = vset.pattern.permute.xlu0 0
    %3665 = vperm.xlu0 %3664, %v3607
    %v3666 = vpop.permute.xlu0 %3665
    %3669 = vset.pattern.permute.xlu0 0
    %3670 = vperm.xlu0 %3669, %v3608
    %v3671 = vpop.permute.xlu0 %3670
    %3674 = vset.pattern.permute.xlu0 0
    %3675 = vperm.xlu0 %3674, %v3609
    %v3676 = vpop.permute.xlu0 %3675
    %3679 = vset.pattern.permute.xlu0 0
    %3680 = vperm.xlu0 %3679, %v3610
    %v3681 = vpop.permute.xlu0 %3680
    %3684 = vset.pattern.permute.xlu0 0
    %3685 = vperm.xlu0 %3684, %v3611
    %v3686 = vpop.permute.xlu0 %3685
    %3689 = vset.pattern.permute.xlu0 0
    %3690 = vperm.xlu0 %3689, %v3612
    %v3691 = vpop.permute.xlu0 %3690
    %v3693 = vmul.f32 %v3616, %v1975
    %v3694 = vmul.f32 %v3616, %v1976
    %v3695 = vmul.f32 %v3616, %v1977
    %v3696 = vmul.f32 %v3616, %v1978
    %v3697 = vmul.f32 %v3621, %v1979
    %v3698 = vmul.f32 %v3621, %v1980
    %v3699 = vmul.f32 %v3621, %v1981
    %v3700 = vmul.f32 %v3621, %v1982
    %v3701 = vmul.f32 %v3626, %v1983
    %v3702 = vmul.f32 %v3626, %v1984
    %v3703 = vmul.f32 %v3626, %v1985
    %v3704 = vmul.f32 %v3626, %v1986
    %v3705 = vmul.f32 %v3631, %v1987
    %v3706 = vmul.f32 %v3631, %v1988
    %v3707 = vmul.f32 %v3631, %v1989
    %v3708 = vmul.f32 %v3631, %v1990
    %v3709 = vmul.f32 %v3636, %v1991
    %v3710 = vmul.f32 %v3636, %v1992
    %v3711 = vmul.f32 %v3636, %v1993
    %v3712 = vmul.f32 %v3636, %v1994
    %v3713 = vmul.f32 %v3641, %v1995
    %v3714 = vmul.f32 %v3641, %v1996
    %v3715 = vmul.f32 %v3641, %v1997
    %v3716 = vmul.f32 %v3641, %v1998
    %v3717 = vmul.f32 %v3646, %v1999
    %v3718 = vmul.f32 %v3646, %v2000
    %v3719 = vmul.f32 %v3646, %v2001
    %v3720 = vmul.f32 %v3646, %v2002
    %v3721 = vmul.f32 %v3651, %v2003
    %v3722 = vmul.f32 %v3651, %v2004
    %v3723 = vmul.f32 %v3651, %v2005
    %v3724 = vmul.f32 %v3651, %v2006
    %v3725 = vmul.f32 %v3656, %v2007
    %v3726 = vmul.f32 %v3656, %v2008
    %v3727 = vmul.f32 %v3656, %v2009
    %v3728 = vmul.f32 %v3656, %v2010
    %v3729 = vmul.f32 %v3661, %v2011
    %v3730 = vmul.f32 %v3661, %v2012
    %v3731 = vmul.f32 %v3661, %v2013
    %v3732 = vmul.f32 %v3661, %v2014
    %v3733 = vmul.f32 %v3666, %v2015
    %v3734 = vmul.f32 %v3666, %v2016
    %v3735 = vmul.f32 %v3666, %v2017
    %v3736 = vmul.f32 %v3666, %v2018
    %v3737 = vmul.f32 %v3671, %v2019
    %v3738 = vmul.f32 %v3671, %v2020
    %v3739 = vmul.f32 %v3671, %v2021
    %v3740 = vmul.f32 %v3671, %v2022
    %v3741 = vmul.f32 %v3676, %v2023
    %v3742 = vmul.f32 %v3676, %v2024
    %v3743 = vmul.f32 %v3676, %v2025
    %v3744 = vmul.f32 %v3676, %v2026
    %v3745 = vmul.f32 %v3681, %v2027
    %v3746 = vmul.f32 %v3681, %v2028
    %v3747 = vmul.f32 %v3681, %v2029
    %v3748 = vmul.f32 %v3681, %v2030
    %v3749 = vmul.f32 %v3686, %v2031
    %v3750 = vmul.f32 %v3686, %v2032
    %v3751 = vmul.f32 %v3686, %v2033
    %v3752 = vmul.f32 %v3686, %v2034
    %v3753 = vmul.f32 %v3691, %v2035
    %v3754 = vmul.f32 %v3691, %v2036
    %v3755 = vmul.f32 %v3691, %v2037
    %v3756 = vmul.f32 %v3691, %v2038
    %v3757 = vadd.f32 %v3693, %v3697
    %v3758 = vrot.slane %v3757, 4
    %v3759 = vadd.f32 %v3757, %v3758
    %v3760 = vrot.slane %v3759, 2
    %v3761 = vadd.f32 %v3759, %v3760
    %v3762 = vrot.slane %v3761, 1
    %v3763 = vadd.f32 %v3761, %v3762
    %v3764 = vadd.f32 %v3694, %v3698
    %v3765 = vrot.slane %v3764, 4
    %v3766 = vadd.f32 %v3764, %v3765
    %v3767 = vrot.slane %v3766, 2
    %v3768 = vadd.f32 %v3766, %v3767
    %v3769 = vrot.slane %v3768, 1
    %v3770 = vadd.f32 %v3768, %v3769
    %v3771 = vadd.f32 %v3695, %v3699
    %v3772 = vrot.slane %v3771, 4
    %v3773 = vadd.f32 %v3771, %v3772
    %v3774 = vrot.slane %v3773, 2
    %v3775 = vadd.f32 %v3773, %v3774
    %v3776 = vrot.slane %v3775, 1
    %v3777 = vadd.f32 %v3775, %v3776
    %v3778 = vadd.f32 %v3696, %v3700
    %v3779 = vrot.slane %v3778, 4
    %v3780 = vadd.f32 %v3778, %v3779
    %v3781 = vrot.slane %v3780, 2
    %v3782 = vadd.f32 %v3780, %v3781
    %v3783 = vrot.slane %v3782, 1
    %v3784 = vadd.f32 %v3782, %v3783
    %v3785 = vadd.f32 %v3701, %v3705
    %v3786 = vrot.slane %v3785, 4
    %v3787 = vadd.f32 %v3785, %v3786
    %v3788 = vrot.slane %v3787, 2
    %v3789 = vadd.f32 %v3787, %v3788
    %v3790 = vrot.slane %v3789, 1
    %v3791 = vadd.f32 %v3789, %v3790
    %v3792 = vadd.f32 %v3702, %v3706
    %v3793 = vrot.slane %v3792, 4
    %v3794 = vadd.f32 %v3792, %v3793
    %v3795 = vrot.slane %v3794, 2
    %v3796 = vadd.f32 %v3794, %v3795
    %v3797 = vrot.slane %v3796, 1
    %v3798 = vadd.f32 %v3796, %v3797
    %v3799 = vadd.f32 %v3703, %v3707
    %v3800 = vrot.slane %v3799, 4
    %v3801 = vadd.f32 %v3799, %v3800
    %v3802 = vrot.slane %v3801, 2
    %v3803 = vadd.f32 %v3801, %v3802
    %v3804 = vrot.slane %v3803, 1
    %v3805 = vadd.f32 %v3803, %v3804
    %v3806 = vadd.f32 %v3704, %v3708
    %v3807 = vrot.slane %v3806, 4
    %v3808 = vadd.f32 %v3806, %v3807
    %v3809 = vrot.slane %v3808, 2
    %v3810 = vadd.f32 %v3808, %v3809
    %v3811 = vrot.slane %v3810, 1
    %v3812 = vadd.f32 %v3810, %v3811
    %v3813 = vadd.f32 %v3709, %v3713
    %v3814 = vrot.slane %v3813, 4
    %v3815 = vadd.f32 %v3813, %v3814
    %v3816 = vrot.slane %v3815, 2
    %v3817 = vadd.f32 %v3815, %v3816
    %v3818 = vrot.slane %v3817, 1
    %v3819 = vadd.f32 %v3817, %v3818
    %v3820 = vadd.f32 %v3710, %v3714
    %v3821 = vrot.slane %v3820, 4
    %v3822 = vadd.f32 %v3820, %v3821
    %v3823 = vrot.slane %v3822, 2
    %v3824 = vadd.f32 %v3822, %v3823
    %v3825 = vrot.slane %v3824, 1
    %v3826 = vadd.f32 %v3824, %v3825
    %v3827 = vadd.f32 %v3711, %v3715
    %v3828 = vrot.slane %v3827, 4
    %v3829 = vadd.f32 %v3827, %v3828
    %v3830 = vrot.slane %v3829, 2
    %v3831 = vadd.f32 %v3829, %v3830
    %v3832 = vrot.slane %v3831, 1
    %v3833 = vadd.f32 %v3831, %v3832
    %v3834 = vadd.f32 %v3712, %v3716
    %v3835 = vrot.slane %v3834, 4
    %v3836 = vadd.f32 %v3834, %v3835
    %v3837 = vrot.slane %v3836, 2
    %v3838 = vadd.f32 %v3836, %v3837
    %v3839 = vrot.slane %v3838, 1
    %v3840 = vadd.f32 %v3838, %v3839
    %v3841 = vadd.f32 %v3717, %v3721
    %v3842 = vrot.slane %v3841, 4
    %v3843 = vadd.f32 %v3841, %v3842
    %v3844 = vrot.slane %v3843, 2
    %v3845 = vadd.f32 %v3843, %v3844
    %v3846 = vrot.slane %v3845, 1
    %v3847 = vadd.f32 %v3845, %v3846
    %v3848 = vadd.f32 %v3718, %v3722
    %v3849 = vrot.slane %v3848, 4
    %v3850 = vadd.f32 %v3848, %v3849
    %v3851 = vrot.slane %v3850, 2
    %v3852 = vadd.f32 %v3850, %v3851
    %v3853 = vrot.slane %v3852, 1
    %v3854 = vadd.f32 %v3852, %v3853
    %v3855 = vadd.f32 %v3719, %v3723
    %v3856 = vrot.slane %v3855, 4
    %v3857 = vadd.f32 %v3855, %v3856
    %v3858 = vrot.slane %v3857, 2
    %v3859 = vadd.f32 %v3857, %v3858
    %v3860 = vrot.slane %v3859, 1
    %v3861 = vadd.f32 %v3859, %v3860
    %v3862 = vadd.f32 %v3720, %v3724
    %v3863 = vrot.slane %v3862, 4
    %v3864 = vadd.f32 %v3862, %v3863
    %v3865 = vrot.slane %v3864, 2
    %v3866 = vadd.f32 %v3864, %v3865
    %v3867 = vrot.slane %v3866, 1
    %v3868 = vadd.f32 %v3866, %v3867
    %v3869 = vadd.f32 %v3725, %v3729
    %v3870 = vrot.slane %v3869, 4
    %v3871 = vadd.f32 %v3869, %v3870
    %v3872 = vrot.slane %v3871, 2
    %v3873 = vadd.f32 %v3871, %v3872
    %v3874 = vrot.slane %v3873, 1
    %v3875 = vadd.f32 %v3873, %v3874
    %v3876 = vadd.f32 %v3726, %v3730
    %v3877 = vrot.slane %v3876, 4
    %v3878 = vadd.f32 %v3876, %v3877
    %v3879 = vrot.slane %v3878, 2
    %v3880 = vadd.f32 %v3878, %v3879
    %v3881 = vrot.slane %v3880, 1
    %v3882 = vadd.f32 %v3880, %v3881
    %v3883 = vadd.f32 %v3727, %v3731
    %v3884 = vrot.slane %v3883, 4
    %v3885 = vadd.f32 %v3883, %v3884
    %v3886 = vrot.slane %v3885, 2
    %v3887 = vadd.f32 %v3885, %v3886
    %v3888 = vrot.slane %v3887, 1
    %v3889 = vadd.f32 %v3887, %v3888
    %v3890 = vadd.f32 %v3728, %v3732
    %v3891 = vrot.slane %v3890, 4
    %v3892 = vadd.f32 %v3890, %v3891
    %v3893 = vrot.slane %v3892, 2
    %v3894 = vadd.f32 %v3892, %v3893
    %v3895 = vrot.slane %v3894, 1
    %v3896 = vadd.f32 %v3894, %v3895
    %v3897 = vadd.f32 %v3733, %v3737
    %v3898 = vrot.slane %v3897, 4
    %v3899 = vadd.f32 %v3897, %v3898
    %v3900 = vrot.slane %v3899, 2
    %v3901 = vadd.f32 %v3899, %v3900
    %v3902 = vrot.slane %v3901, 1
    %v3903 = vadd.f32 %v3901, %v3902
    %v3904 = vadd.f32 %v3734, %v3738
    %v3905 = vrot.slane %v3904, 4
    %v3906 = vadd.f32 %v3904, %v3905
    %v3907 = vrot.slane %v3906, 2
    %v3908 = vadd.f32 %v3906, %v3907
    %v3909 = vrot.slane %v3908, 1
    %v3910 = vadd.f32 %v3908, %v3909
    %v3911 = vadd.f32 %v3735, %v3739
    %v3912 = vrot.slane %v3911, 4
    %v3913 = vadd.f32 %v3911, %v3912
    %v3914 = vrot.slane %v3913, 2
    %v3915 = vadd.f32 %v3913, %v3914
    %v3916 = vrot.slane %v3915, 1
    %v3917 = vadd.f32 %v3915, %v3916
    %v3918 = vadd.f32 %v3736, %v3740
    %v3919 = vrot.slane %v3918, 4
    %v3920 = vadd.f32 %v3918, %v3919
    %v3921 = vrot.slane %v3920, 2
    %v3922 = vadd.f32 %v3920, %v3921
    %v3923 = vrot.slane %v3922, 1
    %v3924 = vadd.f32 %v3922, %v3923
    %v3925 = vadd.f32 %v3741, %v3745
    %v3926 = vrot.slane %v3925, 4
    %v3927 = vadd.f32 %v3925, %v3926
    %v3928 = vrot.slane %v3927, 2
    %v3929 = vadd.f32 %v3927, %v3928
    %v3930 = vrot.slane %v3929, 1
    %v3931 = vadd.f32 %v3929, %v3930
    %v3932 = vadd.f32 %v3742, %v3746
    %v3933 = vrot.slane %v3932, 4
    %v3934 = vadd.f32 %v3932, %v3933
    %v3935 = vrot.slane %v3934, 2
    %v3936 = vadd.f32 %v3934, %v3935
    %v3937 = vrot.slane %v3936, 1
    %v3938 = vadd.f32 %v3936, %v3937
    %v3939 = vadd.f32 %v3743, %v3747
    %v3940 = vrot.slane %v3939, 4
    %v3941 = vadd.f32 %v3939, %v3940
    %v3942 = vrot.slane %v3941, 2
    %v3943 = vadd.f32 %v3941, %v3942
    %v3944 = vrot.slane %v3943, 1
    %v3945 = vadd.f32 %v3943, %v3944
    %v3946 = vadd.f32 %v3744, %v3748
    %v3947 = vrot.slane %v3946, 4
    %v3948 = vadd.f32 %v3946, %v3947
    %v3949 = vrot.slane %v3948, 2
    %v3950 = vadd.f32 %v3948, %v3949
    %v3951 = vrot.slane %v3950, 1
    %v3952 = vadd.f32 %v3950, %v3951
    %v3953 = vadd.f32 %v3749, %v3753
    %v3954 = vrot.slane %v3953, 4
    %v3955 = vadd.f32 %v3953, %v3954
    %v3956 = vrot.slane %v3955, 2
    %v3957 = vadd.f32 %v3955, %v3956
    %v3958 = vrot.slane %v3957, 1
    %v3959 = vadd.f32 %v3957, %v3958
    %v3960 = vadd.f32 %v3750, %v3754
    %v3961 = vrot.slane %v3960, 4
    %v3962 = vadd.f32 %v3960, %v3961
    %v3963 = vrot.slane %v3962, 2
    %v3964 = vadd.f32 %v3962, %v3963
    %v3965 = vrot.slane %v3964, 1
    %v3966 = vadd.f32 %v3964, %v3965
    %v3967 = vadd.f32 %v3751, %v3755
    %v3968 = vrot.slane %v3967, 4
    %v3969 = vadd.f32 %v3967, %v3968
    %v3970 = vrot.slane %v3969, 2
    %v3971 = vadd.f32 %v3969, %v3970
    %v3972 = vrot.slane %v3971, 1
    %v3973 = vadd.f32 %v3971, %v3972
    %v3974 = vadd.f32 %v3752, %v3756
    %v3975 = vrot.slane %v3974, 4
    %v3976 = vadd.f32 %v3974, %v3975
    %v3977 = vrot.slane %v3976, 2
    %v3978 = vadd.f32 %v3976, %v3977
    %v3979 = vrot.slane %v3978, 1
    %v3980 = vadd.f32 %v3978, %v3979
    %v3981 = vadd.f32 %v2771, %v3763
    %v3982 = vadd.f32 %v2772, %v3770
    %v3983 = vadd.f32 %v2773, %v3777
    %v3984 = vadd.f32 %v2774, %v3784
    %v3985 = vadd.f32 %v2775, %v3791
    %v3986 = vadd.f32 %v2776, %v3798
    %v3987 = vadd.f32 %v2777, %v3805
    %v3988 = vadd.f32 %v2778, %v3812
    %v3989 = vadd.f32 %v2779, %v3819
    %v3990 = vadd.f32 %v2780, %v3826
    %v3991 = vadd.f32 %v2781, %v3833
    %v3992 = vadd.f32 %v2782, %v3840
    %v3993 = vadd.f32 %v2783, %v3847
    %v3994 = vadd.f32 %v2784, %v3854
    %v3995 = vadd.f32 %v2785, %v3861
    %v3996 = vadd.f32 %v2786, %v3868
    %v3997 = vadd.f32 %v2787, %v3875
    %v3998 = vadd.f32 %v2788, %v3882
    %v3999 = vadd.f32 %v2789, %v3889
    %v4000 = vadd.f32 %v2790, %v3896
    %v4001 = vadd.f32 %v2791, %v3903
    %v4002 = vadd.f32 %v2792, %v3910
    %v4003 = vadd.f32 %v2793, %v3917
    %v4004 = vadd.f32 %v2794, %v3924
    %v4005 = vadd.f32 %v2795, %v3931
    %v4006 = vadd.f32 %v2796, %v3938
    %v4007 = vadd.f32 %v2797, %v3945
    %v4008 = vadd.f32 %v2798, %v3952
    %v4009 = vadd.f32 %v2799, %v3959
    %v4010 = vadd.f32 %v2800, %v3966
    %v4011 = vadd.f32 %v2801, %v3973
    %v4012 = vadd.f32 %v2802, %v3980
    %v4013 = vmax.f32 %v3981, %v3985
    %v4014 = vmax.f32 %v4013, %v3989
    %v4015 = vmax.f32 %v4014, %v3993
    %v4016 = vmax.f32 %v3982, %v3986
    %v4017 = vmax.f32 %v4016, %v3990
    %v4018 = vmax.f32 %v4017, %v3994
    %v4019 = vmax.f32 %v3983, %v3987
    %v4020 = vmax.f32 %v4019, %v3991
    %v4021 = vmax.f32 %v4020, %v3995
    %v4022 = vmax.f32 %v3984, %v3988
    %v4023 = vmax.f32 %v4022, %v3992
    %v4024 = vmax.f32 %v4023, %v3996
    %v4025 = vmax.f32 %v3997, %v4001
    %v4026 = vmax.f32 %v4025, %v4005
    %v4027 = vmax.f32 %v4026, %v4009
    %v4028 = vmax.f32 %v3998, %v4002
    %v4029 = vmax.f32 %v4028, %v4006
    %v4030 = vmax.f32 %v4029, %v4010
    %v4031 = vmax.f32 %v3999, %v4003
    %v4032 = vmax.f32 %v4031, %v4007
    %v4033 = vmax.f32 %v4032, %v4011
    %v4034 = vmax.f32 %v4000, %v4004
    %v4035 = vmax.f32 %v4034, %v4008
    %v4036 = vmax.f32 %v4035, %v4012
    %v4037 = vsub.f32 %v3981, %v4015
    %v4038 = vsub.f32 %v3982, %v4018
    %v4039 = vsub.f32 %v3983, %v4021
    %v4040 = vsub.f32 %v3984, %v4024
    %v4041 = vsub.f32 %v3985, %v4015
    %v4042 = vsub.f32 %v3986, %v4018
    %v4043 = vsub.f32 %v3987, %v4021
    %v4044 = vsub.f32 %v3988, %v4024
    %v4045 = vsub.f32 %v3989, %v4015
    %v4046 = vsub.f32 %v3990, %v4018
    %v4047 = vsub.f32 %v3991, %v4021
    %v4048 = vsub.f32 %v3992, %v4024
    %v4049 = vsub.f32 %v3993, %v4015
    %v4050 = vsub.f32 %v3994, %v4018
    %v4051 = vsub.f32 %v3995, %v4021
    %v4052 = vsub.f32 %v3996, %v4024
    %v4053 = vsub.f32 %v3997, %v4027
    %v4054 = vsub.f32 %v3998, %v4030
    %v4055 = vsub.f32 %v3999, %v4033
    %v4056 = vsub.f32 %v4000, %v4036
    %v4057 = vsub.f32 %v4001, %v4027
    %v4058 = vsub.f32 %v4002, %v4030
    %v4059 = vsub.f32 %v4003, %v4033
    %v4060 = vsub.f32 %v4004, %v4036
    %v4061 = vsub.f32 %v4005, %v4027
    %v4062 = vsub.f32 %v4006, %v4030
    %v4063 = vsub.f32 %v4007, %v4033
    %v4064 = vsub.f32 %v4008, %v4036
    %v4065 = vsub.f32 %v4009, %v4027
    %v4066 = vsub.f32 %v4010, %v4030
    %v4067 = vsub.f32 %v4011, %v4033
    %v4068 = vsub.f32 %v4012, %v4036
    %v4069 = vmul.f32 %v4037, 1.442695
    %v4070 = vpow.pop %v4069
    %v4071 = vmul.f32 %v4038, 1.442695
    %v4072 = vpow.pop %v4071
    %v4073 = vmul.f32 %v4039, 1.442695
    %v4074 = vpow.pop %v4073
    %v4075 = vmul.f32 %v4040, 1.442695
    %v4076 = vpow.pop %v4075
    %v4077 = vmul.f32 %v4041, 1.442695
    %v4078 = vpow.pop %v4077
    %v4079 = vmul.f32 %v4042, 1.442695
    %v4080 = vpow.pop %v4079
    %v4081 = vmul.f32 %v4043, 1.442695
    %v4082 = vpow.pop %v4081
    %v4083 = vmul.f32 %v4044, 1.442695
    %v4084 = vpow.pop %v4083
    %v4085 = vmul.f32 %v4045, 1.442695
    %v4086 = vpow.pop %v4085
    %v4087 = vmul.f32 %v4046, 1.442695
    %v4088 = vpow.pop %v4087
    %v4089 = vmul.f32 %v4047, 1.442695
    %v4090 = vpow.pop %v4089
    %v4091 = vmul.f32 %v4048, 1.442695
    %v4092 = vpow.pop %v4091
    %v4093 = vmul.f32 %v4049, 1.442695
    %v4094 = vpow.pop %v4093
    %v4095 = vmul.f32 %v4050, 1.442695
    %v4096 = vpow.pop %v4095
    %v4097 = vmul.f32 %v4051, 1.442695
    %v4098 = vpow.pop %v4097
    %v4099 = vmul.f32 %v4052, 1.442695
    %v4100 = vpow.pop %v4099
    %v4101 = vmul.f32 %v4053, 1.442695
    %v4102 = vpow.pop %v4101
    %v4103 = vmul.f32 %v4054, 1.442695
    %v4104 = vpow.pop %v4103
    %v4105 = vmul.f32 %v4055, 1.442695
    %v4106 = vpow.pop %v4105
    %v4107 = vmul.f32 %v4056, 1.442695
    %v4108 = vpow.pop %v4107
    %v4109 = vmul.f32 %v4057, 1.442695
    %v4110 = vpow.pop %v4109
    %v4111 = vmul.f32 %v4058, 1.442695
    %v4112 = vpow.pop %v4111
    %v4113 = vmul.f32 %v4059, 1.442695
    %v4114 = vpow.pop %v4113
    %v4115 = vmul.f32 %v4060, 1.442695
    %v4116 = vpow.pop %v4115
    %v4117 = vmul.f32 %v4061, 1.442695
    %v4118 = vpow.pop %v4117
    %v4119 = vmul.f32 %v4062, 1.442695
    %v4120 = vpow.pop %v4119
    %v4121 = vmul.f32 %v4063, 1.442695
    %v4122 = vpow.pop %v4121
    %v4123 = vmul.f32 %v4064, 1.442695
    %v4124 = vpow.pop %v4123
    %v4125 = vmul.f32 %v4065, 1.442695
    %v4126 = vpow.pop %v4125
    %v4127 = vmul.f32 %v4066, 1.442695
    %v4128 = vpow.pop %v4127
    %v4129 = vmul.f32 %v4067, 1.442695
    %v4130 = vpow.pop %v4129
    %v4131 = vmul.f32 %v4068, 1.442695
    %v4132 = vpow.pop %v4131
    %v4165 = vrot.slane %v4078, 7
    %v4166 = vsel %vm2301, %v4165, %v4070
    %v4167 = vrot.slane %v4086, 6
    %v4168 = vsel %vm2303, %v4167, %v4166
    %v4169 = vrot.slane %v4094, 5
    %v4170 = vsel %vm2305, %v4169, %v4168
    %v4171 = vrot.slane %v4080, 7
    %v4172 = vsel %vm2301, %v4171, %v4072
    %v4173 = vrot.slane %v4088, 6
    %v4174 = vsel %vm2303, %v4173, %v4172
    %v4175 = vrot.slane %v4096, 5
    %v4176 = vsel %vm2305, %v4175, %v4174
    %v4177 = vrot.slane %v4082, 7
    %v4178 = vsel %vm2301, %v4177, %v4074
    %v4179 = vrot.slane %v4090, 6
    %v4180 = vsel %vm2303, %v4179, %v4178
    %v4181 = vrot.slane %v4098, 5
    %v4182 = vsel %vm2305, %v4181, %v4180
    %v4183 = vrot.slane %v4084, 7
    %v4184 = vsel %vm2301, %v4183, %v4076
    %v4185 = vrot.slane %v4092, 6
    %v4186 = vsel %vm2303, %v4185, %v4184
    %v4187 = vrot.slane %v4100, 5
    %v4188 = vsel %vm2305, %v4187, %v4186
    %v4189 = vrot.slane %v4110, 7
    %v4190 = vsel %vm2301, %v4189, %v4102
    %v4191 = vrot.slane %v4118, 6
    %v4192 = vsel %vm2303, %v4191, %v4190
    %v4193 = vrot.slane %v4126, 5
    %v4194 = vsel %vm2305, %v4193, %v4192
    %v4195 = vrot.slane %v4112, 7
    %v4196 = vsel %vm2301, %v4195, %v4104
    %v4197 = vrot.slane %v4120, 6
    %v4198 = vsel %vm2303, %v4197, %v4196
    %v4199 = vrot.slane %v4128, 5
    %v4200 = vsel %vm2305, %v4199, %v4198
    %v4201 = vrot.slane %v4114, 7
    %v4202 = vsel %vm2301, %v4201, %v4106
    %v4203 = vrot.slane %v4122, 6
    %v4204 = vsel %vm2303, %v4203, %v4202
    %v4205 = vrot.slane %v4130, 5
    %v4206 = vsel %vm2305, %v4205, %v4204
    %v4207 = vrot.slane %v4116, 7
    %v4208 = vsel %vm2301, %v4207, %v4108
    %v4209 = vrot.slane %v4124, 6
    %v4210 = vsel %vm2303, %v4209, %v4208
    %v4211 = vrot.slane %v4132, 5
    %v4212 = vsel %vm2305, %v4211, %v4210
    %v4221 = vsel %vm2039, %v4170, 0.0
    %v4222 = vrot.slane %v4221, 4
    %v4223 = vadd.f32 %v4221, %v4222
    %v4224 = vrot.slane %v4223, 2
    %v4225 = vadd.f32 %v4223, %v4224
    %v4226 = vrot.slane %v4225, 1
    %v4227 = vadd.f32 %v4225, %v4226
    %v4228 = vsel %vm2039, %v4176, 0.0
    %v4229 = vrot.slane %v4228, 4
    %v4230 = vadd.f32 %v4228, %v4229
    %v4231 = vrot.slane %v4230, 2
    %v4232 = vadd.f32 %v4230, %v4231
    %v4233 = vrot.slane %v4232, 1
    %v4234 = vadd.f32 %v4232, %v4233
    %v4235 = vsel %vm2039, %v4182, 0.0
    %v4236 = vrot.slane %v4235, 4
    %v4237 = vadd.f32 %v4235, %v4236
    %v4238 = vrot.slane %v4237, 2
    %v4239 = vadd.f32 %v4237, %v4238
    %v4240 = vrot.slane %v4239, 1
    %v4241 = vadd.f32 %v4239, %v4240
    %v4242 = vsel %vm2039, %v4188, 0.0
    %v4243 = vrot.slane %v4242, 4
    %v4244 = vadd.f32 %v4242, %v4243
    %v4245 = vrot.slane %v4244, 2
    %v4246 = vadd.f32 %v4244, %v4245
    %v4247 = vrot.slane %v4246, 1
    %v4248 = vadd.f32 %v4246, %v4247
    %v4249 = vsel %vm2039, %v4194, 0.0
    %v4250 = vrot.slane %v4249, 4
    %v4251 = vadd.f32 %v4249, %v4250
    %v4252 = vrot.slane %v4251, 2
    %v4253 = vadd.f32 %v4251, %v4252
    %v4254 = vrot.slane %v4253, 1
    %v4255 = vadd.f32 %v4253, %v4254
    %v4256 = vsel %vm2039, %v4200, 0.0
    %v4257 = vrot.slane %v4256, 4
    %v4258 = vadd.f32 %v4256, %v4257
    %v4259 = vrot.slane %v4258, 2
    %v4260 = vadd.f32 %v4258, %v4259
    %v4261 = vrot.slane %v4260, 1
    %v4262 = vadd.f32 %v4260, %v4261
    %v4263 = vsel %vm2039, %v4206, 0.0
    %v4264 = vrot.slane %v4263, 4
    %v4265 = vadd.f32 %v4263, %v4264
    %v4266 = vrot.slane %v4265, 2
    %v4267 = vadd.f32 %v4265, %v4266
    %v4268 = vrot.slane %v4267, 1
    %v4269 = vadd.f32 %v4267, %v4268
    %v4270 = vsel %vm2039, %v4212, 0.0
    %v4271 = vrot.slane %v4270, 4
    %v4272 = vadd.f32 %v4270, %v4271
    %v4273 = vrot.slane %v4272, 2
    %v4274 = vadd.f32 %v4272, %v4273
    %v4275 = vrot.slane %v4274, 1
    %v4276 = vadd.f32 %v4274, %v4275
    %v4277 = vlaneseq
    %v4278 = vshrl.u32 %v4277, 7
    %v4279 = vsub.s32 0, %v4278
    %v4280 = vrot.slane %v4227, %v4279
    %v4281 = vlaneseq
    %v4282 = vshrl.u32 %v4281, 7
    %v4283 = vsub.s32 0, %v4282
    %v4284 = vrot.slane %v4234, %v4283
    %v4285 = vlaneseq
    %v4286 = vshrl.u32 %v4285, 7
    %v4287 = vsub.s32 0, %v4286
    %v4288 = vrot.slane %v4241, %v4287
    %v4289 = vlaneseq
    %v4290 = vshrl.u32 %v4289, 7
    %v4291 = vsub.s32 0, %v4290
    %v4292 = vrot.slane %v4248, %v4291
    %v4293 = vlaneseq
    %v4294 = vshrl.u32 %v4293, 7
    %v4295 = vsub.s32 0, %v4294
    %v4296 = vrot.slane %v4255, %v4295
    %v4297 = vlaneseq
    %v4298 = vshrl.u32 %v4297, 7
    %v4299 = vsub.s32 0, %v4298
    %v4300 = vrot.slane %v4262, %v4299
    %v4301 = vlaneseq
    %v4302 = vshrl.u32 %v4301, 7
    %v4303 = vsub.s32 0, %v4302
    %v4304 = vrot.slane %v4269, %v4303
    %v4305 = vlaneseq
    %v4306 = vshrl.u32 %v4305, 7
    %v4307 = vsub.s32 0, %v4306
    %v4308 = vrot.slane %v4276, %v4307
    %v4309 = vrcp.pop %v4280
    %v4310 = vmul.f32 %v4070, %v4309
    %v4311 = vrcp.pop %v4284
    %v4312 = vmul.f32 %v4072, %v4311
    %v4313 = vrcp.pop %v4288
    %v4314 = vmul.f32 %v4074, %v4313
    %v4315 = vrcp.pop %v4292
    %v4316 = vmul.f32 %v4076, %v4315
    %v4317 = vmul.f32 %v4078, %v4309
    %v4318 = vmul.f32 %v4080, %v4311
    %v4319 = vmul.f32 %v4082, %v4313
    %v4320 = vmul.f32 %v4084, %v4315
    %v4321 = vmul.f32 %v4086, %v4309
    %v4322 = vmul.f32 %v4088, %v4311
    %v4323 = vmul.f32 %v4090, %v4313
    %v4324 = vmul.f32 %v4092, %v4315
    %v4325 = vmul.f32 %v4094, %v4309
    %v4326 = vmul.f32 %v4096, %v4311
    %v4327 = vmul.f32 %v4098, %v4313
    %v4328 = vmul.f32 %v4100, %v4315
    %v4329 = vrcp.pop %v4296
    %v4330 = vmul.f32 %v4102, %v4329
    %v4331 = vrcp.pop %v4300
    %v4332 = vmul.f32 %v4104, %v4331
    %v4333 = vrcp.pop %v4304
    %v4334 = vmul.f32 %v4106, %v4333
    %v4335 = vrcp.pop %v4308
    %v4336 = vmul.f32 %v4108, %v4335
    %v4337 = vmul.f32 %v4110, %v4329
    %v4338 = vmul.f32 %v4112, %v4331
    %v4339 = vmul.f32 %v4114, %v4333
    %v4340 = vmul.f32 %v4116, %v4335
    %v4341 = vmul.f32 %v4118, %v4329
    %v4342 = vmul.f32 %v4120, %v4331
    %v4343 = vmul.f32 %v4122, %v4333
    %v4344 = vmul.f32 %v4124, %v4335
    %v4345 = vmul.f32 %v4126, %v4329
    %v4346 = vmul.f32 %v4128, %v4331
    %v4347 = vmul.f32 %v4130, %v4333
    %v4348 = vmul.f32 %v4132, %v4335
    %v4349 = vlaneseq
    %v4350 = vshrl.u32 %v4349, 7
    %v4351 = vsub.s32 0, %v4350
    %v4352 = vrot.slane %v4310, %v4351
    %v4353 = vlaneseq
    %v4354 = vshrl.u32 %v4353, 7
    %v4355 = vsub.s32 0, %v4354
    %v4356 = vrot.slane %v4312, %v4355
    %v4357 = vlaneseq
    %v4358 = vshrl.u32 %v4357, 7
    %v4359 = vsub.s32 0, %v4358
    %v4360 = vrot.slane %v4314, %v4359
    %v4361 = vlaneseq
    %v4362 = vshrl.u32 %v4361, 7
    %v4363 = vsub.s32 0, %v4362
    %v4364 = vrot.slane %v4316, %v4363
    %v4365 = vlaneseq
    %v4366 = vshrl.u32 %v4365, 7
    %v4367 = vsub.s32 0, %v4366
    %v4368 = vrot.slane %v4317, %v4367
    %v4369 = vlaneseq
    %v4370 = vshrl.u32 %v4369, 7
    %v4371 = vsub.s32 0, %v4370
    %v4372 = vrot.slane %v4318, %v4371
    %v4373 = vlaneseq
    %v4374 = vshrl.u32 %v4373, 7
    %v4375 = vsub.s32 0, %v4374
    %v4376 = vrot.slane %v4319, %v4375
    %v4377 = vlaneseq
    %v4378 = vshrl.u32 %v4377, 7
    %v4379 = vsub.s32 0, %v4378
    %v4380 = vrot.slane %v4320, %v4379
    %v4381 = vlaneseq
    %v4382 = vshrl.u32 %v4381, 7
    %v4383 = vsub.s32 0, %v4382
    %v4384 = vrot.slane %v4321, %v4383
    %v4385 = vlaneseq
    %v4386 = vshrl.u32 %v4385, 7
    %v4387 = vsub.s32 0, %v4386
    %v4388 = vrot.slane %v4322, %v4387
    %v4389 = vlaneseq
    %v4390 = vshrl.u32 %v4389, 7
    %v4391 = vsub.s32 0, %v4390
    %v4392 = vrot.slane %v4323, %v4391
    %v4393 = vlaneseq
    %v4394 = vshrl.u32 %v4393, 7
    %v4395 = vsub.s32 0, %v4394
    %v4396 = vrot.slane %v4324, %v4395
    %v4397 = vlaneseq
    %v4398 = vshrl.u32 %v4397, 7
    %v4399 = vsub.s32 0, %v4398
    %v4400 = vrot.slane %v4325, %v4399
    %v4401 = vlaneseq
    %v4402 = vshrl.u32 %v4401, 7
    %v4403 = vsub.s32 0, %v4402
    %v4404 = vrot.slane %v4326, %v4403
    %v4405 = vlaneseq
    %v4406 = vshrl.u32 %v4405, 7
    %v4407 = vsub.s32 0, %v4406
    %v4408 = vrot.slane %v4327, %v4407
    %v4409 = vlaneseq
    %v4410 = vshrl.u32 %v4409, 7
    %v4411 = vsub.s32 0, %v4410
    %v4412 = vrot.slane %v4328, %v4411
    %v4413 = vlaneseq
    %v4414 = vshrl.u32 %v4413, 7
    %v4415 = vsub.s32 0, %v4414
    %v4416 = vrot.slane %v4330, %v4415
    %v4417 = vlaneseq
    %v4418 = vshrl.u32 %v4417, 7
    %v4419 = vsub.s32 0, %v4418
    %v4420 = vrot.slane %v4332, %v4419
    %v4421 = vlaneseq
    %v4422 = vshrl.u32 %v4421, 7
    %v4423 = vsub.s32 0, %v4422
    %v4424 = vrot.slane %v4334, %v4423
    %v4425 = vlaneseq
    %v4426 = vshrl.u32 %v4425, 7
    %v4427 = vsub.s32 0, %v4426
    %v4428 = vrot.slane %v4336, %v4427
    %v4429 = vlaneseq
    %v4430 = vshrl.u32 %v4429, 7
    %v4431 = vsub.s32 0, %v4430
    %v4432 = vrot.slane %v4337, %v4431
    %v4433 = vlaneseq
    %v4434 = vshrl.u32 %v4433, 7
    %v4435 = vsub.s32 0, %v4434
    %v4436 = vrot.slane %v4338, %v4435
    %v4437 = vlaneseq
    %v4438 = vshrl.u32 %v4437, 7
    %v4439 = vsub.s32 0, %v4438
    %v4440 = vrot.slane %v4339, %v4439
    %v4441 = vlaneseq
    %v4442 = vshrl.u32 %v4441, 7
    %v4443 = vsub.s32 0, %v4442
    %v4444 = vrot.slane %v4340, %v4443
    %v4445 = vlaneseq
    %v4446 = vshrl.u32 %v4445, 7
    %v4447 = vsub.s32 0, %v4446
    %v4448 = vrot.slane %v4341, %v4447
    %v4449 = vlaneseq
    %v4450 = vshrl.u32 %v4449, 7
    %v4451 = vsub.s32 0, %v4450
    %v4452 = vrot.slane %v4342, %v4451
    %v4453 = vlaneseq
    %v4454 = vshrl.u32 %v4453, 7
    %v4455 = vsub.s32 0, %v4454
    %v4456 = vrot.slane %v4343, %v4455
    %v4457 = vlaneseq
    %v4458 = vshrl.u32 %v4457, 7
    %v4459 = vsub.s32 0, %v4458
    %v4460 = vrot.slane %v4344, %v4459
    %v4461 = vlaneseq
    %v4462 = vshrl.u32 %v4461, 7
    %v4463 = vsub.s32 0, %v4462
    %v4464 = vrot.slane %v4345, %v4463
    %v4465 = vlaneseq
    %v4466 = vshrl.u32 %v4465, 7
    %v4467 = vsub.s32 0, %v4466
    %v4468 = vrot.slane %v4346, %v4467
    %v4469 = vlaneseq
    %v4470 = vshrl.u32 %v4469, 7
    %v4471 = vsub.s32 0, %v4470
    %v4472 = vrot.slane %v4347, %v4471
    %v4473 = vlaneseq
    %v4474 = vshrl.u32 %v4473, 7
    %v4475 = vsub.s32 0, %v4474
    %v4476 = vrot.slane %v4348, %v4475
    %v4477 = vmul.f32 %v4352, %v1975
    %v4478 = vmul.f32 %v4356, %v1976
    %v4479 = vmul.f32 %v4360, %v1977
    %v4480 = vmul.f32 %v4364, %v1978
    %v4481 = vmul.f32 %v4352, %v1979
    %v4482 = vmul.f32 %v4356, %v1980
    %v4483 = vmul.f32 %v4360, %v1981
    %v4484 = vmul.f32 %v4364, %v1982
    %v4485 = vmul.f32 %v4368, %v1983
    %v4486 = vmul.f32 %v4372, %v1984
    %v4487 = vmul.f32 %v4376, %v1985
    %v4488 = vmul.f32 %v4380, %v1986
    %v4489 = vmul.f32 %v4368, %v1987
    %v4490 = vmul.f32 %v4372, %v1988
    %v4491 = vmul.f32 %v4376, %v1989
    %v4492 = vmul.f32 %v4380, %v1990
    %v4493 = vmul.f32 %v4384, %v1991
    %v4494 = vmul.f32 %v4388, %v1992
    %v4495 = vmul.f32 %v4392, %v1993
    %v4496 = vmul.f32 %v4396, %v1994
    %v4497 = vmul.f32 %v4384, %v1995
    %v4498 = vmul.f32 %v4388, %v1996
    %v4499 = vmul.f32 %v4392, %v1997
    %v4500 = vmul.f32 %v4396, %v1998
    %v4501 = vmul.f32 %v4400, %v1999
    %v4502 = vmul.f32 %v4404, %v2000
    %v4503 = vmul.f32 %v4408, %v2001
    %v4504 = vmul.f32 %v4412, %v2002
    %v4505 = vmul.f32 %v4400, %v2003
    %v4506 = vmul.f32 %v4404, %v2004
    %v4507 = vmul.f32 %v4408, %v2005
    %v4508 = vmul.f32 %v4412, %v2006
    %v4509 = vmul.f32 %v4416, %v2007
    %v4510 = vmul.f32 %v4420, %v2008
    %v4511 = vmul.f32 %v4424, %v2009
    %v4512 = vmul.f32 %v4428, %v2010
    %v4513 = vmul.f32 %v4416, %v2011
    %v4514 = vmul.f32 %v4420, %v2012
    %v4515 = vmul.f32 %v4424, %v2013
    %v4516 = vmul.f32 %v4428, %v2014
    %v4517 = vmul.f32 %v4432, %v2015
    %v4518 = vmul.f32 %v4436, %v2016
    %v4519 = vmul.f32 %v4440, %v2017
    %v4520 = vmul.f32 %v4444, %v2018
    %v4521 = vmul.f32 %v4432, %v2019
    %v4522 = vmul.f32 %v4436, %v2020
    %v4523 = vmul.f32 %v4440, %v2021
    %v4524 = vmul.f32 %v4444, %v2022
    %v4525 = vmul.f32 %v4448, %v2023
    %v4526 = vmul.f32 %v4452, %v2024
    %v4527 = vmul.f32 %v4456, %v2025
    %v4528 = vmul.f32 %v4460, %v2026
    %v4529 = vmul.f32 %v4448, %v2027
    %v4530 = vmul.f32 %v4452, %v2028
    %v4531 = vmul.f32 %v4456, %v2029
    %v4532 = vmul.f32 %v4460, %v2030
    %v4533 = vmul.f32 %v4464, %v2031
    %v4534 = vmul.f32 %v4468, %v2032
    %v4535 = vmul.f32 %v4472, %v2033
    %v4536 = vmul.f32 %v4476, %v2034
    %v4537 = vmul.f32 %v4464, %v2035
    %v4538 = vmul.f32 %v4468, %v2036
    %v4539 = vmul.f32 %v4472, %v2037
    %v4540 = vmul.f32 %v4476, %v2038
    %v4541 = vadd.f32 %v4477, %v4478
    %v4542 = vadd.f32 %v4541, %v4479
    %v4543 = vadd.f32 %v4542, %v4480
    %4544 = vadd.xlane.f32.xlu0 %v4543
    %v4545 = vpop.xlane.xlu0 %4544
    %v4546 = vadd.f32 %v4481, %v4482
    %v4547 = vadd.f32 %v4546, %v4483
    %v4548 = vadd.f32 %v4547, %v4484
    %4549 = vadd.xlane.f32.xlu0 %v4548
    %v4550 = vpop.xlane.xlu0 %4549
    %v4551 = vadd.f32 %v4485, %v4486
    %v4552 = vadd.f32 %v4551, %v4487
    %v4553 = vadd.f32 %v4552, %v4488
    %4554 = vadd.xlane.f32.xlu0 %v4553
    %v4555 = vpop.xlane.xlu0 %4554
    %v4556 = vadd.f32 %v4489, %v4490
    %v4557 = vadd.f32 %v4556, %v4491
    %v4558 = vadd.f32 %v4557, %v4492
    %4559 = vadd.xlane.f32.xlu0 %v4558
    %v4560 = vpop.xlane.xlu0 %4559
    %v4561 = vadd.f32 %v4493, %v4494
    %v4562 = vadd.f32 %v4561, %v4495
    %v4563 = vadd.f32 %v4562, %v4496
    %4564 = vadd.xlane.f32.xlu0 %v4563
    %v4565 = vpop.xlane.xlu0 %4564
    %v4566 = vadd.f32 %v4497, %v4498
    %v4567 = vadd.f32 %v4566, %v4499
    %v4568 = vadd.f32 %v4567, %v4500
    %4569 = vadd.xlane.f32.xlu0 %v4568
    %v4570 = vpop.xlane.xlu0 %4569
    %v4571 = vadd.f32 %v4501, %v4502
    %v4572 = vadd.f32 %v4571, %v4503
    %v4573 = vadd.f32 %v4572, %v4504
    %4574 = vadd.xlane.f32.xlu0 %v4573
    %v4575 = vpop.xlane.xlu0 %4574
    %v4576 = vadd.f32 %v4505, %v4506
    %v4577 = vadd.f32 %v4576, %v4507
    %v4578 = vadd.f32 %v4577, %v4508
    %4579 = vadd.xlane.f32.xlu0 %v4578
    %v4580 = vpop.xlane.xlu0 %4579
    %v4581 = vadd.f32 %v4509, %v4510
    %v4582 = vadd.f32 %v4581, %v4511
    %v4583 = vadd.f32 %v4582, %v4512
    %4584 = vadd.xlane.f32.xlu0 %v4583
    %v4585 = vpop.xlane.xlu0 %4584
    %v4586 = vadd.f32 %v4513, %v4514
    %v4587 = vadd.f32 %v4586, %v4515
    %v4588 = vadd.f32 %v4587, %v4516
    %4589 = vadd.xlane.f32.xlu0 %v4588
    %v4590 = vpop.xlane.xlu0 %4589
    %v4591 = vadd.f32 %v4517, %v4518
    %v4592 = vadd.f32 %v4591, %v4519
    %v4593 = vadd.f32 %v4592, %v4520
    %4594 = vadd.xlane.f32.xlu0 %v4593
    %v4595 = vpop.xlane.xlu0 %4594
    %v4596 = vadd.f32 %v4521, %v4522
    %v4597 = vadd.f32 %v4596, %v4523
    %v4598 = vadd.f32 %v4597, %v4524
    %4599 = vadd.xlane.f32.xlu0 %v4598
    %v4600 = vpop.xlane.xlu0 %4599
    %v4601 = vadd.f32 %v4525, %v4526
    %v4602 = vadd.f32 %v4601, %v4527
    %v4603 = vadd.f32 %v4602, %v4528
    %4604 = vadd.xlane.f32.xlu0 %v4603
    %v4605 = vpop.xlane.xlu0 %4604
    %v4606 = vadd.f32 %v4529, %v4530
    %v4607 = vadd.f32 %v4606, %v4531
    %v4608 = vadd.f32 %v4607, %v4532
    %4609 = vadd.xlane.f32.xlu0 %v4608
    %v4610 = vpop.xlane.xlu0 %4609
    %v4611 = vadd.f32 %v4533, %v4534
    %v4612 = vadd.f32 %v4611, %v4535
    %v4613 = vadd.f32 %v4612, %v4536
    %4614 = vadd.xlane.f32.xlu0 %v4613
    %v4615 = vpop.xlane.xlu0 %4614
    %v4616 = vadd.f32 %v4537, %v4538
    %v4617 = vadd.f32 %v4616, %v4539
    %v4618 = vadd.f32 %v4617, %v4540
    %4619 = vadd.xlane.f32.xlu0 %v4618
    %v4620 = vpop.xlane.xlu0 %4619
    %v4621 = vmul.f32 %v4545, %v4545
    %v4622 = vmul.f32 %v4550, %v4550
    %v4623 = vmul.f32 %v4555, %v4555
    %v4624 = vmul.f32 %v4560, %v4560
    %v4625 = vmul.f32 %v4565, %v4565
    %v4626 = vmul.f32 %v4570, %v4570
    %v4627 = vmul.f32 %v4575, %v4575
    %v4628 = vmul.f32 %v4580, %v4580
    %v4629 = vmul.f32 %v4585, %v4585
    %v4630 = vmul.f32 %v4590, %v4590
    %v4631 = vmul.f32 %v4595, %v4595
    %v4632 = vmul.f32 %v4600, %v4600
    %v4633 = vmul.f32 %v4605, %v4605
    %v4634 = vmul.f32 %v4610, %v4610
    %v4635 = vmul.f32 %v4615, %v4615
    %v4636 = vmul.f32 %v4620, %v4620
    %v4653 = vlaneseq
    %v4654 = vshrl.u32 %v4653, 7
    %v4655 = vsub.s32 %v2226, %v4654
    %v4656 = vrot.slane %v4621, %v4655
    %v4657 = vlaneseq
    %v4658 = vshrl.u32 %v4657, 7
    %v4659 = vsub.s32 %v2231, %v4658
    %v4660 = vrot.slane %v4622, %v4659
    %v4661 = vsel %vm2236, %v4660, %v4656
    %v4662 = vlaneseq
    %v4663 = vshrl.u32 %v4662, 7
    %v4664 = vsub.s32 %v2226, %v4663
    %v4665 = vrot.slane %v4623, %v4664
    %v4666 = vlaneseq
    %v4667 = vshrl.u32 %v4666, 7
    %v4668 = vsub.s32 %v2231, %v4667
    %v4669 = vrot.slane %v4624, %v4668
    %v4670 = vsel %vm2236, %v4669, %v4665
    %v4671 = vlaneseq
    %v4672 = vshrl.u32 %v4671, 7
    %v4673 = vsub.s32 %v2226, %v4672
    %v4674 = vrot.slane %v4625, %v4673
    %v4675 = vlaneseq
    %v4676 = vshrl.u32 %v4675, 7
    %v4677 = vsub.s32 %v2231, %v4676
    %v4678 = vrot.slane %v4626, %v4677
    %v4679 = vsel %vm2236, %v4678, %v4674
    %v4680 = vlaneseq
    %v4681 = vshrl.u32 %v4680, 7
    %v4682 = vsub.s32 %v2226, %v4681
    %v4683 = vrot.slane %v4627, %v4682
    %v4684 = vlaneseq
    %v4685 = vshrl.u32 %v4684, 7
    %v4686 = vsub.s32 %v2231, %v4685
    %v4687 = vrot.slane %v4628, %v4686
    %v4688 = vsel %vm2236, %v4687, %v4683
    %v4689 = vlaneseq
    %v4690 = vshrl.u32 %v4689, 7
    %v4691 = vsub.s32 %v2226, %v4690
    %v4692 = vrot.slane %v4629, %v4691
    %v4693 = vlaneseq
    %v4694 = vshrl.u32 %v4693, 7
    %v4695 = vsub.s32 %v2231, %v4694
    %v4696 = vrot.slane %v4630, %v4695
    %v4697 = vsel %vm2236, %v4696, %v4692
    %v4698 = vlaneseq
    %v4699 = vshrl.u32 %v4698, 7
    %v4700 = vsub.s32 %v2226, %v4699
    %v4701 = vrot.slane %v4631, %v4700
    %v4702 = vlaneseq
    %v4703 = vshrl.u32 %v4702, 7
    %v4704 = vsub.s32 %v2231, %v4703
    %v4705 = vrot.slane %v4632, %v4704
    %v4706 = vsel %vm2236, %v4705, %v4701
    %v4707 = vlaneseq
    %v4708 = vshrl.u32 %v4707, 7
    %v4709 = vsub.s32 %v2226, %v4708
    %v4710 = vrot.slane %v4633, %v4709
    %v4711 = vlaneseq
    %v4712 = vshrl.u32 %v4711, 7
    %v4713 = vsub.s32 %v2231, %v4712
    %v4714 = vrot.slane %v4634, %v4713
    %v4715 = vsel %vm2236, %v4714, %v4710
    %v4716 = vlaneseq
    %v4717 = vshrl.u32 %v4716, 7
    %v4718 = vsub.s32 %v2226, %v4717
    %v4719 = vrot.slane %v4635, %v4718
    %v4720 = vlaneseq
    %v4721 = vshrl.u32 %v4720, 7
    %v4722 = vsub.s32 %v2231, %v4721
    %v4723 = vrot.slane %v4636, %v4722
    %v4724 = vsel %vm2236, %v4723, %v4719
    %v4725 = vsel %vm2301, %v4670, %v4661
    %v4726 = vsel %vm2303, %v4679, %v4725
    %v4727 = vsel %vm2305, %v4688, %v4726
    %v4728 = vsel %vm2301, %v4706, %v4697
    %v4729 = vsel %vm2303, %v4715, %v4728
    %v4730 = vsel %vm2305, %v4724, %v4729
    %v4733 = vsel %vm2312, %v4727, 0.0
    %4734 = vadd.xlane.f32.xlu0 %v4733
    %v4735 = vpop.xlane.xlu0 %4734
    %v4736 = vsel %vm2312, %v4730, 0.0
    %4737 = vadd.xlane.f32.xlu0 %v4736
    %v4738 = vpop.xlane.xlu0 %4737
    %v4739 = vadd.f32 %v4735, 1.0
    %v4740 = vadd.f32 %v4738, 1.0
    %v4741 = vrcp.pop %v4739
    %v4742 = vmul.f32 %v4735, %v4741
    %v4743 = vrcp.pop %v4740
    %v4744 = vmul.f32 %v4738, %v4743
    %v4745 = vrsqrt.pop %v4735
    %v4746 = vmul.f32 %v4735, %v4745
    %vm4747 = vcmp.eq.f32.partialorder %v4735, inf
    %v4748 = vsel %vm4747, %v4735, %v4746
    %vm4749 = vcmp.eq.f32.partialorder %v4735, 0.0
    %v4750 = vand.u32 %v4735, 2147483648
    %v4751 = vsel %vm4749, %v4750, %v4748
    %v4752 = vrsqrt.pop %v4738
    %v4753 = vmul.f32 %v4738, %v4752
    %vm4754 = vcmp.eq.f32.partialorder %v4738, inf
    %v4755 = vsel %vm4754, %v4738, %v4753
    %vm4756 = vcmp.eq.f32.partialorder %v4738, 0.0
    %v4757 = vand.u32 %v4738, 2147483648
    %v4758 = vsel %vm4756, %v4757, %v4755
    %v4759 = vadd.f32 %v4751, 1e-08
    %v4760 = vadd.f32 %v4758, 1e-08
    %v4761 = vrcp.pop %v4759
    %v4762 = vmul.f32 %v4742, %v4761
    %v4763 = vrcp.pop %v4760
    %v4764 = vmul.f32 %v4744, %v4763
    %v4767 = vlaneseq
    %v4768 = vshrl.u32 %v4767, 7
    %v4769 = vsub.s32 0, %v4768
    %v4770 = vrot.slane %v4762, %v4769
    %v4771 = vlaneseq
    %v4772 = vshrl.u32 %v4771, 7
    %v4773 = vsub.s32 1, %v4772
    %v4774 = vrot.slane %v4762, %v4773
    %v4775 = vlaneseq
    %v4776 = vshrl.u32 %v4775, 7
    %v4777 = vsub.s32 2, %v4776
    %v4778 = vrot.slane %v4762, %v4777
    %v4779 = vlaneseq
    %v4780 = vshrl.u32 %v4779, 7
    %v4781 = vsub.s32 3, %v4780
    %v4782 = vrot.slane %v4762, %v4781
    %v4783 = vlaneseq
    %v4784 = vshrl.u32 %v4783, 7
    %v4785 = vsub.s32 0, %v4784
    %v4786 = vrot.slane %v4764, %v4785
    %v4787 = vlaneseq
    %v4788 = vshrl.u32 %v4787, 7
    %v4789 = vsub.s32 1, %v4788
    %v4790 = vrot.slane %v4764, %v4789
    %v4791 = vlaneseq
    %v4792 = vshrl.u32 %v4791, 7
    %v4793 = vsub.s32 2, %v4792
    %v4794 = vrot.slane %v4764, %v4793
    %v4795 = vlaneseq
    %v4796 = vshrl.u32 %v4795, 7
    %v4797 = vsub.s32 3, %v4796
    %v4798 = vrot.slane %v4764, %v4797
    %v4807 = vmul.f32 %v4545, %v4770
    %v4808 = vmul.f32 %v4550, %v4770
    %v4809 = vmul.f32 %v4555, %v4774
    %v4810 = vmul.f32 %v4560, %v4774
    %v4811 = vmul.f32 %v4565, %v4778
    %v4812 = vmul.f32 %v4570, %v4778
    %v4813 = vmul.f32 %v4575, %v4782
    %v4814 = vmul.f32 %v4580, %v4782
    %v4815 = vmul.f32 %v4585, %v4786
    %v4816 = vmul.f32 %v4590, %v4786
    %v4817 = vmul.f32 %v4595, %v4790
    %v4818 = vmul.f32 %v4600, %v4790
    %v4819 = vmul.f32 %v4605, %v4794
    %v4820 = vmul.f32 %v4610, %v4794
    %v4821 = vmul.f32 %v4615, %v4798
    %v4822 = vmul.f32 %v4620, %v4798
    %v4823 = vmul.f32 %v4807, %v4807
    %v4824 = vmul.f32 %v4808, %v4808
    %v4825 = vmul.f32 %v4809, %v4809
    %v4826 = vmul.f32 %v4810, %v4810
    %v4827 = vmul.f32 %v4811, %v4811
    %v4828 = vmul.f32 %v4812, %v4812
    %v4829 = vmul.f32 %v4813, %v4813
    %v4830 = vmul.f32 %v4814, %v4814
    %v4831 = vmul.f32 %v4815, %v4815
    %v4832 = vmul.f32 %v4816, %v4816
    %v4833 = vmul.f32 %v4817, %v4817
    %v4834 = vmul.f32 %v4818, %v4818
    %v4835 = vmul.f32 %v4819, %v4819
    %v4836 = vmul.f32 %v4820, %v4820
    %v4837 = vmul.f32 %v4821, %v4821
    %v4838 = vmul.f32 %v4822, %v4822
    %4855 = vset.pattern.permute.xlu0 0
    %4856 = vperm.xlu0 %4855, %v4823
    %v4857 = vpop.permute.xlu0 %4856
    %4858 = vset.pattern.permute.xlu0 0
    %4859 = vperm.xlu0 %4858, %v4824
    %v4860 = vpop.permute.xlu0 %4859
    %4861 = vset.pattern.permute.xlu0 0
    %4862 = vperm.xlu0 %4861, %v4825
    %v4863 = vpop.permute.xlu0 %4862
    %4864 = vset.pattern.permute.xlu0 0
    %4865 = vperm.xlu0 %4864, %v4826
    %v4866 = vpop.permute.xlu0 %4865
    %4867 = vset.pattern.permute.xlu0 0
    %4868 = vperm.xlu0 %4867, %v4827
    %v4869 = vpop.permute.xlu0 %4868
    %4870 = vset.pattern.permute.xlu0 0
    %4871 = vperm.xlu0 %4870, %v4828
    %v4872 = vpop.permute.xlu0 %4871
    %4873 = vset.pattern.permute.xlu0 0
    %4874 = vperm.xlu0 %4873, %v4829
    %v4875 = vpop.permute.xlu0 %4874
    %4876 = vset.pattern.permute.xlu0 0
    %4877 = vperm.xlu0 %4876, %v4830
    %v4878 = vpop.permute.xlu0 %4877
    %4879 = vset.pattern.permute.xlu0 0
    %4880 = vperm.xlu0 %4879, %v4831
    %v4881 = vpop.permute.xlu0 %4880
    %4882 = vset.pattern.permute.xlu0 0
    %4883 = vperm.xlu0 %4882, %v4832
    %v4884 = vpop.permute.xlu0 %4883
    %4885 = vset.pattern.permute.xlu0 0
    %4886 = vperm.xlu0 %4885, %v4833
    %v4887 = vpop.permute.xlu0 %4886
    %4888 = vset.pattern.permute.xlu0 0
    %4889 = vperm.xlu0 %4888, %v4834
    %v4890 = vpop.permute.xlu0 %4889
    %4891 = vset.pattern.permute.xlu0 0
    %4892 = vperm.xlu0 %4891, %v4835
    %v4893 = vpop.permute.xlu0 %4892
    %4894 = vset.pattern.permute.xlu0 0
    %4895 = vperm.xlu0 %4894, %v4836
    %v4896 = vpop.permute.xlu0 %4895
    %4897 = vset.pattern.permute.xlu0 0
    %4898 = vperm.xlu0 %4897, %v4837
    %v4899 = vpop.permute.xlu0 %4898
    %4900 = vset.pattern.permute.xlu0 0
    %4901 = vperm.xlu0 %4900, %v4838
    %v4902 = vpop.permute.xlu0 %4901
    %v4903 = vlaneseq
    %v4904 = vshrl.u32 %v4903, 7
    %v4905 = vsub.s32 %v2226, %v4904
    %v4906 = vrot.slane %v4857, %v4905
    %v4907 = vlaneseq
    %v4908 = vshrl.u32 %v4907, 7
    %v4909 = vsub.s32 %v2231, %v4908
    %v4910 = vrot.slane %v4860, %v4909
    %v4911 = vsel %vm2236, %v4910, %v4906
    %v4912 = vlaneseq
    %v4913 = vshrl.u32 %v4912, 7
    %v4914 = vsub.s32 %v2226, %v4913
    %v4915 = vrot.slane %v4863, %v4914
    %v4916 = vlaneseq
    %v4917 = vshrl.u32 %v4916, 7
    %v4918 = vsub.s32 %v2231, %v4917
    %v4919 = vrot.slane %v4866, %v4918
    %v4920 = vsel %vm2236, %v4919, %v4915
    %v4921 = vlaneseq
    %v4922 = vshrl.u32 %v4921, 7
    %v4923 = vsub.s32 %v2226, %v4922
    %v4924 = vrot.slane %v4869, %v4923
    %v4925 = vlaneseq
    %v4926 = vshrl.u32 %v4925, 7
    %v4927 = vsub.s32 %v2231, %v4926
    %v4928 = vrot.slane %v4872, %v4927
    %v4929 = vsel %vm2236, %v4928, %v4924
    %v4930 = vlaneseq
    %v4931 = vshrl.u32 %v4930, 7
    %v4932 = vsub.s32 %v2226, %v4931
    %v4933 = vrot.slane %v4875, %v4932
    %v4934 = vlaneseq
    %v4935 = vshrl.u32 %v4934, 7
    %v4936 = vsub.s32 %v2231, %v4935
    %v4937 = vrot.slane %v4878, %v4936
    %v4938 = vsel %vm2236, %v4937, %v4933
    %v4939 = vlaneseq
    %v4940 = vshrl.u32 %v4939, 7
    %v4941 = vsub.s32 %v2226, %v4940
    %v4942 = vrot.slane %v4881, %v4941
    %v4943 = vlaneseq
    %v4944 = vshrl.u32 %v4943, 7
    %v4945 = vsub.s32 %v2231, %v4944
    %v4946 = vrot.slane %v4884, %v4945
    %v4947 = vsel %vm2236, %v4946, %v4942
    %v4948 = vlaneseq
    %v4949 = vshrl.u32 %v4948, 7
    %v4950 = vsub.s32 %v2226, %v4949
    %v4951 = vrot.slane %v4887, %v4950
    %v4952 = vlaneseq
    %v4953 = vshrl.u32 %v4952, 7
    %v4954 = vsub.s32 %v2231, %v4953
    %v4955 = vrot.slane %v4890, %v4954
    %v4956 = vsel %vm2236, %v4955, %v4951
    %v4957 = vlaneseq
    %v4958 = vshrl.u32 %v4957, 7
    %v4959 = vsub.s32 %v2226, %v4958
    %v4960 = vrot.slane %v4893, %v4959
    %v4961 = vlaneseq
    %v4962 = vshrl.u32 %v4961, 7
    %v4963 = vsub.s32 %v2231, %v4962
    %v4964 = vrot.slane %v4896, %v4963
    %v4965 = vsel %vm2236, %v4964, %v4960
    %v4966 = vlaneseq
    %v4967 = vshrl.u32 %v4966, 7
    %v4968 = vsub.s32 %v2226, %v4967
    %v4969 = vrot.slane %v4899, %v4968
    %v4970 = vlaneseq
    %v4971 = vshrl.u32 %v4970, 7
    %v4972 = vsub.s32 %v2231, %v4971
    %v4973 = vrot.slane %v4902, %v4972
    %v4974 = vsel %vm2236, %v4973, %v4969
    %v4975 = vsel %vm2301, %v4920, %v4911
    %v4976 = vsel %vm2303, %v4929, %v4975
    %v4977 = vsel %vm2305, %v4938, %v4976
    %v4978 = vsel %vm2301, %v4956, %v4947
    %v4979 = vsel %vm2303, %v4965, %v4978
    %v4980 = vsel %vm2305, %v4974, %v4979
    %v4983 = vsel %vm2312, %v4977, 0.0
    %4984 = vadd.xlane.f32.xlu0 %v4983
    %v4985 = vpop.xlane.xlu0 %4984
    %v4986 = vsel %vm2312, %v4980, 0.0
    %4987 = vadd.xlane.f32.xlu0 %v4986
    %v4988 = vpop.xlane.xlu0 %4987
    %v4989 = vrsqrt.pop %v4985
    %v4990 = vmul.f32 %v4985, %v4989
    %vm4991 = vcmp.eq.f32.partialorder %v4985, inf
    %v4992 = vsel %vm4991, %v4985, %v4990
    %vm4993 = vcmp.eq.f32.partialorder %v4985, 0.0
    %v4994 = vand.u32 %v4985, 2147483648
    %v4995 = vsel %vm4993, %v4994, %v4992
    %v4996 = vrsqrt.pop %v4988
    %v4997 = vmul.f32 %v4988, %v4996
    %vm4998 = vcmp.eq.f32.partialorder %v4988, inf
    %v4999 = vsel %vm4998, %v4988, %v4997
    %vm5000 = vcmp.eq.f32.partialorder %v4988, 0.0
    %v5001 = vand.u32 %v4988, 2147483648
    %v5002 = vsel %vm5000, %v5001, %v4999
    %v5005 = vlaneseq
    %v5006 = vshrl.u32 %v5005, 7
    %v5007 = vsub.s32 %v2226, %v5006
    %v5008 = vrot.slane %v4995, %v5007
    %v5009 = vlaneseq
    %v5010 = vshrl.u32 %v5009, 7
    %v5011 = vsub.s32 %v2226, %v5010
    %v5012 = vrot.slane %v5002, %v5011
    %v5013 = vsel %vm2301, %v5012, %v5008
    %vm5015 = vcmask 25600
    %5016 = vst.msk [vmem:[#allocation2] sm:$0x3] %vm5015, %v5013
    %v5017 = vsel %vm5015, %v5013, -inf
    %5018 = vmax.xlane.f32.xlu0 %v5017
    %v5019 = vpop.xlane.xlu0 %5018
    %v5021 = vlaneseq
    %v5022 = vshrl.u32 %v5021, 7
    %v5023 = vsub.s32 0, %v5022
    %v5024 = vrot.slane %v5019, %v5023
    %v5025 = vlaneseq
    %v5026 = vshrl.u32 %v5025, 7
    %v5027 = vsub.s32 1, %v5026
    %v5028 = vrot.slane %v5019, %v5027
    %vm5031 = vcmp.ge.f32.partialorder %v4995, %v5024
    %vm5032 = vcmp.ge.f32.partialorder %v5002, %v5028
    %5034 = vbcast.lane.b32.xlu0 %v2226, 256
    %v5035 = vpop.permute.xlu0 %5034
    %v5036 = vsel %vm5031, %v5035, 4
    %v5037 = vsel %vm5032, %v5035, 4
    %5038 = vset.pattern.permute.xlu0 0
    %5039 = vperm.xlu0 %5038, %v5036
    %v5040 = vpop.permute.xlu0 %5039
    %5041 = vset.pattern.permute.xlu0 0
    %5042 = vperm.xlu0 %5041, %v5037
    %v5043 = vpop.permute.xlu0 %5042
    %v5044 = vlaneseq
    %v5045 = vshrl.u32 %v5044, 7
    %v5046 = vsub.s32 %v2226, %v5045
    %v5047 = vrot.slane %v5040, %v5046
    %v5048 = vlaneseq
    %v5049 = vshrl.u32 %v5048, 7
    %v5050 = vsub.s32 %v2226, %v5049
    %v5051 = vrot.slane %v5043, %v5050
    %v5052 = vsel %vm2301, %v5051, %v5047
    %v5053 = vsel %vm5015, %v5052, 2147483647
    %v5054 = vand.u32 %v5053, 65535
    %v5055 = vshra.s32 %v5053, 16
    %v5056 = vcvt.s32.f32 %v5054
    %v5057 = vcvt.s32.f32 %v5055
    %5058 = vmin.xlane.f32.xlu0 %v5057
    %v5059 = vpop.xlane.xlu0 %5058
    %vm5060 = vcmp.eq.f32.partialorder %v5057, %v5059
    %v5061 = vsel %vm5060, %v5056, inf
    %5062 = vmin.xlane.f32.xlu0 %v5061
    %v5063 = vpop.xlane.xlu0 %5062
    %v5064 = vcvt.f32.s32 %v5063
    %v5065 = vcvt.f32.s32 %v5059
    %v5066 = vshll.u32 %v5065, 16
    %v5067 = vadd.s32 %v5066, %v5064
    %vm5068 = vcmp.eq.s32.totalorder %v2226, %v5067
    %v5069 = vsel %vm5068, 1, 0
    %v5070 = vcvt.s32.f32 %v5069
    %v5071 = vlaneseq
    %v5072 = vshrl.u32 %v5071, 7
    %v5073 = vsub.s32 0, %v5072
    %v5074 = vrot.slane %v5070, %v5073
    %5076 = vbcast.lane.b32.xlu0 %v5074, 256
    %v5077 = vpop.permute.xlu0 %5076
    %v5078 = vlaneseq
    %v5079 = vshrl.u32 %v5078, 7
    %v5080 = vsub.s32 1, %v5079
    %v5081 = vrot.slane %v5070, %v5080
    %5083 = vbcast.lane.b32.xlu0 %v5081, 256
    %v5084 = vpop.permute.xlu0 %5083
    %v5087 = vlaneseq
    %v5088 = vshrl.u32 %v5087, 7
    %v5089 = vsub.s32 0, %v5088
    %v5090 = vrot.slane %v5077, %v5089
    %v5091 = vlaneseq
    %v5092 = vshrl.u32 %v5091, 7
    %v5093 = vsub.s32 1, %v5092
    %v5094 = vrot.slane %v5077, %v5093
    %v5095 = vlaneseq
    %v5096 = vshrl.u32 %v5095, 7
    %v5097 = vsub.s32 2, %v5096
    %v5098 = vrot.slane %v5077, %v5097
    %v5099 = vlaneseq
    %v5100 = vshrl.u32 %v5099, 7
    %v5101 = vsub.s32 3, %v5100
    %v5102 = vrot.slane %v5077, %v5101
    %v5103 = vlaneseq
    %v5104 = vshrl.u32 %v5103, 7
    %v5105 = vsub.s32 0, %v5104
    %v5106 = vrot.slane %v5084, %v5105
    %v5107 = vlaneseq
    %v5108 = vshrl.u32 %v5107, 7
    %v5109 = vsub.s32 1, %v5108
    %v5110 = vrot.slane %v5084, %v5109
    %v5111 = vlaneseq
    %v5112 = vshrl.u32 %v5111, 7
    %v5113 = vsub.s32 2, %v5112
    %v5114 = vrot.slane %v5084, %v5113
    %v5115 = vlaneseq
    %v5116 = vshrl.u32 %v5115, 7
    %v5117 = vsub.s32 3, %v5116
    %v5118 = vrot.slane %v5084, %v5117
    %v5127 = vmul.f32 %v4807, %v5090
    %v5128 = vmul.f32 %v4808, %v5090
    %v5129 = vmul.f32 %v4809, %v5094
    %v5130 = vmul.f32 %v4810, %v5094
    %v5131 = vmul.f32 %v4811, %v5098
    %v5132 = vmul.f32 %v4812, %v5098
    %v5133 = vmul.f32 %v4813, %v5102
    %v5134 = vmul.f32 %v4814, %v5102
    %v5135 = vmul.f32 %v4815, %v5106
    %v5136 = vmul.f32 %v4816, %v5106
    %v5137 = vmul.f32 %v4817, %v5110
    %v5138 = vmul.f32 %v4818, %v5110
    %v5139 = vmul.f32 %v4819, %v5114
    %v5140 = vmul.f32 %v4820, %v5114
    %v5141 = vmul.f32 %v4821, %v5118
    %v5142 = vmul.f32 %v4822, %v5118
    %v5143 = vld [vmem:[%s2] sm:$0xff]
    %v5144 = vld [vmem:[%s2 + $0x8] sm:$0xff]
    %v5145 = vld [vmem:[%s2 + $0x10] sm:$0xff]
    %v5146 = vld [vmem:[%s2 + $0x18] sm:$0xff]
    %v5147 = vld [vmem:[%s2 + $0x20] sm:$0xff]
    %v5148 = vld [vmem:[%s2 + $0x28] sm:$0xff]
    %v5149 = vld [vmem:[%s2 + $0x30] sm:$0xff]
    %v5150 = vld [vmem:[%s2 + $0x38] sm:$0xff]
    %v5151 = vld [vmem:[%s2 + $0x40] sm:$0xff]
    %v5152 = vld [vmem:[%s2 + $0x48] sm:$0xff]
    %v5153 = vld [vmem:[%s2 + $0x50] sm:$0xff]
    %v5154 = vld [vmem:[%s2 + $0x58] sm:$0xff]
    %v5155 = vld [vmem:[%s2 + $0x60] sm:$0xff]
    %v5156 = vld [vmem:[%s2 + $0x68] sm:$0xff]
    %v5157 = vld [vmem:[%s2 + $0x70] sm:$0xff]
    %v5158 = vld [vmem:[%s2 + $0x78] sm:$0xff]
    %v5159 = vld [vmem:[%s2 + $0x80] sm:$0xff]
    %v5160 = vld [vmem:[%s2 + $0x88] sm:$0xff]
    %v5161 = vld [vmem:[%s2 + $0x90] sm:$0xff]
    %v5162 = vld [vmem:[%s2 + $0x98] sm:$0xff]
    %v5163 = vld [vmem:[%s2 + $0xa0] sm:$0xff]
    %v5164 = vld [vmem:[%s2 + $0xa8] sm:$0xff]
    %v5165 = vld [vmem:[%s2 + $0xb0] sm:$0xff]
    %v5166 = vld [vmem:[%s2 + $0xb8] sm:$0xff]
    %5171 = vset.pattern.permute.xlu0 0
    %5172 = vperm.xlu0 %5171, %v5129
    %v5173 = vpop.permute.xlu0 %5172
    %5174 = vset.pattern.permute.xlu0 0
    %5175 = vperm.xlu0 %5174, %v5130
    %v5176 = vpop.permute.xlu0 %5175
    %5177 = vset.pattern.permute.xlu0 0
    %5178 = vperm.xlu0 %5177, %v5137
    %v5179 = vpop.permute.xlu0 %5178
    %5180 = vset.pattern.permute.xlu0 0
    %5181 = vperm.xlu0 %5180, %v5138
    %v5182 = vpop.permute.xlu0 %5181
    %v5183 = vlaneseq
    %v5184 = vshrl.u32 %v5183, 7
    %v5185 = vsub.s32 %v2226, %v5184
    %v5186 = vrot.slane %v5173, %v5185
    %v5187 = vlaneseq
    %v5188 = vshrl.u32 %v5187, 7
    %v5189 = vsub.s32 %v2231, %v5188
    %v5190 = vrot.slane %v5176, %v5189
    %v5191 = vsel %vm2236, %v5190, %v5186
    %v5192 = vlaneseq
    %v5193 = vshrl.u32 %v5192, 7
    %v5194 = vsub.s32 %v2226, %v5193
    %v5195 = vrot.slane %v5179, %v5194
    %v5196 = vlaneseq
    %v5197 = vshrl.u32 %v5196, 7
    %v5198 = vsub.s32 %v2231, %v5197
    %v5199 = vrot.slane %v5182, %v5198
    %v5200 = vsel %vm2236, %v5199, %v5195
    %v5201 = vsel %vm2301, %v5200, %v5191
    %vm5202 = vcmask 130048
    %v5203 = vsel %vm5202, %v5201, 0
    %5205 = vmatprep.subr.mxu0 0.0
    %5206 = vmatpush1.msra.mxu0 0.0
    %5207 = vmatprep.subr.mxu0 0.0
    %5208 = vmatpush1.msra.mxu0 0.0
    %5209 = vmatprep.subr.mxu0 0.0
    %5210 = vmatpush1.msra.mxu0 0.0
    %5211 = vmatprep.subr.mxu0 0.0
    %5212 = vmatpush1.msra.mxu0 0.0
    %5213 = vmatprep.subr.mxu0 0.0
    %5214 = vmatpush1.msra.mxu0 0.0
    %5215 = vmatprep.subr.mxu0 0.0
    %5216 = vmatpush1.msra.mxu0 0.0
    %5217 = vmatprep.subr.mxu0 0.0
    %5218 = vmatpush1.msra.mxu0 0.0
    %5219 = vmatprep.subr.mxu0 0.0
    %5220 = vmatpush1.msra.mxu0 0.0
    %5221 = vmatprep.subr.mxu0 0.0
    %5222 = vmatpush1.msra.mxu0 0.0
    %5223 = vmatprep.subr.mxu0 0.0
    %5224 = vmatpush1.msra.mxu0 0.0
    %5225 = vmatprep.subr.mxu0 0.0
    %5226 = vmatpush1.msra.mxu0 0.0
    %5227 = vmatprep.subr.mxu0 0.0
    %5228 = vmatpush1.msra.mxu0 0.0
    %5229 = vmatprep.subr.mxu0 0.0
    %5230 = vmatpush1.msra.mxu0 0.0
    %5231 = vmatprep.subr.mxu0 0.0
    %5232 = vmatpush1.msra.mxu0 0.0
    %5233 = vmatprep.subr.mxu0 %v5153
    %5234 = vmatpush1.msra.mxu0 %v5152
    %5235 = vmatprep.subr.mxu0 %v5150
    %5236 = vmatpush1.msra.mxu0 %v5149
    %5237 = vmatprep.subr.mxu0 0.0
    %5238 = vmatpush2.msra.mxu0 0.0
    %5239 = vmatprep.subr.mxu0 0.0
    %5240 = vmatpush2.msra.mxu0 0.0
    %5241 = vmatprep.subr.mxu0 0.0
    %5242 = vmatpush2.msra.mxu0 0.0
    %5243 = vmatprep.subr.mxu0 0.0
    %5244 = vmatpush2.msra.mxu0 0.0
    %5245 = vmatprep.subr.mxu0 0.0
    %5246 = vmatpush2.msra.mxu0 0.0
    %5247 = vmatprep.subr.mxu0 0.0
    %5248 = vmatpush2.msra.mxu0 0.0
    %5249 = vmatprep.subr.mxu0 0.0
    %5250 = vmatpush2.msra.mxu0 0.0
    %5251 = vmatprep.subr.mxu0 0.0
    %5252 = vmatpush2.msra.mxu0 0.0
    %5253 = vmatprep.subr.mxu0 0.0
    %5254 = vmatpush2.msra.mxu0 0.0
    %5255 = vmatprep.subr.mxu0 0.0
    %5256 = vmatpush2.msra.mxu0 0.0
    %5257 = vmatprep.subr.mxu0 0.0
    %5258 = vmatpush2.msra.mxu0 0.0
    %5259 = vmatprep.subr.mxu0 0.0
    %5260 = vmatpush2.msra.mxu0 0.0
    %5261 = vmatprep.subr.mxu0 0.0
    %5262 = vmatpush2.msra.mxu0 0.0
    %5263 = vmatprep.subr.mxu0 0.0
    %5264 = vmatpush2.msra.mxu0 0.0
    %5265 = vmatprep.subr.mxu0 0.0
    %5266 = vmatpush2.msra.mxu0 0.0
    %5267 = vmatprep.subr.mxu0 0.0
    %5268 = vmatpush2.msra.mxu0 0.0
    %5269 = vmatprep.mubr.f32.mxu0 0.0
    %5270 = vmatmul.mubr.f32.gmra.mxu0 %v5203
    %v5271 = vpop.f32.mrf.mxu0
    %v5272 = vadd.f32 0.0, %v5271
    %v5273 = vpop.f32.mrf.mxu0
    %v5274 = vadd.f32 0.0, %v5273
    %5275 = vdwg.mxu0
    %5276 = vmatprep.subr.mxu0 0.0
    %5277 = vmatpush1.msra.mxu0 0.0
    %5278 = vmatprep.subr.mxu0 0.0
    %5279 = vmatpush1.msra.mxu0 0.0
    %5280 = vmatprep.subr.mxu0 0.0
    %5281 = vmatpush1.msra.mxu0 0.0
    %5282 = vmatprep.subr.mxu0 0.0
    %5283 = vmatpush1.msra.mxu0 0.0
    %5284 = vmatprep.subr.mxu0 0.0
    %5285 = vmatpush1.msra.mxu0 0.0
    %5286 = vmatprep.subr.mxu0 0.0
    %5287 = vmatpush1.msra.mxu0 0.0
    %5288 = vmatprep.subr.mxu0 0.0
    %5289 = vmatpush1.msra.mxu0 0.0
    %5290 = vmatprep.subr.mxu0 0.0
    %5291 = vmatpush1.msra.mxu0 0.0
    %5292 = vmatprep.subr.mxu0 0.0
    %5293 = vmatpush1.msra.mxu0 0.0
    %5294 = vmatprep.subr.mxu0 0.0
    %5295 = vmatpush1.msra.mxu0 0.0
    %5296 = vmatprep.subr.mxu0 0.0
    %5297 = vmatpush1.msra.mxu0 0.0
    %5298 = vmatprep.subr.mxu0 0.0
    %5299 = vmatpush1.msra.mxu0 0.0
    %5300 = vmatprep.subr.mxu0 0.0
    %5301 = vmatpush1.msra.mxu0 0.0
    %5302 = vmatprep.subr.mxu0 0.0
    %5303 = vmatpush1.msra.mxu0 0.0
    %5304 = vmatprep.subr.mxu0 0.0
    %5305 = vmatpush1.msra.mxu0 %v5154
    %5306 = vmatprep.subr.mxu0 0.0
    %5307 = vmatpush1.msra.mxu0 %v5151
    %5308 = vmatprep.subr.mxu0 0.0
    %5309 = vmatpush2.msra.mxu0 0.0
    %5310 = vmatprep.subr.mxu0 0.0
    %5311 = vmatpush2.msra.mxu0 0.0
    %5312 = vmatprep.subr.mxu0 0.0
    %5313 = vmatpush2.msra.mxu0 0.0
    %5314 = vmatprep.subr.mxu0 0.0
    %5315 = vmatpush2.msra.mxu0 0.0
    %5316 = vmatprep.subr.mxu0 0.0
    %5317 = vmatpush2.msra.mxu0 0.0
    %5318 = vmatprep.subr.mxu0 0.0
    %5319 = vmatpush2.msra.mxu0 0.0
    %5320 = vmatprep.subr.mxu0 0.0
    %5321 = vmatpush2.msra.mxu0 0.0
    %5322 = vmatprep.subr.mxu0 0.0
    %5323 = vmatpush2.msra.mxu0 0.0
    %5324 = vmatprep.subr.mxu0 0.0
    %5325 = vmatpush2.msra.mxu0 0.0
    %5326 = vmatprep.subr.mxu0 0.0
    %5327 = vmatpush2.msra.mxu0 0.0
    %5328 = vmatprep.subr.mxu0 0.0
    %5329 = vmatpush2.msra.mxu0 0.0
    %5330 = vmatprep.subr.mxu0 0.0
    %5331 = vmatpush2.msra.mxu0 0.0
    %5332 = vmatprep.subr.mxu0 0.0
    %5333 = vmatpush2.msra.mxu0 0.0
    %5334 = vmatprep.subr.mxu0 0.0
    %5335 = vmatpush2.msra.mxu0 0.0
    %5336 = vmatprep.subr.mxu0 0.0
    %5337 = vmatpush2.msra.mxu0 0.0
    %5338 = vmatprep.subr.mxu0 0.0
    %5339 = vmatpush2.msra.mxu0 0.0
    %5340 = vmatprep.mubr.f32.mxu0 0.0
    %5341 = vmatmul.mubr.f32.gmra.mxu0 %v5203
    %v5342 = vpop.f32.mrf.mxu0
    %v5343 = vadd.f32 0.0, %v5342
    %v5344 = vpop.f32.mrf.mxu0
    %5345 = vdwg.mxu0
    %5350 = vset.pattern.permute.xlu0 0
    %5351 = vperm.xlu0 %5350, %v5127
    %v5352 = vpop.permute.xlu0 %5351
    %5353 = vset.pattern.permute.xlu0 0
    %5354 = vperm.xlu0 %5353, %v5128
    %v5355 = vpop.permute.xlu0 %5354
    %5356 = vset.pattern.permute.xlu0 0
    %5357 = vperm.xlu0 %5356, %v5135
    %v5358 = vpop.permute.xlu0 %5357
    %5359 = vset.pattern.permute.xlu0 0
    %5360 = vperm.xlu0 %5359, %v5136
    %v5361 = vpop.permute.xlu0 %5360
    %v5362 = vlaneseq
    %v5363 = vshrl.u32 %v5362, 7
    %v5364 = vsub.s32 %v2226, %v5363
    %v5365 = vrot.slane %v5352, %v5364
    %v5366 = vlaneseq
    %v5367 = vshrl.u32 %v5366, 7
    %v5368 = vsub.s32 %v2231, %v5367
    %v5369 = vrot.slane %v5355, %v5368
    %v5370 = vsel %vm2236, %v5369, %v5365
    %v5371 = vlaneseq
    %v5372 = vshrl.u32 %v5371, 7
    %v5373 = vsub.s32 %v2226, %v5372
    %v5374 = vrot.slane %v5358, %v5373
    %v5375 = vlaneseq
    %v5376 = vshrl.u32 %v5375, 7
    %v5377 = vsub.s32 %v2231, %v5376
    %v5378 = vrot.slane %v5361, %v5377
    %v5379 = vsel %vm2236, %v5378, %v5374
    %v5380 = vsel %vm2301, %v5379, %v5370
    %v5381 = vsel %vm5202, %v5380, 0
    %5383 = vmatprep.subr.mxu0 0.0
    %5384 = vmatpush1.msra.mxu0 0.0
    %5385 = vmatprep.subr.mxu0 0.0
    %5386 = vmatpush1.msra.mxu0 0.0
    %5387 = vmatprep.subr.mxu0 0.0
    %5388 = vmatpush1.msra.mxu0 0.0
    %5389 = vmatprep.subr.mxu0 0.0
    %5390 = vmatpush1.msra.mxu0 0.0
    %5391 = vmatprep.subr.mxu0 0.0
    %5392 = vmatpush1.msra.mxu0 0.0
    %5393 = vmatprep.subr.mxu0 0.0
    %5394 = vmatpush1.msra.mxu0 0.0
    %5395 = vmatprep.subr.mxu0 0.0
    %5396 = vmatpush1.msra.mxu0 0.0
    %5397 = vmatprep.subr.mxu0 0.0
    %5398 = vmatpush1.msra.mxu0 0.0
    %5399 = vmatprep.subr.mxu0 0.0
    %5400 = vmatpush1.msra.mxu0 0.0
    %5401 = vmatprep.subr.mxu0 0.0
    %5402 = vmatpush1.msra.mxu0 0.0
    %5403 = vmatprep.subr.mxu0 0.0
    %5404 = vmatpush1.msra.mxu0 0.0
    %5405 = vmatprep.subr.mxu0 0.0
    %5406 = vmatpush1.msra.mxu0 0.0
    %5407 = vmatprep.subr.mxu0 0.0
    %5408 = vmatpush1.msra.mxu0 0.0
    %5409 = vmatprep.subr.mxu0 0.0
    %5410 = vmatpush1.msra.mxu0 0.0
    %5411 = vmatprep.subr.mxu0 %v5147
    %5412 = vmatpush1.msra.mxu0 %v5146
    %5413 = vmatprep.subr.mxu0 %v5144
    %5414 = vmatpush1.msra.mxu0 %v5143
    %5415 = vmatprep.subr.mxu0 0.0
    %5416 = vmatpush2.msra.mxu0 0.0
    %5417 = vmatprep.subr.mxu0 0.0
    %5418 = vmatpush2.msra.mxu0 0.0
    %5419 = vmatprep.subr.mxu0 0.0
    %5420 = vmatpush2.msra.mxu0 0.0
    %5421 = vmatprep.subr.mxu0 0.0
    %5422 = vmatpush2.msra.mxu0 0.0
    %5423 = vmatprep.subr.mxu0 0.0
    %5424 = vmatpush2.msra.mxu0 0.0
    %5425 = vmatprep.subr.mxu0 0.0
    %5426 = vmatpush2.msra.mxu0 0.0
    %5427 = vmatprep.subr.mxu0 0.0
    %5428 = vmatpush2.msra.mxu0 0.0
    %5429 = vmatprep.subr.mxu0 0.0
    %5430 = vmatpush2.msra.mxu0 0.0
    %5431 = vmatprep.subr.mxu0 0.0
    %5432 = vmatpush2.msra.mxu0 0.0
    %5433 = vmatprep.subr.mxu0 0.0
    %5434 = vmatpush2.msra.mxu0 0.0
    %5435 = vmatprep.subr.mxu0 0.0
    %5436 = vmatpush2.msra.mxu0 0.0
    %5437 = vmatprep.subr.mxu0 0.0
    %5438 = vmatpush2.msra.mxu0 0.0
    %5439 = vmatprep.subr.mxu0 0.0
    %5440 = vmatpush2.msra.mxu0 0.0
    %5441 = vmatprep.subr.mxu0 0.0
    %5442 = vmatpush2.msra.mxu0 0.0
    %5443 = vmatprep.subr.mxu0 0.0
    %5444 = vmatpush2.msra.mxu0 0.0
    %5445 = vmatprep.subr.mxu0 0.0
    %5446 = vmatpush2.msra.mxu0 0.0
    %5447 = vmatprep.mubr.f32.mxu0 0.0
    %5448 = vmatmul.mubr.f32.gmra.mxu0 %v5381
    %v5449 = vpop.f32.mrf.mxu0
    %v5450 = vadd.f32 %v5272, %v5449
    %v5451 = vpop.f32.mrf.mxu0
    %v5452 = vadd.f32 %v5274, %v5451
    %5453 = vdwg.mxu0
    %5454 = vmatprep.subr.mxu0 0.0
    %5455 = vmatpush1.msra.mxu0 0.0
    %5456 = vmatprep.subr.mxu0 0.0
    %5457 = vmatpush1.msra.mxu0 0.0
    %5458 = vmatprep.subr.mxu0 0.0
    %5459 = vmatpush1.msra.mxu0 0.0
    %5460 = vmatprep.subr.mxu0 0.0
    %5461 = vmatpush1.msra.mxu0 0.0
    %5462 = vmatprep.subr.mxu0 0.0
    %5463 = vmatpush1.msra.mxu0 0.0
    %5464 = vmatprep.subr.mxu0 0.0
    %5465 = vmatpush1.msra.mxu0 0.0
    %5466 = vmatprep.subr.mxu0 0.0
    %5467 = vmatpush1.msra.mxu0 0.0
    %5468 = vmatprep.subr.mxu0 0.0
    %5469 = vmatpush1.msra.mxu0 0.0
    %5470 = vmatprep.subr.mxu0 0.0
    %5471 = vmatpush1.msra.mxu0 0.0
    %5472 = vmatprep.subr.mxu0 0.0
    %5473 = vmatpush1.msra.mxu0 0.0
    %5474 = vmatprep.subr.mxu0 0.0
    %5475 = vmatpush1.msra.mxu0 0.0
    %5476 = vmatprep.subr.mxu0 0.0
    %5477 = vmatpush1.msra.mxu0 0.0
    %5478 = vmatprep.subr.mxu0 0.0
    %5479 = vmatpush1.msra.mxu0 0.0
    %5480 = vmatprep.subr.mxu0 0.0
    %5481 = vmatpush1.msra.mxu0 0.0
    %5482 = vmatprep.subr.mxu0 0.0
    %5483 = vmatpush1.msra.mxu0 %v5148
    %5484 = vmatprep.subr.mxu0 0.0
    %5485 = vmatpush1.msra.mxu0 %v5145
    %5486 = vmatprep.subr.mxu0 0.0
    %5487 = vmatpush2.msra.mxu0 0.0
    %5488 = vmatprep.subr.mxu0 0.0
    %5489 = vmatpush2.msra.mxu0 0.0
    %5490 = vmatprep.subr.mxu0 0.0
    %5491 = vmatpush2.msra.mxu0 0.0
    %5492 = vmatprep.subr.mxu0 0.0
    %5493 = vmatpush2.msra.mxu0 0.0
    %5494 = vmatprep.subr.mxu0 0.0
    %5495 = vmatpush2.msra.mxu0 0.0
    %5496 = vmatprep.subr.mxu0 0.0
    %5497 = vmatpush2.msra.mxu0 0.0
    %5498 = vmatprep.subr.mxu0 0.0
    %5499 = vmatpush2.msra.mxu0 0.0
    %5500 = vmatprep.subr.mxu0 0.0
    %5501 = vmatpush2.msra.mxu0 0.0
    %5502 = vmatprep.subr.mxu0 0.0
    %5503 = vmatpush2.msra.mxu0 0.0
    %5504 = vmatprep.subr.mxu0 0.0
    %5505 = vmatpush2.msra.mxu0 0.0
    %5506 = vmatprep.subr.mxu0 0.0
    %5507 = vmatpush2.msra.mxu0 0.0
    %5508 = vmatprep.subr.mxu0 0.0
    %5509 = vmatpush2.msra.mxu0 0.0
    %5510 = vmatprep.subr.mxu0 0.0
    %5511 = vmatpush2.msra.mxu0 0.0
    %5512 = vmatprep.subr.mxu0 0.0
    %5513 = vmatpush2.msra.mxu0 0.0
    %5514 = vmatprep.subr.mxu0 0.0
    %5515 = vmatpush2.msra.mxu0 0.0
    %5516 = vmatprep.subr.mxu0 0.0
    %5517 = vmatpush2.msra.mxu0 0.0
    %5518 = vmatprep.mubr.f32.mxu0 0.0
    %5519 = vmatmul.mubr.f32.gmra.mxu0 %v5381
    %v5520 = vpop.f32.mrf.mxu0
    %v5521 = vadd.f32 %v5343, %v5520
    %v5522 = vpop.f32.mrf.mxu0
    %5523 = vdwg.mxu0
    %5528 = vset.pattern.permute.xlu0 0
    %5529 = vperm.xlu0 %5528, %v5131
    %v5530 = vpop.permute.xlu0 %5529
    %5531 = vset.pattern.permute.xlu0 0
    %5532 = vperm.xlu0 %5531, %v5132
    %v5533 = vpop.permute.xlu0 %5532
    %5534 = vset.pattern.permute.xlu0 0
    %5535 = vperm.xlu0 %5534, %v5139
    %v5536 = vpop.permute.xlu0 %5535
    %5537 = vset.pattern.permute.xlu0 0
    %5538 = vperm.xlu0 %5537, %v5140
    %v5539 = vpop.permute.xlu0 %5538
    %v5540 = vlaneseq
    %v5541 = vshrl.u32 %v5540, 7
    %v5542 = vsub.s32 %v2226, %v5541
    %v5543 = vrot.slane %v5530, %v5542
    %v5544 = vlaneseq
    %v5545 = vshrl.u32 %v5544, 7
    %v5546 = vsub.s32 %v2231, %v5545
    %v5547 = vrot.slane %v5533, %v5546
    %v5548 = vsel %vm2236, %v5547, %v5543
    %v5549 = vlaneseq
    %v5550 = vshrl.u32 %v5549, 7
    %v5551 = vsub.s32 %v2226, %v5550
    %v5552 = vrot.slane %v5536, %v5551
    %v5553 = vlaneseq
    %v5554 = vshrl.u32 %v5553, 7
    %v5555 = vsub.s32 %v2231, %v5554
    %v5556 = vrot.slane %v5539, %v5555
    %v5557 = vsel %vm2236, %v5556, %v5552
    %v5558 = vsel %vm2301, %v5557, %v5548
    %v5559 = vsel %vm5202, %v5558, 0
    %5561 = vmatprep.subr.mxu0 0.0
    %5562 = vmatpush1.msra.mxu0 0.0
    %5563 = vmatprep.subr.mxu0 0.0
    %5564 = vmatpush1.msra.mxu0 0.0
    %5565 = vmatprep.subr.mxu0 0.0
    %5566 = vmatpush1.msra.mxu0 0.0
    %5567 = vmatprep.subr.mxu0 0.0
    %5568 = vmatpush1.msra.mxu0 0.0
    %5569 = vmatprep.subr.mxu0 0.0
    %5570 = vmatpush1.msra.mxu0 0.0
    %5571 = vmatprep.subr.mxu0 0.0
    %5572 = vmatpush1.msra.mxu0 0.0
    %5573 = vmatprep.subr.mxu0 0.0
    %5574 = vmatpush1.msra.mxu0 0.0
    %5575 = vmatprep.subr.mxu0 0.0
    %5576 = vmatpush1.msra.mxu0 0.0
    %5577 = vmatprep.subr.mxu0 0.0
    %5578 = vmatpush1.msra.mxu0 0.0
    %5579 = vmatprep.subr.mxu0 0.0
    %5580 = vmatpush1.msra.mxu0 0.0
    %5581 = vmatprep.subr.mxu0 0.0
    %5582 = vmatpush1.msra.mxu0 0.0
    %5583 = vmatprep.subr.mxu0 0.0
    %5584 = vmatpush1.msra.mxu0 0.0
    %5585 = vmatprep.subr.mxu0 0.0
    %5586 = vmatpush1.msra.mxu0 0.0
    %5587 = vmatprep.subr.mxu0 0.0
    %5588 = vmatpush1.msra.mxu0 0.0
    %5589 = vmatprep.subr.mxu0 %v5159
    %5590 = vmatpush1.msra.mxu0 %v5158
    %5591 = vmatprep.subr.mxu0 %v5156
    %5592 = vmatpush1.msra.mxu0 %v5155
    %5593 = vmatprep.subr.mxu0 0.0
    %5594 = vmatpush2.msra.mxu0 0.0
    %5595 = vmatprep.subr.mxu0 0.0
    %5596 = vmatpush2.msra.mxu0 0.0
    %5597 = vmatprep.subr.mxu0 0.0
    %5598 = vmatpush2.msra.mxu0 0.0
    %5599 = vmatprep.subr.mxu0 0.0
    %5600 = vmatpush2.msra.mxu0 0.0
    %5601 = vmatprep.subr.mxu0 0.0
    %5602 = vmatpush2.msra.mxu0 0.0
    %5603 = vmatprep.subr.mxu0 0.0
    %5604 = vmatpush2.msra.mxu0 0.0
    %5605 = vmatprep.subr.mxu0 0.0
    %5606 = vmatpush2.msra.mxu0 0.0
    %5607 = vmatprep.subr.mxu0 0.0
    %5608 = vmatpush2.msra.mxu0 0.0
    %5609 = vmatprep.subr.mxu0 0.0
    %5610 = vmatpush2.msra.mxu0 0.0
    %5611 = vmatprep.subr.mxu0 0.0
    %5612 = vmatpush2.msra.mxu0 0.0
    %5613 = vmatprep.subr.mxu0 0.0
    %5614 = vmatpush2.msra.mxu0 0.0
    %5615 = vmatprep.subr.mxu0 0.0
    %5616 = vmatpush2.msra.mxu0 0.0
    %5617 = vmatprep.subr.mxu0 0.0
    %5618 = vmatpush2.msra.mxu0 0.0
    %5619 = vmatprep.subr.mxu0 0.0
    %5620 = vmatpush2.msra.mxu0 0.0
    %5621 = vmatprep.subr.mxu0 0.0
    %5622 = vmatpush2.msra.mxu0 0.0
    %5623 = vmatprep.subr.mxu0 0.0
    %5624 = vmatpush2.msra.mxu0 0.0
    %5625 = vmatprep.mubr.f32.mxu0 0.0
    %5626 = vmatmul.mubr.f32.gmra.mxu0 %v5559
    %v5627 = vpop.f32.mrf.mxu0
    %v5628 = vadd.f32 0.0, %v5627
    %v5629 = vpop.f32.mrf.mxu0
    %v5630 = vadd.f32 0.0, %v5629
    %5631 = vdwg.mxu0
    %5632 = vmatprep.subr.mxu0 0.0
    %5633 = vmatpush1.msra.mxu0 0.0
    %5634 = vmatprep.subr.mxu0 0.0
    %5635 = vmatpush1.msra.mxu0 0.0
    %5636 = vmatprep.subr.mxu0 0.0
    %5637 = vmatpush1.msra.mxu0 0.0
    %5638 = vmatprep.subr.mxu0 0.0
    %5639 = vmatpush1.msra.mxu0 0.0
    %5640 = vmatprep.subr.mxu0 0.0
    %5641 = vmatpush1.msra.mxu0 0.0
    %5642 = vmatprep.subr.mxu0 0.0
    %5643 = vmatpush1.msra.mxu0 0.0
    %5644 = vmatprep.subr.mxu0 0.0
    %5645 = vmatpush1.msra.mxu0 0.0
    %5646 = vmatprep.subr.mxu0 0.0
    %5647 = vmatpush1.msra.mxu0 0.0
    %5648 = vmatprep.subr.mxu0 0.0
    %5649 = vmatpush1.msra.mxu0 0.0
    %5650 = vmatprep.subr.mxu0 0.0
    %5651 = vmatpush1.msra.mxu0 0.0
    %5652 = vmatprep.subr.mxu0 0.0
    %5653 = vmatpush1.msra.mxu0 0.0
    %5654 = vmatprep.subr.mxu0 0.0
    %5655 = vmatpush1.msra.mxu0 0.0
    %5656 = vmatprep.subr.mxu0 0.0
    %5657 = vmatpush1.msra.mxu0 0.0
    %5658 = vmatprep.subr.mxu0 0.0
    %5659 = vmatpush1.msra.mxu0 0.0
    %5660 = vmatprep.subr.mxu0 0.0
    %5661 = vmatpush1.msra.mxu0 %v5160
    %5662 = vmatprep.subr.mxu0 0.0
    %5663 = vmatpush1.msra.mxu0 %v5157
    %5664 = vmatprep.subr.mxu0 0.0
    %5665 = vmatpush2.msra.mxu0 0.0
    %5666 = vmatprep.subr.mxu0 0.0
    %5667 = vmatpush2.msra.mxu0 0.0
    %5668 = vmatprep.subr.mxu0 0.0
    %5669 = vmatpush2.msra.mxu0 0.0
    %5670 = vmatprep.subr.mxu0 0.0
    %5671 = vmatpush2.msra.mxu0 0.0
    %5672 = vmatprep.subr.mxu0 0.0
    %5673 = vmatpush2.msra.mxu0 0.0
    %5674 = vmatprep.subr.mxu0 0.0
    %5675 = vmatpush2.msra.mxu0 0.0
    %5676 = vmatprep.subr.mxu0 0.0
    %5677 = vmatpush2.msra.mxu0 0.0
    %5678 = vmatprep.subr.mxu0 0.0
    %5679 = vmatpush2.msra.mxu0 0.0
    %5680 = vmatprep.subr.mxu0 0.0
    %5681 = vmatpush2.msra.mxu0 0.0
    %5682 = vmatprep.subr.mxu0 0.0
    %5683 = vmatpush2.msra.mxu0 0.0
    %5684 = vmatprep.subr.mxu0 0.0
    %5685 = vmatpush2.msra.mxu0 0.0
    %5686 = vmatprep.subr.mxu0 0.0
    %5687 = vmatpush2.msra.mxu0 0.0
    %5688 = vmatprep.subr.mxu0 0.0
    %5689 = vmatpush2.msra.mxu0 0.0
    %5690 = vmatprep.subr.mxu0 0.0
    %5691 = vmatpush2.msra.mxu0 0.0
    %5692 = vmatprep.subr.mxu0 0.0
    %5693 = vmatpush2.msra.mxu0 0.0
    %5694 = vmatprep.subr.mxu0 0.0
    %5695 = vmatpush2.msra.mxu0 0.0
    %5696 = vmatprep.mubr.f32.mxu0 0.0
    %5697 = vmatmul.mubr.f32.gmra.mxu0 %v5559
    %v5698 = vpop.f32.mrf.mxu0
    %v5699 = vadd.f32 0.0, %v5698
    %v5700 = vpop.f32.mrf.mxu0
    %5701 = vdwg.mxu0
    %v5702 = vadd.f32 %v5450, %v5628
    %v5703 = vadd.f32 %v5452, %v5630
    %v5704 = vadd.f32 %v5521, %v5699
    %5709 = vset.pattern.permute.xlu0 0
    %5710 = vperm.xlu0 %5709, %v5133
    %v5711 = vpop.permute.xlu0 %5710
    %5712 = vset.pattern.permute.xlu0 0
    %5713 = vperm.xlu0 %5712, %v5134
    %v5714 = vpop.permute.xlu0 %5713
    %5715 = vset.pattern.permute.xlu0 0
    %5716 = vperm.xlu0 %5715, %v5141
    %v5717 = vpop.permute.xlu0 %5716
    %5718 = vset.pattern.permute.xlu0 0
    %5719 = vperm.xlu0 %5718, %v5142
    %v5720 = vpop.permute.xlu0 %5719
    %v5721 = vlaneseq
    %v5722 = vshrl.u32 %v5721, 7
    %v5723 = vsub.s32 %v2226, %v5722
    %v5724 = vrot.slane %v5711, %v5723
    %v5725 = vlaneseq
    %v5726 = vshrl.u32 %v5725, 7
    %v5727 = vsub.s32 %v2231, %v5726
    %v5728 = vrot.slane %v5714, %v5727
    %v5729 = vsel %vm2236, %v5728, %v5724
    %v5730 = vlaneseq
    %v5731 = vshrl.u32 %v5730, 7
    %v5732 = vsub.s32 %v2226, %v5731
    %v5733 = vrot.slane %v5717, %v5732
    %v5734 = vlaneseq
    %v5735 = vshrl.u32 %v5734, 7
    %v5736 = vsub.s32 %v2231, %v5735
    %v5737 = vrot.slane %v5720, %v5736
    %v5738 = vsel %vm2236, %v5737, %v5733
    %v5739 = vsel %vm2301, %v5738, %v5729
    %v5740 = vsel %vm5202, %v5739, 0
    %5742 = vmatprep.subr.mxu0 0.0
    %5743 = vmatpush1.msra.mxu0 0.0
    %5744 = vmatprep.subr.mxu0 0.0
    %5745 = vmatpush1.msra.mxu0 0.0
    %5746 = vmatprep.subr.mxu0 0.0
    %5747 = vmatpush1.msra.mxu0 0.0
    %5748 = vmatprep.subr.mxu0 0.0
    %5749 = vmatpush1.msra.mxu0 0.0
    %5750 = vmatprep.subr.mxu0 0.0
    %5751 = vmatpush1.msra.mxu0 0.0
    %5752 = vmatprep.subr.mxu0 0.0
    %5753 = vmatpush1.msra.mxu0 0.0
    %5754 = vmatprep.subr.mxu0 0.0
    %5755 = vmatpush1.msra.mxu0 0.0
    %5756 = vmatprep.subr.mxu0 0.0
    %5757 = vmatpush1.msra.mxu0 0.0
    %5758 = vmatprep.subr.mxu0 0.0
    %5759 = vmatpush1.msra.mxu0 0.0
    %5760 = vmatprep.subr.mxu0 0.0
    %5761 = vmatpush1.msra.mxu0 0.0
    %5762 = vmatprep.subr.mxu0 0.0
    %5763 = vmatpush1.msra.mxu0 0.0
    %5764 = vmatprep.subr.mxu0 0.0
    %5765 = vmatpush1.msra.mxu0 0.0
    %5766 = vmatprep.subr.mxu0 0.0
    %5767 = vmatpush1.msra.mxu0 0.0
    %5768 = vmatprep.subr.mxu0 0.0
    %5769 = vmatpush1.msra.mxu0 0.0
    %5770 = vmatprep.subr.mxu0 %v5165
    %5771 = vmatpush1.msra.mxu0 %v5164
    %5772 = vmatprep.subr.mxu0 %v5162
    %5773 = vmatpush1.msra.mxu0 %v5161
    %5774 = vmatprep.subr.mxu0 0.0
    %5775 = vmatpush2.msra.mxu0 0.0
    %5776 = vmatprep.subr.mxu0 0.0
    %5777 = vmatpush2.msra.mxu0 0.0
    %5778 = vmatprep.subr.mxu0 0.0
    %5779 = vmatpush2.msra.mxu0 0.0
    %5780 = vmatprep.subr.mxu0 0.0
    %5781 = vmatpush2.msra.mxu0 0.0
    %5782 = vmatprep.subr.mxu0 0.0
    %5783 = vmatpush2.msra.mxu0 0.0
    %5784 = vmatprep.subr.mxu0 0.0
    %5785 = vmatpush2.msra.mxu0 0.0
    %5786 = vmatprep.subr.mxu0 0.0
    %5787 = vmatpush2.msra.mxu0 0.0
    %5788 = vmatprep.subr.mxu0 0.0
    %5789 = vmatpush2.msra.mxu0 0.0
    %5790 = vmatprep.subr.mxu0 0.0
    %5791 = vmatpush2.msra.mxu0 0.0
    %5792 = vmatprep.subr.mxu0 0.0
    %5793 = vmatpush2.msra.mxu0 0.0
    %5794 = vmatprep.subr.mxu0 0.0
    %5795 = vmatpush2.msra.mxu0 0.0
    %5796 = vmatprep.subr.mxu0 0.0
    %5797 = vmatpush2.msra.mxu0 0.0
    %5798 = vmatprep.subr.mxu0 0.0
    %5799 = vmatpush2.msra.mxu0 0.0
    %5800 = vmatprep.subr.mxu0 0.0
    %5801 = vmatpush2.msra.mxu0 0.0
    %5802 = vmatprep.subr.mxu0 0.0
    %5803 = vmatpush2.msra.mxu0 0.0
    %5804 = vmatprep.subr.mxu0 0.0
    %5805 = vmatpush2.msra.mxu0 0.0
    %5806 = vmatprep.mubr.f32.mxu0 0.0
    %5807 = vmatmul.mubr.f32.gmra.mxu0 %v5740
    %v5808 = vpop.f32.mrf.mxu0
    %v5809 = vadd.f32 0.0, %v5808
    %v5810 = vpop.f32.mrf.mxu0
    %v5811 = vadd.f32 0.0, %v5810
    %5812 = vdwg.mxu0
    %5813 = vmatprep.subr.mxu0 0.0
    %5814 = vmatpush1.msra.mxu0 0.0
    %5815 = vmatprep.subr.mxu0 0.0
    %5816 = vmatpush1.msra.mxu0 0.0
    %5817 = vmatprep.subr.mxu0 0.0
    %5818 = vmatpush1.msra.mxu0 0.0
    %5819 = vmatprep.subr.mxu0 0.0
    %5820 = vmatpush1.msra.mxu0 0.0
    %5821 = vmatprep.subr.mxu0 0.0
    %5822 = vmatpush1.msra.mxu0 0.0
    %5823 = vmatprep.subr.mxu0 0.0
    %5824 = vmatpush1.msra.mxu0 0.0
    %5825 = vmatprep.subr.mxu0 0.0
    %5826 = vmatpush1.msra.mxu0 0.0
    %5827 = vmatprep.subr.mxu0 0.0
    %5828 = vmatpush1.msra.mxu0 0.0
    %5829 = vmatprep.subr.mxu0 0.0
    %5830 = vmatpush1.msra.mxu0 0.0
    %5831 = vmatprep.subr.mxu0 0.0
    %5832 = vmatpush1.msra.mxu0 0.0
    %5833 = vmatprep.subr.mxu0 0.0
    %5834 = vmatpush1.msra.mxu0 0.0
    %5835 = vmatprep.subr.mxu0 0.0
    %5836 = vmatpush1.msra.mxu0 0.0
    %5837 = vmatprep.subr.mxu0 0.0
    %5838 = vmatpush1.msra.mxu0 0.0
    %5839 = vmatprep.subr.mxu0 0.0
    %5840 = vmatpush1.msra.mxu0 0.0
    %5841 = vmatprep.subr.mxu0 0.0
    %5842 = vmatpush1.msra.mxu0 %v5166
    %5843 = vmatprep.subr.mxu0 0.0
    %5844 = vmatpush1.msra.mxu0 %v5163
    %5845 = vmatprep.subr.mxu0 0.0
    %5846 = vmatpush2.msra.mxu0 0.0
    %5847 = vmatprep.subr.mxu0 0.0
    %5848 = vmatpush2.msra.mxu0 0.0
    %5849 = vmatprep.subr.mxu0 0.0
    %5850 = vmatpush2.msra.mxu0 0.0
    %5851 = vmatprep.subr.mxu0 0.0
    %5852 = vmatpush2.msra.mxu0 0.0
    %5853 = vmatprep.subr.mxu0 0.0
    %5854 = vmatpush2.msra.mxu0 0.0
    %5855 = vmatprep.subr.mxu0 0.0
    %5856 = vmatpush2.msra.mxu0 0.0
    %5857 = vmatprep.subr.mxu0 0.0
    %5858 = vmatpush2.msra.mxu0 0.0
    %5859 = vmatprep.subr.mxu0 0.0
    %5860 = vmatpush2.msra.mxu0 0.0
    %5861 = vmatprep.subr.mxu0 0.0
    %5862 = vmatpush2.msra.mxu0 0.0
    %5863 = vmatprep.subr.mxu0 0.0
    %5864 = vmatpush2.msra.mxu0 0.0
    %5865 = vmatprep.subr.mxu0 0.0
    %5866 = vmatpush2.msra.mxu0 0.0
    %5867 = vmatprep.subr.mxu0 0.0
    %5868 = vmatpush2.msra.mxu0 0.0
    %5869 = vmatprep.subr.mxu0 0.0
    %5870 = vmatpush2.msra.mxu0 0.0
    %5871 = vmatprep.subr.mxu0 0.0
    %5872 = vmatpush2.msra.mxu0 0.0
    %5873 = vmatprep.subr.mxu0 0.0
    %5874 = vmatpush2.msra.mxu0 0.0
    %5875 = vmatprep.subr.mxu0 0.0
    %5876 = vmatpush2.msra.mxu0 0.0
    %5877 = vmatprep.mubr.f32.mxu0 0.0
    %5878 = vmatmul.mubr.f32.gmra.mxu0 %v5740
    %v5879 = vpop.f32.mrf.mxu0
    %v5880 = vadd.f32 0.0, %v5879
    %v5881 = vpop.f32.mrf.mxu0
    %5882 = vdwg.mxu0
    %v5883 = vadd.f32 %v5702, %v5809
    %v5884 = vadd.f32 %v5703, %v5811
    %v5885 = vadd.f32 %v5704, %v5880
    %v5886 = vld [vmem:[%s3] sm:$0x7]
    %v5888 = vlaneseq
    %v5889 = vshrl.u32 %v5888, 7
    %v5890 = vsub.s32 0, %v5889
    %v5891 = vrot.slane %v5886, %v5890
    %v5892 = vlaneseq
    %v5893 = vshrl.u32 %v5892, 7
    %v5894 = vsub.s32 1, %v5893
    %v5895 = vrot.slane %v5886, %v5894
    %v5896 = vlaneseq
    %v5897 = vshrl.u32 %v5896, 7
    %v5898 = vsub.s32 2, %v5897
    %v5899 = vrot.slane %v5886, %v5898
    %v5903 = vadd.f32 %v5883, %v5891
    %v5904 = vadd.f32 %v5884, %v5895
    %v5905 = vadd.f32 %v5885, %v5899
    %v5906 = vxor.u32 %v5903, 2147483648
    %v5907 = vxor.u32 %v5904, 2147483648
    %v5908 = vxor.u32 %v5905, 2147483648
    %v5909 = vmul.f32 %v5906, 1.442695
    %v5910 = vpow.pop %v5909
    %v5911 = vmul.f32 %v5907, 1.442695
    %v5912 = vpow.pop %v5911
    %v5913 = vmul.f32 %v5908, 1.442695
    %v5914 = vpow.pop %v5913
    %v5915 = vadd.f32 %v5910, 1.0
    %v5916 = vadd.f32 %v5912, 1.0
    %v5917 = vadd.f32 %v5914, 1.0
    %v5918 = vrcp.pop %v5915
    %v5919 = vmul.f32 1.0, %v5918
    %v5920 = vrcp.pop %v5916
    %v5921 = vmul.f32 1.0, %v5920
    %v5922 = vrcp.pop %v5917
    %v5923 = vmul.f32 1.0, %v5922
    %v5924 = vld [vmem:[%s4] sm:$0xff]
    %v5925 = vld [vmem:[%s4 + $0x8] sm:$0xff]
    %v5926 = vld [vmem:[%s4 + $0x10] sm:$0xff]
    %v5927 = vld [vmem:[%s4 + $0x18] sm:$0xff]
    %v5928 = vld [vmem:[%s4 + $0x20] sm:$0xff]
    %v5929 = vld [vmem:[%s4 + $0x28] sm:$0xff]
    %v5930 = vld [vmem:[%s4 + $0x30] sm:$0xff]
    %v5931 = vld [vmem:[%s4 + $0x38] sm:$0xff]
    %v5932 = vld [vmem:[%s4 + $0x40] sm:$0xff]
    %v5933 = vld [vmem:[%s4 + $0x48] sm:$0xff]
    %v5934 = vld [vmem:[%s4 + $0x50] sm:$0xff]
    %v5935 = vld [vmem:[%s4 + $0x58] sm:$0xff]
    %v5936 = vld [vmem:[%s4 + $0x60] sm:$0xff]
    %v5937 = vld [vmem:[%s4 + $0x68] sm:$0xff]
    %v5938 = vld [vmem:[%s4 + $0x70] sm:$0xff]
    %v5939 = vld [vmem:[%s4 + $0x78] sm:$0xff]
    %v5940 = vld [vmem:[%s4 + $0x80] sm:$0xff]
    %v5941 = vld [vmem:[%s4 + $0x88] sm:$0xff]
    %v5942 = vld [vmem:[%s4 + $0x90] sm:$0xff]
    %v5943 = vld [vmem:[%s4 + $0x98] sm:$0xff]
    %v5944 = vld [vmem:[%s4 + $0xa0] sm:$0xff]
    %v5945 = vld [vmem:[%s4 + $0xa8] sm:$0xff]
    %v5946 = vld [vmem:[%s4 + $0xb0] sm:$0xff]
    %v5947 = vld [vmem:[%s4 + $0xb8] sm:$0xff]
    %v5948 = vld [vmem:[%s4 + $0xc0] sm:$0xff]
    %v5949 = vld [vmem:[%s4 + $0xc8] sm:$0xff]
    %v5950 = vld [vmem:[%s4 + $0xd0] sm:$0xff]
    %v5951 = vld [vmem:[%s4 + $0xd8] sm:$0xff]
    %v5952 = vld [vmem:[%s4 + $0xe0] sm:$0xff]
    %v5953 = vld [vmem:[%s4 + $0xe8] sm:$0xff]
    %v5954 = vld [vmem:[%s4 + $0xf0] sm:$0xff]
    %v5955 = vld [vmem:[%s4 + $0xf8] sm:$0xff]
    %v5956 = vld [vmem:[%s4 + $0x100] sm:$0xff]
    %v5957 = vld [vmem:[%s4 + $0x108] sm:$0xff]
    %v5958 = vld [vmem:[%s4 + $0x110] sm:$0xff]
    %v5959 = vld [vmem:[%s4 + $0x118] sm:$0xff]
    %v5960 = vld [vmem:[%s4 + $0x120] sm:$0xff]
    %v5961 = vld [vmem:[%s4 + $0x128] sm:$0xff]
    %v5962 = vld [vmem:[%s4 + $0x130] sm:$0xff]
    %v5963 = vld [vmem:[%s4 + $0x138] sm:$0xff]
    %v5964 = vld [vmem:[%s4 + $0x140] sm:$0xff]
    %v5965 = vld [vmem:[%s4 + $0x148] sm:$0xff]
    %v5966 = vld [vmem:[%s4 + $0x150] sm:$0xff]
    %v5967 = vld [vmem:[%s4 + $0x158] sm:$0xff]
    %v5968 = vld [vmem:[%s4 + $0x160] sm:$0xff]
    %v5969 = vld [vmem:[%s4 + $0x168] sm:$0xff]
    %v5970 = vld [vmem:[%s4 + $0x170] sm:$0xff]
    %v5971 = vld [vmem:[%s4 + $0x178] sm:$0xff]
    %v5972 = vld [vmem:[%s4 + $0x180] sm:$0xff]
    %v5973 = vld [vmem:[%s4 + $0x188] sm:$0xff]
    %v5974 = vld [vmem:[%s4 + $0x190] sm:$0xff]
    %v5975 = vld [vmem:[%s4 + $0x198] sm:$0xff]
    %v5976 = vld [vmem:[%s4 + $0x1a0] sm:$0xff]
    %v5977 = vld [vmem:[%s4 + $0x1a8] sm:$0xff]
    %v5978 = vld [vmem:[%s4 + $0x1b0] sm:$0xff]
    %v5979 = vld [vmem:[%s4 + $0x1b8] sm:$0xff]
    %v5980 = vld [vmem:[%s4 + $0x1c0] sm:$0xff]
    %v5981 = vld [vmem:[%s4 + $0x1c8] sm:$0xff]
    %v5982 = vld [vmem:[%s4 + $0x1d0] sm:$0xff]
    %v5983 = vld [vmem:[%s4 + $0x1d8] sm:$0xff]
    %v5984 = vld [vmem:[%s4 + $0x1e0] sm:$0xff]
    %v5985 = vld [vmem:[%s4 + $0x1e8] sm:$0xff]
    %v5986 = vld [vmem:[%s4 + $0x1f0] sm:$0xff]
    %v5987 = vld [vmem:[%s4 + $0x1f8] sm:$0xff]
    %v5988 = vld [vmem:[%s4 + $0x200] sm:$0xff]
    %v5989 = vld [vmem:[%s4 + $0x208] sm:$0xff]
    %v5990 = vld [vmem:[%s4 + $0x210] sm:$0xff]
    %v5991 = vld [vmem:[%s4 + $0x218] sm:$0xff]
    %v5992 = vld [vmem:[%s4 + $0x220] sm:$0xff]
    %v5993 = vld [vmem:[%s4 + $0x228] sm:$0xff]
    %v5994 = vld [vmem:[%s4 + $0x230] sm:$0xff]
    %v5995 = vld [vmem:[%s4 + $0x238] sm:$0xff]
    %v5996 = vld [vmem:[%s4 + $0x240] sm:$0xff]
    %v5997 = vld [vmem:[%s4 + $0x248] sm:$0xff]
    %v5998 = vld [vmem:[%s4 + $0x250] sm:$0xff]
    %v5999 = vld [vmem:[%s4 + $0x258] sm:$0xff]
    %v6000 = vld [vmem:[%s4 + $0x260] sm:$0xff]
    %v6001 = vld [vmem:[%s4 + $0x268] sm:$0xff]
    %v6002 = vld [vmem:[%s4 + $0x270] sm:$0xff]
    %v6003 = vld [vmem:[%s4 + $0x278] sm:$0xff]
    %v6004 = vld [vmem:[%s4 + $0x280] sm:$0xff]
    %v6005 = vld [vmem:[%s4 + $0x288] sm:$0xff]
    %v6006 = vld [vmem:[%s4 + $0x290] sm:$0xff]
    %v6007 = vld [vmem:[%s4 + $0x298] sm:$0xff]
    %v6008 = vld [vmem:[%s4 + $0x2a0] sm:$0xff]
    %v6009 = vld [vmem:[%s4 + $0x2a8] sm:$0xff]
    %v6010 = vld [vmem:[%s4 + $0x2b0] sm:$0xff]
    %v6011 = vld [vmem:[%s4 + $0x2b8] sm:$0xff]
    %v6012 = vld [vmem:[%s4 + $0x2c0] sm:$0xff]
    %v6013 = vld [vmem:[%s4 + $0x2c8] sm:$0xff]
    %v6014 = vld [vmem:[%s4 + $0x2d0] sm:$0xff]
    %v6015 = vld [vmem:[%s4 + $0x2d8] sm:$0xff]
    %v6016 = vld [vmem:[%s4 + $0x2e0] sm:$0xff]
    %v6017 = vld [vmem:[%s4 + $0x2e8] sm:$0xff]
    %v6018 = vld [vmem:[%s4 + $0x2f0] sm:$0xff]
    %v6019 = vld [vmem:[%s4 + $0x2f8] sm:$0xff]
    %v6020 = vld [vmem:[%s5] sm:$0x3]
    %v6022 = vlaneseq
    %v6023 = vshrl.u32 %v6022, 7
    %v6024 = vsub.s32 0, %v6023
    %v6025 = vrot.slane %v6020, %v6024
    %v6026 = vlaneseq
    %v6027 = vshrl.u32 %v6026, 7
    %v6028 = vsub.s32 1, %v6027
    %v6029 = vrot.slane %v6020, %v6028
    %6032 = vmatprep.subr.mxu0 %v5955
    %6033 = vmatpush1.msra.mxu0 %v5954
    %6034 = vmatprep.subr.mxu0 %v5953
    %6035 = vmatpush1.msra.mxu0 %v5952
    %6036 = vmatprep.subr.mxu0 %v5951
    %6037 = vmatpush1.msra.mxu0 %v5950
    %6038 = vmatprep.subr.mxu0 %v5949
    %6039 = vmatpush1.msra.mxu0 %v5948
    %6040 = vmatprep.subr.mxu0 %v5947
    %6041 = vmatpush1.msra.mxu0 %v5946
    %6042 = vmatprep.subr.mxu0 %v5945
    %6043 = vmatpush1.msra.mxu0 %v5944
    %6044 = vmatprep.subr.mxu0 %v5943
    %6045 = vmatpush1.msra.mxu0 %v5942
    %6046 = vmatprep.subr.mxu0 %v5941
    %6047 = vmatpush1.msra.mxu0 %v5940
    %6048 = vmatprep.subr.mxu0 %v5939
    %6049 = vmatpush1.msra.mxu0 %v5938
    %6050 = vmatprep.subr.mxu0 %v5937
    %6051 = vmatpush1.msra.mxu0 %v5936
    %6052 = vmatprep.subr.mxu0 %v5935
    %6053 = vmatpush1.msra.mxu0 %v5934
    %6054 = vmatprep.subr.mxu0 %v5933
    %6055 = vmatpush1.msra.mxu0 %v5932
    %6056 = vmatprep.subr.mxu0 %v5931
    %6057 = vmatpush1.msra.mxu0 %v5930
    %6058 = vmatprep.subr.mxu0 %v5929
    %6059 = vmatpush1.msra.mxu0 %v5928
    %6060 = vmatprep.subr.mxu0 %v5927
    %6061 = vmatpush1.msra.mxu0 %v5926
    %6062 = vmatprep.subr.mxu0 %v5925
    %6063 = vmatpush1.msra.mxu0 %v5924
    %6064 = vmatprep.subr.mxu0 %v5987
    %6065 = vmatpush2.msra.mxu0 %v5986
    %6066 = vmatprep.subr.mxu0 %v5985
    %6067 = vmatpush2.msra.mxu0 %v5984
    %6068 = vmatprep.subr.mxu0 %v5983
    %6069 = vmatpush2.msra.mxu0 %v5982
    %6070 = vmatprep.subr.mxu0 %v5981
    %6071 = vmatpush2.msra.mxu0 %v5980
    %6072 = vmatprep.subr.mxu0 %v5979
    %6073 = vmatpush2.msra.mxu0 %v5978
    %6074 = vmatprep.subr.mxu0 %v5977
    %6075 = vmatpush2.msra.mxu0 %v5976
    %6076 = vmatprep.subr.mxu0 %v5975
    %6077 = vmatpush2.msra.mxu0 %v5974
    %6078 = vmatprep.subr.mxu0 %v5973
    %6079 = vmatpush2.msra.mxu0 %v5972
    %6080 = vmatprep.subr.mxu0 %v5971
    %6081 = vmatpush2.msra.mxu0 %v5970
    %6082 = vmatprep.subr.mxu0 %v5969
    %6083 = vmatpush2.msra.mxu0 %v5968
    %6084 = vmatprep.subr.mxu0 %v5967
    %6085 = vmatpush2.msra.mxu0 %v5966
    %6086 = vmatprep.subr.mxu0 %v5965
    %6087 = vmatpush2.msra.mxu0 %v5964
    %6088 = vmatprep.subr.mxu0 %v5963
    %6089 = vmatpush2.msra.mxu0 %v5962
    %6090 = vmatprep.subr.mxu0 %v5961
    %6091 = vmatpush2.msra.mxu0 %v5960
    %6092 = vmatprep.subr.mxu0 %v5959
    %6093 = vmatpush2.msra.mxu0 %v5958
    %6094 = vmatprep.subr.mxu0 %v5957
    %6095 = vmatpush2.msra.mxu0 %v5956
    %6096 = vmatprep.mubr.f32.mxu0 %v5921
    %6097 = vmatmul.mubr.f32.gmra.mxu0 %v5919
    %v6098 = vpop.f32.mrf.mxu0
    %v6099 = vadd.f32 %v6025, %v6098
    %v6100 = vpop.f32.mrf.mxu0
    %v6101 = vadd.f32 %v6029, %v6100
    %6102 = vdwg.mxu0
    %6103 = vmatprep.subr.mxu0 %v6019
    %6104 = vmatpush1.msra.mxu0 %v6018
    %6105 = vmatprep.subr.mxu0 %v6017
    %6106 = vmatpush1.msra.mxu0 %v6016
    %6107 = vmatprep.subr.mxu0 %v6015
    %6108 = vmatpush1.msra.mxu0 %v6014
    %6109 = vmatprep.subr.mxu0 %v6013
    %6110 = vmatpush1.msra.mxu0 %v6012
    %6111 = vmatprep.subr.mxu0 %v6011
    %6112 = vmatpush1.msra.mxu0 %v6010
    %6113 = vmatprep.subr.mxu0 %v6009
    %6114 = vmatpush1.msra.mxu0 %v6008
    %6115 = vmatprep.subr.mxu0 %v6007
    %6116 = vmatpush1.msra.mxu0 %v6006
    %6117 = vmatprep.subr.mxu0 %v6005
    %6118 = vmatpush1.msra.mxu0 %v6004
    %6119 = vmatprep.subr.mxu0 %v6003
    %6120 = vmatpush1.msra.mxu0 %v6002
    %6121 = vmatprep.subr.mxu0 %v6001
    %6122 = vmatpush1.msra.mxu0 %v6000
    %6123 = vmatprep.subr.mxu0 %v5999
    %6124 = vmatpush1.msra.mxu0 %v5998
    %6125 = vmatprep.subr.mxu0 %v5997
    %6126 = vmatpush1.msra.mxu0 %v5996
    %6127 = vmatprep.subr.mxu0 %v5995
    %6128 = vmatpush1.msra.mxu0 %v5994
    %6129 = vmatprep.subr.mxu0 %v5993
    %6130 = vmatpush1.msra.mxu0 %v5992
    %6131 = vmatprep.subr.mxu0 %v5991
    %6132 = vmatpush1.msra.mxu0 %v5990
    %6133 = vmatprep.subr.mxu0 %v5989
    %6134 = vmatpush1.msra.mxu0 %v5988
    %6135 = vmatprep.subr.mxu0 0.0
    %6136 = vmatpush2.msra.mxu0 0.0
    %6137 = vmatprep.subr.mxu0 0.0
    %6138 = vmatpush2.msra.mxu0 0.0
    %6139 = vmatprep.subr.mxu0 0.0
    %6140 = vmatpush2.msra.mxu0 0.0
    %6141 = vmatprep.subr.mxu0 0.0
    %6142 = vmatpush2.msra.mxu0 0.0
    %6143 = vmatprep.subr.mxu0 0.0
    %6144 = vmatpush2.msra.mxu0 0.0
    %6145 = vmatprep.subr.mxu0 0.0
    %6146 = vmatpush2.msra.mxu0 0.0
    %6147 = vmatprep.subr.mxu0 0.0
    %6148 = vmatpush2.msra.mxu0 0.0
    %6149 = vmatprep.subr.mxu0 0.0
    %6150 = vmatpush2.msra.mxu0 0.0
    %6151 = vmatprep.subr.mxu0 0.0
    %6152 = vmatpush2.msra.mxu0 0.0
    %6153 = vmatprep.subr.mxu0 0.0
    %6154 = vmatpush2.msra.mxu0 0.0
    %6155 = vmatprep.subr.mxu0 0.0
    %6156 = vmatpush2.msra.mxu0 0.0
    %6157 = vmatprep.subr.mxu0 0.0
    %6158 = vmatpush2.msra.mxu0 0.0
    %6159 = vmatprep.subr.mxu0 0.0
    %6160 = vmatpush2.msra.mxu0 0.0
    %6161 = vmatprep.subr.mxu0 0.0
    %6162 = vmatpush2.msra.mxu0 0.0
    %6163 = vmatprep.subr.mxu0 0.0
    %6164 = vmatpush2.msra.mxu0 0.0
    %6165 = vmatprep.subr.mxu0 0.0
    %6166 = vmatpush2.msra.mxu0 0.0
    %6167 = vmatprep.mubr.f32.mxu0 0.0
    %6168 = vmatmul.mubr.f32.gmra.mxu0 %v5923
    %v6169 = vpop.f32.mrf.mxu0
    %v6170 = vadd.f32 %v6099, %v6169
    %v6171 = vpop.f32.mrf.mxu0
    %v6172 = vadd.f32 %v6101, %v6171
    %6173 = vdwg.mxu0
    %v6174 = vxor.u32 %v6170, 2147483648
    %v6175 = vxor.u32 %v6172, 2147483648
    %v6176 = vmul.f32 %v6174, 1.442695
    %v6177 = vpow.pop %v6176
    %v6178 = vmul.f32 %v6175, 1.442695
    %v6179 = vpow.pop %v6178
    %v6180 = vadd.f32 %v6177, 1.0
    %v6181 = vadd.f32 %v6179, 1.0
    %v6182 = vrcp.pop %v6180
    %v6183 = vmul.f32 1.0, %v6182
    %v6184 = vrcp.pop %v6181
    %v6185 = vmul.f32 1.0, %v6184
    %v6186 = vld [vmem:[%s6] sm:$0xff]
    %v6187 = vld [vmem:[%s6 + $0x8] sm:$0xff]
    %v6188 = vld [vmem:[%s6 + $0x10] sm:$0xff]
    %v6189 = vld [vmem:[%s6 + $0x18] sm:$0xff]
    %v6190 = vld [vmem:[%s6 + $0x20] sm:$0xff]
    %v6191 = vld [vmem:[%s6 + $0x28] sm:$0xff]
    %v6192 = vld [vmem:[%s6 + $0x30] sm:$0xff]
    %v6193 = vld [vmem:[%s6 + $0x38] sm:$0xff]
    %v6194 = vld [vmem:[%s6 + $0x40] sm:$0xff]
    %v6195 = vld [vmem:[%s6 + $0x48] sm:$0xff]
    %v6196 = vld [vmem:[%s6 + $0x50] sm:$0xff]
    %v6197 = vld [vmem:[%s6 + $0x58] sm:$0xff]
    %v6198 = vld [vmem:[%s6 + $0x60] sm:$0xff]
    %v6199 = vld [vmem:[%s6 + $0x68] sm:$0xff]
    %v6200 = vld [vmem:[%s6 + $0x70] sm:$0xff]
    %v6201 = vld [vmem:[%s6 + $0x78] sm:$0xff]
    %v6202 = vld [vmem:[%s6 + $0x80] sm:$0xff]
    %v6203 = vld [vmem:[%s6 + $0x88] sm:$0xff]
    %v6204 = vld [vmem:[%s6 + $0x90] sm:$0xff]
    %v6205 = vld [vmem:[%s6 + $0x98] sm:$0xff]
    %v6206 = vld [vmem:[%s6 + $0xa0] sm:$0xff]
    %v6207 = vld [vmem:[%s6 + $0xa8] sm:$0xff]
    %v6208 = vld [vmem:[%s6 + $0xb0] sm:$0xff]
    %v6209 = vld [vmem:[%s6 + $0xb8] sm:$0xff]
    %v6210 = vld [vmem:[%s6 + $0xc0] sm:$0xff]
    %v6211 = vld [vmem:[%s6 + $0xc8] sm:$0xff]
    %v6212 = vld [vmem:[%s6 + $0xd0] sm:$0xff]
    %v6213 = vld [vmem:[%s6 + $0xd8] sm:$0xff]
    %v6214 = vld [vmem:[%s6 + $0xe0] sm:$0xff]
    %v6215 = vld [vmem:[%s6 + $0xe8] sm:$0xff]
    %v6216 = vld [vmem:[%s6 + $0xf0] sm:$0xff]
    %v6217 = vld [vmem:[%s6 + $0xf8] sm:$0xff]
    %v6218 = vld [vmem:[%s7] sm:$0x1]
    %v6220 = vlaneseq
    %v6221 = vshrl.u32 %v6220, 7
    %v6222 = vsub.s32 0, %v6221
    %v6223 = vrot.slane %v6218, %v6222
    %6225 = vmatprep.subr.mxu0 0.0
    %6226 = vmatpush1.msra.mxu0 %v6201
    %6227 = vmatprep.subr.mxu0 0.0
    %6228 = vmatpush1.msra.mxu0 %v6200
    %6229 = vmatprep.subr.mxu0 0.0
    %6230 = vmatpush1.msra.mxu0 %v6199
    %6231 = vmatprep.subr.mxu0 0.0
    %6232 = vmatpush1.msra.mxu0 %v6198
    %6233 = vmatprep.subr.mxu0 0.0
    %6234 = vmatpush1.msra.mxu0 %v6197
    %6235 = vmatprep.subr.mxu0 0.0
    %6236 = vmatpush1.msra.mxu0 %v6196
    %6237 = vmatprep.subr.mxu0 0.0
    %6238 = vmatpush1.msra.mxu0 %v6195
    %6239 = vmatprep.subr.mxu0 0.0
    %6240 = vmatpush1.msra.mxu0 %v6194
    %6241 = vmatprep.subr.mxu0 0.0
    %6242 = vmatpush1.msra.mxu0 %v6193
    %6243 = vmatprep.subr.mxu0 0.0
    %6244 = vmatpush1.msra.mxu0 %v6192
    %6245 = vmatprep.subr.mxu0 0.0
    %6246 = vmatpush1.msra.mxu0 %v6191
    %6247 = vmatprep.subr.mxu0 0.0
    %6248 = vmatpush1.msra.mxu0 %v6190
    %6249 = vmatprep.subr.mxu0 0.0
    %6250 = vmatpush1.msra.mxu0 %v6189
    %6251 = vmatprep.subr.mxu0 0.0
    %6252 = vmatpush1.msra.mxu0 %v6188
    %6253 = vmatprep.subr.mxu0 0.0
    %6254 = vmatpush1.msra.mxu0 %v6187
    %6255 = vmatprep.subr.mxu0 0.0
    %6256 = vmatpush1.msra.mxu0 %v6186
    %6257 = vmatprep.subr.mxu0 0.0
    %6258 = vmatpush2.msra.mxu0 %v6217
    %6259 = vmatprep.subr.mxu0 0.0
    %6260 = vmatpush2.msra.mxu0 %v6216
    %6261 = vmatprep.subr.mxu0 0.0
    %6262 = vmatpush2.msra.mxu0 %v6215
    %6263 = vmatprep.subr.mxu0 0.0
    %6264 = vmatpush2.msra.mxu0 %v6214
    %6265 = vmatprep.subr.mxu0 0.0
    %6266 = vmatpush2.msra.mxu0 %v6213
    %6267 = vmatprep.subr.mxu0 0.0
    %6268 = vmatpush2.msra.mxu0 %v6212
    %6269 = vmatprep.subr.mxu0 0.0
    %6270 = vmatpush2.msra.mxu0 %v6211
    %6271 = vmatprep.subr.mxu0 0.0
    %6272 = vmatpush2.msra.mxu0 %v6210
    %6273 = vmatprep.subr.mxu0 0.0
    %6274 = vmatpush2.msra.mxu0 %v6209
    %6275 = vmatprep.subr.mxu0 0.0
    %6276 = vmatpush2.msra.mxu0 %v6208
    %6277 = vmatprep.subr.mxu0 0.0
    %6278 = vmatpush2.msra.mxu0 %v6207
    %6279 = vmatprep.subr.mxu0 0.0
    %6280 = vmatpush2.msra.mxu0 %v6206
    %6281 = vmatprep.subr.mxu0 0.0
    %6282 = vmatpush2.msra.mxu0 %v6205
    %6283 = vmatprep.subr.mxu0 0.0
    %6284 = vmatpush2.msra.mxu0 %v6204
    %6285 = vmatprep.subr.mxu0 0.0
    %6286 = vmatpush2.msra.mxu0 %v6203
    %6287 = vmatprep.subr.mxu0 0.0
    %6288 = vmatpush2.msra.mxu0 %v6202
    %6289 = vmatprep.mubr.f32.mxu0 %v6185
    %6290 = vmatmul.mubr.f32.gmra.mxu0 %v6183
    %v6291 = vpop.f32.mrf.mxu0
    %v6292 = vadd.f32 %v6223, %v6291
    %v6293 = vpop.f32.mrf.mxu0
    %6294 = vdwg.mxu0
    %vm6295 = vcmask 517120
    %6296 = vst.msk [vmem:[%s9] sm:$0x3] %vm6295, %v6292
    // Predicated region
    $region34: #{capsule_net_forward.5} parent=1 // pred_check
      _
    $region35: #{capsule_net_forward.5} parent=1 // pred_check_branch
      %6298 = sbr.rel (0) target = $region37
    $region36: #{capsule_net_forward.5} parent=1 // pred_region
      %s6300 = ssub.s32 32, 32
      %6301 = vsyncadd [#allocation3], %s6300
      %s6303 = sshll.u32 [#allocation2], 4
      %s6304 = int_to_ptr.vmem [resolvable:$true] %s6303
      %6306 = dma.vmem_to_hbm [thread:$0]  %s6304, 32, %s8, [#allocation3]
    $region37: #{capsule_net_forward.5} parent=1 // pred_fallthru
      _
    // Predicated region
    $region38: #{capsule_net_forward.5} parent=1 // pred_check
      _
    $region39: #{capsule_net_forward.5} parent=1 // pred_check_branch
      %6308 = sbr.rel (0) target = $region41
    $region40: #{capsule_net_forward.5} parent=1 // pred_region
      _
    $region41: #{capsule_net_forward.5} parent=1 // pred_fallthru
      _
    // Predicated region
    $region42: #{capsule_net_forward.5} parent=1 // pred_check
      _
    $region43: #{capsule_net_forward.5} parent=1 // pred_check_branch
      %6310 = sbr.rel (0) target = $region45
    $region44: #{capsule_net_forward.5} parent=1 // pred_region
      %6311 = dma.done [#allocation3], 32
    $region45: #{capsule_net_forward.5} parent=1 // pred_fallthru
      _
    // Predicated region
    $region46: #{capsule_net_forward.5} parent=1 // pred_check
      _
    $region47: #{capsule_net_forward.5} parent=1 // pred_check_branch
      %6313 = sbr.rel (0) target = $region49
    $region48: #{capsule_net_forward.5} parent=1 // pred_region
      _
    $region49: #{capsule_net_forward.5} parent=1 // pred_fallthru
      _
    %6314 = vsyncpa [#allocation3], 1

</llo_original>
